<compile_context>
chip_gen: v6e
topology: v6e:2x2x1
jax: 0.10.0
libtpu: 0.0.40
codegen_flags: <defaults>
</compile_context>

<pallas_src>
import functools

import jax
import jax.numpy as jnp
from jax.experimental import pallas as pl
from jax.experimental.pallas import tpu as pltpu

EPS = 1e-5  # PyTorch nn.LayerNorm default
_SQRT_HALF = 0.7071067811865476

# Kernel-argument order of the packed parameters (after the features input).
_PARAM_ORDER = (
    'queries', 'nf_gb', 'ne_gb', 'ln_gb',
    'cWq', 'cWkv_t', 'cWo', 'sWqkv', 'sWo', 'W1', 'W2',
    'bvec', 'cbkv', 'sbqkv', 'b1',
)


# ----------------------------- in-kernel math --------------------------------

def _erf(x):
    # TODO(synk): switch to jax.lax.erf if/when Mosaic guarantees an erf
    # lowering; Abramowitz & Stegun 7.1.26 keeps exact-GELU semantics using
    # only exp / reciprocal (EUP) + mul/add (VPU).
    a1, a2, a3, a4, a5 = (0.254829592, -0.284496736, 1.421413741,
                          -1.453152027, 1.061405429)
    p = 0.3275911
    ax = jnp.abs(x)
    t = pl.reciprocal(1.0 + p * ax, approx=True)          # divide -> EUP slot
    poly = ((((a5 * t + a4) * t + a3) * t + a2) * t + a1) * t
    y = 1.0 - poly * jnp.exp(-ax * ax)
    return jnp.where(x >= 0, y, -y)


def _gelu(x):
    # Exact (erf) GELU to match torch.nn.GELU().
    return 0.5 * x * (1.0 + _erf(x * _SQRT_HALF))


# ----------------------------- fused forward kernel --------------------------

def _forward_kernel(feats_ref, q0_ref, nf_ref, ne_ref, lngb_ref,
                    cwq_ref, cwkvt_ref, cwo_ref, swqkv_ref, swo_ref,
                    w1_ref, w2_ref, bvec_ref, cbkv_ref, sbqkv_ref, b1_ref,
                    pred_ref, *, num_heads, depth, dim):
    f32 = jnp.float32
    bf16 = jnp.bfloat16
    C = dim
    hd = C // num_heads

    def ln_rows(x, g, b):
        # LayerNorm over the channel (last) axis; x: (L, C), g/b: (1, C).
        mean = jnp.mean(x, axis=-1, keepdims=True)
        var = jnp.mean(jnp.square(x - mean), axis=-1, keepdims=True)
        return (x - mean) * jax.lax.rsqrt(var + EPS) * g + b

    def softmax(s):
        s = s - jnp.max(s, axis=-1, keepdims=True)
        e = jnp.exp(s)
        return e * pl.reciprocal(jnp.sum(e, axis=-1, keepdims=True), approx=True)

    def merge_heads(outs, wo, bo):
        # concat(head outputs) @ full (C, C) output projection
        o = jnp.concatenate(outs, axis=-1).astype(bf16)                 # (L, C)
        return jnp.dot(o, wo, preferred_element_type=f32) + bo

    def mha_cross(q_full, kv_cn, wo, bo):
        # q_full: (L, C) f32 (scale folded into q); kv_cn: (2C, N) f32 with
        # rows [k ; v] channel-major, so per-head K/V are sublane slices.
        outs = []
        for h in range(num_heads):
            qh = q_full[:, h * hd:(h + 1) * hd].astype(bf16)            # (L, hd)
            kh = kv_cn[h * hd:(h + 1) * hd, :].astype(bf16)             # (hd, N)
            vh = kv_cn[C + h * hd:C + (h + 1) * hd, :].astype(bf16)     # (hd, N)
            s = jnp.dot(qh, kh, preferred_element_type=f32)             # (L, N)
            p = softmax(s).astype(bf16)
            outs.append(jax.lax.dot_general(                            # (L, hd)
                p, vh, (((1,), (1,)), ((), ())), preferred_element_type=f32))
        return merge_heads(outs, wo, bo)

    def mha_self(qkv, wo, bo):
        # qkv: (L, 3C) f32 laid out [q | k | v] (scale folded into q columns).
        outs = []
        for h in range(num_heads):
            qh = qkv[:, h * hd:(h + 1) * hd].astype(bf16)
            kh = qkv[:, C + h * hd:C + (h + 1) * hd].astype(bf16)
            vh = qkv[:, 2 * C + h * hd:2 * C + (h + 1) * hd].astype(bf16)
            s = jax.lax.dot_general(qh, kh, (((1,), (1,)), ((), ())),
                                    preferred_element_type=f32)         # (L, L)
            p = softmax(s).astype(bf16)
            outs.append(jnp.dot(p, vh, preferred_element_type=f32))     # (L, hd)
        return merge_heads(outs, wo, bo)

    # --- prologue: feature LayerNorm over the channel (sublane) axis ---------
    feats = feats_ref[...].astype(f32)                                   # (C, N)
    fmean = jnp.mean(feats, axis=0, keepdims=True)
    fvar = jnp.mean(jnp.square(feats - fmean), axis=0, keepdims=True)
    feats = (feats - fmean) * jax.lax.rsqrt(fvar + EPS)
    feats = feats * nf_ref[0] + nf_ref[1]                                # (C, 1) affine
    feats_bf = feats.astype(bf16)

    cls = q0_ref[...].astype(f32)                                        # (Q, C)

    # --- decoder blocks (static unroll is fine at toy depth/heads) -----------
    for l in range(depth):
        lngb = lngb_ref[l]                                               # (6, C)
        bvec = bvec_ref[l]                                               # (4, C)

        # cross-attention: queries attend to the feature tokens
        y = ln_rows(cls, lngb[0:1], lngb[1:2])
        q_full = jnp.dot(y.astype(bf16), cwq_ref[l],
                         preferred_element_type=f32) + bvec[0:1]         # (Q, C)
        kv_cn = jnp.dot(cwkvt_ref[l], feats_bf,
                        preferred_element_type=f32) + cbkv_ref[l]        # (2C, N)
        cls = cls + mha_cross(q_full, kv_cn, cwo_ref[l], bvec[1:2])

        # self-attention over the queries (fused qkv projection)
        y = ln_rows(cls, lngb[2:3], lngb[3:4])
        qkv = jnp.dot(y.astype(bf16), swqkv_ref[l],
                      preferred_element_type=f32) + sbqkv_ref[l]         # (Q, 3C)
        cls = cls + mha_self(qkv, swo_ref[l], bvec[2:3])

        # MLP with exact (erf) GELU
        y = ln_rows(cls, lngb[4:5], lngb[5:6])
        hid = _gelu(jnp.dot(y.astype(bf16), w1_ref[l],
                            preferred_element_type=f32) + b1_ref[l])
        cls = cls + jnp.dot(hid.astype(bf16), w2_ref[l],
                            preferred_element_type=f32) + bvec[3:4]

    # --- epilogue: final LayerNorm + pred = cls @ feats -> (Q, N) ------------
    cls = ln_rows(cls, ne_ref[0:1], ne_ref[1:2])
    pred = jnp.dot(cls.astype(bf16), feats_bf, preferred_element_type=f32)
    pred_ref[...] = pred.astype(pred_ref.dtype)


# ----------------------------- wrapper ---------------------------------------

def transformer_learner_forward(packed, x, *, num_heads, param_buffers=1):
    B, C, H, W = x.shape
    N = H * W
    Q = packed['queries'].shape[0]
    depth = packed['ln_gb'].shape[0]

    # No transpose: features stay channel-major (B, C, N); lane dim = tokens.
    feats = x.reshape(B, C, N)

    # Parameters never change across the batch grid -> single-buffer them.
    param_kw = ({'pipeline_mode': pl.Buffered(param_buffers)}
                if param_buffers is not None else {})

    in_specs = [pl.BlockSpec((None, C, N), lambda b: (b, 0, 0))]
    args = [feats]
    for name in _PARAM_ORDER:
        a = packed[name]
        zeros = (0,) * a.ndim
        in_specs.append(pl.BlockSpec(a.shape, lambda b, _z=zeros: _z, **param_kw))
        args.append(a)

    pred = pl.pallas_call(
        functools.partial(_forward_kernel, num_heads=num_heads,
                          depth=depth, dim=C),
        out_shape=jax.ShapeDtypeStruct((B, Q, N), x.dtype),
        grid=(B,),  # keep B even on v7x so both TensorCores stay busy
        in_specs=in_specs,
        out_specs=pl.BlockSpec((None, Q, N), lambda b: (b, 0, 0)),
        compiler_params=pltpu.CompilerParams(
            dimension_semantics=("parallel",),
            vmem_limit_bytes=32 * 1024 * 1024,
        ),
    )(*args)

    return pred.reshape(B, Q, H, W)              # (B, num_queries, H, W)


# ----------------------------- params ---------------------------------------

def init_params(key, dim, num_heads, num_queries, branch_depth, mlp_ratio=4.0):
    """Per-layer parameter dicts mirroring the PyTorch module layout.

    Weights use the x @ W (+ b) convention (W has shape (fan_in, fan_out)).
    LayerNorm affines and `queries` are randomized (PyTorch inits them to
    ones/zeros resp. zeros) so the numerical check in __main__ exercises
    every parameter path of the kernel.
    """
    hidden = int(dim * mlp_ratio)
    kq, kln, klayers = jax.random.split(key, 3)
    ln_keys = iter(jax.random.split(kln, 3 * branch_depth + 2))

    def dense(k, fan_in, fan_out):
        kw, kb = jax.random.split(k)
        w = jax.random.normal(kw, (fan_in, fan_out), jnp.float32) * 0.02
        b = jax.random.normal(kb, (fan_out,), jnp.float32) * 0.02
        return w, b

    def ln():
        kg, kb = jax.random.split(next(ln_keys))
        return (1.0 + 0.1 * jax.random.normal(kg, (dim,), jnp.float32),
                0.1 * jax.random.normal(kb, (dim,), jnp.float32))

    layer_keys = jax.random.split(klayers, branch_depth)
    layers = []
    for i in range(branch_depth):
        k = jax.random.split(layer_keys[i], 7)
        Wq, bq = dense(k[0], dim, dim)
        Wkv, bkv = dense(k[1], dim, 2 * dim)
        Wcp, bcp = dense(k[2], dim, dim)
        Wqkv, bqkv = dense(k[3], dim, 3 * dim)
        Wsp, bsp = dense(k[4], dim, dim)
        W1, b1 = dense(k[5], dim, hidden)
        W2, b2 = dense(k[6], hidden, dim)
        layers.append(dict(
            norm1=ln(), norm2=ln(), norm3=ln(),
            cross=dict(Wq=Wq, bq=bq, Wkv=Wkv, bkv=bkv, Wp=Wcp, bp=bcp),
            attn=dict(Wqkv=Wqkv, bqkv=bqkv, Wp=Wsp, bp=bsp),
            mlp=dict(W1=W1, b1=b1, W2=W2, b2=b2)))
    queries = jax.random.normal(kq, (1, num_queries, dim), jnp.float32) * 0.02
    return dict(layers=layers, queries=queries,
                norm_features=ln(), norm_embs=ln())


def pack_params(params, num_heads):
    """Consolidate + restructure parameters for the fused kernel.

    * attention scale (head_dim**-0.5) folded into the q projections,
    * cross-attn kv weight stored transposed (2C, C) so K/V come out
      channel-major ((2C, N), lane-dense over tokens),
    * matmul weights stored in bf16 (MXU-native), LN / bias vectors in f32,
    * per-layer LN affines and (C,)-shaped biases stacked into single arrays
      to minimize kernel inputs / per-grid-step DMAs.
    """
    layers = params['layers']
    C = params['queries'].shape[-1]
    hd = C // num_heads
    scale = float(hd) ** -0.5
    bf16 = jnp.bfloat16
    f32 = jnp.float32

    def stack(fn, dtype=f32):
        return jnp.stack([fn(lp) for lp in layers]).astype(dtype)

    return {
        'queries': params['queries'].reshape(-1, C).astype(f32),
        'nf_gb': jnp.stack(params['norm_features']).reshape(2, C, 1).astype(f32),
        'ne_gb': jnp.stack(params['norm_embs']).astype(f32),
        'ln_gb': stack(lambda lp: jnp.stack([lp['norm1'][0], lp['norm1'][1],
                                             lp['norm2'][0], lp['norm2'][1],
                                             lp['norm3'][0], lp['norm3'][1]])),
        # cross-attention (q from queries, k/v from features)
        'cWq': stack(lambda lp: lp['cross']['Wq'] * scale, bf16),
        'cWkv_t': stack(lambda lp: lp['cross']['Wkv'].T, bf16),
        'cWo': stack(lambda lp: lp['cross']['Wp'], bf16),
        # self-attention over queries (fused qkv, q columns pre-scaled)
        'sWqkv': stack(lambda lp: jnp.concatenate(
            [lp['attn']['Wqkv'][:, :C] * scale, lp['attn']['Wqkv'][:, C:]],
            axis=1), bf16),
        'sWo': stack(lambda lp: lp['attn']['Wp'], bf16),
        # MLP
        'W1': stack(lambda lp: lp['mlp']['W1'], bf16),
        'W2': stack(lambda lp: lp['mlp']['W2'], bf16),
        # stacked (C,)-shaped biases: [cbq*scale, cbo, sbo, b2]
        'bvec': stack(lambda lp: jnp.stack([lp['cross']['bq'] * scale,
                                            lp['cross']['bp'],
                                            lp['attn']['bp'],
                                            lp['mlp']['b2']])),
        'cbkv': stack(lambda lp: lp['cross']['bkv'].reshape(2 * C, 1)),
        'sbqkv': stack(lambda lp: jnp.concatenate(
            [lp['attn']['bqkv'][:C] * scale,
             lp['attn']['bqkv'][C:]]).reshape(1, 3 * C)),
        'b1': stack(lambda lp: lp['mlp']['b1'].reshape(1, -1)),
    }


# ----------------------------- pure-JAX reference ----------------------------

def _ln_ref(x, g, b):
    mean = jnp.mean(x, axis=-1, keepdims=True)
    var = jnp.mean(jnp.square(x - mean), axis=-1, keepdims=True)
    return (x - mean) * jax.lax.rsqrt(var + EPS) * g + b


def reference_forward(params, x, num_heads):
    """f32 reference mirroring the PyTorch TransformerLearner forward."""
    B, C, H, W = x.shape
    N = H * W
    hd = C // num_heads
    scale = float(hd) ** -0.5

    feats = jnp.transpose(x.reshape(B, C, N), (0, 2, 1))                 # (B, N, C)
    feats = _ln_ref(feats, *params['norm_features'])
    cls = jnp.broadcast_to(params['queries'], (B,) + params['queries'].shape[1:])

    def heads(t):  # (B, T, C) -> (B, H, T, hd)
        b, T, _ = t.shape
        return t.reshape(b, T, num_heads, hd).transpose(0, 2, 1, 3)

    def attention(q_in, kv_in, Wq, bq, Wk, bk, Wv, bv, Wp, bp):
        q = heads(q_in @ Wq + bq)
        k = heads(kv_in @ Wk + bk)
        v = heads(kv_in @ Wv + bv)
        attn = jax.nn.softmax(jnp.einsum('bhld,bhnd->bhln', q, k) * scale, -1)
        o = jnp.einsum('bhln,bhnd->bhld', attn, v)
        return o.transpose(0, 2, 1, 3).reshape(q_in.shape) @ Wp + bp

    for lp in params['layers']:
        c = lp['cross']
        y = _ln_ref(cls, *lp['norm1'])
        cls = cls + attention(y, feats, c['Wq'], c['bq'],
                              c['Wkv'][:, :C], c['bkv'][:C],
                              c['Wkv'][:, C:], c['bkv'][C:], c['Wp'], c['bp'])
        a = lp['attn']
        y = _ln_ref(cls, *lp['norm2'])
        cls = cls + attention(y, y, a['Wqkv'][:, :C], a['bqkv'][:C],
                              a['Wqkv'][:, C:2 * C], a['bqkv'][C:2 * C],
                              a['Wqkv'][:, 2 * C:], a['bqkv'][2 * C:],
                              a['Wp'], a['bp'])
        m = lp['mlp']
        y = _ln_ref(cls, *lp['norm3'])
        hid = jax.nn.gelu(y @ m['W1'] + m['b1'], approximate=False)
        cls = cls + hid @ m['W2'] + m['b2']

    cls = _ln_ref(cls, *params['norm_embs'])
    pred = jnp.einsum('bnc,bqc->bqn', feats, cls)
    return pred.reshape(B, -1, H, W)


# ----------------------------- main ------------------------------------------

if __name__ == "__main__":
    B, dim, H, W = 2, 32, 16, 16          # input channels == dim (LayerNorm over C)
    num_heads, num_queries, branch_depth = 4, 8, 2

    key = jax.random.PRNGKey(0)
    kx, kp = jax.random.split(key)
    x = jax.random.normal(kx, (B, dim, H, W), jnp.float32)   # NCHW like PyTorch
    params = init_params(kp, dim, num_heads, num_queries, branch_depth)
    packed = pack_params(params, num_heads=num_heads)        # one-time host-side packing

    fwd = jax.jit(functools.partial(transformer_learner_forward,
                                    num_heads=num_heads, param_buffers=1))
    try:
        pred = fwd(packed, x)
        jax.block_until_ready(pred)
    except Exception:
        # Fallback: if this JAX build rejects pl.Buffered(1) for single-
        # buffered constant-index params, use the default double buffering.
        fwd = jax.jit(functools.partial(transformer_learner_forward,
                                        num_heads=num_heads, param_buffers=None))
        pred = fwd(packed, x)
        jax.block_until_ready(pred)

    assert pred.shape == (B, num_queries, H, W), pred.shape
    assert bool(jnp.all(jnp.isfinite(pred)))

    # Loose tolerance: kernel uses bf16 matmul operands + approx reciprocals,
    # reference is pure f32 (see review's correctness notes).
    ref = reference_forward(params, x, num_heads)
    err = float(jnp.max(jnp.abs(pred - ref)))
    scale = float(jnp.max(jnp.abs(ref)))
    assert err <= 0.08 * scale + 0.1, (err, scale)

    print("KERNEL_OK")
</pallas_src>

<mosaic_0001>
module attributes {stable_mosaic.version = 11 : i64} {
  func.func @_forward_kernel(%arg0: i32, %arg1: memref<1x32x256xf32, #tpu.memory_space<vmem>>, %arg2: memref<8x32xf32, #tpu.memory_space<vmem>>, %arg3: memref<2x32x1xf32, #tpu.memory_space<vmem>>, %arg4: memref<2x32xf32, #tpu.memory_space<vmem>>, %arg5: memref<2x6x32xf32, #tpu.memory_space<vmem>>, %arg6: memref<2x32x32xbf16, #tpu.memory_space<vmem>>, %arg7: memref<2x64x32xbf16, #tpu.memory_space<vmem>>, %arg8: memref<2x32x32xbf16, #tpu.memory_space<vmem>>, %arg9: memref<2x32x96xbf16, #tpu.memory_space<vmem>>, %arg10: memref<2x32x32xbf16, #tpu.memory_space<vmem>>, %arg11: memref<2x32x128xbf16, #tpu.memory_space<vmem>>, %arg12: memref<2x128x32xbf16, #tpu.memory_space<vmem>>, %arg13: memref<2x4x32xf32, #tpu.memory_space<vmem>>, %arg14: memref<2x64x1xf32, #tpu.memory_space<vmem>>, %arg15: memref<2x1x96xf32, #tpu.memory_space<vmem>>, %arg16: memref<2x1x128xf32, #tpu.memory_space<vmem>>, %arg17: memref<1x8x256xf32, #tpu.memory_space<vmem>>) attributes {dimension_semantics = [#tpu.dimension_semantics<parallel>], iteration_bounds = array<i64: 2>, scalar_prefetch = 0 : i64, scratch_operands = 0 : i64, tpu.core_type = #tpu.core_type<tc>, window_params = [{transform_indices = @transform_0, window_bounds = array<i64: 1, 32, 256>}, {pipeline_mode = #tpu.pipeline_mode<synchronous>, transform_indices = @transform_1, window_bounds = array<i64: 8, 32>}, {pipeline_mode = #tpu.pipeline_mode<synchronous>, transform_indices = @transform_2, window_bounds = array<i64: 2, 32, 1>}, {pipeline_mode = #tpu.pipeline_mode<synchronous>, transform_indices = @transform_3, window_bounds = array<i64: 2, 32>}, {pipeline_mode = #tpu.pipeline_mode<synchronous>, transform_indices = @transform_4, window_bounds = array<i64: 2, 6, 32>}, {pipeline_mode = #tpu.pipeline_mode<synchronous>, transform_indices = @transform_5, window_bounds = array<i64: 2, 32, 32>}, {pipeline_mode = #tpu.pipeline_mode<synchronous>, transform_indices = @transform_6, window_bounds = array<i64: 2, 64, 32>}, {pipeline_mode = #tpu.pipeline_mode<synchronous>, transform_indices = @transform_7, window_bounds = array<i64: 2, 32, 32>}, {pipeline_mode = #tpu.pipeline_mode<synchronous>, transform_indices = @transform_8, window_bounds = array<i64: 2, 32, 96>}, {pipeline_mode = #tpu.pipeline_mode<synchronous>, transform_indices = @transform_9, window_bounds = array<i64: 2, 32, 32>}, {pipeline_mode = #tpu.pipeline_mode<synchronous>, transform_indices = @transform_10, window_bounds = array<i64: 2, 32, 128>}, {pipeline_mode = #tpu.pipeline_mode<synchronous>, transform_indices = @transform_11, window_bounds = array<i64: 2, 128, 32>}, {pipeline_mode = #tpu.pipeline_mode<synchronous>, transform_indices = @transform_12, window_bounds = array<i64: 2, 4, 32>}, {pipeline_mode = #tpu.pipeline_mode<synchronous>, transform_indices = @transform_13, window_bounds = array<i64: 2, 64, 1>}, {pipeline_mode = #tpu.pipeline_mode<synchronous>, transform_indices = @transform_14, window_bounds = array<i64: 2, 1, 96>}, {pipeline_mode = #tpu.pipeline_mode<synchronous>, transform_indices = @transform_15, window_bounds = array<i64: 2, 1, 128>}, {transform_indices = @transform_16, window_bounds = array<i64: 1, 8, 256>}]} {
    %c0 = arith.constant 0 : index
    %c0_0 = arith.constant 0 : index
    %c0_1 = arith.constant 0 : index
    %0 = vector.load %arg1[%c0, %c0_0, %c0_1] : memref<1x32x256xf32, #tpu.memory_space<vmem>>, vector<1x32x256xf32>
    %1 = vector.shape_cast %0 : vector<1x32x256xf32> to vector<32x256xf32>
    %cst = arith.constant dense<0.000000e+00> : vector<256xf32>
    %2 = vector.multi_reduction <add>, %1, %cst [0] : vector<32x256xf32> to vector<256xf32>
    %3 = vector.shape_cast %2 : vector<256xf32> to vector<1x256xf32>
    %cst_2 = arith.constant 3.200000e+01 : f32
    %4 = vector.broadcast %cst_2 : f32 to vector<1x256xf32>
    %5 = arith.divf %3, %4 : vector<1x256xf32>
    %6 = vector.broadcast %5 : vector<1x256xf32> to vector<32x256xf32>
    %7 = arith.subf %1, %6 : vector<32x256xf32>
    %8 = arith.mulf %7, %7 : vector<32x256xf32>
    %cst_3 = arith.constant dense<0.000000e+00> : vector<256xf32>
    %9 = vector.multi_reduction <add>, %8, %cst_3 [0] : vector<32x256xf32> to vector<256xf32>
    %10 = vector.shape_cast %9 : vector<256xf32> to vector<1x256xf32>
    %cst_4 = arith.constant 3.200000e+01 : f32
    %11 = vector.broadcast %cst_4 : f32 to vector<1x256xf32>
    %12 = arith.divf %10, %11 : vector<1x256xf32>
    %13 = vector.broadcast %5 : vector<1x256xf32> to vector<32x256xf32>
    %14 = arith.subf %1, %13 : vector<32x256xf32>
    %cst_5 = arith.constant 9.99999974E-6 : f32
    %15 = vector.broadcast %cst_5 : f32 to vector<1x256xf32>
    %16 = arith.addf %12, %15 : vector<1x256xf32>
    %17 = math.rsqrt %16 : vector<1x256xf32>
    %18 = vector.broadcast %17 : vector<1x256xf32> to vector<32x256xf32>
    %19 = arith.mulf %14, %18 : vector<32x256xf32>
    %c0_6 = arith.constant 0 : index
    %c0_7 = arith.constant 0 : index
    %c0_8 = arith.constant 0 : index
    %20 = vector.load %arg3[%c0_6, %c0_7, %c0_8] : memref<2x32x1xf32, #tpu.memory_space<vmem>>, vector<1x32x1xf32>
    %21 = vector.shape_cast %20 : vector<1x32x1xf32> to vector<32x1xf32>
    %22 = vector.broadcast %21 : vector<32x1xf32> to vector<32x256xf32>
    %23 = arith.mulf %19, %22 : vector<32x256xf32>
    %c1 = arith.constant 1 : index
    %c0_9 = arith.constant 0 : index
    %c0_10 = arith.constant 0 : index
    %24 = vector.load %arg3[%c1, %c0_9, %c0_10] : memref<2x32x1xf32, #tpu.memory_space<vmem>>, vector<1x32x1xf32>
    %25 = vector.shape_cast %24 : vector<1x32x1xf32> to vector<32x1xf32>
    %26 = vector.broadcast %25 : vector<32x1xf32> to vector<32x256xf32>
    %27 = arith.addf %23, %26 : vector<32x256xf32>
    %28 = arith.truncf %27 : vector<32x256xf32> to vector<32x256xbf16>
    %c0_11 = arith.constant 0 : index
    %c0_12 = arith.constant 0 : index
    %29 = vector.load %arg2[%c0_11, %c0_12] : memref<8x32xf32, #tpu.memory_space<vmem>>, vector<8x32xf32>
    %c0_13 = arith.constant 0 : index
    %c0_14 = arith.constant 0 : index
    %c0_15 = arith.constant 0 : index
    %30 = vector.load %arg5[%c0_13, %c0_14, %c0_15] : memref<2x6x32xf32, #tpu.memory_space<vmem>>, vector<1x6x32xf32>
    %31 = vector.shape_cast %30 : vector<1x6x32xf32> to vector<6x32xf32>
    %c0_16 = arith.constant 0 : index
    %c0_17 = arith.constant 0 : index
    %c0_18 = arith.constant 0 : index
    %32 = vector.load %arg13[%c0_16, %c0_17, %c0_18] : memref<2x4x32xf32, #tpu.memory_space<vmem>>, vector<1x4x32xf32>
    %33 = vector.shape_cast %32 : vector<1x4x32xf32> to vector<4x32xf32>
    %34 = vector.extract_strided_slice %31 {offsets = [0, 0], sizes = [1, 32], strides = [1, 1]} : vector<6x32xf32> to vector<1x32xf32>
    %35 = vector.extract_strided_slice %31 {offsets = [1, 0], sizes = [1, 32], strides = [1, 1]} : vector<6x32xf32> to vector<1x32xf32>
    %cst_19 = arith.constant dense<0.000000e+00> : vector<8xf32>
    %36 = vector.multi_reduction <add>, %29, %cst_19 [1] : vector<8x32xf32> to vector<8xf32>
    %37 = vector.shape_cast %36 : vector<8xf32> to vector<8x1xf32>
    %cst_20 = arith.constant 3.200000e+01 : f32
    %38 = vector.broadcast %cst_20 : f32 to vector<8x1xf32>
    %39 = arith.divf %37, %38 : vector<8x1xf32>
    %40 = vector.broadcast %39 : vector<8x1xf32> to vector<8x32xf32>
    %41 = arith.subf %29, %40 : vector<8x32xf32>
    %42 = arith.mulf %41, %41 : vector<8x32xf32>
    %cst_21 = arith.constant dense<0.000000e+00> : vector<8xf32>
    %43 = vector.multi_reduction <add>, %42, %cst_21 [1] : vector<8x32xf32> to vector<8xf32>
    %44 = vector.shape_cast %43 : vector<8xf32> to vector<8x1xf32>
    %cst_22 = arith.constant 3.200000e+01 : f32
    %45 = vector.broadcast %cst_22 : f32 to vector<8x1xf32>
    %46 = arith.divf %44, %45 : vector<8x1xf32>
    %47 = vector.broadcast %39 : vector<8x1xf32> to vector<8x32xf32>
    %48 = arith.subf %29, %47 : vector<8x32xf32>
    %cst_23 = arith.constant 9.99999974E-6 : f32
    %49 = vector.broadcast %cst_23 : f32 to vector<8x1xf32>
    %50 = arith.addf %46, %49 : vector<8x1xf32>
    %51 = math.rsqrt %50 : vector<8x1xf32>
    %52 = vector.broadcast %51 : vector<8x1xf32> to vector<8x32xf32>
    %53 = arith.mulf %48, %52 : vector<8x32xf32>
    %54 = vector.broadcast %34 : vector<1x32xf32> to vector<8x32xf32>
    %55 = arith.mulf %53, %54 : vector<8x32xf32>
    %56 = vector.broadcast %35 : vector<1x32xf32> to vector<8x32xf32>
    %57 = arith.addf %55, %56 : vector<8x32xf32>
    %58 = arith.truncf %57 : vector<8x32xf32> to vector<8x32xbf16>
    %c0_24 = arith.constant 0 : index
    %c0_25 = arith.constant 0 : index
    %c0_26 = arith.constant 0 : index
    %59 = vector.load %arg6[%c0_24, %c0_25, %c0_26] : memref<2x32x32xbf16, #tpu.memory_space<vmem>>, vector<1x32x32xbf16>
    %60 = vector.shape_cast %59 : vector<1x32x32xbf16> to vector<32x32xbf16>
    %cst_27 = arith.constant dense<0.000000e+00> : vector<8x32xf32>
    %61 = tpu.matmul %58, %60, %cst_27 {dimension_numbers = #tpu.dot_dimension_numbers<[1], [0], [0], [1], [0, 0, 1, 1], [], []>} : vector<8x32xbf16>, vector<32x32xbf16>, vector<8x32xf32> -> vector<8x32xf32>
    %62 = vector.extract_strided_slice %33 {offsets = [0, 0], sizes = [1, 32], strides = [1, 1]} : vector<4x32xf32> to vector<1x32xf32>
    %63 = vector.broadcast %62 : vector<1x32xf32> to vector<8x32xf32>
    %64 = arith.addf %61, %63 : vector<8x32xf32>
    %c0_28 = arith.constant 0 : index
    %c0_29 = arith.constant 0 : index
    %c0_30 = arith.constant 0 : index
    %65 = vector.load %arg7[%c0_28, %c0_29, %c0_30] : memref<2x64x32xbf16, #tpu.memory_space<vmem>>, vector<1x64x32xbf16>
    %66 = vector.shape_cast %65 : vector<1x64x32xbf16> to vector<64x32xbf16>
    %cst_31 = arith.constant dense<0.000000e+00> : vector<64x256xf32>
    %67 = tpu.matmul %66, %28, %cst_31 {dimension_numbers = #tpu.dot_dimension_numbers<[1], [0], [0], [1], [0, 0, 1, 1], [], []>} : vector<64x32xbf16>, vector<32x256xbf16>, vector<64x256xf32> -> vector<64x256xf32>
    %c0_32 = arith.constant 0 : index
    %c0_33 = arith.constant 0 : index
    %c0_34 = arith.constant 0 : index
    %68 = vector.load %arg14[%c0_32, %c0_33, %c0_34] : memref<2x64x1xf32, #tpu.memory_space<vmem>>, vector<1x64x1xf32>
    %69 = vector.shape_cast %68 : vector<1x64x1xf32> to vector<64x1xf32>
    %70 = vector.broadcast %69 : vector<64x1xf32> to vector<64x256xf32>
    %71 = arith.addf %67, %70 : vector<64x256xf32>
    %c0_35 = arith.constant 0 : index
    %c0_36 = arith.constant 0 : index
    %c0_37 = arith.constant 0 : index
    %72 = vector.load %arg8[%c0_35, %c0_36, %c0_37] : memref<2x32x32xbf16, #tpu.memory_space<vmem>>, vector<1x32x32xbf16>
    %73 = vector.shape_cast %72 : vector<1x32x32xbf16> to vector<32x32xbf16>
    %74 = vector.extract_strided_slice %33 {offsets = [1, 0], sizes = [1, 32], strides = [1, 1]} : vector<4x32xf32> to vector<1x32xf32>
    %75 = vector.extract_strided_slice %64 {offsets = [0, 0], sizes = [8, 8], strides = [1, 1]} : vector<8x32xf32> to vector<8x8xf32>
    %76 = arith.truncf %75 : vector<8x8xf32> to vector<8x8xbf16>
    %77 = vector.extract_strided_slice %71 {offsets = [0, 0], sizes = [8, 256], strides = [1, 1]} : vector<64x256xf32> to vector<8x256xf32>
    %78 = arith.truncf %77 : vector<8x256xf32> to vector<8x256xbf16>
    %79 = vector.extract_strided_slice %71 {offsets = [32, 0], sizes = [8, 256], strides = [1, 1]} : vector<64x256xf32> to vector<8x256xf32>
    %80 = arith.truncf %79 : vector<8x256xf32> to vector<8x256xbf16>
    %cst_38 = arith.constant dense<0.000000e+00> : vector<8x256xf32>
    %81 = tpu.matmul %76, %78, %cst_38 {dimension_numbers = #tpu.dot_dimension_numbers<[1], [0], [0], [1], [0, 0, 1, 1], [], []>} : vector<8x8xbf16>, vector<8x256xbf16>, vector<8x256xf32> -> vector<8x256xf32>
    %cst_39 = arith.constant dense<0xFF800000> : vector<8xf32>
    %82 = vector.multi_reduction <maximumf>, %81, %cst_39 [1] : vector<8x256xf32> to vector<8xf32>
    %83 = vector.shape_cast %82 : vector<8xf32> to vector<8x1xf32>
    %84 = vector.broadcast %83 : vector<8x1xf32> to vector<8x256xf32>
    %85 = arith.subf %81, %84 : vector<8x256xf32>
    %86 = math.exp %85 : vector<8x256xf32>
    %cst_40 = arith.constant dense<0.000000e+00> : vector<8xf32>
    %87 = vector.multi_reduction <add>, %86, %cst_40 [1] : vector<8x256xf32> to vector<8xf32>
    %88 = vector.shape_cast %87 : vector<8xf32> to vector<8x1xf32>
    %89 = tpu.reciprocal %88 {approx = true} : vector<8x1xf32> -> vector<8x1xf32>
    %90 = vector.broadcast %89 : vector<8x1xf32> to vector<8x256xf32>
    %91 = arith.mulf %86, %90 : vector<8x256xf32>
    %92 = arith.truncf %91 : vector<8x256xf32> to vector<8x256xbf16>
    %cst_41 = arith.constant dense<0.000000e+00> : vector<8x8xf32>
    %93 = tpu.matmul %92, %80, %cst_41 {dimension_numbers = #tpu.dot_dimension_numbers<[1], [1], [0], [0], [0, 0, 1, 0], [], []>} : vector<8x256xbf16>, vector<8x256xbf16>, vector<8x8xf32> -> vector<8x8xf32>
    %94 = vector.extract_strided_slice %64 {offsets = [0, 8], sizes = [8, 8], strides = [1, 1]} : vector<8x32xf32> to vector<8x8xf32>
    %95 = arith.truncf %94 : vector<8x8xf32> to vector<8x8xbf16>
    %96 = vector.extract_strided_slice %71 {offsets = [8, 0], sizes = [8, 256], strides = [1, 1]} : vector<64x256xf32> to vector<8x256xf32>
    %97 = arith.truncf %96 : vector<8x256xf32> to vector<8x256xbf16>
    %98 = vector.extract_strided_slice %71 {offsets = [40, 0], sizes = [8, 256], strides = [1, 1]} : vector<64x256xf32> to vector<8x256xf32>
    %99 = arith.truncf %98 : vector<8x256xf32> to vector<8x256xbf16>
    %cst_42 = arith.constant dense<0.000000e+00> : vector<8x256xf32>
    %100 = tpu.matmul %95, %97, %cst_42 {dimension_numbers = #tpu.dot_dimension_numbers<[1], [0], [0], [1], [0, 0, 1, 1], [], []>} : vector<8x8xbf16>, vector<8x256xbf16>, vector<8x256xf32> -> vector<8x256xf32>
    %cst_43 = arith.constant dense<0xFF800000> : vector<8xf32>
    %101 = vector.multi_reduction <maximumf>, %100, %cst_43 [1] : vector<8x256xf32> to vector<8xf32>
    %102 = vector.shape_cast %101 : vector<8xf32> to vector<8x1xf32>
    %103 = vector.broadcast %102 : vector<8x1xf32> to vector<8x256xf32>
    %104 = arith.subf %100, %103 : vector<8x256xf32>
    %105 = math.exp %104 : vector<8x256xf32>
    %cst_44 = arith.constant dense<0.000000e+00> : vector<8xf32>
    %106 = vector.multi_reduction <add>, %105, %cst_44 [1] : vector<8x256xf32> to vector<8xf32>
    %107 = vector.shape_cast %106 : vector<8xf32> to vector<8x1xf32>
    %108 = tpu.reciprocal %107 {approx = true} : vector<8x1xf32> -> vector<8x1xf32>
    %109 = vector.broadcast %108 : vector<8x1xf32> to vector<8x256xf32>
    %110 = arith.mulf %105, %109 : vector<8x256xf32>
    %111 = arith.truncf %110 : vector<8x256xf32> to vector<8x256xbf16>
    %cst_45 = arith.constant dense<0.000000e+00> : vector<8x8xf32>
    %112 = tpu.matmul %111, %99, %cst_45 {dimension_numbers = #tpu.dot_dimension_numbers<[1], [1], [0], [0], [0, 0, 1, 0], [], []>} : vector<8x256xbf16>, vector<8x256xbf16>, vector<8x8xf32> -> vector<8x8xf32>
    %113 = vector.extract_strided_slice %64 {offsets = [0, 16], sizes = [8, 8], strides = [1, 1]} : vector<8x32xf32> to vector<8x8xf32>
    %114 = arith.truncf %113 : vector<8x8xf32> to vector<8x8xbf16>
    %115 = vector.extract_strided_slice %71 {offsets = [16, 0], sizes = [8, 256], strides = [1, 1]} : vector<64x256xf32> to vector<8x256xf32>
    %116 = arith.truncf %115 : vector<8x256xf32> to vector<8x256xbf16>
    %117 = vector.extract_strided_slice %71 {offsets = [48, 0], sizes = [8, 256], strides = [1, 1]} : vector<64x256xf32> to vector<8x256xf32>
    %118 = arith.truncf %117 : vector<8x256xf32> to vector<8x256xbf16>
    %cst_46 = arith.constant dense<0.000000e+00> : vector<8x256xf32>
    %119 = tpu.matmul %114, %116, %cst_46 {dimension_numbers = #tpu.dot_dimension_numbers<[1], [0], [0], [1], [0, 0, 1, 1], [], []>} : vector<8x8xbf16>, vector<8x256xbf16>, vector<8x256xf32> -> vector<8x256xf32>
    %cst_47 = arith.constant dense<0xFF800000> : vector<8xf32>
    %120 = vector.multi_reduction <maximumf>, %119, %cst_47 [1] : vector<8x256xf32> to vector<8xf32>
    %121 = vector.shape_cast %120 : vector<8xf32> to vector<8x1xf32>
    %122 = vector.broadcast %121 : vector<8x1xf32> to vector<8x256xf32>
    %123 = arith.subf %119, %122 : vector<8x256xf32>
    %124 = math.exp %123 : vector<8x256xf32>
    %cst_48 = arith.constant dense<0.000000e+00> : vector<8xf32>
    %125 = vector.multi_reduction <add>, %124, %cst_48 [1] : vector<8x256xf32> to vector<8xf32>
    %126 = vector.shape_cast %125 : vector<8xf32> to vector<8x1xf32>
    %127 = tpu.reciprocal %126 {approx = true} : vector<8x1xf32> -> vector<8x1xf32>
    %128 = vector.broadcast %127 : vector<8x1xf32> to vector<8x256xf32>
    %129 = arith.mulf %124, %128 : vector<8x256xf32>
    %130 = arith.truncf %129 : vector<8x256xf32> to vector<8x256xbf16>
    %cst_49 = arith.constant dense<0.000000e+00> : vector<8x8xf32>
    %131 = tpu.matmul %130, %118, %cst_49 {dimension_numbers = #tpu.dot_dimension_numbers<[1], [1], [0], [0], [0, 0, 1, 0], [], []>} : vector<8x256xbf16>, vector<8x256xbf16>, vector<8x8xf32> -> vector<8x8xf32>
    %132 = vector.extract_strided_slice %64 {offsets = [0, 24], sizes = [8, 8], strides = [1, 1]} : vector<8x32xf32> to vector<8x8xf32>
    %133 = arith.truncf %132 : vector<8x8xf32> to vector<8x8xbf16>
    %134 = vector.extract_strided_slice %71 {offsets = [24, 0], sizes = [8, 256], strides = [1, 1]} : vector<64x256xf32> to vector<8x256xf32>
    %135 = arith.truncf %134 : vector<8x256xf32> to vector<8x256xbf16>
    %136 = vector.extract_strided_slice %71 {offsets = [56, 0], sizes = [8, 256], strides = [1, 1]} : vector<64x256xf32> to vector<8x256xf32>
    %137 = arith.truncf %136 : vector<8x256xf32> to vector<8x256xbf16>
    %cst_50 = arith.constant dense<0.000000e+00> : vector<8x256xf32>
    %138 = tpu.matmul %133, %135, %cst_50 {dimension_numbers = #tpu.dot_dimension_numbers<[1], [0], [0], [1], [0, 0, 1, 1], [], []>} : vector<8x8xbf16>, vector<8x256xbf16>, vector<8x256xf32> -> vector<8x256xf32>
    %cst_51 = arith.constant dense<0xFF800000> : vector<8xf32>
    %139 = vector.multi_reduction <maximumf>, %138, %cst_51 [1] : vector<8x256xf32> to vector<8xf32>
    %140 = vector.shape_cast %139 : vector<8xf32> to vector<8x1xf32>
    %141 = vector.broadcast %140 : vector<8x1xf32> to vector<8x256xf32>
    %142 = arith.subf %138, %141 : vector<8x256xf32>
    %143 = math.exp %142 : vector<8x256xf32>
    %cst_52 = arith.constant dense<0.000000e+00> : vector<8xf32>
    %144 = vector.multi_reduction <add>, %143, %cst_52 [1] : vector<8x256xf32> to vector<8xf32>
    %145 = vector.shape_cast %144 : vector<8xf32> to vector<8x1xf32>
    %146 = tpu.reciprocal %145 {approx = true} : vector<8x1xf32> -> vector<8x1xf32>
    %147 = vector.broadcast %146 : vector<8x1xf32> to vector<8x256xf32>
    %148 = arith.mulf %143, %147 : vector<8x256xf32>
    %149 = arith.truncf %148 : vector<8x256xf32> to vector<8x256xbf16>
    %cst_53 = arith.constant dense<0.000000e+00> : vector<8x8xf32>
    %150 = tpu.matmul %149, %137, %cst_53 {dimension_numbers = #tpu.dot_dimension_numbers<[1], [1], [0], [0], [0, 0, 1, 0], [], []>} : vector<8x256xbf16>, vector<8x256xbf16>, vector<8x8xf32> -> vector<8x8xf32>
    %151 = tpu.concatenate %93, %112, %131, %150 in 1 : vector<8x8xf32>, vector<8x8xf32>, vector<8x8xf32>, vector<8x8xf32> -> vector<8x32xf32>
    %152 = arith.truncf %151 : vector<8x32xf32> to vector<8x32xbf16>
    %cst_54 = arith.constant dense<0.000000e+00> : vector<8x32xf32>
    %153 = tpu.matmul %152, %73, %cst_54 {dimension_numbers = #tpu.dot_dimension_numbers<[1], [0], [0], [1], [0, 0, 1, 1], [], []>} : vector<8x32xbf16>, vector<32x32xbf16>, vector<8x32xf32> -> vector<8x32xf32>
    %154 = vector.broadcast %74 : vector<1x32xf32> to vector<8x32xf32>
    %155 = arith.addf %153, %154 : vector<8x32xf32>
    %156 = arith.addf %29, %155 : vector<8x32xf32>
    %157 = vector.extract_strided_slice %31 {offsets = [2, 0], sizes = [1, 32], strides = [1, 1]} : vector<6x32xf32> to vector<1x32xf32>
    %158 = vector.extract_strided_slice %31 {offsets = [3, 0], sizes = [1, 32], strides = [1, 1]} : vector<6x32xf32> to vector<1x32xf32>
    %cst_55 = arith.constant dense<0.000000e+00> : vector<8xf32>
    %159 = vector.multi_reduction <add>, %156, %cst_55 [1] : vector<8x32xf32> to vector<8xf32>
    %160 = vector.shape_cast %159 : vector<8xf32> to vector<8x1xf32>
    %cst_56 = arith.constant 3.200000e+01 : f32
    %161 = vector.broadcast %cst_56 : f32 to vector<8x1xf32>
    %162 = arith.divf %160, %161 : vector<8x1xf32>
    %163 = vector.broadcast %162 : vector<8x1xf32> to vector<8x32xf32>
    %164 = arith.subf %156, %163 : vector<8x32xf32>
    %165 = arith.mulf %164, %164 : vector<8x32xf32>
    %cst_57 = arith.constant dense<0.000000e+00> : vector<8xf32>
    %166 = vector.multi_reduction <add>, %165, %cst_57 [1] : vector<8x32xf32> to vector<8xf32>
    %167 = vector.shape_cast %166 : vector<8xf32> to vector<8x1xf32>
    %cst_58 = arith.constant 3.200000e+01 : f32
    %168 = vector.broadcast %cst_58 : f32 to vector<8x1xf32>
    %169 = arith.divf %167, %168 : vector<8x1xf32>
    %170 = vector.broadcast %162 : vector<8x1xf32> to vector<8x32xf32>
    %171 = arith.subf %156, %170 : vector<8x32xf32>
    %cst_59 = arith.constant 9.99999974E-6 : f32
    %172 = vector.broadcast %cst_59 : f32 to vector<8x1xf32>
    %173 = arith.addf %169, %172 : vector<8x1xf32>
    %174 = math.rsqrt %173 : vector<8x1xf32>
    %175 = vector.broadcast %174 : vector<8x1xf32> to vector<8x32xf32>
    %176 = arith.mulf %171, %175 : vector<8x32xf32>
    %177 = vector.broadcast %157 : vector<1x32xf32> to vector<8x32xf32>
    %178 = arith.mulf %176, %177 : vector<8x32xf32>
    %179 = vector.broadcast %158 : vector<1x32xf32> to vector<8x32xf32>
    %180 = arith.addf %178, %179 : vector<8x32xf32>
    %181 = arith.truncf %180 : vector<8x32xf32> to vector<8x32xbf16>
    %c0_60 = arith.constant 0 : index
    %c0_61 = arith.constant 0 : index
    %c0_62 = arith.constant 0 : index
    %182 = vector.load %arg9[%c0_60, %c0_61, %c0_62] : memref<2x32x96xbf16, #tpu.memory_space<vmem>>, vector<1x32x96xbf16>
    %183 = vector.shape_cast %182 : vector<1x32x96xbf16> to vector<32x96xbf16>
    %cst_63 = arith.constant dense<0.000000e+00> : vector<8x96xf32>
    %184 = tpu.matmul %181, %183, %cst_63 {dimension_numbers = #tpu.dot_dimension_numbers<[1], [0], [0], [1], [0, 0, 1, 1], [], []>} : vector<8x32xbf16>, vector<32x96xbf16>, vector<8x96xf32> -> vector<8x96xf32>
    %c0_64 = arith.constant 0 : index
    %c0_65 = arith.constant 0 : index
    %c0_66 = arith.constant 0 : index
    %185 = vector.load %arg15[%c0_64, %c0_65, %c0_66] : memref<2x1x96xf32, #tpu.memory_space<vmem>>, vector<1x1x96xf32>
    %186 = vector.shape_cast %185 : vector<1x1x96xf32> to vector<1x96xf32>
    %187 = vector.broadcast %186 : vector<1x96xf32> to vector<8x96xf32>
    %188 = arith.addf %184, %187 : vector<8x96xf32>
    %c0_67 = arith.constant 0 : index
    %c0_68 = arith.constant 0 : index
    %c0_69 = arith.constant 0 : index
    %189 = vector.load %arg10[%c0_67, %c0_68, %c0_69] : memref<2x32x32xbf16, #tpu.memory_space<vmem>>, vector<1x32x32xbf16>
    %190 = vector.shape_cast %189 : vector<1x32x32xbf16> to vector<32x32xbf16>
    %191 = vector.extract_strided_slice %33 {offsets = [2, 0], sizes = [1, 32], strides = [1, 1]} : vector<4x32xf32> to vector<1x32xf32>
    %192 = vector.extract_strided_slice %188 {offsets = [0, 0], sizes = [8, 8], strides = [1, 1]} : vector<8x96xf32> to vector<8x8xf32>
    %193 = arith.truncf %192 : vector<8x8xf32> to vector<8x8xbf16>
    %194 = vector.extract_strided_slice %188 {offsets = [0, 32], sizes = [8, 8], strides = [1, 1]} : vector<8x96xf32> to vector<8x8xf32>
    %195 = arith.truncf %194 : vector<8x8xf32> to vector<8x8xbf16>
    %196 = vector.extract_strided_slice %188 {offsets = [0, 64], sizes = [8, 8], strides = [1, 1]} : vector<8x96xf32> to vector<8x8xf32>
    %197 = arith.truncf %196 : vector<8x8xf32> to vector<8x8xbf16>
    %cst_70 = arith.constant dense<0.000000e+00> : vector<8x8xf32>
    %198 = tpu.matmul %193, %195, %cst_70 {dimension_numbers = #tpu.dot_dimension_numbers<[1], [1], [0], [0], [0, 0, 1, 0], [], []>} : vector<8x8xbf16>, vector<8x8xbf16>, vector<8x8xf32> -> vector<8x8xf32>
    %cst_71 = arith.constant dense<0xFF800000> : vector<8xf32>
    %199 = vector.multi_reduction <maximumf>, %198, %cst_71 [1] : vector<8x8xf32> to vector<8xf32>
    %200 = vector.shape_cast %199 : vector<8xf32> to vector<8x1xf32>
    %201 = vector.broadcast %200 : vector<8x1xf32> to vector<8x8xf32>
    %202 = arith.subf %198, %201 : vector<8x8xf32>
    %203 = math.exp %202 : vector<8x8xf32>
    %cst_72 = arith.constant dense<0.000000e+00> : vector<8xf32>
    %204 = vector.multi_reduction <add>, %203, %cst_72 [1] : vector<8x8xf32> to vector<8xf32>
    %205 = vector.shape_cast %204 : vector<8xf32> to vector<8x1xf32>
    %206 = tpu.reciprocal %205 {approx = true} : vector<8x1xf32> -> vector<8x1xf32>
    %207 = vector.broadcast %206 : vector<8x1xf32> to vector<8x8xf32>
    %208 = arith.mulf %203, %207 : vector<8x8xf32>
    %209 = arith.truncf %208 : vector<8x8xf32> to vector<8x8xbf16>
    %cst_73 = arith.constant dense<0.000000e+00> : vector<8x8xf32>
    %210 = tpu.matmul %209, %197, %cst_73 {dimension_numbers = #tpu.dot_dimension_numbers<[1], [0], [0], [1], [0, 0, 1, 1], [], []>} : vector<8x8xbf16>, vector<8x8xbf16>, vector<8x8xf32> -> vector<8x8xf32>
    %211 = vector.extract_strided_slice %188 {offsets = [0, 8], sizes = [8, 8], strides = [1, 1]} : vector<8x96xf32> to vector<8x8xf32>
    %212 = arith.truncf %211 : vector<8x8xf32> to vector<8x8xbf16>
    %213 = vector.extract_strided_slice %188 {offsets = [0, 40], sizes = [8, 8], strides = [1, 1]} : vector<8x96xf32> to vector<8x8xf32>
    %214 = arith.truncf %213 : vector<8x8xf32> to vector<8x8xbf16>
    %215 = vector.extract_strided_slice %188 {offsets = [0, 72], sizes = [8, 8], strides = [1, 1]} : vector<8x96xf32> to vector<8x8xf32>
    %216 = arith.truncf %215 : vector<8x8xf32> to vector<8x8xbf16>
    %cst_74 = arith.constant dense<0.000000e+00> : vector<8x8xf32>
    %217 = tpu.matmul %212, %214, %cst_74 {dimension_numbers = #tpu.dot_dimension_numbers<[1], [1], [0], [0], [0, 0, 1, 0], [], []>} : vector<8x8xbf16>, vector<8x8xbf16>, vector<8x8xf32> -> vector<8x8xf32>
    %cst_75 = arith.constant dense<0xFF800000> : vector<8xf32>
    %218 = vector.multi_reduction <maximumf>, %217, %cst_75 [1] : vector<8x8xf32> to vector<8xf32>
    %219 = vector.shape_cast %218 : vector<8xf32> to vector<8x1xf32>
    %220 = vector.broadcast %219 : vector<8x1xf32> to vector<8x8xf32>
    %221 = arith.subf %217, %220 : vector<8x8xf32>
    %222 = math.exp %221 : vector<8x8xf32>
    %cst_76 = arith.constant dense<0.000000e+00> : vector<8xf32>
    %223 = vector.multi_reduction <add>, %222, %cst_76 [1] : vector<8x8xf32> to vector<8xf32>
    %224 = vector.shape_cast %223 : vector<8xf32> to vector<8x1xf32>
    %225 = tpu.reciprocal %224 {approx = true} : vector<8x1xf32> -> vector<8x1xf32>
    %226 = vector.broadcast %225 : vector<8x1xf32> to vector<8x8xf32>
    %227 = arith.mulf %222, %226 : vector<8x8xf32>
    %228 = arith.truncf %227 : vector<8x8xf32> to vector<8x8xbf16>
    %cst_77 = arith.constant dense<0.000000e+00> : vector<8x8xf32>
    %229 = tpu.matmul %228, %216, %cst_77 {dimension_numbers = #tpu.dot_dimension_numbers<[1], [0], [0], [1], [0, 0, 1, 1], [], []>} : vector<8x8xbf16>, vector<8x8xbf16>, vector<8x8xf32> -> vector<8x8xf32>
    %230 = vector.extract_strided_slice %188 {offsets = [0, 16], sizes = [8, 8], strides = [1, 1]} : vector<8x96xf32> to vector<8x8xf32>
    %231 = arith.truncf %230 : vector<8x8xf32> to vector<8x8xbf16>
    %232 = vector.extract_strided_slice %188 {offsets = [0, 48], sizes = [8, 8], strides = [1, 1]} : vector<8x96xf32> to vector<8x8xf32>
    %233 = arith.truncf %232 : vector<8x8xf32> to vector<8x8xbf16>
    %234 = vector.extract_strided_slice %188 {offsets = [0, 80], sizes = [8, 8], strides = [1, 1]} : vector<8x96xf32> to vector<8x8xf32>
    %235 = arith.truncf %234 : vector<8x8xf32> to vector<8x8xbf16>
    %cst_78 = arith.constant dense<0.000000e+00> : vector<8x8xf32>
    %236 = tpu.matmul %231, %233, %cst_78 {dimension_numbers = #tpu.dot_dimension_numbers<[1], [1], [0], [0], [0, 0, 1, 0], [], []>} : vector<8x8xbf16>, vector<8x8xbf16>, vector<8x8xf32> -> vector<8x8xf32>
    %cst_79 = arith.constant dense<0xFF800000> : vector<8xf32>
    %237 = vector.multi_reduction <maximumf>, %236, %cst_79 [1] : vector<8x8xf32> to vector<8xf32>
    %238 = vector.shape_cast %237 : vector<8xf32> to vector<8x1xf32>
    %239 = vector.broadcast %238 : vector<8x1xf32> to vector<8x8xf32>
    %240 = arith.subf %236, %239 : vector<8x8xf32>
    %241 = math.exp %240 : vector<8x8xf32>
    %cst_80 = arith.constant dense<0.000000e+00> : vector<8xf32>
    %242 = vector.multi_reduction <add>, %241, %cst_80 [1] : vector<8x8xf32> to vector<8xf32>
    %243 = vector.shape_cast %242 : vector<8xf32> to vector<8x1xf32>
    %244 = tpu.reciprocal %243 {approx = true} : vector<8x1xf32> -> vector<8x1xf32>
    %245 = vector.broadcast %244 : vector<8x1xf32> to vector<8x8xf32>
    %246 = arith.mulf %241, %245 : vector<8x8xf32>
    %247 = arith.truncf %246 : vector<8x8xf32> to vector<8x8xbf16>
    %cst_81 = arith.constant dense<0.000000e+00> : vector<8x8xf32>
    %248 = tpu.matmul %247, %235, %cst_81 {dimension_numbers = #tpu.dot_dimension_numbers<[1], [0], [0], [1], [0, 0, 1, 1], [], []>} : vector<8x8xbf16>, vector<8x8xbf16>, vector<8x8xf32> -> vector<8x8xf32>
    %249 = vector.extract_strided_slice %188 {offsets = [0, 24], sizes = [8, 8], strides = [1, 1]} : vector<8x96xf32> to vector<8x8xf32>
    %250 = arith.truncf %249 : vector<8x8xf32> to vector<8x8xbf16>
    %251 = vector.extract_strided_slice %188 {offsets = [0, 56], sizes = [8, 8], strides = [1, 1]} : vector<8x96xf32> to vector<8x8xf32>
    %252 = arith.truncf %251 : vector<8x8xf32> to vector<8x8xbf16>
    %253 = vector.extract_strided_slice %188 {offsets = [0, 88], sizes = [8, 8], strides = [1, 1]} : vector<8x96xf32> to vector<8x8xf32>
    %254 = arith.truncf %253 : vector<8x8xf32> to vector<8x8xbf16>
    %cst_82 = arith.constant dense<0.000000e+00> : vector<8x8xf32>
    %255 = tpu.matmul %250, %252, %cst_82 {dimension_numbers = #tpu.dot_dimension_numbers<[1], [1], [0], [0], [0, 0, 1, 0], [], []>} : vector<8x8xbf16>, vector<8x8xbf16>, vector<8x8xf32> -> vector<8x8xf32>
    %cst_83 = arith.constant dense<0xFF800000> : vector<8xf32>
    %256 = vector.multi_reduction <maximumf>, %255, %cst_83 [1] : vector<8x8xf32> to vector<8xf32>
    %257 = vector.shape_cast %256 : vector<8xf32> to vector<8x1xf32>
    %258 = vector.broadcast %257 : vector<8x1xf32> to vector<8x8xf32>
    %259 = arith.subf %255, %258 : vector<8x8xf32>
    %260 = math.exp %259 : vector<8x8xf32>
    %cst_84 = arith.constant dense<0.000000e+00> : vector<8xf32>
    %261 = vector.multi_reduction <add>, %260, %cst_84 [1] : vector<8x8xf32> to vector<8xf32>
    %262 = vector.shape_cast %261 : vector<8xf32> to vector<8x1xf32>
    %263 = tpu.reciprocal %262 {approx = true} : vector<8x1xf32> -> vector<8x1xf32>
    %264 = vector.broadcast %263 : vector<8x1xf32> to vector<8x8xf32>
    %265 = arith.mulf %260, %264 : vector<8x8xf32>
    %266 = arith.truncf %265 : vector<8x8xf32> to vector<8x8xbf16>
    %cst_85 = arith.constant dense<0.000000e+00> : vector<8x8xf32>
    %267 = tpu.matmul %266, %254, %cst_85 {dimension_numbers = #tpu.dot_dimension_numbers<[1], [0], [0], [1], [0, 0, 1, 1], [], []>} : vector<8x8xbf16>, vector<8x8xbf16>, vector<8x8xf32> -> vector<8x8xf32>
    %268 = tpu.concatenate %210, %229, %248, %267 in 1 : vector<8x8xf32>, vector<8x8xf32>, vector<8x8xf32>, vector<8x8xf32> -> vector<8x32xf32>
    %269 = arith.truncf %268 : vector<8x32xf32> to vector<8x32xbf16>
    %cst_86 = arith.constant dense<0.000000e+00> : vector<8x32xf32>
    %270 = tpu.matmul %269, %190, %cst_86 {dimension_numbers = #tpu.dot_dimension_numbers<[1], [0], [0], [1], [0, 0, 1, 1], [], []>} : vector<8x32xbf16>, vector<32x32xbf16>, vector<8x32xf32> -> vector<8x32xf32>
    %271 = vector.broadcast %191 : vector<1x32xf32> to vector<8x32xf32>
    %272 = arith.addf %270, %271 : vector<8x32xf32>
    %273 = arith.addf %156, %272 : vector<8x32xf32>
    %274 = vector.extract_strided_slice %31 {offsets = [4, 0], sizes = [1, 32], strides = [1, 1]} : vector<6x32xf32> to vector<1x32xf32>
    %275 = vector.extract_strided_slice %31 {offsets = [5, 0], sizes = [1, 32], strides = [1, 1]} : vector<6x32xf32> to vector<1x32xf32>
    %cst_87 = arith.constant dense<0.000000e+00> : vector<8xf32>
    %276 = vector.multi_reduction <add>, %273, %cst_87 [1] : vector<8x32xf32> to vector<8xf32>
    %277 = vector.shape_cast %276 : vector<8xf32> to vector<8x1xf32>
    %cst_88 = arith.constant 3.200000e+01 : f32
    %278 = vector.broadcast %cst_88 : f32 to vector<8x1xf32>
    %279 = arith.divf %277, %278 : vector<8x1xf32>
    %280 = vector.broadcast %279 : vector<8x1xf32> to vector<8x32xf32>
    %281 = arith.subf %273, %280 : vector<8x32xf32>
    %282 = arith.mulf %281, %281 : vector<8x32xf32>
    %cst_89 = arith.constant dense<0.000000e+00> : vector<8xf32>
    %283 = vector.multi_reduction <add>, %282, %cst_89 [1] : vector<8x32xf32> to vector<8xf32>
    %284 = vector.shape_cast %283 : vector<8xf32> to vector<8x1xf32>
    %cst_90 = arith.constant 3.200000e+01 : f32
    %285 = vector.broadcast %cst_90 : f32 to vector<8x1xf32>
    %286 = arith.divf %284, %285 : vector<8x1xf32>
    %287 = vector.broadcast %279 : vector<8x1xf32> to vector<8x32xf32>
    %288 = arith.subf %273, %287 : vector<8x32xf32>
    %cst_91 = arith.constant 9.99999974E-6 : f32
    %289 = vector.broadcast %cst_91 : f32 to vector<8x1xf32>
    %290 = arith.addf %286, %289 : vector<8x1xf32>
    %291 = math.rsqrt %290 : vector<8x1xf32>
    %292 = vector.broadcast %291 : vector<8x1xf32> to vector<8x32xf32>
    %293 = arith.mulf %288, %292 : vector<8x32xf32>
    %294 = vector.broadcast %274 : vector<1x32xf32> to vector<8x32xf32>
    %295 = arith.mulf %293, %294 : vector<8x32xf32>
    %296 = vector.broadcast %275 : vector<1x32xf32> to vector<8x32xf32>
    %297 = arith.addf %295, %296 : vector<8x32xf32>
    %298 = arith.truncf %297 : vector<8x32xf32> to vector<8x32xbf16>
    %c0_92 = arith.constant 0 : index
    %c0_93 = arith.constant 0 : index
    %c0_94 = arith.constant 0 : index
    %299 = vector.load %arg11[%c0_92, %c0_93, %c0_94] : memref<2x32x128xbf16, #tpu.memory_space<vmem>>, vector<1x32x128xbf16>
    %300 = vector.shape_cast %299 : vector<1x32x128xbf16> to vector<32x128xbf16>
    %cst_95 = arith.constant dense<0.000000e+00> : vector<8x128xf32>
    %301 = tpu.matmul %298, %300, %cst_95 {dimension_numbers = #tpu.dot_dimension_numbers<[1], [0], [0], [1], [0, 0, 1, 1], [], []>} : vector<8x32xbf16>, vector<32x128xbf16>, vector<8x128xf32> -> vector<8x128xf32>
    %c0_96 = arith.constant 0 : index
    %c0_97 = arith.constant 0 : index
    %c0_98 = arith.constant 0 : index
    %302 = vector.load %arg16[%c0_96, %c0_97, %c0_98] : memref<2x1x128xf32, #tpu.memory_space<vmem>>, vector<1x1x128xf32>
    %303 = vector.shape_cast %302 : vector<1x1x128xf32> to vector<1x128xf32>
    %304 = vector.broadcast %303 : vector<1x128xf32> to vector<8x128xf32>
    %305 = arith.addf %301, %304 : vector<8x128xf32>
    %cst_99 = arith.constant 5.000000e-01 : f32
    %306 = vector.broadcast %cst_99 : f32 to vector<8x128xf32>
    %307 = arith.mulf %306, %305 : vector<8x128xf32>
    %cst_100 = arith.constant 0.707106769 : f32
    %308 = vector.broadcast %cst_100 : f32 to vector<8x128xf32>
    %309 = arith.mulf %305, %308 : vector<8x128xf32>
    %310 = math.absf %309 : vector<8x128xf32>
    %cst_101 = arith.constant 0.327591091 : f32
    %311 = vector.broadcast %cst_101 : f32 to vector<8x128xf32>
    %312 = arith.mulf %311, %310 : vector<8x128xf32>
    %cst_102 = arith.constant 1.000000e+00 : f32
    %313 = vector.broadcast %cst_102 : f32 to vector<8x128xf32>
    %314 = arith.addf %313, %312 : vector<8x128xf32>
    %315 = tpu.reciprocal %314 {approx = true} : vector<8x128xf32> -> vector<8x128xf32>
    %cst_103 = arith.constant 1.06140542 : f32
    %316 = vector.broadcast %cst_103 : f32 to vector<8x128xf32>
    %317 = arith.mulf %316, %315 : vector<8x128xf32>
    %cst_104 = arith.constant -1.45315206 : f32
    %318 = vector.broadcast %cst_104 : f32 to vector<8x128xf32>
    %319 = arith.addf %317, %318 : vector<8x128xf32>
    %320 = arith.mulf %319, %315 : vector<8x128xf32>
    %cst_105 = arith.constant 1.42141378 : f32
    %321 = vector.broadcast %cst_105 : f32 to vector<8x128xf32>
    %322 = arith.addf %320, %321 : vector<8x128xf32>
    %323 = arith.mulf %322, %315 : vector<8x128xf32>
    %cst_106 = arith.constant -0.284496725 : f32
    %324 = vector.broadcast %cst_106 : f32 to vector<8x128xf32>
    %325 = arith.addf %323, %324 : vector<8x128xf32>
    %326 = arith.mulf %325, %315 : vector<8x128xf32>
    %cst_107 = arith.constant 0.254829586 : f32
    %327 = vector.broadcast %cst_107 : f32 to vector<8x128xf32>
    %328 = arith.addf %326, %327 : vector<8x128xf32>
    %329 = arith.mulf %328, %315 : vector<8x128xf32>
    %cst_108 = arith.constant 0.000000e+00 : f32
    %330 = vector.broadcast %cst_108 : f32 to vector<8x128xf32>
    %331 = arith.subf %330, %310 : vector<8x128xf32>
    %332 = arith.mulf %331, %310 : vector<8x128xf32>
    %333 = math.exp %332 : vector<8x128xf32>
    %334 = arith.mulf %329, %333 : vector<8x128xf32>
    %cst_109 = arith.constant 1.000000e+00 : f32
    %335 = vector.broadcast %cst_109 : f32 to vector<8x128xf32>
    %336 = arith.subf %335, %334 : vector<8x128xf32>
    %cst_110 = arith.constant 0.000000e+00 : f32
    %337 = vector.broadcast %cst_110 : f32 to vector<8x128xf32>
    %338 = arith.cmpf oge, %309, %337 : vector<8x128xf32>
    %cst_111 = arith.constant 0.000000e+00 : f32
    %339 = vector.broadcast %cst_111 : f32 to vector<8x128xf32>
    %340 = arith.subf %339, %336 : vector<8x128xf32>
    %341 = arith.select %338, %336, %340 : vector<8x128xi1>, vector<8x128xf32>
    %cst_112 = arith.constant 1.000000e+00 : f32
    %342 = vector.broadcast %cst_112 : f32 to vector<8x128xf32>
    %343 = arith.addf %342, %341 : vector<8x128xf32>
    %344 = arith.mulf %307, %343 : vector<8x128xf32>
    %345 = arith.truncf %344 : vector<8x128xf32> to vector<8x128xbf16>
    %c0_113 = arith.constant 0 : index
    %c0_114 = arith.constant 0 : index
    %c0_115 = arith.constant 0 : index
    %346 = vector.load %arg12[%c0_113, %c0_114, %c0_115] : memref<2x128x32xbf16, #tpu.memory_space<vmem>>, vector<1x128x32xbf16>
    %347 = vector.shape_cast %346 : vector<1x128x32xbf16> to vector<128x32xbf16>
    %cst_116 = arith.constant dense<0.000000e+00> : vector<8x32xf32>
    %348 = tpu.matmul %345, %347, %cst_116 {dimension_numbers = #tpu.dot_dimension_numbers<[1], [0], [0], [1], [0, 0, 1, 1], [], []>} : vector<8x128xbf16>, vector<128x32xbf16>, vector<8x32xf32> -> vector<8x32xf32>
    %349 = arith.addf %273, %348 : vector<8x32xf32>
    %350 = vector.extract_strided_slice %33 {offsets = [3, 0], sizes = [1, 32], strides = [1, 1]} : vector<4x32xf32> to vector<1x32xf32>
    %351 = vector.broadcast %350 : vector<1x32xf32> to vector<8x32xf32>
    %352 = arith.addf %349, %351 : vector<8x32xf32>
    %c1_117 = arith.constant 1 : index
    %c0_118 = arith.constant 0 : index
    %c0_119 = arith.constant 0 : index
    %353 = vector.load %arg5[%c1_117, %c0_118, %c0_119] : memref<2x6x32xf32, #tpu.memory_space<vmem>>, vector<1x6x32xf32>
    %354 = vector.shape_cast %353 : vector<1x6x32xf32> to vector<6x32xf32>
    %c1_120 = arith.constant 1 : index
    %c0_121 = arith.constant 0 : index
    %c0_122 = arith.constant 0 : index
    %355 = vector.load %arg13[%c1_120, %c0_121, %c0_122] : memref<2x4x32xf32, #tpu.memory_space<vmem>>, vector<1x4x32xf32>
    %356 = vector.shape_cast %355 : vector<1x4x32xf32> to vector<4x32xf32>
    %357 = vector.extract_strided_slice %354 {offsets = [0, 0], sizes = [1, 32], strides = [1, 1]} : vector<6x32xf32> to vector<1x32xf32>
    %358 = vector.extract_strided_slice %354 {offsets = [1, 0], sizes = [1, 32], strides = [1, 1]} : vector<6x32xf32> to vector<1x32xf32>
    %cst_123 = arith.constant dense<0.000000e+00> : vector<8xf32>
    %359 = vector.multi_reduction <add>, %352, %cst_123 [1] : vector<8x32xf32> to vector<8xf32>
    %360 = vector.shape_cast %359 : vector<8xf32> to vector<8x1xf32>
    %cst_124 = arith.constant 3.200000e+01 : f32
    %361 = vector.broadcast %cst_124 : f32 to vector<8x1xf32>
    %362 = arith.divf %360, %361 : vector<8x1xf32>
    %363 = vector.broadcast %362 : vector<8x1xf32> to vector<8x32xf32>
    %364 = arith.subf %352, %363 : vector<8x32xf32>
    %365 = arith.mulf %364, %364 : vector<8x32xf32>
    %cst_125 = arith.constant dense<0.000000e+00> : vector<8xf32>
    %366 = vector.multi_reduction <add>, %365, %cst_125 [1] : vector<8x32xf32> to vector<8xf32>
    %367 = vector.shape_cast %366 : vector<8xf32> to vector<8x1xf32>
    %cst_126 = arith.constant 3.200000e+01 : f32
    %368 = vector.broadcast %cst_126 : f32 to vector<8x1xf32>
    %369 = arith.divf %367, %368 : vector<8x1xf32>
    %370 = vector.broadcast %362 : vector<8x1xf32> to vector<8x32xf32>
    %371 = arith.subf %352, %370 : vector<8x32xf32>
    %cst_127 = arith.constant 9.99999974E-6 : f32
    %372 = vector.broadcast %cst_127 : f32 to vector<8x1xf32>
    %373 = arith.addf %369, %372 : vector<8x1xf32>
    %374 = math.rsqrt %373 : vector<8x1xf32>
    %375 = vector.broadcast %374 : vector<8x1xf32> to vector<8x32xf32>
    %376 = arith.mulf %371, %375 : vector<8x32xf32>
    %377 = vector.broadcast %357 : vector<1x32xf32> to vector<8x32xf32>
    %378 = arith.mulf %376, %377 : vector<8x32xf32>
    %379 = vector.broadcast %358 : vector<1x32xf32> to vector<8x32xf32>
    %380 = arith.addf %378, %379 : vector<8x32xf32>
    %381 = arith.truncf %380 : vector<8x32xf32> to vector<8x32xbf16>
    %c1_128 = arith.constant 1 : index
    %c0_129 = arith.constant 0 : index
    %c0_130 = arith.constant 0 : index
    %382 = vector.load %arg6[%c1_128, %c0_129, %c0_130] : memref<2x32x32xbf16, #tpu.memory_space<vmem>>, vector<1x32x32xbf16>
    %383 = vector.shape_cast %382 : vector<1x32x32xbf16> to vector<32x32xbf16>
    %cst_131 = arith.constant dense<0.000000e+00> : vector<8x32xf32>
    %384 = tpu.matmul %381, %383, %cst_131 {dimension_numbers = #tpu.dot_dimension_numbers<[1], [0], [0], [1], [0, 0, 1, 1], [], []>} : vector<8x32xbf16>, vector<32x32xbf16>, vector<8x32xf32> -> vector<8x32xf32>
    %385 = vector.extract_strided_slice %356 {offsets = [0, 0], sizes = [1, 32], strides = [1, 1]} : vector<4x32xf32> to vector<1x32xf32>
    %386 = vector.broadcast %385 : vector<1x32xf32> to vector<8x32xf32>
    %387 = arith.addf %384, %386 : vector<8x32xf32>
    %c1_132 = arith.constant 1 : index
    %c0_133 = arith.constant 0 : index
    %c0_134 = arith.constant 0 : index
    %388 = vector.load %arg7[%c1_132, %c0_133, %c0_134] : memref<2x64x32xbf16, #tpu.memory_space<vmem>>, vector<1x64x32xbf16>
    %389 = vector.shape_cast %388 : vector<1x64x32xbf16> to vector<64x32xbf16>
    %cst_135 = arith.constant dense<0.000000e+00> : vector<64x256xf32>
    %390 = tpu.matmul %389, %28, %cst_135 {dimension_numbers = #tpu.dot_dimension_numbers<[1], [0], [0], [1], [0, 0, 1, 1], [], []>} : vector<64x32xbf16>, vector<32x256xbf16>, vector<64x256xf32> -> vector<64x256xf32>
    %c1_136 = arith.constant 1 : index
    %c0_137 = arith.constant 0 : index
    %c0_138 = arith.constant 0 : index
    %391 = vector.load %arg14[%c1_136, %c0_137, %c0_138] : memref<2x64x1xf32, #tpu.memory_space<vmem>>, vector<1x64x1xf32>
    %392 = vector.shape_cast %391 : vector<1x64x1xf32> to vector<64x1xf32>
    %393 = vector.broadcast %392 : vector<64x1xf32> to vector<64x256xf32>
    %394 = arith.addf %390, %393 : vector<64x256xf32>
    %c1_139 = arith.constant 1 : index
    %c0_140 = arith.constant 0 : index
    %c0_141 = arith.constant 0 : index
    %395 = vector.load %arg8[%c1_139, %c0_140, %c0_141] : memref<2x32x32xbf16, #tpu.memory_space<vmem>>, vector<1x32x32xbf16>
    %396 = vector.shape_cast %395 : vector<1x32x32xbf16> to vector<32x32xbf16>
    %397 = vector.extract_strided_slice %356 {offsets = [1, 0], sizes = [1, 32], strides = [1, 1]} : vector<4x32xf32> to vector<1x32xf32>
    %398 = vector.extract_strided_slice %387 {offsets = [0, 0], sizes = [8, 8], strides = [1, 1]} : vector<8x32xf32> to vector<8x8xf32>
    %399 = arith.truncf %398 : vector<8x8xf32> to vector<8x8xbf16>
    %400 = vector.extract_strided_slice %394 {offsets = [0, 0], sizes = [8, 256], strides = [1, 1]} : vector<64x256xf32> to vector<8x256xf32>
    %401 = arith.truncf %400 : vector<8x256xf32> to vector<8x256xbf16>
    %402 = vector.extract_strided_slice %394 {offsets = [32, 0], sizes = [8, 256], strides = [1, 1]} : vector<64x256xf32> to vector<8x256xf32>
    %403 = arith.truncf %402 : vector<8x256xf32> to vector<8x256xbf16>
    %cst_142 = arith.constant dense<0.000000e+00> : vector<8x256xf32>
    %404 = tpu.matmul %399, %401, %cst_142 {dimension_numbers = #tpu.dot_dimension_numbers<[1], [0], [0], [1], [0, 0, 1, 1], [], []>} : vector<8x8xbf16>, vector<8x256xbf16>, vector<8x256xf32> -> vector<8x256xf32>
    %cst_143 = arith.constant dense<0xFF800000> : vector<8xf32>
    %405 = vector.multi_reduction <maximumf>, %404, %cst_143 [1] : vector<8x256xf32> to vector<8xf32>
    %406 = vector.shape_cast %405 : vector<8xf32> to vector<8x1xf32>
    %407 = vector.broadcast %406 : vector<8x1xf32> to vector<8x256xf32>
    %408 = arith.subf %404, %407 : vector<8x256xf32>
    %409 = math.exp %408 : vector<8x256xf32>
    %cst_144 = arith.constant dense<0.000000e+00> : vector<8xf32>
    %410 = vector.multi_reduction <add>, %409, %cst_144 [1] : vector<8x256xf32> to vector<8xf32>
    %411 = vector.shape_cast %410 : vector<8xf32> to vector<8x1xf32>
    %412 = tpu.reciprocal %411 {approx = true} : vector<8x1xf32> -> vector<8x1xf32>
    %413 = vector.broadcast %412 : vector<8x1xf32> to vector<8x256xf32>
    %414 = arith.mulf %409, %413 : vector<8x256xf32>
    %415 = arith.truncf %414 : vector<8x256xf32> to vector<8x256xbf16>
    %cst_145 = arith.constant dense<0.000000e+00> : vector<8x8xf32>
    %416 = tpu.matmul %415, %403, %cst_145 {dimension_numbers = #tpu.dot_dimension_numbers<[1], [1], [0], [0], [0, 0, 1, 0], [], []>} : vector<8x256xbf16>, vector<8x256xbf16>, vector<8x8xf32> -> vector<8x8xf32>
    %417 = vector.extract_strided_slice %387 {offsets = [0, 8], sizes = [8, 8], strides = [1, 1]} : vector<8x32xf32> to vector<8x8xf32>
    %418 = arith.truncf %417 : vector<8x8xf32> to vector<8x8xbf16>
    %419 = vector.extract_strided_slice %394 {offsets = [8, 0], sizes = [8, 256], strides = [1, 1]} : vector<64x256xf32> to vector<8x256xf32>
    %420 = arith.truncf %419 : vector<8x256xf32> to vector<8x256xbf16>
    %421 = vector.extract_strided_slice %394 {offsets = [40, 0], sizes = [8, 256], strides = [1, 1]} : vector<64x256xf32> to vector<8x256xf32>
    %422 = arith.truncf %421 : vector<8x256xf32> to vector<8x256xbf16>
    %cst_146 = arith.constant dense<0.000000e+00> : vector<8x256xf32>
    %423 = tpu.matmul %418, %420, %cst_146 {dimension_numbers = #tpu.dot_dimension_numbers<[1], [0], [0], [1], [0, 0, 1, 1], [], []>} : vector<8x8xbf16>, vector<8x256xbf16>, vector<8x256xf32> -> vector<8x256xf32>
    %cst_147 = arith.constant dense<0xFF800000> : vector<8xf32>
    %424 = vector.multi_reduction <maximumf>, %423, %cst_147 [1] : vector<8x256xf32> to vector<8xf32>
    %425 = vector.shape_cast %424 : vector<8xf32> to vector<8x1xf32>
    %426 = vector.broadcast %425 : vector<8x1xf32> to vector<8x256xf32>
    %427 = arith.subf %423, %426 : vector<8x256xf32>
    %428 = math.exp %427 : vector<8x256xf32>
    %cst_148 = arith.constant dense<0.000000e+00> : vector<8xf32>
    %429 = vector.multi_reduction <add>, %428, %cst_148 [1] : vector<8x256xf32> to vector<8xf32>
    %430 = vector.shape_cast %429 : vector<8xf32> to vector<8x1xf32>
    %431 = tpu.reciprocal %430 {approx = true} : vector<8x1xf32> -> vector<8x1xf32>
    %432 = vector.broadcast %431 : vector<8x1xf32> to vector<8x256xf32>
    %433 = arith.mulf %428, %432 : vector<8x256xf32>
    %434 = arith.truncf %433 : vector<8x256xf32> to vector<8x256xbf16>
    %cst_149 = arith.constant dense<0.000000e+00> : vector<8x8xf32>
    %435 = tpu.matmul %434, %422, %cst_149 {dimension_numbers = #tpu.dot_dimension_numbers<[1], [1], [0], [0], [0, 0, 1, 0], [], []>} : vector<8x256xbf16>, vector<8x256xbf16>, vector<8x8xf32> -> vector<8x8xf32>
    %436 = vector.extract_strided_slice %387 {offsets = [0, 16], sizes = [8, 8], strides = [1, 1]} : vector<8x32xf32> to vector<8x8xf32>
    %437 = arith.truncf %436 : vector<8x8xf32> to vector<8x8xbf16>
    %438 = vector.extract_strided_slice %394 {offsets = [16, 0], sizes = [8, 256], strides = [1, 1]} : vector<64x256xf32> to vector<8x256xf32>
    %439 = arith.truncf %438 : vector<8x256xf32> to vector<8x256xbf16>
    %440 = vector.extract_strided_slice %394 {offsets = [48, 0], sizes = [8, 256], strides = [1, 1]} : vector<64x256xf32> to vector<8x256xf32>
    %441 = arith.truncf %440 : vector<8x256xf32> to vector<8x256xbf16>
    %cst_150 = arith.constant dense<0.000000e+00> : vector<8x256xf32>
    %442 = tpu.matmul %437, %439, %cst_150 {dimension_numbers = #tpu.dot_dimension_numbers<[1], [0], [0], [1], [0, 0, 1, 1], [], []>} : vector<8x8xbf16>, vector<8x256xbf16>, vector<8x256xf32> -> vector<8x256xf32>
    %cst_151 = arith.constant dense<0xFF800000> : vector<8xf32>
    %443 = vector.multi_reduction <maximumf>, %442, %cst_151 [1] : vector<8x256xf32> to vector<8xf32>
    %444 = vector.shape_cast %443 : vector<8xf32> to vector<8x1xf32>
    %445 = vector.broadcast %444 : vector<8x1xf32> to vector<8x256xf32>
    %446 = arith.subf %442, %445 : vector<8x256xf32>
    %447 = math.exp %446 : vector<8x256xf32>
    %cst_152 = arith.constant dense<0.000000e+00> : vector<8xf32>
    %448 = vector.multi_reduction <add>, %447, %cst_152 [1] : vector<8x256xf32> to vector<8xf32>
    %449 = vector.shape_cast %448 : vector<8xf32> to vector<8x1xf32>
    %450 = tpu.reciprocal %449 {approx = true} : vector<8x1xf32> -> vector<8x1xf32>
    %451 = vector.broadcast %450 : vector<8x1xf32> to vector<8x256xf32>
    %452 = arith.mulf %447, %451 : vector<8x256xf32>
    %453 = arith.truncf %452 : vector<8x256xf32> to vector<8x256xbf16>
    %cst_153 = arith.constant dense<0.000000e+00> : vector<8x8xf32>
    %454 = tpu.matmul %453, %441, %cst_153 {dimension_numbers = #tpu.dot_dimension_numbers<[1], [1], [0], [0], [0, 0, 1, 0], [], []>} : vector<8x256xbf16>, vector<8x256xbf16>, vector<8x8xf32> -> vector<8x8xf32>
    %455 = vector.extract_strided_slice %387 {offsets = [0, 24], sizes = [8, 8], strides = [1, 1]} : vector<8x32xf32> to vector<8x8xf32>
    %456 = arith.truncf %455 : vector<8x8xf32> to vector<8x8xbf16>
    %457 = vector.extract_strided_slice %394 {offsets = [24, 0], sizes = [8, 256], strides = [1, 1]} : vector<64x256xf32> to vector<8x256xf32>
    %458 = arith.truncf %457 : vector<8x256xf32> to vector<8x256xbf16>
    %459 = vector.extract_strided_slice %394 {offsets = [56, 0], sizes = [8, 256], strides = [1, 1]} : vector<64x256xf32> to vector<8x256xf32>
    %460 = arith.truncf %459 : vector<8x256xf32> to vector<8x256xbf16>
    %cst_154 = arith.constant dense<0.000000e+00> : vector<8x256xf32>
    %461 = tpu.matmul %456, %458, %cst_154 {dimension_numbers = #tpu.dot_dimension_numbers<[1], [0], [0], [1], [0, 0, 1, 1], [], []>} : vector<8x8xbf16>, vector<8x256xbf16>, vector<8x256xf32> -> vector<8x256xf32>
    %cst_155 = arith.constant dense<0xFF800000> : vector<8xf32>
    %462 = vector.multi_reduction <maximumf>, %461, %cst_155 [1] : vector<8x256xf32> to vector<8xf32>
    %463 = vector.shape_cast %462 : vector<8xf32> to vector<8x1xf32>
    %464 = vector.broadcast %463 : vector<8x1xf32> to vector<8x256xf32>
    %465 = arith.subf %461, %464 : vector<8x256xf32>
    %466 = math.exp %465 : vector<8x256xf32>
    %cst_156 = arith.constant dense<0.000000e+00> : vector<8xf32>
    %467 = vector.multi_reduction <add>, %466, %cst_156 [1] : vector<8x256xf32> to vector<8xf32>
    %468 = vector.shape_cast %467 : vector<8xf32> to vector<8x1xf32>
    %469 = tpu.reciprocal %468 {approx = true} : vector<8x1xf32> -> vector<8x1xf32>
    %470 = vector.broadcast %469 : vector<8x1xf32> to vector<8x256xf32>
    %471 = arith.mulf %466, %470 : vector<8x256xf32>
    %472 = arith.truncf %471 : vector<8x256xf32> to vector<8x256xbf16>
    %cst_157 = arith.constant dense<0.000000e+00> : vector<8x8xf32>
    %473 = tpu.matmul %472, %460, %cst_157 {dimension_numbers = #tpu.dot_dimension_numbers<[1], [1], [0], [0], [0, 0, 1, 0], [], []>} : vector<8x256xbf16>, vector<8x256xbf16>, vector<8x8xf32> -> vector<8x8xf32>
    %474 = tpu.concatenate %416, %435, %454, %473 in 1 : vector<8x8xf32>, vector<8x8xf32>, vector<8x8xf32>, vector<8x8xf32> -> vector<8x32xf32>
    %475 = arith.truncf %474 : vector<8x32xf32> to vector<8x32xbf16>
    %cst_158 = arith.constant dense<0.000000e+00> : vector<8x32xf32>
    %476 = tpu.matmul %475, %396, %cst_158 {dimension_numbers = #tpu.dot_dimension_numbers<[1], [0], [0], [1], [0, 0, 1, 1], [], []>} : vector<8x32xbf16>, vector<32x32xbf16>, vector<8x32xf32> -> vector<8x32xf32>
    %477 = vector.broadcast %397 : vector<1x32xf32> to vector<8x32xf32>
    %478 = arith.addf %476, %477 : vector<8x32xf32>
    %479 = arith.addf %352, %478 : vector<8x32xf32>
    %480 = vector.extract_strided_slice %354 {offsets = [2, 0], sizes = [1, 32], strides = [1, 1]} : vector<6x32xf32> to vector<1x32xf32>
    %481 = vector.extract_strided_slice %354 {offsets = [3, 0], sizes = [1, 32], strides = [1, 1]} : vector<6x32xf32> to vector<1x32xf32>
    %cst_159 = arith.constant dense<0.000000e+00> : vector<8xf32>
    %482 = vector.multi_reduction <add>, %479, %cst_159 [1] : vector<8x32xf32> to vector<8xf32>
    %483 = vector.shape_cast %482 : vector<8xf32> to vector<8x1xf32>
    %cst_160 = arith.constant 3.200000e+01 : f32
    %484 = vector.broadcast %cst_160 : f32 to vector<8x1xf32>
    %485 = arith.divf %483, %484 : vector<8x1xf32>
    %486 = vector.broadcast %485 : vector<8x1xf32> to vector<8x32xf32>
    %487 = arith.subf %479, %486 : vector<8x32xf32>
    %488 = arith.mulf %487, %487 : vector<8x32xf32>
    %cst_161 = arith.constant dense<0.000000e+00> : vector<8xf32>
    %489 = vector.multi_reduction <add>, %488, %cst_161 [1] : vector<8x32xf32> to vector<8xf32>
    %490 = vector.shape_cast %489 : vector<8xf32> to vector<8x1xf32>
    %cst_162 = arith.constant 3.200000e+01 : f32
    %491 = vector.broadcast %cst_162 : f32 to vector<8x1xf32>
    %492 = arith.divf %490, %491 : vector<8x1xf32>
    %493 = vector.broadcast %485 : vector<8x1xf32> to vector<8x32xf32>
    %494 = arith.subf %479, %493 : vector<8x32xf32>
    %cst_163 = arith.constant 9.99999974E-6 : f32
    %495 = vector.broadcast %cst_163 : f32 to vector<8x1xf32>
    %496 = arith.addf %492, %495 : vector<8x1xf32>
    %497 = math.rsqrt %496 : vector<8x1xf32>
    %498 = vector.broadcast %497 : vector<8x1xf32> to vector<8x32xf32>
    %499 = arith.mulf %494, %498 : vector<8x32xf32>
    %500 = vector.broadcast %480 : vector<1x32xf32> to vector<8x32xf32>
    %501 = arith.mulf %499, %500 : vector<8x32xf32>
    %502 = vector.broadcast %481 : vector<1x32xf32> to vector<8x32xf32>
    %503 = arith.addf %501, %502 : vector<8x32xf32>
    %504 = arith.truncf %503 : vector<8x32xf32> to vector<8x32xbf16>
    %c1_164 = arith.constant 1 : index
    %c0_165 = arith.constant 0 : index
    %c0_166 = arith.constant 0 : index
    %505 = vector.load %arg9[%c1_164, %c0_165, %c0_166] : memref<2x32x96xbf16, #tpu.memory_space<vmem>>, vector<1x32x96xbf16>
    %506 = vector.shape_cast %505 : vector<1x32x96xbf16> to vector<32x96xbf16>
    %cst_167 = arith.constant dense<0.000000e+00> : vector<8x96xf32>
    %507 = tpu.matmul %504, %506, %cst_167 {dimension_numbers = #tpu.dot_dimension_numbers<[1], [0], [0], [1], [0, 0, 1, 1], [], []>} : vector<8x32xbf16>, vector<32x96xbf16>, vector<8x96xf32> -> vector<8x96xf32>
    %c1_168 = arith.constant 1 : index
    %c0_169 = arith.constant 0 : index
    %c0_170 = arith.constant 0 : index
    %508 = vector.load %arg15[%c1_168, %c0_169, %c0_170] : memref<2x1x96xf32, #tpu.memory_space<vmem>>, vector<1x1x96xf32>
    %509 = vector.shape_cast %508 : vector<1x1x96xf32> to vector<1x96xf32>
    %510 = vector.broadcast %509 : vector<1x96xf32> to vector<8x96xf32>
    %511 = arith.addf %507, %510 : vector<8x96xf32>
    %c1_171 = arith.constant 1 : index
    %c0_172 = arith.constant 0 : index
    %c0_173 = arith.constant 0 : index
    %512 = vector.load %arg10[%c1_171, %c0_172, %c0_173] : memref<2x32x32xbf16, #tpu.memory_space<vmem>>, vector<1x32x32xbf16>
    %513 = vector.shape_cast %512 : vector<1x32x32xbf16> to vector<32x32xbf16>
    %514 = vector.extract_strided_slice %356 {offsets = [2, 0], sizes = [1, 32], strides = [1, 1]} : vector<4x32xf32> to vector<1x32xf32>
    %515 = vector.extract_strided_slice %511 {offsets = [0, 0], sizes = [8, 8], strides = [1, 1]} : vector<8x96xf32> to vector<8x8xf32>
    %516 = arith.truncf %515 : vector<8x8xf32> to vector<8x8xbf16>
    %517 = vector.extract_strided_slice %511 {offsets = [0, 32], sizes = [8, 8], strides = [1, 1]} : vector<8x96xf32> to vector<8x8xf32>
    %518 = arith.truncf %517 : vector<8x8xf32> to vector<8x8xbf16>
    %519 = vector.extract_strided_slice %511 {offsets = [0, 64], sizes = [8, 8], strides = [1, 1]} : vector<8x96xf32> to vector<8x8xf32>
    %520 = arith.truncf %519 : vector<8x8xf32> to vector<8x8xbf16>
    %cst_174 = arith.constant dense<0.000000e+00> : vector<8x8xf32>
    %521 = tpu.matmul %516, %518, %cst_174 {dimension_numbers = #tpu.dot_dimension_numbers<[1], [1], [0], [0], [0, 0, 1, 0], [], []>} : vector<8x8xbf16>, vector<8x8xbf16>, vector<8x8xf32> -> vector<8x8xf32>
    %cst_175 = arith.constant dense<0xFF800000> : vector<8xf32>
    %522 = vector.multi_reduction <maximumf>, %521, %cst_175 [1] : vector<8x8xf32> to vector<8xf32>
    %523 = vector.shape_cast %522 : vector<8xf32> to vector<8x1xf32>
    %524 = vector.broadcast %523 : vector<8x1xf32> to vector<8x8xf32>
    %525 = arith.subf %521, %524 : vector<8x8xf32>
    %526 = math.exp %525 : vector<8x8xf32>
    %cst_176 = arith.constant dense<0.000000e+00> : vector<8xf32>
    %527 = vector.multi_reduction <add>, %526, %cst_176 [1] : vector<8x8xf32> to vector<8xf32>
    %528 = vector.shape_cast %527 : vector<8xf32> to vector<8x1xf32>
    %529 = tpu.reciprocal %528 {approx = true} : vector<8x1xf32> -> vector<8x1xf32>
    %530 = vector.broadcast %529 : vector<8x1xf32> to vector<8x8xf32>
    %531 = arith.mulf %526, %530 : vector<8x8xf32>
    %532 = arith.truncf %531 : vector<8x8xf32> to vector<8x8xbf16>
    %cst_177 = arith.constant dense<0.000000e+00> : vector<8x8xf32>
    %533 = tpu.matmul %532, %520, %cst_177 {dimension_numbers = #tpu.dot_dimension_numbers<[1], [0], [0], [1], [0, 0, 1, 1], [], []>} : vector<8x8xbf16>, vector<8x8xbf16>, vector<8x8xf32> -> vector<8x8xf32>
    %534 = vector.extract_strided_slice %511 {offsets = [0, 8], sizes = [8, 8], strides = [1, 1]} : vector<8x96xf32> to vector<8x8xf32>
    %535 = arith.truncf %534 : vector<8x8xf32> to vector<8x8xbf16>
    %536 = vector.extract_strided_slice %511 {offsets = [0, 40], sizes = [8, 8], strides = [1, 1]} : vector<8x96xf32> to vector<8x8xf32>
    %537 = arith.truncf %536 : vector<8x8xf32> to vector<8x8xbf16>
    %538 = vector.extract_strided_slice %511 {offsets = [0, 72], sizes = [8, 8], strides = [1, 1]} : vector<8x96xf32> to vector<8x8xf32>
    %539 = arith.truncf %538 : vector<8x8xf32> to vector<8x8xbf16>
    %cst_178 = arith.constant dense<0.000000e+00> : vector<8x8xf32>
    %540 = tpu.matmul %535, %537, %cst_178 {dimension_numbers = #tpu.dot_dimension_numbers<[1], [1], [0], [0], [0, 0, 1, 0], [], []>} : vector<8x8xbf16>, vector<8x8xbf16>, vector<8x8xf32> -> vector<8x8xf32>
    %cst_179 = arith.constant dense<0xFF800000> : vector<8xf32>
    %541 = vector.multi_reduction <maximumf>, %540, %cst_179 [1] : vector<8x8xf32> to vector<8xf32>
    %542 = vector.shape_cast %541 : vector<8xf32> to vector<8x1xf32>
    %543 = vector.broadcast %542 : vector<8x1xf32> to vector<8x8xf32>
    %544 = arith.subf %540, %543 : vector<8x8xf32>
    %545 = math.exp %544 : vector<8x8xf32>
    %cst_180 = arith.constant dense<0.000000e+00> : vector<8xf32>
    %546 = vector.multi_reduction <add>, %545, %cst_180 [1] : vector<8x8xf32> to vector<8xf32>
    %547 = vector.shape_cast %546 : vector<8xf32> to vector<8x1xf32>
    %548 = tpu.reciprocal %547 {approx = true} : vector<8x1xf32> -> vector<8x1xf32>
    %549 = vector.broadcast %548 : vector<8x1xf32> to vector<8x8xf32>
    %550 = arith.mulf %545, %549 : vector<8x8xf32>
    %551 = arith.truncf %550 : vector<8x8xf32> to vector<8x8xbf16>
    %cst_181 = arith.constant dense<0.000000e+00> : vector<8x8xf32>
    %552 = tpu.matmul %551, %539, %cst_181 {dimension_numbers = #tpu.dot_dimension_numbers<[1], [0], [0], [1], [0, 0, 1, 1], [], []>} : vector<8x8xbf16>, vector<8x8xbf16>, vector<8x8xf32> -> vector<8x8xf32>
    %553 = vector.extract_strided_slice %511 {offsets = [0, 16], sizes = [8, 8], strides = [1, 1]} : vector<8x96xf32> to vector<8x8xf32>
    %554 = arith.truncf %553 : vector<8x8xf32> to vector<8x8xbf16>
    %555 = vector.extract_strided_slice %511 {offsets = [0, 48], sizes = [8, 8], strides = [1, 1]} : vector<8x96xf32> to vector<8x8xf32>
    %556 = arith.truncf %555 : vector<8x8xf32> to vector<8x8xbf16>
    %557 = vector.extract_strided_slice %511 {offsets = [0, 80], sizes = [8, 8], strides = [1, 1]} : vector<8x96xf32> to vector<8x8xf32>
    %558 = arith.truncf %557 : vector<8x8xf32> to vector<8x8xbf16>
    %cst_182 = arith.constant dense<0.000000e+00> : vector<8x8xf32>
    %559 = tpu.matmul %554, %556, %cst_182 {dimension_numbers = #tpu.dot_dimension_numbers<[1], [1], [0], [0], [0, 0, 1, 0], [], []>} : vector<8x8xbf16>, vector<8x8xbf16>, vector<8x8xf32> -> vector<8x8xf32>
    %cst_183 = arith.constant dense<0xFF800000> : vector<8xf32>
    %560 = vector.multi_reduction <maximumf>, %559, %cst_183 [1] : vector<8x8xf32> to vector<8xf32>
    %561 = vector.shape_cast %560 : vector<8xf32> to vector<8x1xf32>
    %562 = vector.broadcast %561 : vector<8x1xf32> to vector<8x8xf32>
    %563 = arith.subf %559, %562 : vector<8x8xf32>
    %564 = math.exp %563 : vector<8x8xf32>
    %cst_184 = arith.constant dense<0.000000e+00> : vector<8xf32>
    %565 = vector.multi_reduction <add>, %564, %cst_184 [1] : vector<8x8xf32> to vector<8xf32>
    %566 = vector.shape_cast %565 : vector<8xf32> to vector<8x1xf32>
    %567 = tpu.reciprocal %566 {approx = true} : vector<8x1xf32> -> vector<8x1xf32>
    %568 = vector.broadcast %567 : vector<8x1xf32> to vector<8x8xf32>
    %569 = arith.mulf %564, %568 : vector<8x8xf32>
    %570 = arith.truncf %569 : vector<8x8xf32> to vector<8x8xbf16>
    %cst_185 = arith.constant dense<0.000000e+00> : vector<8x8xf32>
    %571 = tpu.matmul %570, %558, %cst_185 {dimension_numbers = #tpu.dot_dimension_numbers<[1], [0], [0], [1], [0, 0, 1, 1], [], []>} : vector<8x8xbf16>, vector<8x8xbf16>, vector<8x8xf32> -> vector<8x8xf32>
    %572 = vector.extract_strided_slice %511 {offsets = [0, 24], sizes = [8, 8], strides = [1, 1]} : vector<8x96xf32> to vector<8x8xf32>
    %573 = arith.truncf %572 : vector<8x8xf32> to vector<8x8xbf16>
    %574 = vector.extract_strided_slice %511 {offsets = [0, 56], sizes = [8, 8], strides = [1, 1]} : vector<8x96xf32> to vector<8x8xf32>
    %575 = arith.truncf %574 : vector<8x8xf32> to vector<8x8xbf16>
    %576 = vector.extract_strided_slice %511 {offsets = [0, 88], sizes = [8, 8], strides = [1, 1]} : vector<8x96xf32> to vector<8x8xf32>
    %577 = arith.truncf %576 : vector<8x8xf32> to vector<8x8xbf16>
    %cst_186 = arith.constant dense<0.000000e+00> : vector<8x8xf32>
    %578 = tpu.matmul %573, %575, %cst_186 {dimension_numbers = #tpu.dot_dimension_numbers<[1], [1], [0], [0], [0, 0, 1, 0], [], []>} : vector<8x8xbf16>, vector<8x8xbf16>, vector<8x8xf32> -> vector<8x8xf32>
    %cst_187 = arith.constant dense<0xFF800000> : vector<8xf32>
    %579 = vector.multi_reduction <maximumf>, %578, %cst_187 [1] : vector<8x8xf32> to vector<8xf32>
    %580 = vector.shape_cast %579 : vector<8xf32> to vector<8x1xf32>
    %581 = vector.broadcast %580 : vector<8x1xf32> to vector<8x8xf32>
    %582 = arith.subf %578, %581 : vector<8x8xf32>
    %583 = math.exp %582 : vector<8x8xf32>
    %cst_188 = arith.constant dense<0.000000e+00> : vector<8xf32>
    %584 = vector.multi_reduction <add>, %583, %cst_188 [1] : vector<8x8xf32> to vector<8xf32>
    %585 = vector.shape_cast %584 : vector<8xf32> to vector<8x1xf32>
    %586 = tpu.reciprocal %585 {approx = true} : vector<8x1xf32> -> vector<8x1xf32>
    %587 = vector.broadcast %586 : vector<8x1xf32> to vector<8x8xf32>
    %588 = arith.mulf %583, %587 : vector<8x8xf32>
    %589 = arith.truncf %588 : vector<8x8xf32> to vector<8x8xbf16>
    %cst_189 = arith.constant dense<0.000000e+00> : vector<8x8xf32>
    %590 = tpu.matmul %589, %577, %cst_189 {dimension_numbers = #tpu.dot_dimension_numbers<[1], [0], [0], [1], [0, 0, 1, 1], [], []>} : vector<8x8xbf16>, vector<8x8xbf16>, vector<8x8xf32> -> vector<8x8xf32>
    %591 = tpu.concatenate %533, %552, %571, %590 in 1 : vector<8x8xf32>, vector<8x8xf32>, vector<8x8xf32>, vector<8x8xf32> -> vector<8x32xf32>
    %592 = arith.truncf %591 : vector<8x32xf32> to vector<8x32xbf16>
    %cst_190 = arith.constant dense<0.000000e+00> : vector<8x32xf32>
    %593 = tpu.matmul %592, %513, %cst_190 {dimension_numbers = #tpu.dot_dimension_numbers<[1], [0], [0], [1], [0, 0, 1, 1], [], []>} : vector<8x32xbf16>, vector<32x32xbf16>, vector<8x32xf32> -> vector<8x32xf32>
    %594 = vector.broadcast %514 : vector<1x32xf32> to vector<8x32xf32>
    %595 = arith.addf %593, %594 : vector<8x32xf32>
    %596 = arith.addf %479, %595 : vector<8x32xf32>
    %597 = vector.extract_strided_slice %354 {offsets = [4, 0], sizes = [1, 32], strides = [1, 1]} : vector<6x32xf32> to vector<1x32xf32>
    %598 = vector.extract_strided_slice %354 {offsets = [5, 0], sizes = [1, 32], strides = [1, 1]} : vector<6x32xf32> to vector<1x32xf32>
    %cst_191 = arith.constant dense<0.000000e+00> : vector<8xf32>
    %599 = vector.multi_reduction <add>, %596, %cst_191 [1] : vector<8x32xf32> to vector<8xf32>
    %600 = vector.shape_cast %599 : vector<8xf32> to vector<8x1xf32>
    %cst_192 = arith.constant 3.200000e+01 : f32
    %601 = vector.broadcast %cst_192 : f32 to vector<8x1xf32>
    %602 = arith.divf %600, %601 : vector<8x1xf32>
    %603 = vector.broadcast %602 : vector<8x1xf32> to vector<8x32xf32>
    %604 = arith.subf %596, %603 : vector<8x32xf32>
    %605 = arith.mulf %604, %604 : vector<8x32xf32>
    %cst_193 = arith.constant dense<0.000000e+00> : vector<8xf32>
    %606 = vector.multi_reduction <add>, %605, %cst_193 [1] : vector<8x32xf32> to vector<8xf32>
    %607 = vector.shape_cast %606 : vector<8xf32> to vector<8x1xf32>
    %cst_194 = arith.constant 3.200000e+01 : f32
    %608 = vector.broadcast %cst_194 : f32 to vector<8x1xf32>
    %609 = arith.divf %607, %608 : vector<8x1xf32>
    %610 = vector.broadcast %602 : vector<8x1xf32> to vector<8x32xf32>
    %611 = arith.subf %596, %610 : vector<8x32xf32>
    %cst_195 = arith.constant 9.99999974E-6 : f32
    %612 = vector.broadcast %cst_195 : f32 to vector<8x1xf32>
    %613 = arith.addf %609, %612 : vector<8x1xf32>
    %614 = math.rsqrt %613 : vector<8x1xf32>
    %615 = vector.broadcast %614 : vector<8x1xf32> to vector<8x32xf32>
    %616 = arith.mulf %611, %615 : vector<8x32xf32>
    %617 = vector.broadcast %597 : vector<1x32xf32> to vector<8x32xf32>
    %618 = arith.mulf %616, %617 : vector<8x32xf32>
    %619 = vector.broadcast %598 : vector<1x32xf32> to vector<8x32xf32>
    %620 = arith.addf %618, %619 : vector<8x32xf32>
    %621 = arith.truncf %620 : vector<8x32xf32> to vector<8x32xbf16>
    %c1_196 = arith.constant 1 : index
    %c0_197 = arith.constant 0 : index
    %c0_198 = arith.constant 0 : index
    %622 = vector.load %arg11[%c1_196, %c0_197, %c0_198] : memref<2x32x128xbf16, #tpu.memory_space<vmem>>, vector<1x32x128xbf16>
    %623 = vector.shape_cast %622 : vector<1x32x128xbf16> to vector<32x128xbf16>
    %cst_199 = arith.constant dense<0.000000e+00> : vector<8x128xf32>
    %624 = tpu.matmul %621, %623, %cst_199 {dimension_numbers = #tpu.dot_dimension_numbers<[1], [0], [0], [1], [0, 0, 1, 1], [], []>} : vector<8x32xbf16>, vector<32x128xbf16>, vector<8x128xf32> -> vector<8x128xf32>
    %c1_200 = arith.constant 1 : index
    %c0_201 = arith.constant 0 : index
    %c0_202 = arith.constant 0 : index
    %625 = vector.load %arg16[%c1_200, %c0_201, %c0_202] : memref<2x1x128xf32, #tpu.memory_space<vmem>>, vector<1x1x128xf32>
    %626 = vector.shape_cast %625 : vector<1x1x128xf32> to vector<1x128xf32>
    %627 = vector.broadcast %626 : vector<1x128xf32> to vector<8x128xf32>
    %628 = arith.addf %624, %627 : vector<8x128xf32>
    %cst_203 = arith.constant 5.000000e-01 : f32
    %629 = vector.broadcast %cst_203 : f32 to vector<8x128xf32>
    %630 = arith.mulf %629, %628 : vector<8x128xf32>
    %cst_204 = arith.constant 0.707106769 : f32
    %631 = vector.broadcast %cst_204 : f32 to vector<8x128xf32>
    %632 = arith.mulf %628, %631 : vector<8x128xf32>
    %633 = math.absf %632 : vector<8x128xf32>
    %cst_205 = arith.constant 0.327591091 : f32
    %634 = vector.broadcast %cst_205 : f32 to vector<8x128xf32>
    %635 = arith.mulf %634, %633 : vector<8x128xf32>
    %cst_206 = arith.constant 1.000000e+00 : f32
    %636 = vector.broadcast %cst_206 : f32 to vector<8x128xf32>
    %637 = arith.addf %636, %635 : vector<8x128xf32>
    %638 = tpu.reciprocal %637 {approx = true} : vector<8x128xf32> -> vector<8x128xf32>
    %cst_207 = arith.constant 1.06140542 : f32
    %639 = vector.broadcast %cst_207 : f32 to vector<8x128xf32>
    %640 = arith.mulf %639, %638 : vector<8x128xf32>
    %cst_208 = arith.constant -1.45315206 : f32
    %641 = vector.broadcast %cst_208 : f32 to vector<8x128xf32>
    %642 = arith.addf %640, %641 : vector<8x128xf32>
    %643 = arith.mulf %642, %638 : vector<8x128xf32>
    %cst_209 = arith.constant 1.42141378 : f32
    %644 = vector.broadcast %cst_209 : f32 to vector<8x128xf32>
    %645 = arith.addf %643, %644 : vector<8x128xf32>
    %646 = arith.mulf %645, %638 : vector<8x128xf32>
    %cst_210 = arith.constant -0.284496725 : f32
    %647 = vector.broadcast %cst_210 : f32 to vector<8x128xf32>
    %648 = arith.addf %646, %647 : vector<8x128xf32>
    %649 = arith.mulf %648, %638 : vector<8x128xf32>
    %cst_211 = arith.constant 0.254829586 : f32
    %650 = vector.broadcast %cst_211 : f32 to vector<8x128xf32>
    %651 = arith.addf %649, %650 : vector<8x128xf32>
    %652 = arith.mulf %651, %638 : vector<8x128xf32>
    %cst_212 = arith.constant 0.000000e+00 : f32
    %653 = vector.broadcast %cst_212 : f32 to vector<8x128xf32>
    %654 = arith.subf %653, %633 : vector<8x128xf32>
    %655 = arith.mulf %654, %633 : vector<8x128xf32>
    %656 = math.exp %655 : vector<8x128xf32>
    %657 = arith.mulf %652, %656 : vector<8x128xf32>
    %cst_213 = arith.constant 1.000000e+00 : f32
    %658 = vector.broadcast %cst_213 : f32 to vector<8x128xf32>
    %659 = arith.subf %658, %657 : vector<8x128xf32>
    %cst_214 = arith.constant 0.000000e+00 : f32
    %660 = vector.broadcast %cst_214 : f32 to vector<8x128xf32>
    %661 = arith.cmpf oge, %632, %660 : vector<8x128xf32>
    %cst_215 = arith.constant 0.000000e+00 : f32
    %662 = vector.broadcast %cst_215 : f32 to vector<8x128xf32>
    %663 = arith.subf %662, %659 : vector<8x128xf32>
    %664 = arith.select %661, %659, %663 : vector<8x128xi1>, vector<8x128xf32>
    %cst_216 = arith.constant 1.000000e+00 : f32
    %665 = vector.broadcast %cst_216 : f32 to vector<8x128xf32>
    %666 = arith.addf %665, %664 : vector<8x128xf32>
    %667 = arith.mulf %630, %666 : vector<8x128xf32>
    %668 = arith.truncf %667 : vector<8x128xf32> to vector<8x128xbf16>
    %c1_217 = arith.constant 1 : index
    %c0_218 = arith.constant 0 : index
    %c0_219 = arith.constant 0 : index
    %669 = vector.load %arg12[%c1_217, %c0_218, %c0_219] : memref<2x128x32xbf16, #tpu.memory_space<vmem>>, vector<1x128x32xbf16>
    %670 = vector.shape_cast %669 : vector<1x128x32xbf16> to vector<128x32xbf16>
    %cst_220 = arith.constant dense<0.000000e+00> : vector<8x32xf32>
    %671 = tpu.matmul %668, %670, %cst_220 {dimension_numbers = #tpu.dot_dimension_numbers<[1], [0], [0], [1], [0, 0, 1, 1], [], []>} : vector<8x128xbf16>, vector<128x32xbf16>, vector<8x32xf32> -> vector<8x32xf32>
    %672 = arith.addf %596, %671 : vector<8x32xf32>
    %673 = vector.extract_strided_slice %356 {offsets = [3, 0], sizes = [1, 32], strides = [1, 1]} : vector<4x32xf32> to vector<1x32xf32>
    %674 = vector.broadcast %673 : vector<1x32xf32> to vector<8x32xf32>
    %675 = arith.addf %672, %674 : vector<8x32xf32>
    %c0_221 = arith.constant 0 : index
    %c0_222 = arith.constant 0 : index
    %676 = vector.load %arg4[%c0_221, %c0_222] : memref<2x32xf32, #tpu.memory_space<vmem>>, vector<1x32xf32>
    %c1_223 = arith.constant 1 : index
    %c0_224 = arith.constant 0 : index
    %677 = vector.load %arg4[%c1_223, %c0_224] : memref<2x32xf32, #tpu.memory_space<vmem>>, vector<1x32xf32>
    %cst_225 = arith.constant dense<0.000000e+00> : vector<8xf32>
    %678 = vector.multi_reduction <add>, %675, %cst_225 [1] : vector<8x32xf32> to vector<8xf32>
    %679 = vector.shape_cast %678 : vector<8xf32> to vector<8x1xf32>
    %cst_226 = arith.constant 3.200000e+01 : f32
    %680 = vector.broadcast %cst_226 : f32 to vector<8x1xf32>
    %681 = arith.divf %679, %680 : vector<8x1xf32>
    %682 = vector.broadcast %681 : vector<8x1xf32> to vector<8x32xf32>
    %683 = arith.subf %675, %682 : vector<8x32xf32>
    %684 = arith.mulf %683, %683 : vector<8x32xf32>
    %cst_227 = arith.constant dense<0.000000e+00> : vector<8xf32>
    %685 = vector.multi_reduction <add>, %684, %cst_227 [1] : vector<8x32xf32> to vector<8xf32>
    %686 = vector.shape_cast %685 : vector<8xf32> to vector<8x1xf32>
    %cst_228 = arith.constant 3.200000e+01 : f32
    %687 = vector.broadcast %cst_228 : f32 to vector<8x1xf32>
    %688 = arith.divf %686, %687 : vector<8x1xf32>
    %689 = vector.broadcast %681 : vector<8x1xf32> to vector<8x32xf32>
    %690 = arith.subf %675, %689 : vector<8x32xf32>
    %cst_229 = arith.constant 9.99999974E-6 : f32
    %691 = vector.broadcast %cst_229 : f32 to vector<8x1xf32>
    %692 = arith.addf %688, %691 : vector<8x1xf32>
    %693 = math.rsqrt %692 : vector<8x1xf32>
    %694 = vector.broadcast %693 : vector<8x1xf32> to vector<8x32xf32>
    %695 = arith.mulf %690, %694 : vector<8x32xf32>
    %696 = vector.broadcast %676 : vector<1x32xf32> to vector<8x32xf32>
    %697 = arith.mulf %695, %696 : vector<8x32xf32>
    %698 = vector.broadcast %677 : vector<1x32xf32> to vector<8x32xf32>
    %699 = arith.addf %697, %698 : vector<8x32xf32>
    %700 = arith.truncf %699 : vector<8x32xf32> to vector<8x32xbf16>
    %cst_230 = arith.constant dense<0.000000e+00> : vector<8x256xf32>
    %701 = tpu.matmul %700, %28, %cst_230 {dimension_numbers = #tpu.dot_dimension_numbers<[1], [0], [0], [1], [0, 0, 1, 1], [], []>} : vector<8x32xbf16>, vector<32x256xbf16>, vector<8x256xf32> -> vector<8x256xf32>
    %c0_231 = arith.constant 0 : index
    %c0_232 = arith.constant 0 : index
    %c0_233 = arith.constant 0 : index
    %702 = vector.load %arg17[%c0_231, %c0_232, %c0_233] : memref<1x8x256xf32, #tpu.memory_space<vmem>>, vector<1x8x256xf32>
    %703 = vector.shape_cast %702 : vector<1x8x256xf32> to vector<8x256xf32>
    %704 = vector.shape_cast %701 : vector<8x256xf32> to vector<1x8x256xf32>
    tpu.vector_store %arg17[%c0_231, %c0_232, %c0_233], %704 {strides = array<i32>} : memref<1x8x256xf32, #tpu.memory_space<vmem>>, vector<1x8x256xf32>,
    return
  }
  func.func @transform_0(%arg0: i32) -> (i32, i32, i32) {
    %c0_i32 = arith.constant 0 : i32
    %c0_i32_0 = arith.constant 0 : i32
    %c0_i32_1 = arith.constant 0 : i32
    return %arg0, %c0_i32, %c0_i32_0 : i32, i32, i32
  }
  func.func @transform_1(%arg0: i32) -> (i32, i32) {
    %c0_i32 = arith.constant 0 : i32
    %c0_i32_0 = arith.constant 0 : i32
    %c0_i32_1 = arith.constant 0 : i32
    return %c0_i32, %c0_i32_0 : i32, i32
  }
  func.func @transform_2(%arg0: i32) -> (i32, i32, i32) {
    %c0_i32 = arith.constant 0 : i32
    %c0_i32_0 = arith.constant 0 : i32
    %c0_i32_1 = arith.constant 0 : i32
    %c0_i32_2 = arith.constant 0 : i32
    return %c0_i32, %c0_i32_0, %c0_i32_1 : i32, i32, i32
  }
  func.func @transform_3(%arg0: i32) -> (i32, i32) {
    %c0_i32 = arith.constant 0 : i32
    %c0_i32_0 = arith.constant 0 : i32
    %c0_i32_1 = arith.constant 0 : i32
    return %c0_i32, %c0_i32_0 : i32, i32
  }
  func.func @transform_4(%arg0: i32) -> (i32, i32, i32) {
    %c0_i32 = arith.constant 0 : i32
    %c0_i32_0 = arith.constant 0 : i32
    %c0_i32_1 = arith.constant 0 : i32
    %c0_i32_2 = arith.constant 0 : i32
    return %c0_i32, %c0_i32_0, %c0_i32_1 : i32, i32, i32
  }
  func.func @transform_5(%arg0: i32) -> (i32, i32, i32) {
    %c0_i32 = arith.constant 0 : i32
    %c0_i32_0 = arith.constant 0 : i32
    %c0_i32_1 = arith.constant 0 : i32
    %c0_i32_2 = arith.constant 0 : i32
    return %c0_i32, %c0_i32_0, %c0_i32_1 : i32, i32, i32
  }
  func.func @transform_6(%arg0: i32) -> (i32, i32, i32) {
    %c0_i32 = arith.constant 0 : i32
    %c0_i32_0 = arith.constant 0 : i32
    %c0_i32_1 = arith.constant 0 : i32
    %c0_i32_2 = arith.constant 0 : i32
    return %c0_i32, %c0_i32_0, %c0_i32_1 : i32, i32, i32
  }
  func.func @transform_7(%arg0: i32) -> (i32, i32, i32) {
    %c0_i32 = arith.constant 0 : i32
    %c0_i32_0 = arith.constant 0 : i32
    %c0_i32_1 = arith.constant 0 : i32
    %c0_i32_2 = arith.constant 0 : i32
    return %c0_i32, %c0_i32_0, %c0_i32_1 : i32, i32, i32
  }
  func.func @transform_8(%arg0: i32) -> (i32, i32, i32) {
    %c0_i32 = arith.constant 0 : i32
    %c0_i32_0 = arith.constant 0 : i32
    %c0_i32_1 = arith.constant 0 : i32
    %c0_i32_2 = arith.constant 0 : i32
    return %c0_i32, %c0_i32_0, %c0_i32_1 : i32, i32, i32
  }
  func.func @transform_9(%arg0: i32) -> (i32, i32, i32) {
    %c0_i32 = arith.constant 0 : i32
    %c0_i32_0 = arith.constant 0 : i32
    %c0_i32_1 = arith.constant 0 : i32
    %c0_i32_2 = arith.constant 0 : i32
    return %c0_i32, %c0_i32_0, %c0_i32_1 : i32, i32, i32
  }
  func.func @transform_10(%arg0: i32) -> (i32, i32, i32) {
    %c0_i32 = arith.constant 0 : i32
    %c0_i32_0 = arith.constant 0 : i32
    %c0_i32_1 = arith.constant 0 : i32
    %c0_i32_2 = arith.constant 0 : i32
    return %c0_i32, %c0_i32_0, %c0_i32_1 : i32, i32, i32
  }
  func.func @transform_11(%arg0: i32) -> (i32, i32, i32) {
    %c0_i32 = arith.constant 0 : i32
    %c0_i32_0 = arith.constant 0 : i32
    %c0_i32_1 = arith.constant 0 : i32
    %c0_i32_2 = arith.constant 0 : i32
    return %c0_i32, %c0_i32_0, %c0_i32_1 : i32, i32, i32
  }
  func.func @transform_12(%arg0: i32) -> (i32, i32, i32) {
    %c0_i32 = arith.constant 0 : i32
    %c0_i32_0 = arith.constant 0 : i32
    %c0_i32_1 = arith.constant 0 : i32
    %c0_i32_2 = arith.constant 0 : i32
    return %c0_i32, %c0_i32_0, %c0_i32_1 : i32, i32, i32
  }
  func.func @transform_13(%arg0: i32) -> (i32, i32, i32) {
    %c0_i32 = arith.constant 0 : i32
    %c0_i32_0 = arith.constant 0 : i32
    %c0_i32_1 = arith.constant 0 : i32
    %c0_i32_2 = arith.constant 0 : i32
    return %c0_i32, %c0_i32_0, %c0_i32_1 : i32, i32, i32
  }
  func.func @transform_14(%arg0: i32) -> (i32, i32, i32) {
    %c0_i32 = arith.constant 0 : i32
    %c0_i32_0 = arith.constant 0 : i32
    %c0_i32_1 = arith.constant 0 : i32
    %c0_i32_2 = arith.constant 0 : i32
    return %c0_i32, %c0_i32_0, %c0_i32_1 : i32, i32, i32
  }
  func.func @transform_15(%arg0: i32) -> (i32, i32, i32) {
    %c0_i32 = arith.constant 0 : i32
    %c0_i32_0 = arith.constant 0 : i32
    %c0_i32_1 = arith.constant 0 : i32
    %c0_i32_2 = arith.constant 0 : i32
    return %c0_i32, %c0_i32_0, %c0_i32_1 : i32, i32, i32
  }
  func.func @transform_16(%arg0: i32) -> (i32, i32, i32) {
    %c0_i32 = arith.constant 0 : i32
    %c0_i32_0 = arith.constant 0 : i32
    %c0_i32_1 = arith.constant 0 : i32
    return %arg0, %c0_i32, %c0_i32_0 : i32, i32, i32
  }
}

module attributes {stable_mosaic.version = 11 : i64} {
  func.func @_forward_kernel(%arg0: i32, %arg1: memref<1x32x256xf32, #tpu.memory_space<vmem>>, %arg2: memref<8x32xf32, #tpu.memory_space<vmem>>, %arg3: memref<2x32x1xf32, #tpu.memory_space<vmem>>, %arg4: memref<2x32xf32, #tpu.memory_space<vmem>>, %arg5: memref<2x6x32xf32, #tpu.memory_space<vmem>>, %arg6: memref<2x32x32xbf16, #tpu.memory_space<vmem>>, %arg7: memref<2x64x32xbf16, #tpu.memory_space<vmem>>, %arg8: memref<2x32x32xbf16, #tpu.memory_space<vmem>>, %arg9: memref<2x32x96xbf16, #tpu.memory_space<vmem>>, %arg10: memref<2x32x32xbf16, #tpu.memory_space<vmem>>, %arg11: memref<2x32x128xbf16, #tpu.memory_space<vmem>>, %arg12: memref<2x128x32xbf16, #tpu.memory_space<vmem>>, %arg13: memref<2x4x32xf32, #tpu.memory_space<vmem>>, %arg14: memref<2x64x1xf32, #tpu.memory_space<vmem>>, %arg15: memref<2x1x96xf32, #tpu.memory_space<vmem>>, %arg16: memref<2x1x128xf32, #tpu.memory_space<vmem>>, %arg17: memref<1x8x256xf32, #tpu.memory_space<vmem>>) attributes {dimension_semantics = [#tpu.dimension_semantics<parallel>], iteration_bounds = array<i64: 2>, scalar_prefetch = 0 : i64, scratch_operands = 0 : i64, tpu.core_type = #tpu.core_type<tc>, window_params = [{transform_indices = @transform_0, window_bounds = array<i64: 1, 32, 256>}, {pipeline_mode = #tpu.pipeline_mode<synchronous>, transform_indices = @transform_1, window_bounds = array<i64: 8, 32>}, {pipeline_mode = #tpu.pipeline_mode<synchronous>, transform_indices = @transform_2, window_bounds = array<i64: 2, 32, 1>}, {pipeline_mode = #tpu.pipeline_mode<synchronous>, transform_indices = @transform_3, window_bounds = array<i64: 2, 32>}, {pipeline_mode = #tpu.pipeline_mode<synchronous>, transform_indices = @transform_4, window_bounds = array<i64: 2, 6, 32>}, {pipeline_mode = #tpu.pipeline_mode<synchronous>, transform_indices = @transform_5, window_bounds = array<i64: 2, 32, 32>}, {pipeline_mode = #tpu.pipeline_mode<synchronous>, transform_indices = @transform_6, window_bounds = array<i64: 2, 64, 32>}, {pipeline_mode = #tpu.pipeline_mode<synchronous>, transform_indices = @transform_7, window_bounds = array<i64: 2, 32, 32>}, {pipeline_mode = #tpu.pipeline_mode<synchronous>, transform_indices = @transform_8, window_bounds = array<i64: 2, 32, 96>}, {pipeline_mode = #tpu.pipeline_mode<synchronous>, transform_indices = @transform_9, window_bounds = array<i64: 2, 32, 32>}, {pipeline_mode = #tpu.pipeline_mode<synchronous>, transform_indices = @transform_10, window_bounds = array<i64: 2, 32, 128>}, {pipeline_mode = #tpu.pipeline_mode<synchronous>, transform_indices = @transform_11, window_bounds = array<i64: 2, 128, 32>}, {pipeline_mode = #tpu.pipeline_mode<synchronous>, transform_indices = @transform_12, window_bounds = array<i64: 2, 4, 32>}, {pipeline_mode = #tpu.pipeline_mode<synchronous>, transform_indices = @transform_13, window_bounds = array<i64: 2, 64, 1>}, {pipeline_mode = #tpu.pipeline_mode<synchronous>, transform_indices = @transform_14, window_bounds = array<i64: 2, 1, 96>}, {pipeline_mode = #tpu.pipeline_mode<synchronous>, transform_indices = @transform_15, window_bounds = array<i64: 2, 1, 128>}, {transform_indices = @transform_16, window_bounds = array<i64: 1, 8, 256>}]} {
    %c0 = arith.constant 0 : index
    %c0_0 = arith.constant 0 : index
    %c0_1 = arith.constant 0 : index
    %0 = vector.load %arg1[%c0, %c0_0, %c0_1] : memref<1x32x256xf32, #tpu.memory_space<vmem>>, vector<1x32x256xf32>
    %1 = vector.shape_cast %0 : vector<1x32x256xf32> to vector<32x256xf32>
    %cst = arith.constant dense<0.000000e+00> : vector<256xf32>
    %2 = vector.multi_reduction <add>, %1, %cst [0] : vector<32x256xf32> to vector<256xf32>
    %3 = vector.shape_cast %2 : vector<256xf32> to vector<1x256xf32>
    %cst_2 = arith.constant 3.200000e+01 : f32
    %4 = vector.broadcast %cst_2 : f32 to vector<1x256xf32>
    %5 = arith.divf %3, %4 : vector<1x256xf32>
    %6 = vector.broadcast %5 : vector<1x256xf32> to vector<32x256xf32>
    %7 = arith.subf %1, %6 : vector<32x256xf32>
    %8 = arith.mulf %7, %7 : vector<32x256xf32>
    %cst_3 = arith.constant dense<0.000000e+00> : vector<256xf32>
    %9 = vector.multi_reduction <add>, %8, %cst_3 [0] : vector<32x256xf32> to vector<256xf32>
    %10 = vector.shape_cast %9 : vector<256xf32> to vector<1x256xf32>
    %cst_4 = arith.constant 3.200000e+01 : f32
    %11 = vector.broadcast %cst_4 : f32 to vector<1x256xf32>
    %12 = arith.divf %10, %11 : vector<1x256xf32>
    %13 = vector.broadcast %5 : vector<1x256xf32> to vector<32x256xf32>
    %14 = arith.subf %1, %13 : vector<32x256xf32>
    %cst_5 = arith.constant 9.99999974E-6 : f32
    %15 = vector.broadcast %cst_5 : f32 to vector<1x256xf32>
    %16 = arith.addf %12, %15 : vector<1x256xf32>
    %17 = math.rsqrt %16 : vector<1x256xf32>
    %18 = vector.broadcast %17 : vector<1x256xf32> to vector<32x256xf32>
    %19 = arith.mulf %14, %18 : vector<32x256xf32>
    %c0_6 = arith.constant 0 : index
    %c0_7 = arith.constant 0 : index
    %c0_8 = arith.constant 0 : index
    %20 = vector.load %arg3[%c0_6, %c0_7, %c0_8] : memref<2x32x1xf32, #tpu.memory_space<vmem>>, vector<1x32x1xf32>
    %21 = vector.shape_cast %20 : vector<1x32x1xf32> to vector<32x1xf32>
    %22 = vector.broadcast %21 : vector<32x1xf32> to vector<32x256xf32>
    %23 = arith.mulf %19, %22 : vector<32x256xf32>
    %c1 = arith.constant 1 : index
    %c0_9 = arith.constant 0 : index
    %c0_10 = arith.constant 0 : index
    %24 = vector.load %arg3[%c1, %c0_9, %c0_10] : memref<2x32x1xf32, #tpu.memory_space<vmem>>, vector<1x32x1xf32>
    %25 = vector.shape_cast %24 : vector<1x32x1xf32> to vector<32x1xf32>
    %26 = vector.broadcast %25 : vector<32x1xf32> to vector<32x256xf32>
    %27 = arith.addf %23, %26 : vector<32x256xf32>
    %28 = arith.truncf %27 : vector<32x256xf32> to vector<32x256xbf16>
    %c0_11 = arith.constant 0 : index
    %c0_12 = arith.constant 0 : index
    %29 = vector.load %arg2[%c0_11, %c0_12] : memref<8x32xf32, #tpu.memory_space<vmem>>, vector<8x32xf32>
    %c0_13 = arith.constant 0 : index
    %c0_14 = arith.constant 0 : index
    %c0_15 = arith.constant 0 : index
    %30 = vector.load %arg5[%c0_13, %c0_14, %c0_15] : memref<2x6x32xf32, #tpu.memory_space<vmem>>, vector<1x6x32xf32>
    %31 = vector.shape_cast %30 : vector<1x6x32xf32> to vector<6x32xf32>
    %c0_16 = arith.constant 0 : index
    %c0_17 = arith.constant 0 : index
    %c0_18 = arith.constant 0 : index
    %32 = vector.load %arg13[%c0_16, %c0_17, %c0_18] : memref<2x4x32xf32, #tpu.memory_space<vmem>>, vector<1x4x32xf32>
    %33 = vector.shape_cast %32 : vector<1x4x32xf32> to vector<4x32xf32>
    %34 = vector.extract_strided_slice %31 {offsets = [0, 0], sizes = [1, 32], strides = [1, 1]} : vector<6x32xf32> to vector<1x32xf32>
    %35 = vector.extract_strided_slice %31 {offsets = [1, 0], sizes = [1, 32], strides = [1, 1]} : vector<6x32xf32> to vector<1x32xf32>
    %cst_19 = arith.constant dense<0.000000e+00> : vector<8xf32>
    %36 = vector.multi_reduction <add>, %29, %cst_19 [1] : vector<8x32xf32> to vector<8xf32>
    %37 = vector.shape_cast %36 : vector<8xf32> to vector<8x1xf32>
    %cst_20 = arith.constant 3.200000e+01 : f32
    %38 = vector.broadcast %cst_20 : f32 to vector<8x1xf32>
    %39 = arith.divf %37, %38 : vector<8x1xf32>
    %40 = vector.broadcast %39 : vector<8x1xf32> to vector<8x32xf32>
    %41 = arith.subf %29, %40 : vector<8x32xf32>
    %42 = arith.mulf %41, %41 : vector<8x32xf32>
    %cst_21 = arith.constant dense<0.000000e+00> : vector<8xf32>
    %43 = vector.multi_reduction <add>, %42, %cst_21 [1] : vector<8x32xf32> to vector<8xf32>
    %44 = vector.shape_cast %43 : vector<8xf32> to vector<8x1xf32>
    %cst_22 = arith.constant 3.200000e+01 : f32
    %45 = vector.broadcast %cst_22 : f32 to vector<8x1xf32>
    %46 = arith.divf %44, %45 : vector<8x1xf32>
    %47 = vector.broadcast %39 : vector<8x1xf32> to vector<8x32xf32>
    %48 = arith.subf %29, %47 : vector<8x32xf32>
    %cst_23 = arith.constant 9.99999974E-6 : f32
    %49 = vector.broadcast %cst_23 : f32 to vector<8x1xf32>
    %50 = arith.addf %46, %49 : vector<8x1xf32>
    %51 = math.rsqrt %50 : vector<8x1xf32>
    %52 = vector.broadcast %51 : vector<8x1xf32> to vector<8x32xf32>
    %53 = arith.mulf %48, %52 : vector<8x32xf32>
    %54 = vector.broadcast %34 : vector<1x32xf32> to vector<8x32xf32>
    %55 = arith.mulf %53, %54 : vector<8x32xf32>
    %56 = vector.broadcast %35 : vector<1x32xf32> to vector<8x32xf32>
    %57 = arith.addf %55, %56 : vector<8x32xf32>
    %58 = arith.truncf %57 : vector<8x32xf32> to vector<8x32xbf16>
    %c0_24 = arith.constant 0 : index
    %c0_25 = arith.constant 0 : index
    %c0_26 = arith.constant 0 : index
    %59 = vector.load %arg6[%c0_24, %c0_25, %c0_26] : memref<2x32x32xbf16, #tpu.memory_space<vmem>>, vector<1x32x32xbf16>
    %60 = vector.shape_cast %59 : vector<1x32x32xbf16> to vector<32x32xbf16>
    %cst_27 = arith.constant dense<0.000000e+00> : vector<8x32xf32>
    %61 = tpu.matmul %58, %60, %cst_27 {dimension_numbers = #tpu.dot_dimension_numbers<[1], [0], [0], [1], [0, 0, 1, 1], [], []>} : vector<8x32xbf16>, vector<32x32xbf16>, vector<8x32xf32> -> vector<8x32xf32>
    %62 = vector.extract_strided_slice %33 {offsets = [0, 0], sizes = [1, 32], strides = [1, 1]} : vector<4x32xf32> to vector<1x32xf32>
    %63 = vector.broadcast %62 : vector<1x32xf32> to vector<8x32xf32>
    %64 = arith.addf %61, %63 : vector<8x32xf32>
    %c0_28 = arith.constant 0 : index
    %c0_29 = arith.constant 0 : index
    %c0_30 = arith.constant 0 : index
    %65 = vector.load %arg7[%c0_28, %c0_29, %c0_30] : memref<2x64x32xbf16, #tpu.memory_space<vmem>>, vector<1x64x32xbf16>
    %66 = vector.shape_cast %65 : vector<1x64x32xbf16> to vector<64x32xbf16>
    %cst_31 = arith.constant dense<0.000000e+00> : vector<64x256xf32>
    %67 = tpu.matmul %66, %28, %cst_31 {dimension_numbers = #tpu.dot_dimension_numbers<[1], [0], [0], [1], [0, 0, 1, 1], [], []>} : vector<64x32xbf16>, vector<32x256xbf16>, vector<64x256xf32> -> vector<64x256xf32>
    %c0_32 = arith.constant 0 : index
    %c0_33 = arith.constant 0 : index
    %c0_34 = arith.constant 0 : index
    %68 = vector.load %arg14[%c0_32, %c0_33, %c0_34] : memref<2x64x1xf32, #tpu.memory_space<vmem>>, vector<1x64x1xf32>
    %69 = vector.shape_cast %68 : vector<1x64x1xf32> to vector<64x1xf32>
    %70 = vector.broadcast %69 : vector<64x1xf32> to vector<64x256xf32>
    %71 = arith.addf %67, %70 : vector<64x256xf32>
    %c0_35 = arith.constant 0 : index
    %c0_36 = arith.constant 0 : index
    %c0_37 = arith.constant 0 : index
    %72 = vector.load %arg8[%c0_35, %c0_36, %c0_37] : memref<2x32x32xbf16, #tpu.memory_space<vmem>>, vector<1x32x32xbf16>
    %73 = vector.shape_cast %72 : vector<1x32x32xbf16> to vector<32x32xbf16>
    %74 = vector.extract_strided_slice %33 {offsets = [1, 0], sizes = [1, 32], strides = [1, 1]} : vector<4x32xf32> to vector<1x32xf32>
    %75 = vector.extract_strided_slice %64 {offsets = [0, 0], sizes = [8, 8], strides = [1, 1]} : vector<8x32xf32> to vector<8x8xf32>
    %76 = arith.truncf %75 : vector<8x8xf32> to vector<8x8xbf16>
    %77 = vector.extract_strided_slice %71 {offsets = [0, 0], sizes = [8, 256], strides = [1, 1]} : vector<64x256xf32> to vector<8x256xf32>
    %78 = arith.truncf %77 : vector<8x256xf32> to vector<8x256xbf16>
    %79 = vector.extract_strided_slice %71 {offsets = [32, 0], sizes = [8, 256], strides = [1, 1]} : vector<64x256xf32> to vector<8x256xf32>
    %80 = arith.truncf %79 : vector<8x256xf32> to vector<8x256xbf16>
    %cst_38 = arith.constant dense<0.000000e+00> : vector<8x256xf32>
    %81 = tpu.matmul %76, %78, %cst_38 {dimension_numbers = #tpu.dot_dimension_numbers<[1], [0], [0], [1], [0, 0, 1, 1], [], []>} : vector<8x8xbf16>, vector<8x256xbf16>, vector<8x256xf32> -> vector<8x256xf32>
    %cst_39 = arith.constant dense<0xFF800000> : vector<8xf32>
    %82 = vector.multi_reduction <maximumf>, %81, %cst_39 [1] : vector<8x256xf32> to vector<8xf32>
    %83 = vector.shape_cast %82 : vector<8xf32> to vector<8x1xf32>
    %84 = vector.broadcast %83 : vector<8x1xf32> to vector<8x256xf32>
    %85 = arith.subf %81, %84 : vector<8x256xf32>
    %86 = math.exp %85 : vector<8x256xf32>
    %cst_40 = arith.constant dense<0.000000e+00> : vector<8xf32>
    %87 = vector.multi_reduction <add>, %86, %cst_40 [1] : vector<8x256xf32> to vector<8xf32>
    %88 = vector.shape_cast %87 : vector<8xf32> to vector<8x1xf32>
    %89 = tpu.reciprocal %88 {approx = true} : vector<8x1xf32> -> vector<8x1xf32>
    %90 = vector.broadcast %89 : vector<8x1xf32> to vector<8x256xf32>
    %91 = arith.mulf %86, %90 : vector<8x256xf32>
    %92 = arith.truncf %91 : vector<8x256xf32> to vector<8x256xbf16>
    %cst_41 = arith.constant dense<0.000000e+00> : vector<8x8xf32>
    %93 = tpu.matmul %92, %80, %cst_41 {dimension_numbers = #tpu.dot_dimension_numbers<[1], [1], [0], [0], [0, 0, 1, 0], [], []>} : vector<8x256xbf16>, vector<8x256xbf16>, vector<8x8xf32> -> vector<8x8xf32>
    %94 = vector.extract_strided_slice %64 {offsets = [0, 8], sizes = [8, 8], strides = [1, 1]} : vector<8x32xf32> to vector<8x8xf32>
    %95 = arith.truncf %94 : vector<8x8xf32> to vector<8x8xbf16>
    %96 = vector.extract_strided_slice %71 {offsets = [8, 0], sizes = [8, 256], strides = [1, 1]} : vector<64x256xf32> to vector<8x256xf32>
    %97 = arith.truncf %96 : vector<8x256xf32> to vector<8x256xbf16>
    %98 = vector.extract_strided_slice %71 {offsets = [40, 0], sizes = [8, 256], strides = [1, 1]} : vector<64x256xf32> to vector<8x256xf32>
    %99 = arith.truncf %98 : vector<8x256xf32> to vector<8x256xbf16>
    %cst_42 = arith.constant dense<0.000000e+00> : vector<8x256xf32>
    %100 = tpu.matmul %95, %97, %cst_42 {dimension_numbers = #tpu.dot_dimension_numbers<[1], [0], [0], [1], [0, 0, 1, 1], [], []>} : vector<8x8xbf16>, vector<8x256xbf16>, vector<8x256xf32> -> vector<8x256xf32>
    %cst_43 = arith.constant dense<0xFF800000> : vector<8xf32>
    %101 = vector.multi_reduction <maximumf>, %100, %cst_43 [1] : vector<8x256xf32> to vector<8xf32>
    %102 = vector.shape_cast %101 : vector<8xf32> to vector<8x1xf32>
    %103 = vector.broadcast %102 : vector<8x1xf32> to vector<8x256xf32>
    %104 = arith.subf %100, %103 : vector<8x256xf32>
    %105 = math.exp %104 : vector<8x256xf32>
    %cst_44 = arith.constant dense<0.000000e+00> : vector<8xf32>
    %106 = vector.multi_reduction <add>, %105, %cst_44 [1] : vector<8x256xf32> to vector<8xf32>
    %107 = vector.shape_cast %106 : vector<8xf32> to vector<8x1xf32>
    %108 = tpu.reciprocal %107 {approx = true} : vector<8x1xf32> -> vector<8x1xf32>
    %109 = vector.broadcast %108 : vector<8x1xf32> to vector<8x256xf32>
    %110 = arith.mulf %105, %109 : vector<8x256xf32>
    %111 = arith.truncf %110 : vector<8x256xf32> to vector<8x256xbf16>
    %cst_45 = arith.constant dense<0.000000e+00> : vector<8x8xf32>
    %112 = tpu.matmul %111, %99, %cst_45 {dimension_numbers = #tpu.dot_dimension_numbers<[1], [1], [0], [0], [0, 0, 1, 0], [], []>} : vector<8x256xbf16>, vector<8x256xbf16>, vector<8x8xf32> -> vector<8x8xf32>
    %113 = vector.extract_strided_slice %64 {offsets = [0, 16], sizes = [8, 8], strides = [1, 1]} : vector<8x32xf32> to vector<8x8xf32>
    %114 = arith.truncf %113 : vector<8x8xf32> to vector<8x8xbf16>
    %115 = vector.extract_strided_slice %71 {offsets = [16, 0], sizes = [8, 256], strides = [1, 1]} : vector<64x256xf32> to vector<8x256xf32>
    %116 = arith.truncf %115 : vector<8x256xf32> to vector<8x256xbf16>
    %117 = vector.extract_strided_slice %71 {offsets = [48, 0], sizes = [8, 256], strides = [1, 1]} : vector<64x256xf32> to vector<8x256xf32>
    %118 = arith.truncf %117 : vector<8x256xf32> to vector<8x256xbf16>
    %cst_46 = arith.constant dense<0.000000e+00> : vector<8x256xf32>
    %119 = tpu.matmul %114, %116, %cst_46 {dimension_numbers = #tpu.dot_dimension_numbers<[1], [0], [0], [1], [0, 0, 1, 1], [], []>} : vector<8x8xbf16>, vector<8x256xbf16>, vector<8x256xf32> -> vector<8x256xf32>
    %cst_47 = arith.constant dense<0xFF800000> : vector<8xf32>
    %120 = vector.multi_reduction <maximumf>, %119, %cst_47 [1] : vector<8x256xf32> to vector<8xf32>
    %121 = vector.shape_cast %120 : vector<8xf32> to vector<8x1xf32>
    %122 = vector.broadcast %121 : vector<8x1xf32> to vector<8x256xf32>
    %123 = arith.subf %119, %122 : vector<8x256xf32>
    %124 = math.exp %123 : vector<8x256xf32>
    %cst_48 = arith.constant dense<0.000000e+00> : vector<8xf32>
    %125 = vector.multi_reduction <add>, %124, %cst_48 [1] : vector<8x256xf32> to vector<8xf32>
    %126 = vector.shape_cast %125 : vector<8xf32> to vector<8x1xf32>
    %127 = tpu.reciprocal %126 {approx = true} : vector<8x1xf32> -> vector<8x1xf32>
    %128 = vector.broadcast %127 : vector<8x1xf32> to vector<8x256xf32>
    %129 = arith.mulf %124, %128 : vector<8x256xf32>
    %130 = arith.truncf %129 : vector<8x256xf32> to vector<8x256xbf16>
    %cst_49 = arith.constant dense<0.000000e+00> : vector<8x8xf32>
    %131 = tpu.matmul %130, %118, %cst_49 {dimension_numbers = #tpu.dot_dimension_numbers<[1], [1], [0], [0], [0, 0, 1, 0], [], []>} : vector<8x256xbf16>, vector<8x256xbf16>, vector<8x8xf32> -> vector<8x8xf32>
    %132 = vector.extract_strided_slice %64 {offsets = [0, 24], sizes = [8, 8], strides = [1, 1]} : vector<8x32xf32> to vector<8x8xf32>
    %133 = arith.truncf %132 : vector<8x8xf32> to vector<8x8xbf16>
    %134 = vector.extract_strided_slice %71 {offsets = [24, 0], sizes = [8, 256], strides = [1, 1]} : vector<64x256xf32> to vector<8x256xf32>
    %135 = arith.truncf %134 : vector<8x256xf32> to vector<8x256xbf16>
    %136 = vector.extract_strided_slice %71 {offsets = [56, 0], sizes = [8, 256], strides = [1, 1]} : vector<64x256xf32> to vector<8x256xf32>
    %137 = arith.truncf %136 : vector<8x256xf32> to vector<8x256xbf16>
    %cst_50 = arith.constant dense<0.000000e+00> : vector<8x256xf32>
    %138 = tpu.matmul %133, %135, %cst_50 {dimension_numbers = #tpu.dot_dimension_numbers<[1], [0], [0], [1], [0, 0, 1, 1], [], []>} : vector<8x8xbf16>, vector<8x256xbf16>, vector<8x256xf32> -> vector<8x256xf32>
    %cst_51 = arith.constant dense<0xFF800000> : vector<8xf32>
    %139 = vector.multi_reduction <maximumf>, %138, %cst_51 [1] : vector<8x256xf32> to vector<8xf32>
    %140 = vector.shape_cast %139 : vector<8xf32> to vector<8x1xf32>
    %141 = vector.broadcast %140 : vector<8x1xf32> to vector<8x256xf32>
    %142 = arith.subf %138, %141 : vector<8x256xf32>
    %143 = math.exp %142 : vector<8x256xf32>
    %cst_52 = arith.constant dense<0.000000e+00> : vector<8xf32>
    %144 = vector.multi_reduction <add>, %143, %cst_52 [1] : vector<8x256xf32> to vector<8xf32>
    %145 = vector.shape_cast %144 : vector<8xf32> to vector<8x1xf32>
    %146 = tpu.reciprocal %145 {approx = true} : vector<8x1xf32> -> vector<8x1xf32>
    %147 = vector.broadcast %146 : vector<8x1xf32> to vector<8x256xf32>
    %148 = arith.mulf %143, %147 : vector<8x256xf32>
    %149 = arith.truncf %148 : vector<8x256xf32> to vector<8x256xbf16>
    %cst_53 = arith.constant dense<0.000000e+00> : vector<8x8xf32>
    %150 = tpu.matmul %149, %137, %cst_53 {dimension_numbers = #tpu.dot_dimension_numbers<[1], [1], [0], [0], [0, 0, 1, 0], [], []>} : vector<8x256xbf16>, vector<8x256xbf16>, vector<8x8xf32> -> vector<8x8xf32>
    %151 = tpu.concatenate %93, %112, %131, %150 in 1 : vector<8x8xf32>, vector<8x8xf32>, vector<8x8xf32>, vector<8x8xf32> -> vector<8x32xf32>
    %152 = arith.truncf %151 : vector<8x32xf32> to vector<8x32xbf16>
    %cst_54 = arith.constant dense<0.000000e+00> : vector<8x32xf32>
    %153 = tpu.matmul %152, %73, %cst_54 {dimension_numbers = #tpu.dot_dimension_numbers<[1], [0], [0], [1], [0, 0, 1, 1], [], []>} : vector<8x32xbf16>, vector<32x32xbf16>, vector<8x32xf32> -> vector<8x32xf32>
    %154 = vector.broadcast %74 : vector<1x32xf32> to vector<8x32xf32>
    %155 = arith.addf %153, %154 : vector<8x32xf32>
    %156 = arith.addf %29, %155 : vector<8x32xf32>
    %157 = vector.extract_strided_slice %31 {offsets = [2, 0], sizes = [1, 32], strides = [1, 1]} : vector<6x32xf32> to vector<1x32xf32>
    %158 = vector.extract_strided_slice %31 {offsets = [3, 0], sizes = [1, 32], strides = [1, 1]} : vector<6x32xf32> to vector<1x32xf32>
    %cst_55 = arith.constant dense<0.000000e+00> : vector<8xf32>
    %159 = vector.multi_reduction <add>, %156, %cst_55 [1] : vector<8x32xf32> to vector<8xf32>
    %160 = vector.shape_cast %159 : vector<8xf32> to vector<8x1xf32>
    %cst_56 = arith.constant 3.200000e+01 : f32
    %161 = vector.broadcast %cst_56 : f32 to vector<8x1xf32>
    %162 = arith.divf %160, %161 : vector<8x1xf32>
    %163 = vector.broadcast %162 : vector<8x1xf32> to vector<8x32xf32>
    %164 = arith.subf %156, %163 : vector<8x32xf32>
    %165 = arith.mulf %164, %164 : vector<8x32xf32>
    %cst_57 = arith.constant dense<0.000000e+00> : vector<8xf32>
    %166 = vector.multi_reduction <add>, %165, %cst_57 [1] : vector<8x32xf32> to vector<8xf32>
    %167 = vector.shape_cast %166 : vector<8xf32> to vector<8x1xf32>
    %cst_58 = arith.constant 3.200000e+01 : f32
    %168 = vector.broadcast %cst_58 : f32 to vector<8x1xf32>
    %169 = arith.divf %167, %168 : vector<8x1xf32>
    %170 = vector.broadcast %162 : vector<8x1xf32> to vector<8x32xf32>
    %171 = arith.subf %156, %170 : vector<8x32xf32>
    %cst_59 = arith.constant 9.99999974E-6 : f32
    %172 = vector.broadcast %cst_59 : f32 to vector<8x1xf32>
    %173 = arith.addf %169, %172 : vector<8x1xf32>
    %174 = math.rsqrt %173 : vector<8x1xf32>
    %175 = vector.broadcast %174 : vector<8x1xf32> to vector<8x32xf32>
    %176 = arith.mulf %171, %175 : vector<8x32xf32>
    %177 = vector.broadcast %157 : vector<1x32xf32> to vector<8x32xf32>
    %178 = arith.mulf %176, %177 : vector<8x32xf32>
    %179 = vector.broadcast %158 : vector<1x32xf32> to vector<8x32xf32>
    %180 = arith.addf %178, %179 : vector<8x32xf32>
    %181 = arith.truncf %180 : vector<8x32xf32> to vector<8x32xbf16>
    %c0_60 = arith.constant 0 : index
    %c0_61 = arith.constant 0 : index
    %c0_62 = arith.constant 0 : index
    %182 = vector.load %arg9[%c0_60, %c0_61, %c0_62] : memref<2x32x96xbf16, #tpu.memory_space<vmem>>, vector<1x32x96xbf16>
    %183 = vector.shape_cast %182 : vector<1x32x96xbf16> to vector<32x96xbf16>
    %cst_63 = arith.constant dense<0.000000e+00> : vector<8x96xf32>
    %184 = tpu.matmul %181, %183, %cst_63 {dimension_numbers = #tpu.dot_dimension_numbers<[1], [0], [0], [1], [0, 0, 1, 1], [], []>} : vector<8x32xbf16>, vector<32x96xbf16>, vector<8x96xf32> -> vector<8x96xf32>
    %c0_64 = arith.constant 0 : index
    %c0_65 = arith.constant 0 : index
    %c0_66 = arith.constant 0 : index
    %185 = vector.load %arg15[%c0_64, %c0_65, %c0_66] : memref<2x1x96xf32, #tpu.memory_space<vmem>>, vector<1x1x96xf32>
    %186 = vector.shape_cast %185 : vector<1x1x96xf32> to vector<1x96xf32>
    %187 = vector.broadcast %186 : vector<1x96xf32> to vector<8x96xf32>
    %188 = arith.addf %184, %187 : vector<8x96xf32>
    %c0_67 = arith.constant 0 : index
    %c0_68 = arith.constant 0 : index
    %c0_69 = arith.constant 0 : index
    %189 = vector.load %arg10[%c0_67, %c0_68, %c0_69] : memref<2x32x32xbf16, #tpu.memory_space<vmem>>, vector<1x32x32xbf16>
    %190 = vector.shape_cast %189 : vector<1x32x32xbf16> to vector<32x32xbf16>
    %191 = vector.extract_strided_slice %33 {offsets = [2, 0], sizes = [1, 32], strides = [1, 1]} : vector<4x32xf32> to vector<1x32xf32>
    %192 = vector.extract_strided_slice %188 {offsets = [0, 0], sizes = [8, 8], strides = [1, 1]} : vector<8x96xf32> to vector<8x8xf32>
    %193 = arith.truncf %192 : vector<8x8xf32> to vector<8x8xbf16>
    %194 = vector.extract_strided_slice %188 {offsets = [0, 32], sizes = [8, 8], strides = [1, 1]} : vector<8x96xf32> to vector<8x8xf32>
    %195 = arith.truncf %194 : vector<8x8xf32> to vector<8x8xbf16>
    %196 = vector.extract_strided_slice %188 {offsets = [0, 64], sizes = [8, 8], strides = [1, 1]} : vector<8x96xf32> to vector<8x8xf32>
    %197 = arith.truncf %196 : vector<8x8xf32> to vector<8x8xbf16>
    %cst_70 = arith.constant dense<0.000000e+00> : vector<8x8xf32>
    %198 = tpu.matmul %193, %195, %cst_70 {dimension_numbers = #tpu.dot_dimension_numbers<[1], [1], [0], [0], [0, 0, 1, 0], [], []>} : vector<8x8xbf16>, vector<8x8xbf16>, vector<8x8xf32> -> vector<8x8xf32>
    %cst_71 = arith.constant dense<0xFF800000> : vector<8xf32>
    %199 = vector.multi_reduction <maximumf>, %198, %cst_71 [1] : vector<8x8xf32> to vector<8xf32>
    %200 = vector.shape_cast %199 : vector<8xf32> to vector<8x1xf32>
    %201 = vector.broadcast %200 : vector<8x1xf32> to vector<8x8xf32>
    %202 = arith.subf %198, %201 : vector<8x8xf32>
    %203 = math.exp %202 : vector<8x8xf32>
    %cst_72 = arith.constant dense<0.000000e+00> : vector<8xf32>
    %204 = vector.multi_reduction <add>, %203, %cst_72 [1] : vector<8x8xf32> to vector<8xf32>
    %205 = vector.shape_cast %204 : vector<8xf32> to vector<8x1xf32>
    %206 = tpu.reciprocal %205 {approx = true} : vector<8x1xf32> -> vector<8x1xf32>
    %207 = vector.broadcast %206 : vector<8x1xf32> to vector<8x8xf32>
    %208 = arith.mulf %203, %207 : vector<8x8xf32>
    %209 = arith.truncf %208 : vector<8x8xf32> to vector<8x8xbf16>
    %cst_73 = arith.constant dense<0.000000e+00> : vector<8x8xf32>
    %210 = tpu.matmul %209, %197, %cst_73 {dimension_numbers = #tpu.dot_dimension_numbers<[1], [0], [0], [1], [0, 0, 1, 1], [], []>} : vector<8x8xbf16>, vector<8x8xbf16>, vector<8x8xf32> -> vector<8x8xf32>
    %211 = vector.extract_strided_slice %188 {offsets = [0, 8], sizes = [8, 8], strides = [1, 1]} : vector<8x96xf32> to vector<8x8xf32>
    %212 = arith.truncf %211 : vector<8x8xf32> to vector<8x8xbf16>
    %213 = vector.extract_strided_slice %188 {offsets = [0, 40], sizes = [8, 8], strides = [1, 1]} : vector<8x96xf32> to vector<8x8xf32>
    %214 = arith.truncf %213 : vector<8x8xf32> to vector<8x8xbf16>
    %215 = vector.extract_strided_slice %188 {offsets = [0, 72], sizes = [8, 8], strides = [1, 1]} : vector<8x96xf32> to vector<8x8xf32>
    %216 = arith.truncf %215 : vector<8x8xf32> to vector<8x8xbf16>
    %cst_74 = arith.constant dense<0.000000e+00> : vector<8x8xf32>
    %217 = tpu.matmul %212, %214, %cst_74 {dimension_numbers = #tpu.dot_dimension_numbers<[1], [1], [0], [0], [0, 0, 1, 0], [], []>} : vector<8x8xbf16>, vector<8x8xbf16>, vector<8x8xf32> -> vector<8x8xf32>
    %cst_75 = arith.constant dense<0xFF800000> : vector<8xf32>
    %218 = vector.multi_reduction <maximumf>, %217, %cst_75 [1] : vector<8x8xf32> to vector<8xf32>
    %219 = vector.shape_cast %218 : vector<8xf32> to vector<8x1xf32>
    %220 = vector.broadcast %219 : vector<8x1xf32> to vector<8x8xf32>
    %221 = arith.subf %217, %220 : vector<8x8xf32>
    %222 = math.exp %221 : vector<8x8xf32>
    %cst_76 = arith.constant dense<0.000000e+00> : vector<8xf32>
    %223 = vector.multi_reduction <add>, %222, %cst_76 [1] : vector<8x8xf32> to vector<8xf32>
    %224 = vector.shape_cast %223 : vector<8xf32> to vector<8x1xf32>
    %225 = tpu.reciprocal %224 {approx = true} : vector<8x1xf32> -> vector<8x1xf32>
    %226 = vector.broadcast %225 : vector<8x1xf32> to vector<8x8xf32>
    %227 = arith.mulf %222, %226 : vector<8x8xf32>
    %228 = arith.truncf %227 : vector<8x8xf32> to vector<8x8xbf16>
    %cst_77 = arith.constant dense<0.000000e+00> : vector<8x8xf32>
    %229 = tpu.matmul %228, %216, %cst_77 {dimension_numbers = #tpu.dot_dimension_numbers<[1], [0], [0], [1], [0, 0, 1, 1], [], []>} : vector<8x8xbf16>, vector<8x8xbf16>, vector<8x8xf32> -> vector<8x8xf32>
    %230 = vector.extract_strided_slice %188 {offsets = [0, 16], sizes = [8, 8], strides = [1, 1]} : vector<8x96xf32> to vector<8x8xf32>
    %231 = arith.truncf %230 : vector<8x8xf32> to vector<8x8xbf16>
    %232 = vector.extract_strided_slice %188 {offsets = [0, 48], sizes = [8, 8], strides = [1, 1]} : vector<8x96xf32> to vector<8x8xf32>
    %233 = arith.truncf %232 : vector<8x8xf32> to vector<8x8xbf16>
    %234 = vector.extract_strided_slice %188 {offsets = [0, 80], sizes = [8, 8], strides = [1, 1]} : vector<8x96xf32> to vector<8x8xf32>
    %235 = arith.truncf %234 : vector<8x8xf32> to vector<8x8xbf16>
    %cst_78 = arith.constant dense<0.000000e+00> : vector<8x8xf32>
    %236 = tpu.matmul %231, %233, %cst_78 {dimension_numbers = #tpu.dot_dimension_numbers<[1], [1], [0], [0], [0, 0, 1, 0], [], []>} : vector<8x8xbf16>, vector<8x8xbf16>, vector<8x8xf32> -> vector<8x8xf32>
    %cst_79 = arith.constant dense<0xFF800000> : vector<8xf32>
    %237 = vector.multi_reduction <maximumf>, %236, %cst_79 [1] : vector<8x8xf32> to vector<8xf32>
    %238 = vector.shape_cast %237 : vector<8xf32> to vector<8x1xf32>
    %239 = vector.broadcast %238 : vector<8x1xf32> to vector<8x8xf32>
    %240 = arith.subf %236, %239 : vector<8x8xf32>
    %241 = math.exp %240 : vector<8x8xf32>
    %cst_80 = arith.constant dense<0.000000e+00> : vector<8xf32>
    %242 = vector.multi_reduction <add>, %241, %cst_80 [1] : vector<8x8xf32> to vector<8xf32>
    %243 = vector.shape_cast %242 : vector<8xf32> to vector<8x1xf32>
    %244 = tpu.reciprocal %243 {approx = true} : vector<8x1xf32> -> vector<8x1xf32>
    %245 = vector.broadcast %244 : vector<8x1xf32> to vector<8x8xf32>
    %246 = arith.mulf %241, %245 : vector<8x8xf32>
    %247 = arith.truncf %246 : vector<8x8xf32> to vector<8x8xbf16>
    %cst_81 = arith.constant dense<0.000000e+00> : vector<8x8xf32>
    %248 = tpu.matmul %247, %235, %cst_81 {dimension_numbers = #tpu.dot_dimension_numbers<[1], [0], [0], [1], [0, 0, 1, 1], [], []>} : vector<8x8xbf16>, vector<8x8xbf16>, vector<8x8xf32> -> vector<8x8xf32>
    %249 = vector.extract_strided_slice %188 {offsets = [0, 24], sizes = [8, 8], strides = [1, 1]} : vector<8x96xf32> to vector<8x8xf32>
    %250 = arith.truncf %249 : vector<8x8xf32> to vector<8x8xbf16>
    %251 = vector.extract_strided_slice %188 {offsets = [0, 56], sizes = [8, 8], strides = [1, 1]} : vector<8x96xf32> to vector<8x8xf32>
    %252 = arith.truncf %251 : vector<8x8xf32> to vector<8x8xbf16>
    %253 = vector.extract_strided_slice %188 {offsets = [0, 88], sizes = [8, 8], strides = [1, 1]} : vector<8x96xf32> to vector<8x8xf32>
    %254 = arith.truncf %253 : vector<8x8xf32> to vector<8x8xbf16>
    %cst_82 = arith.constant dense<0.000000e+00> : vector<8x8xf32>
    %255 = tpu.matmul %250, %252, %cst_82 {dimension_numbers = #tpu.dot_dimension_numbers<[1], [1], [0], [0], [0, 0, 1, 0], [], []>} : vector<8x8xbf16>, vector<8x8xbf16>, vector<8x8xf32> -> vector<8x8xf32>
    %cst_83 = arith.constant dense<0xFF800000> : vector<8xf32>
    %256 = vector.multi_reduction <maximumf>, %255, %cst_83 [1] : vector<8x8xf32> to vector<8xf32>
    %257 = vector.shape_cast %256 : vector<8xf32> to vector<8x1xf32>
    %258 = vector.broadcast %257 : vector<8x1xf32> to vector<8x8xf32>
    %259 = arith.subf %255, %258 : vector<8x8xf32>
    %260 = math.exp %259 : vector<8x8xf32>
    %cst_84 = arith.constant dense<0.000000e+00> : vector<8xf32>
    %261 = vector.multi_reduction <add>, %260, %cst_84 [1] : vector<8x8xf32> to vector<8xf32>
    %262 = vector.shape_cast %261 : vector<8xf32> to vector<8x1xf32>
    %263 = tpu.reciprocal %262 {approx = true} : vector<8x1xf32> -> vector<8x1xf32>
    %264 = vector.broadcast %263 : vector<8x1xf32> to vector<8x8xf32>
    %265 = arith.mulf %260, %264 : vector<8x8xf32>
    %266 = arith.truncf %265 : vector<8x8xf32> to vector<8x8xbf16>
    %cst_85 = arith.constant dense<0.000000e+00> : vector<8x8xf32>
    %267 = tpu.matmul %266, %254, %cst_85 {dimension_numbers = #tpu.dot_dimension_numbers<[1], [0], [0], [1], [0, 0, 1, 1], [], []>} : vector<8x8xbf16>, vector<8x8xbf16>, vector<8x8xf32> -> vector<8x8xf32>
    %268 = tpu.concatenate %210, %229, %248, %267 in 1 : vector<8x8xf32>, vector<8x8xf32>, vector<8x8xf32>, vector<8x8xf32> -> vector<8x32xf32>
    %269 = arith.truncf %268 : vector<8x32xf32> to vector<8x32xbf16>
    %cst_86 = arith.constant dense<0.000000e+00> : vector<8x32xf32>
    %270 = tpu.matmul %269, %190, %cst_86 {dimension_numbers = #tpu.dot_dimension_numbers<[1], [0], [0], [1], [0, 0, 1, 1], [], []>} : vector<8x32xbf16>, vector<32x32xbf16>, vector<8x32xf32> -> vector<8x32xf32>
    %271 = vector.broadcast %191 : vector<1x32xf32> to vector<8x32xf32>
    %272 = arith.addf %270, %271 : vector<8x32xf32>
    %273 = arith.addf %156, %272 : vector<8x32xf32>
    %274 = vector.extract_strided_slice %31 {offsets = [4, 0], sizes = [1, 32], strides = [1, 1]} : vector<6x32xf32> to vector<1x32xf32>
    %275 = vector.extract_strided_slice %31 {offsets = [5, 0], sizes = [1, 32], strides = [1, 1]} : vector<6x32xf32> to vector<1x32xf32>
    %cst_87 = arith.constant dense<0.000000e+00> : vector<8xf32>
    %276 = vector.multi_reduction <add>, %273, %cst_87 [1] : vector<8x32xf32> to vector<8xf32>
    %277 = vector.shape_cast %276 : vector<8xf32> to vector<8x1xf32>
    %cst_88 = arith.constant 3.200000e+01 : f32
    %278 = vector.broadcast %cst_88 : f32 to vector<8x1xf32>
    %279 = arith.divf %277, %278 : vector<8x1xf32>
    %280 = vector.broadcast %279 : vector<8x1xf32> to vector<8x32xf32>
    %281 = arith.subf %273, %280 : vector<8x32xf32>
    %282 = arith.mulf %281, %281 : vector<8x32xf32>
    %cst_89 = arith.constant dense<0.000000e+00> : vector<8xf32>
    %283 = vector.multi_reduction <add>, %282, %cst_89 [1] : vector<8x32xf32> to vector<8xf32>
    %284 = vector.shape_cast %283 : vector<8xf32> to vector<8x1xf32>
    %cst_90 = arith.constant 3.200000e+01 : f32
    %285 = vector.broadcast %cst_90 : f32 to vector<8x1xf32>
    %286 = arith.divf %284, %285 : vector<8x1xf32>
    %287 = vector.broadcast %279 : vector<8x1xf32> to vector<8x32xf32>
    %288 = arith.subf %273, %287 : vector<8x32xf32>
    %cst_91 = arith.constant 9.99999974E-6 : f32
    %289 = vector.broadcast %cst_91 : f32 to vector<8x1xf32>
    %290 = arith.addf %286, %289 : vector<8x1xf32>
    %291 = math.rsqrt %290 : vector<8x1xf32>
    %292 = vector.broadcast %291 : vector<8x1xf32> to vector<8x32xf32>
    %293 = arith.mulf %288, %292 : vector<8x32xf32>
    %294 = vector.broadcast %274 : vector<1x32xf32> to vector<8x32xf32>
    %295 = arith.mulf %293, %294 : vector<8x32xf32>
    %296 = vector.broadcast %275 : vector<1x32xf32> to vector<8x32xf32>
    %297 = arith.addf %295, %296 : vector<8x32xf32>
    %298 = arith.truncf %297 : vector<8x32xf32> to vector<8x32xbf16>
    %c0_92 = arith.constant 0 : index
    %c0_93 = arith.constant 0 : index
    %c0_94 = arith.constant 0 : index
    %299 = vector.load %arg11[%c0_92, %c0_93, %c0_94] : memref<2x32x128xbf16, #tpu.memory_space<vmem>>, vector<1x32x128xbf16>
    %300 = vector.shape_cast %299 : vector<1x32x128xbf16> to vector<32x128xbf16>
    %cst_95 = arith.constant dense<0.000000e+00> : vector<8x128xf32>
    %301 = tpu.matmul %298, %300, %cst_95 {dimension_numbers = #tpu.dot_dimension_numbers<[1], [0], [0], [1], [0, 0, 1, 1], [], []>} : vector<8x32xbf16>, vector<32x128xbf16>, vector<8x128xf32> -> vector<8x128xf32>
    %c0_96 = arith.constant 0 : index
    %c0_97 = arith.constant 0 : index
    %c0_98 = arith.constant 0 : index
    %302 = vector.load %arg16[%c0_96, %c0_97, %c0_98] : memref<2x1x128xf32, #tpu.memory_space<vmem>>, vector<1x1x128xf32>
    %303 = vector.shape_cast %302 : vector<1x1x128xf32> to vector<1x128xf32>
    %304 = vector.broadcast %303 : vector<1x128xf32> to vector<8x128xf32>
    %305 = arith.addf %301, %304 : vector<8x128xf32>
    %cst_99 = arith.constant 5.000000e-01 : f32
    %306 = vector.broadcast %cst_99 : f32 to vector<8x128xf32>
    %307 = arith.mulf %306, %305 : vector<8x128xf32>
    %cst_100 = arith.constant 0.707106769 : f32
    %308 = vector.broadcast %cst_100 : f32 to vector<8x128xf32>
    %309 = arith.mulf %305, %308 : vector<8x128xf32>
    %310 = math.absf %309 : vector<8x128xf32>
    %cst_101 = arith.constant 0.327591091 : f32
    %311 = vector.broadcast %cst_101 : f32 to vector<8x128xf32>
    %312 = arith.mulf %311, %310 : vector<8x128xf32>
    %cst_102 = arith.constant 1.000000e+00 : f32
    %313 = vector.broadcast %cst_102 : f32 to vector<8x128xf32>
    %314 = arith.addf %313, %312 : vector<8x128xf32>
    %315 = tpu.reciprocal %314 {approx = true} : vector<8x128xf32> -> vector<8x128xf32>
    %cst_103 = arith.constant 1.06140542 : f32
    %316 = vector.broadcast %cst_103 : f32 to vector<8x128xf32>
    %317 = arith.mulf %316, %315 : vector<8x128xf32>
    %cst_104 = arith.constant -1.45315206 : f32
    %318 = vector.broadcast %cst_104 : f32 to vector<8x128xf32>
    %319 = arith.addf %317, %318 : vector<8x128xf32>
    %320 = arith.mulf %319, %315 : vector<8x128xf32>
    %cst_105 = arith.constant 1.42141378 : f32
    %321 = vector.broadcast %cst_105 : f32 to vector<8x128xf32>
    %322 = arith.addf %320, %321 : vector<8x128xf32>
    %323 = arith.mulf %322, %315 : vector<8x128xf32>
    %cst_106 = arith.constant -0.284496725 : f32
    %324 = vector.broadcast %cst_106 : f32 to vector<8x128xf32>
    %325 = arith.addf %323, %324 : vector<8x128xf32>
    %326 = arith.mulf %325, %315 : vector<8x128xf32>
    %cst_107 = arith.constant 0.254829586 : f32
    %327 = vector.broadcast %cst_107 : f32 to vector<8x128xf32>
    %328 = arith.addf %326, %327 : vector<8x128xf32>
    %329 = arith.mulf %328, %315 : vector<8x128xf32>
    %cst_108 = arith.constant 0.000000e+00 : f32
    %330 = vector.broadcast %cst_108 : f32 to vector<8x128xf32>
    %331 = arith.subf %330, %310 : vector<8x128xf32>
    %332 = arith.mulf %331, %310 : vector<8x128xf32>
    %333 = math.exp %332 : vector<8x128xf32>
    %334 = arith.mulf %329, %333 : vector<8x128xf32>
    %cst_109 = arith.constant 1.000000e+00 : f32
    %335 = vector.broadcast %cst_109 : f32 to vector<8x128xf32>
    %336 = arith.subf %335, %334 : vector<8x128xf32>
    %cst_110 = arith.constant 0.000000e+00 : f32
    %337 = vector.broadcast %cst_110 : f32 to vector<8x128xf32>
    %338 = arith.cmpf oge, %309, %337 : vector<8x128xf32>
    %cst_111 = arith.constant 0.000000e+00 : f32
    %339 = vector.broadcast %cst_111 : f32 to vector<8x128xf32>
    %340 = arith.subf %339, %336 : vector<8x128xf32>
    %341 = arith.select %338, %336, %340 : vector<8x128xi1>, vector<8x128xf32>
    %cst_112 = arith.constant 1.000000e+00 : f32
    %342 = vector.broadcast %cst_112 : f32 to vector<8x128xf32>
    %343 = arith.addf %342, %341 : vector<8x128xf32>
    %344 = arith.mulf %307, %343 : vector<8x128xf32>
    %345 = arith.truncf %344 : vector<8x128xf32> to vector<8x128xbf16>
    %c0_113 = arith.constant 0 : index
    %c0_114 = arith.constant 0 : index
    %c0_115 = arith.constant 0 : index
    %346 = vector.load %arg12[%c0_113, %c0_114, %c0_115] : memref<2x128x32xbf16, #tpu.memory_space<vmem>>, vector<1x128x32xbf16>
    %347 = vector.shape_cast %346 : vector<1x128x32xbf16> to vector<128x32xbf16>
    %cst_116 = arith.constant dense<0.000000e+00> : vector<8x32xf32>
    %348 = tpu.matmul %345, %347, %cst_116 {dimension_numbers = #tpu.dot_dimension_numbers<[1], [0], [0], [1], [0, 0, 1, 1], [], []>} : vector<8x128xbf16>, vector<128x32xbf16>, vector<8x32xf32> -> vector<8x32xf32>
    %349 = arith.addf %273, %348 : vector<8x32xf32>
    %350 = vector.extract_strided_slice %33 {offsets = [3, 0], sizes = [1, 32], strides = [1, 1]} : vector<4x32xf32> to vector<1x32xf32>
    %351 = vector.broadcast %350 : vector<1x32xf32> to vector<8x32xf32>
    %352 = arith.addf %349, %351 : vector<8x32xf32>
    %c1_117 = arith.constant 1 : index
    %c0_118 = arith.constant 0 : index
    %c0_119 = arith.constant 0 : index
    %353 = vector.load %arg5[%c1_117, %c0_118, %c0_119] : memref<2x6x32xf32, #tpu.memory_space<vmem>>, vector<1x6x32xf32>
    %354 = vector.shape_cast %353 : vector<1x6x32xf32> to vector<6x32xf32>
    %c1_120 = arith.constant 1 : index
    %c0_121 = arith.constant 0 : index
    %c0_122 = arith.constant 0 : index
    %355 = vector.load %arg13[%c1_120, %c0_121, %c0_122] : memref<2x4x32xf32, #tpu.memory_space<vmem>>, vector<1x4x32xf32>
    %356 = vector.shape_cast %355 : vector<1x4x32xf32> to vector<4x32xf32>
    %357 = vector.extract_strided_slice %354 {offsets = [0, 0], sizes = [1, 32], strides = [1, 1]} : vector<6x32xf32> to vector<1x32xf32>
    %358 = vector.extract_strided_slice %354 {offsets = [1, 0], sizes = [1, 32], strides = [1, 1]} : vector<6x32xf32> to vector<1x32xf32>
    %cst_123 = arith.constant dense<0.000000e+00> : vector<8xf32>
    %359 = vector.multi_reduction <add>, %352, %cst_123 [1] : vector<8x32xf32> to vector<8xf32>
    %360 = vector.shape_cast %359 : vector<8xf32> to vector<8x1xf32>
    %cst_124 = arith.constant 3.200000e+01 : f32
    %361 = vector.broadcast %cst_124 : f32 to vector<8x1xf32>
    %362 = arith.divf %360, %361 : vector<8x1xf32>
    %363 = vector.broadcast %362 : vector<8x1xf32> to vector<8x32xf32>
    %364 = arith.subf %352, %363 : vector<8x32xf32>
    %365 = arith.mulf %364, %364 : vector<8x32xf32>
    %cst_125 = arith.constant dense<0.000000e+00> : vector<8xf32>
    %366 = vector.multi_reduction <add>, %365, %cst_125 [1] : vector<8x32xf32> to vector<8xf32>
    %367 = vector.shape_cast %366 : vector<8xf32> to vector<8x1xf32>
    %cst_126 = arith.constant 3.200000e+01 : f32
    %368 = vector.broadcast %cst_126 : f32 to vector<8x1xf32>
    %369 = arith.divf %367, %368 : vector<8x1xf32>
    %370 = vector.broadcast %362 : vector<8x1xf32> to vector<8x32xf32>
    %371 = arith.subf %352, %370 : vector<8x32xf32>
    %cst_127 = arith.constant 9.99999974E-6 : f32
    %372 = vector.broadcast %cst_127 : f32 to vector<8x1xf32>
    %373 = arith.addf %369, %372 : vector<8x1xf32>
    %374 = math.rsqrt %373 : vector<8x1xf32>
    %375 = vector.broadcast %374 : vector<8x1xf32> to vector<8x32xf32>
    %376 = arith.mulf %371, %375 : vector<8x32xf32>
    %377 = vector.broadcast %357 : vector<1x32xf32> to vector<8x32xf32>
    %378 = arith.mulf %376, %377 : vector<8x32xf32>
    %379 = vector.broadcast %358 : vector<1x32xf32> to vector<8x32xf32>
    %380 = arith.addf %378, %379 : vector<8x32xf32>
    %381 = arith.truncf %380 : vector<8x32xf32> to vector<8x32xbf16>
    %c1_128 = arith.constant 1 : index
    %c0_129 = arith.constant 0 : index
    %c0_130 = arith.constant 0 : index
    %382 = vector.load %arg6[%c1_128, %c0_129, %c0_130] : memref<2x32x32xbf16, #tpu.memory_space<vmem>>, vector<1x32x32xbf16>
    %383 = vector.shape_cast %382 : vector<1x32x32xbf16> to vector<32x32xbf16>
    %cst_131 = arith.constant dense<0.000000e+00> : vector<8x32xf32>
    %384 = tpu.matmul %381, %383, %cst_131 {dimension_numbers = #tpu.dot_dimension_numbers<[1], [0], [0], [1], [0, 0, 1, 1], [], []>} : vector<8x32xbf16>, vector<32x32xbf16>, vector<8x32xf32> -> vector<8x32xf32>
    %385 = vector.extract_strided_slice %356 {offsets = [0, 0], sizes = [1, 32], strides = [1, 1]} : vector<4x32xf32> to vector<1x32xf32>
    %386 = vector.broadcast %385 : vector<1x32xf32> to vector<8x32xf32>
    %387 = arith.addf %384, %386 : vector<8x32xf32>
    %c1_132 = arith.constant 1 : index
    %c0_133 = arith.constant 0 : index
    %c0_134 = arith.constant 0 : index
    %388 = vector.load %arg7[%c1_132, %c0_133, %c0_134] : memref<2x64x32xbf16, #tpu.memory_space<vmem>>, vector<1x64x32xbf16>
    %389 = vector.shape_cast %388 : vector<1x64x32xbf16> to vector<64x32xbf16>
    %cst_135 = arith.constant dense<0.000000e+00> : vector<64x256xf32>
    %390 = tpu.matmul %389, %28, %cst_135 {dimension_numbers = #tpu.dot_dimension_numbers<[1], [0], [0], [1], [0, 0, 1, 1], [], []>} : vector<64x32xbf16>, vector<32x256xbf16>, vector<64x256xf32> -> vector<64x256xf32>
    %c1_136 = arith.constant 1 : index
    %c0_137 = arith.constant 0 : index
    %c0_138 = arith.constant 0 : index
    %391 = vector.load %arg14[%c1_136, %c0_137, %c0_138] : memref<2x64x1xf32, #tpu.memory_space<vmem>>, vector<1x64x1xf32>
    %392 = vector.shape_cast %391 : vector<1x64x1xf32> to vector<64x1xf32>
    %393 = vector.broadcast %392 : vector<64x1xf32> to vector<64x256xf32>
    %394 = arith.addf %390, %393 : vector<64x256xf32>
    %c1_139 = arith.constant 1 : index
    %c0_140 = arith.constant 0 : index
    %c0_141 = arith.constant 0 : index
    %395 = vector.load %arg8[%c1_139, %c0_140, %c0_141] : memref<2x32x32xbf16, #tpu.memory_space<vmem>>, vector<1x32x32xbf16>
    %396 = vector.shape_cast %395 : vector<1x32x32xbf16> to vector<32x32xbf16>
    %397 = vector.extract_strided_slice %356 {offsets = [1, 0], sizes = [1, 32], strides = [1, 1]} : vector<4x32xf32> to vector<1x32xf32>
    %398 = vector.extract_strided_slice %387 {offsets = [0, 0], sizes = [8, 8], strides = [1, 1]} : vector<8x32xf32> to vector<8x8xf32>
    %399 = arith.truncf %398 : vector<8x8xf32> to vector<8x8xbf16>
    %400 = vector.extract_strided_slice %394 {offsets = [0, 0], sizes = [8, 256], strides = [1, 1]} : vector<64x256xf32> to vector<8x256xf32>
    %401 = arith.truncf %400 : vector<8x256xf32> to vector<8x256xbf16>
    %402 = vector.extract_strided_slice %394 {offsets = [32, 0], sizes = [8, 256], strides = [1, 1]} : vector<64x256xf32> to vector<8x256xf32>
    %403 = arith.truncf %402 : vector<8x256xf32> to vector<8x256xbf16>
    %cst_142 = arith.constant dense<0.000000e+00> : vector<8x256xf32>
    %404 = tpu.matmul %399, %401, %cst_142 {dimension_numbers = #tpu.dot_dimension_numbers<[1], [0], [0], [1], [0, 0, 1, 1], [], []>} : vector<8x8xbf16>, vector<8x256xbf16>, vector<8x256xf32> -> vector<8x256xf32>
    %cst_143 = arith.constant dense<0xFF800000> : vector<8xf32>
    %405 = vector.multi_reduction <maximumf>, %404, %cst_143 [1] : vector<8x256xf32> to vector<8xf32>
    %406 = vector.shape_cast %405 : vector<8xf32> to vector<8x1xf32>
    %407 = vector.broadcast %406 : vector<8x1xf32> to vector<8x256xf32>
    %408 = arith.subf %404, %407 : vector<8x256xf32>
    %409 = math.exp %408 : vector<8x256xf32>
    %cst_144 = arith.constant dense<0.000000e+00> : vector<8xf32>
    %410 = vector.multi_reduction <add>, %409, %cst_144 [1] : vector<8x256xf32> to vector<8xf32>
    %411 = vector.shape_cast %410 : vector<8xf32> to vector<8x1xf32>
    %412 = tpu.reciprocal %411 {approx = true} : vector<8x1xf32> -> vector<8x1xf32>
    %413 = vector.broadcast %412 : vector<8x1xf32> to vector<8x256xf32>
    %414 = arith.mulf %409, %413 : vector<8x256xf32>
    %415 = arith.truncf %414 : vector<8x256xf32> to vector<8x256xbf16>
    %cst_145 = arith.constant dense<0.000000e+00> : vector<8x8xf32>
    %416 = tpu.matmul %415, %403, %cst_145 {dimension_numbers = #tpu.dot_dimension_numbers<[1], [1], [0], [0], [0, 0, 1, 0], [], []>} : vector<8x256xbf16>, vector<8x256xbf16>, vector<8x8xf32> -> vector<8x8xf32>
    %417 = vector.extract_strided_slice %387 {offsets = [0, 8], sizes = [8, 8], strides = [1, 1]} : vector<8x32xf32> to vector<8x8xf32>
    %418 = arith.truncf %417 : vector<8x8xf32> to vector<8x8xbf16>
    %419 = vector.extract_strided_slice %394 {offsets = [8, 0], sizes = [8, 256], strides = [1, 1]} : vector<64x256xf32> to vector<8x256xf32>
    %420 = arith.truncf %419 : vector<8x256xf32> to vector<8x256xbf16>
    %421 = vector.extract_strided_slice %394 {offsets = [40, 0], sizes = [8, 256], strides = [1, 1]} : vector<64x256xf32> to vector<8x256xf32>
    %422 = arith.truncf %421 : vector<8x256xf32> to vector<8x256xbf16>
    %cst_146 = arith.constant dense<0.000000e+00> : vector<8x256xf32>
    %423 = tpu.matmul %418, %420, %cst_146 {dimension_numbers = #tpu.dot_dimension_numbers<[1], [0], [0], [1], [0, 0, 1, 1], [], []>} : vector<8x8xbf16>, vector<8x256xbf16>, vector<8x256xf32> -> vector<8x256xf32>
    %cst_147 = arith.constant dense<0xFF800000> : vector<8xf32>
    %424 = vector.multi_reduction <maximumf>, %423, %cst_147 [1] : vector<8x256xf32> to vector<8xf32>
    %425 = vector.shape_cast %424 : vector<8xf32> to vector<8x1xf32>
    %426 = vector.broadcast %425 : vector<8x1xf32> to vector<8x256xf32>
    %427 = arith.subf %423, %426 : vector<8x256xf32>
    %428 = math.exp %427 : vector<8x256xf32>
    %cst_148 = arith.constant dense<0.000000e+00> : vector<8xf32>
    %429 = vector.multi_reduction <add>, %428, %cst_148 [1] : vector<8x256xf32> to vector<8xf32>
    %430 = vector.shape_cast %429 : vector<8xf32> to vector<8x1xf32>
    %431 = tpu.reciprocal %430 {approx = true} : vector<8x1xf32> -> vector<8x1xf32>
    %432 = vector.broadcast %431 : vector<8x1xf32> to vector<8x256xf32>
    %433 = arith.mulf %428, %432 : vector<8x256xf32>
    %434 = arith.truncf %433 : vector<8x256xf32> to vector<8x256xbf16>
    %cst_149 = arith.constant dense<0.000000e+00> : vector<8x8xf32>
    %435 = tpu.matmul %434, %422, %cst_149 {dimension_numbers = #tpu.dot_dimension_numbers<[1], [1], [0], [0], [0, 0, 1, 0], [], []>} : vector<8x256xbf16>, vector<8x256xbf16>, vector<8x8xf32> -> vector<8x8xf32>
    %436 = vector.extract_strided_slice %387 {offsets = [0, 16], sizes = [8, 8], strides = [1, 1]} : vector<8x32xf32> to vector<8x8xf32>
    %437 = arith.truncf %436 : vector<8x8xf32> to vector<8x8xbf16>
    %438 = vector.extract_strided_slice %394 {offsets = [16, 0], sizes = [8, 256], strides = [1, 1]} : vector<64x256xf32> to vector<8x256xf32>
    %439 = arith.truncf %438 : vector<8x256xf32> to vector<8x256xbf16>
    %440 = vector.extract_strided_slice %394 {offsets = [48, 0], sizes = [8, 256], strides = [1, 1]} : vector<64x256xf32> to vector<8x256xf32>
    %441 = arith.truncf %440 : vector<8x256xf32> to vector<8x256xbf16>
    %cst_150 = arith.constant dense<0.000000e+00> : vector<8x256xf32>
    %442 = tpu.matmul %437, %439, %cst_150 {dimension_numbers = #tpu.dot_dimension_numbers<[1], [0], [0], [1], [0, 0, 1, 1], [], []>} : vector<8x8xbf16>, vector<8x256xbf16>, vector<8x256xf32> -> vector<8x256xf32>
    %cst_151 = arith.constant dense<0xFF800000> : vector<8xf32>
    %443 = vector.multi_reduction <maximumf>, %442, %cst_151 [1] : vector<8x256xf32> to vector<8xf32>
    %444 = vector.shape_cast %443 : vector<8xf32> to vector<8x1xf32>
    %445 = vector.broadcast %444 : vector<8x1xf32> to vector<8x256xf32>
    %446 = arith.subf %442, %445 : vector<8x256xf32>
    %447 = math.exp %446 : vector<8x256xf32>
    %cst_152 = arith.constant dense<0.000000e+00> : vector<8xf32>
    %448 = vector.multi_reduction <add>, %447, %cst_152 [1] : vector<8x256xf32> to vector<8xf32>
    %449 = vector.shape_cast %448 : vector<8xf32> to vector<8x1xf32>
    %450 = tpu.reciprocal %449 {approx = true} : vector<8x1xf32> -> vector<8x1xf32>
    %451 = vector.broadcast %450 : vector<8x1xf32> to vector<8x256xf32>
    %452 = arith.mulf %447, %451 : vector<8x256xf32>
    %453 = arith.truncf %452 : vector<8x256xf32> to vector<8x256xbf16>
    %cst_153 = arith.constant dense<0.000000e+00> : vector<8x8xf32>
    %454 = tpu.matmul %453, %441, %cst_153 {dimension_numbers = #tpu.dot_dimension_numbers<[1], [1], [0], [0], [0, 0, 1, 0], [], []>} : vector<8x256xbf16>, vector<8x256xbf16>, vector<8x8xf32> -> vector<8x8xf32>
    %455 = vector.extract_strided_slice %387 {offsets = [0, 24], sizes = [8, 8], strides = [1, 1]} : vector<8x32xf32> to vector<8x8xf32>
    %456 = arith.truncf %455 : vector<8x8xf32> to vector<8x8xbf16>
    %457 = vector.extract_strided_slice %394 {offsets = [24, 0], sizes = [8, 256], strides = [1, 1]} : vector<64x256xf32> to vector<8x256xf32>
    %458 = arith.truncf %457 : vector<8x256xf32> to vector<8x256xbf16>
    %459 = vector.extract_strided_slice %394 {offsets = [56, 0], sizes = [8, 256], strides = [1, 1]} : vector<64x256xf32> to vector<8x256xf32>
    %460 = arith.truncf %459 : vector<8x256xf32> to vector<8x256xbf16>
    %cst_154 = arith.constant dense<0.000000e+00> : vector<8x256xf32>
    %461 = tpu.matmul %456, %458, %cst_154 {dimension_numbers = #tpu.dot_dimension_numbers<[1], [0], [0], [1], [0, 0, 1, 1], [], []>} : vector<8x8xbf16>, vector<8x256xbf16>, vector<8x256xf32> -> vector<8x256xf32>
    %cst_155 = arith.constant dense<0xFF800000> : vector<8xf32>
    %462 = vector.multi_reduction <maximumf>, %461, %cst_155 [1] : vector<8x256xf32> to vector<8xf32>
    %463 = vector.shape_cast %462 : vector<8xf32> to vector<8x1xf32>
    %464 = vector.broadcast %463 : vector<8x1xf32> to vector<8x256xf32>
    %465 = arith.subf %461, %464 : vector<8x256xf32>
    %466 = math.exp %465 : vector<8x256xf32>
    %cst_156 = arith.constant dense<0.000000e+00> : vector<8xf32>
    %467 = vector.multi_reduction <add>, %466, %cst_156 [1] : vector<8x256xf32> to vector<8xf32>
    %468 = vector.shape_cast %467 : vector<8xf32> to vector<8x1xf32>
    %469 = tpu.reciprocal %468 {approx = true} : vector<8x1xf32> -> vector<8x1xf32>
    %470 = vector.broadcast %469 : vector<8x1xf32> to vector<8x256xf32>
    %471 = arith.mulf %466, %470 : vector<8x256xf32>
    %472 = arith.truncf %471 : vector<8x256xf32> to vector<8x256xbf16>
    %cst_157 = arith.constant dense<0.000000e+00> : vector<8x8xf32>
    %473 = tpu.matmul %472, %460, %cst_157 {dimension_numbers = #tpu.dot_dimension_numbers<[1], [1], [0], [0], [0, 0, 1, 0], [], []>} : vector<8x256xbf16>, vector<8x256xbf16>, vector<8x8xf32> -> vector<8x8xf32>
    %474 = tpu.concatenate %416, %435, %454, %473 in 1 : vector<8x8xf32>, vector<8x8xf32>, vector<8x8xf32>, vector<8x8xf32> -> vector<8x32xf32>
    %475 = arith.truncf %474 : vector<8x32xf32> to vector<8x32xbf16>
    %cst_158 = arith.constant dense<0.000000e+00> : vector<8x32xf32>
    %476 = tpu.matmul %475, %396, %cst_158 {dimension_numbers = #tpu.dot_dimension_numbers<[1], [0], [0], [1], [0, 0, 1, 1], [], []>} : vector<8x32xbf16>, vector<32x32xbf16>, vector<8x32xf32> -> vector<8x32xf32>
    %477 = vector.broadcast %397 : vector<1x32xf32> to vector<8x32xf32>
    %478 = arith.addf %476, %477 : vector<8x32xf32>
    %479 = arith.addf %352, %478 : vector<8x32xf32>
    %480 = vector.extract_strided_slice %354 {offsets = [2, 0], sizes = [1, 32], strides = [1, 1]} : vector<6x32xf32> to vector<1x32xf32>
    %481 = vector.extract_strided_slice %354 {offsets = [3, 0], sizes = [1, 32], strides = [1, 1]} : vector<6x32xf32> to vector<1x32xf32>
    %cst_159 = arith.constant dense<0.000000e+00> : vector<8xf32>
    %482 = vector.multi_reduction <add>, %479, %cst_159 [1] : vector<8x32xf32> to vector<8xf32>
    %483 = vector.shape_cast %482 : vector<8xf32> to vector<8x1xf32>
    %cst_160 = arith.constant 3.200000e+01 : f32
    %484 = vector.broadcast %cst_160 : f32 to vector<8x1xf32>
    %485 = arith.divf %483, %484 : vector<8x1xf32>
    %486 = vector.broadcast %485 : vector<8x1xf32> to vector<8x32xf32>
    %487 = arith.subf %479, %486 : vector<8x32xf32>
    %488 = arith.mulf %487, %487 : vector<8x32xf32>
    %cst_161 = arith.constant dense<0.000000e+00> : vector<8xf32>
    %489 = vector.multi_reduction <add>, %488, %cst_161 [1] : vector<8x32xf32> to vector<8xf32>
    %490 = vector.shape_cast %489 : vector<8xf32> to vector<8x1xf32>
    %cst_162 = arith.constant 3.200000e+01 : f32
    %491 = vector.broadcast %cst_162 : f32 to vector<8x1xf32>
    %492 = arith.divf %490, %491 : vector<8x1xf32>
    %493 = vector.broadcast %485 : vector<8x1xf32> to vector<8x32xf32>
    %494 = arith.subf %479, %493 : vector<8x32xf32>
    %cst_163 = arith.constant 9.99999974E-6 : f32
    %495 = vector.broadcast %cst_163 : f32 to vector<8x1xf32>
    %496 = arith.addf %492, %495 : vector<8x1xf32>
    %497 = math.rsqrt %496 : vector<8x1xf32>
    %498 = vector.broadcast %497 : vector<8x1xf32> to vector<8x32xf32>
    %499 = arith.mulf %494, %498 : vector<8x32xf32>
    %500 = vector.broadcast %480 : vector<1x32xf32> to vector<8x32xf32>
    %501 = arith.mulf %499, %500 : vector<8x32xf32>
    %502 = vector.broadcast %481 : vector<1x32xf32> to vector<8x32xf32>
    %503 = arith.addf %501, %502 : vector<8x32xf32>
    %504 = arith.truncf %503 : vector<8x32xf32> to vector<8x32xbf16>
    %c1_164 = arith.constant 1 : index
    %c0_165 = arith.constant 0 : index
    %c0_166 = arith.constant 0 : index
    %505 = vector.load %arg9[%c1_164, %c0_165, %c0_166] : memref<2x32x96xbf16, #tpu.memory_space<vmem>>, vector<1x32x96xbf16>
    %506 = vector.shape_cast %505 : vector<1x32x96xbf16> to vector<32x96xbf16>
    %cst_167 = arith.constant dense<0.000000e+00> : vector<8x96xf32>
    %507 = tpu.matmul %504, %506, %cst_167 {dimension_numbers = #tpu.dot_dimension_numbers<[1], [0], [0], [1], [0, 0, 1, 1], [], []>} : vector<8x32xbf16>, vector<32x96xbf16>, vector<8x96xf32> -> vector<8x96xf32>
    %c1_168 = arith.constant 1 : index
    %c0_169 = arith.constant 0 : index
    %c0_170 = arith.constant 0 : index
    %508 = vector.load %arg15[%c1_168, %c0_169, %c0_170] : memref<2x1x96xf32, #tpu.memory_space<vmem>>, vector<1x1x96xf32>
    %509 = vector.shape_cast %508 : vector<1x1x96xf32> to vector<1x96xf32>
    %510 = vector.broadcast %509 : vector<1x96xf32> to vector<8x96xf32>
    %511 = arith.addf %507, %510 : vector<8x96xf32>
    %c1_171 = arith.constant 1 : index
    %c0_172 = arith.constant 0 : index
    %c0_173 = arith.constant 0 : index
    %512 = vector.load %arg10[%c1_171, %c0_172, %c0_173] : memref<2x32x32xbf16, #tpu.memory_space<vmem>>, vector<1x32x32xbf16>
    %513 = vector.shape_cast %512 : vector<1x32x32xbf16> to vector<32x32xbf16>
    %514 = vector.extract_strided_slice %356 {offsets = [2, 0], sizes = [1, 32], strides = [1, 1]} : vector<4x32xf32> to vector<1x32xf32>
    %515 = vector.extract_strided_slice %511 {offsets = [0, 0], sizes = [8, 8], strides = [1, 1]} : vector<8x96xf32> to vector<8x8xf32>
    %516 = arith.truncf %515 : vector<8x8xf32> to vector<8x8xbf16>
    %517 = vector.extract_strided_slice %511 {offsets = [0, 32], sizes = [8, 8], strides = [1, 1]} : vector<8x96xf32> to vector<8x8xf32>
    %518 = arith.truncf %517 : vector<8x8xf32> to vector<8x8xbf16>
    %519 = vector.extract_strided_slice %511 {offsets = [0, 64], sizes = [8, 8], strides = [1, 1]} : vector<8x96xf32> to vector<8x8xf32>
    %520 = arith.truncf %519 : vector<8x8xf32> to vector<8x8xbf16>
    %cst_174 = arith.constant dense<0.000000e+00> : vector<8x8xf32>
    %521 = tpu.matmul %516, %518, %cst_174 {dimension_numbers = #tpu.dot_dimension_numbers<[1], [1], [0], [0], [0, 0, 1, 0], [], []>} : vector<8x8xbf16>, vector<8x8xbf16>, vector<8x8xf32> -> vector<8x8xf32>
    %cst_175 = arith.constant dense<0xFF800000> : vector<8xf32>
    %522 = vector.multi_reduction <maximumf>, %521, %cst_175 [1] : vector<8x8xf32> to vector<8xf32>
    %523 = vector.shape_cast %522 : vector<8xf32> to vector<8x1xf32>
    %524 = vector.broadcast %523 : vector<8x1xf32> to vector<8x8xf32>
    %525 = arith.subf %521, %524 : vector<8x8xf32>
    %526 = math.exp %525 : vector<8x8xf32>
    %cst_176 = arith.constant dense<0.000000e+00> : vector<8xf32>
    %527 = vector.multi_reduction <add>, %526, %cst_176 [1] : vector<8x8xf32> to vector<8xf32>
    %528 = vector.shape_cast %527 : vector<8xf32> to vector<8x1xf32>
    %529 = tpu.reciprocal %528 {approx = true} : vector<8x1xf32> -> vector<8x1xf32>
    %530 = vector.broadcast %529 : vector<8x1xf32> to vector<8x8xf32>
    %531 = arith.mulf %526, %530 : vector<8x8xf32>
    %532 = arith.truncf %531 : vector<8x8xf32> to vector<8x8xbf16>
    %cst_177 = arith.constant dense<0.000000e+00> : vector<8x8xf32>
    %533 = tpu.matmul %532, %520, %cst_177 {dimension_numbers = #tpu.dot_dimension_numbers<[1], [0], [0], [1], [0, 0, 1, 1], [], []>} : vector<8x8xbf16>, vector<8x8xbf16>, vector<8x8xf32> -> vector<8x8xf32>
    %534 = vector.extract_strided_slice %511 {offsets = [0, 8], sizes = [8, 8], strides = [1, 1]} : vector<8x96xf32> to vector<8x8xf32>
    %535 = arith.truncf %534 : vector<8x8xf32> to vector<8x8xbf16>
    %536 = vector.extract_strided_slice %511 {offsets = [0, 40], sizes = [8, 8], strides = [1, 1]} : vector<8x96xf32> to vector<8x8xf32>
    %537 = arith.truncf %536 : vector<8x8xf32> to vector<8x8xbf16>
    %538 = vector.extract_strided_slice %511 {offsets = [0, 72], sizes = [8, 8], strides = [1, 1]} : vector<8x96xf32> to vector<8x8xf32>
    %539 = arith.truncf %538 : vector<8x8xf32> to vector<8x8xbf16>
    %cst_178 = arith.constant dense<0.000000e+00> : vector<8x8xf32>
    %540 = tpu.matmul %535, %537, %cst_178 {dimension_numbers = #tpu.dot_dimension_numbers<[1], [1], [0], [0], [0, 0, 1, 0], [], []>} : vector<8x8xbf16>, vector<8x8xbf16>, vector<8x8xf32> -> vector<8x8xf32>
    %cst_179 = arith.constant dense<0xFF800000> : vector<8xf32>
    %541 = vector.multi_reduction <maximumf>, %540, %cst_179 [1] : vector<8x8xf32> to vector<8xf32>
    %542 = vector.shape_cast %541 : vector<8xf32> to vector<8x1xf32>
    %543 = vector.broadcast %542 : vector<8x1xf32> to vector<8x8xf32>
    %544 = arith.subf %540, %543 : vector<8x8xf32>
    %545 = math.exp %544 : vector<8x8xf32>
    %cst_180 = arith.constant dense<0.000000e+00> : vector<8xf32>
    %546 = vector.multi_reduction <add>, %545, %cst_180 [1] : vector<8x8xf32> to vector<8xf32>
    %547 = vector.shape_cast %546 : vector<8xf32> to vector<8x1xf32>
    %548 = tpu.reciprocal %547 {approx = true} : vector<8x1xf32> -> vector<8x1xf32>
    %549 = vector.broadcast %548 : vector<8x1xf32> to vector<8x8xf32>
    %550 = arith.mulf %545, %549 : vector<8x8xf32>
    %551 = arith.truncf %550 : vector<8x8xf32> to vector<8x8xbf16>
    %cst_181 = arith.constant dense<0.000000e+00> : vector<8x8xf32>
    %552 = tpu.matmul %551, %539, %cst_181 {dimension_numbers = #tpu.dot_dimension_numbers<[1], [0], [0], [1], [0, 0, 1, 1], [], []>} : vector<8x8xbf16>, vector<8x8xbf16>, vector<8x8xf32> -> vector<8x8xf32>
    %553 = vector.extract_strided_slice %511 {offsets = [0, 16], sizes = [8, 8], strides = [1, 1]} : vector<8x96xf32> to vector<8x8xf32>
    %554 = arith.truncf %553 : vector<8x8xf32> to vector<8x8xbf16>
    %555 = vector.extract_strided_slice %511 {offsets = [0, 48], sizes = [8, 8], strides = [1, 1]} : vector<8x96xf32> to vector<8x8xf32>
    %556 = arith.truncf %555 : vector<8x8xf32> to vector<8x8xbf16>
    %557 = vector.extract_strided_slice %511 {offsets = [0, 80], sizes = [8, 8], strides = [1, 1]} : vector<8x96xf32> to vector<8x8xf32>
    %558 = arith.truncf %557 : vector<8x8xf32> to vector<8x8xbf16>
    %cst_182 = arith.constant dense<0.000000e+00> : vector<8x8xf32>
    %559 = tpu.matmul %554, %556, %cst_182 {dimension_numbers = #tpu.dot_dimension_numbers<[1], [1], [0], [0], [0, 0, 1, 0], [], []>} : vector<8x8xbf16>, vector<8x8xbf16>, vector<8x8xf32> -> vector<8x8xf32>
    %cst_183 = arith.constant dense<0xFF800000> : vector<8xf32>
    %560 = vector.multi_reduction <maximumf>, %559, %cst_183 [1] : vector<8x8xf32> to vector<8xf32>
    %561 = vector.shape_cast %560 : vector<8xf32> to vector<8x1xf32>
    %562 = vector.broadcast %561 : vector<8x1xf32> to vector<8x8xf32>
    %563 = arith.subf %559, %562 : vector<8x8xf32>
    %564 = math.exp %563 : vector<8x8xf32>
    %cst_184 = arith.constant dense<0.000000e+00> : vector<8xf32>
    %565 = vector.multi_reduction <add>, %564, %cst_184 [1] : vector<8x8xf32> to vector<8xf32>
    %566 = vector.shape_cast %565 : vector<8xf32> to vector<8x1xf32>
    %567 = tpu.reciprocal %566 {approx = true} : vector<8x1xf32> -> vector<8x1xf32>
    %568 = vector.broadcast %567 : vector<8x1xf32> to vector<8x8xf32>
    %569 = arith.mulf %564, %568 : vector<8x8xf32>
    %570 = arith.truncf %569 : vector<8x8xf32> to vector<8x8xbf16>
    %cst_185 = arith.constant dense<0.000000e+00> : vector<8x8xf32>
    %571 = tpu.matmul %570, %558, %cst_185 {dimension_numbers = #tpu.dot_dimension_numbers<[1], [0], [0], [1], [0, 0, 1, 1], [], []>} : vector<8x8xbf16>, vector<8x8xbf16>, vector<8x8xf32> -> vector<8x8xf32>
    %572 = vector.extract_strided_slice %511 {offsets = [0, 24], sizes = [8, 8], strides = [1, 1]} : vector<8x96xf32> to vector<8x8xf32>
    %573 = arith.truncf %572 : vector<8x8xf32> to vector<8x8xbf16>
    %574 = vector.extract_strided_slice %511 {offsets = [0, 56], sizes = [8, 8], strides = [1, 1]} : vector<8x96xf32> to vector<8x8xf32>
    %575 = arith.truncf %574 : vector<8x8xf32> to vector<8x8xbf16>
    %576 = vector.extract_strided_slice %511 {offsets = [0, 88], sizes = [8, 8], strides = [1, 1]} : vector<8x96xf32> to vector<8x8xf32>
    %577 = arith.truncf %576 : vector<8x8xf32> to vector<8x8xbf16>
    %cst_186 = arith.constant dense<0.000000e+00> : vector<8x8xf32>
    %578 = tpu.matmul %573, %575, %cst_186 {dimension_numbers = #tpu.dot_dimension_numbers<[1], [1], [0], [0], [0, 0, 1, 0], [], []>} : vector<8x8xbf16>, vector<8x8xbf16>, vector<8x8xf32> -> vector<8x8xf32>
    %cst_187 = arith.constant dense<0xFF800000> : vector<8xf32>
    %579 = vector.multi_reduction <maximumf>, %578, %cst_187 [1] : vector<8x8xf32> to vector<8xf32>
    %580 = vector.shape_cast %579 : vector<8xf32> to vector<8x1xf32>
    %581 = vector.broadcast %580 : vector<8x1xf32> to vector<8x8xf32>
    %582 = arith.subf %578, %581 : vector<8x8xf32>
    %583 = math.exp %582 : vector<8x8xf32>
    %cst_188 = arith.constant dense<0.000000e+00> : vector<8xf32>
    %584 = vector.multi_reduction <add>, %583, %cst_188 [1] : vector<8x8xf32> to vector<8xf32>
    %585 = vector.shape_cast %584 : vector<8xf32> to vector<8x1xf32>
    %586 = tpu.reciprocal %585 {approx = true} : vector<8x1xf32> -> vector<8x1xf32>
    %587 = vector.broadcast %586 : vector<8x1xf32> to vector<8x8xf32>
    %588 = arith.mulf %583, %587 : vector<8x8xf32>
    %589 = arith.truncf %588 : vector<8x8xf32> to vector<8x8xbf16>
    %cst_189 = arith.constant dense<0.000000e+00> : vector<8x8xf32>
    %590 = tpu.matmul %589, %577, %cst_189 {dimension_numbers = #tpu.dot_dimension_numbers<[1], [0], [0], [1], [0, 0, 1, 1], [], []>} : vector<8x8xbf16>, vector<8x8xbf16>, vector<8x8xf32> -> vector<8x8xf32>
    %591 = tpu.concatenate %533, %552, %571, %590 in 1 : vector<8x8xf32>, vector<8x8xf32>, vector<8x8xf32>, vector<8x8xf32> -> vector<8x32xf32>
    %592 = arith.truncf %591 : vector<8x32xf32> to vector<8x32xbf16>
    %cst_190 = arith.constant dense<0.000000e+00> : vector<8x32xf32>
    %593 = tpu.matmul %592, %513, %cst_190 {dimension_numbers = #tpu.dot_dimension_numbers<[1], [0], [0], [1], [0, 0, 1, 1], [], []>} : vector<8x32xbf16>, vector<32x32xbf16>, vector<8x32xf32> -> vector<8x32xf32>
    %594 = vector.broadcast %514 : vector<1x32xf32> to vector<8x32xf32>
    %595 = arith.addf %593, %594 : vector<8x32xf32>
    %596 = arith.addf %479, %595 : vector<8x32xf32>
    %597 = vector.extract_strided_slice %354 {offsets = [4, 0], sizes = [1, 32], strides = [1, 1]} : vector<6x32xf32> to vector<1x32xf32>
    %598 = vector.extract_strided_slice %354 {offsets = [5, 0], sizes = [1, 32], strides = [1, 1]} : vector<6x32xf32> to vector<1x32xf32>
    %cst_191 = arith.constant dense<0.000000e+00> : vector<8xf32>
    %599 = vector.multi_reduction <add>, %596, %cst_191 [1] : vector<8x32xf32> to vector<8xf32>
    %600 = vector.shape_cast %599 : vector<8xf32> to vector<8x1xf32>
    %cst_192 = arith.constant 3.200000e+01 : f32
    %601 = vector.broadcast %cst_192 : f32 to vector<8x1xf32>
    %602 = arith.divf %600, %601 : vector<8x1xf32>
    %603 = vector.broadcast %602 : vector<8x1xf32> to vector<8x32xf32>
    %604 = arith.subf %596, %603 : vector<8x32xf32>
    %605 = arith.mulf %604, %604 : vector<8x32xf32>
    %cst_193 = arith.constant dense<0.000000e+00> : vector<8xf32>
    %606 = vector.multi_reduction <add>, %605, %cst_193 [1] : vector<8x32xf32> to vector<8xf32>
    %607 = vector.shape_cast %606 : vector<8xf32> to vector<8x1xf32>
    %cst_194 = arith.constant 3.200000e+01 : f32
    %608 = vector.broadcast %cst_194 : f32 to vector<8x1xf32>
    %609 = arith.divf %607, %608 : vector<8x1xf32>
    %610 = vector.broadcast %602 : vector<8x1xf32> to vector<8x32xf32>
    %611 = arith.subf %596, %610 : vector<8x32xf32>
    %cst_195 = arith.constant 9.99999974E-6 : f32
    %612 = vector.broadcast %cst_195 : f32 to vector<8x1xf32>
    %613 = arith.addf %609, %612 : vector<8x1xf32>
    %614 = math.rsqrt %613 : vector<8x1xf32>
    %615 = vector.broadcast %614 : vector<8x1xf32> to vector<8x32xf32>
    %616 = arith.mulf %611, %615 : vector<8x32xf32>
    %617 = vector.broadcast %597 : vector<1x32xf32> to vector<8x32xf32>
    %618 = arith.mulf %616, %617 : vector<8x32xf32>
    %619 = vector.broadcast %598 : vector<1x32xf32> to vector<8x32xf32>
    %620 = arith.addf %618, %619 : vector<8x32xf32>
    %621 = arith.truncf %620 : vector<8x32xf32> to vector<8x32xbf16>
    %c1_196 = arith.constant 1 : index
    %c0_197 = arith.constant 0 : index
    %c0_198 = arith.constant 0 : index
    %622 = vector.load %arg11[%c1_196, %c0_197, %c0_198] : memref<2x32x128xbf16, #tpu.memory_space<vmem>>, vector<1x32x128xbf16>
    %623 = vector.shape_cast %622 : vector<1x32x128xbf16> to vector<32x128xbf16>
    %cst_199 = arith.constant dense<0.000000e+00> : vector<8x128xf32>
    %624 = tpu.matmul %621, %623, %cst_199 {dimension_numbers = #tpu.dot_dimension_numbers<[1], [0], [0], [1], [0, 0, 1, 1], [], []>} : vector<8x32xbf16>, vector<32x128xbf16>, vector<8x128xf32> -> vector<8x128xf32>
    %c1_200 = arith.constant 1 : index
    %c0_201 = arith.constant 0 : index
    %c0_202 = arith.constant 0 : index
    %625 = vector.load %arg16[%c1_200, %c0_201, %c0_202] : memref<2x1x128xf32, #tpu.memory_space<vmem>>, vector<1x1x128xf32>
    %626 = vector.shape_cast %625 : vector<1x1x128xf32> to vector<1x128xf32>
    %627 = vector.broadcast %626 : vector<1x128xf32> to vector<8x128xf32>
    %628 = arith.addf %624, %627 : vector<8x128xf32>
    %cst_203 = arith.constant 5.000000e-01 : f32
    %629 = vector.broadcast %cst_203 : f32 to vector<8x128xf32>
    %630 = arith.mulf %629, %628 : vector<8x128xf32>
    %cst_204 = arith.constant 0.707106769 : f32
    %631 = vector.broadcast %cst_204 : f32 to vector<8x128xf32>
    %632 = arith.mulf %628, %631 : vector<8x128xf32>
    %633 = math.absf %632 : vector<8x128xf32>
    %cst_205 = arith.constant 0.327591091 : f32
    %634 = vector.broadcast %cst_205 : f32 to vector<8x128xf32>
    %635 = arith.mulf %634, %633 : vector<8x128xf32>
    %cst_206 = arith.constant 1.000000e+00 : f32
    %636 = vector.broadcast %cst_206 : f32 to vector<8x128xf32>
    %637 = arith.addf %636, %635 : vector<8x128xf32>
    %638 = tpu.reciprocal %637 {approx = true} : vector<8x128xf32> -> vector<8x128xf32>
    %cst_207 = arith.constant 1.06140542 : f32
    %639 = vector.broadcast %cst_207 : f32 to vector<8x128xf32>
    %640 = arith.mulf %639, %638 : vector<8x128xf32>
    %cst_208 = arith.constant -1.45315206 : f32
    %641 = vector.broadcast %cst_208 : f32 to vector<8x128xf32>
    %642 = arith.addf %640, %641 : vector<8x128xf32>
    %643 = arith.mulf %642, %638 : vector<8x128xf32>
    %cst_209 = arith.constant 1.42141378 : f32
    %644 = vector.broadcast %cst_209 : f32 to vector<8x128xf32>
    %645 = arith.addf %643, %644 : vector<8x128xf32>
    %646 = arith.mulf %645, %638 : vector<8x128xf32>
    %cst_210 = arith.constant -0.284496725 : f32
    %647 = vector.broadcast %cst_210 : f32 to vector<8x128xf32>
    %648 = arith.addf %646, %647 : vector<8x128xf32>
    %649 = arith.mulf %648, %638 : vector<8x128xf32>
    %cst_211 = arith.constant 0.254829586 : f32
    %650 = vector.broadcast %cst_211 : f32 to vector<8x128xf32>
    %651 = arith.addf %649, %650 : vector<8x128xf32>
    %652 = arith.mulf %651, %638 : vector<8x128xf32>
    %cst_212 = arith.constant 0.000000e+00 : f32
    %653 = vector.broadcast %cst_212 : f32 to vector<8x128xf32>
    %654 = arith.subf %653, %633 : vector<8x128xf32>
    %655 = arith.mulf %654, %633 : vector<8x128xf32>
    %656 = math.exp %655 : vector<8x128xf32>
    %657 = arith.mulf %652, %656 : vector<8x128xf32>
    %cst_213 = arith.constant 1.000000e+00 : f32
    %658 = vector.broadcast %cst_213 : f32 to vector<8x128xf32>
    %659 = arith.subf %658, %657 : vector<8x128xf32>
    %cst_214 = arith.constant 0.000000e+00 : f32
    %660 = vector.broadcast %cst_214 : f32 to vector<8x128xf32>
    %661 = arith.cmpf oge, %632, %660 : vector<8x128xf32>
    %cst_215 = arith.constant 0.000000e+00 : f32
    %662 = vector.broadcast %cst_215 : f32 to vector<8x128xf32>
    %663 = arith.subf %662, %659 : vector<8x128xf32>
    %664 = arith.select %661, %659, %663 : vector<8x128xi1>, vector<8x128xf32>
    %cst_216 = arith.constant 1.000000e+00 : f32
    %665 = vector.broadcast %cst_216 : f32 to vector<8x128xf32>
    %666 = arith.addf %665, %664 : vector<8x128xf32>
    %667 = arith.mulf %630, %666 : vector<8x128xf32>
    %668 = arith.truncf %667 : vector<8x128xf32> to vector<8x128xbf16>
    %c1_217 = arith.constant 1 : index
    %c0_218 = arith.constant 0 : index
    %c0_219 = arith.constant 0 : index
    %669 = vector.load %arg12[%c1_217, %c0_218, %c0_219] : memref<2x128x32xbf16, #tpu.memory_space<vmem>>, vector<1x128x32xbf16>
    %670 = vector.shape_cast %669 : vector<1x128x32xbf16> to vector<128x32xbf16>
    %cst_220 = arith.constant dense<0.000000e+00> : vector<8x32xf32>
    %671 = tpu.matmul %668, %670, %cst_220 {dimension_numbers = #tpu.dot_dimension_numbers<[1], [0], [0], [1], [0, 0, 1, 1], [], []>} : vector<8x128xbf16>, vector<128x32xbf16>, vector<8x32xf32> -> vector<8x32xf32>
    %672 = arith.addf %596, %671 : vector<8x32xf32>
    %673 = vector.extract_strided_slice %356 {offsets = [3, 0], sizes = [1, 32], strides = [1, 1]} : vector<4x32xf32> to vector<1x32xf32>
    %674 = vector.broadcast %673 : vector<1x32xf32> to vector<8x32xf32>
    %675 = arith.addf %672, %674 : vector<8x32xf32>
    %c0_221 = arith.constant 0 : index
    %c0_222 = arith.constant 0 : index
    %676 = vector.load %arg4[%c0_221, %c0_222] : memref<2x32xf32, #tpu.memory_space<vmem>>, vector<1x32xf32>
    %c1_223 = arith.constant 1 : index
    %c0_224 = arith.constant 0 : index
    %677 = vector.load %arg4[%c1_223, %c0_224] : memref<2x32xf32, #tpu.memory_space<vmem>>, vector<1x32xf32>
    %cst_225 = arith.constant dense<0.000000e+00> : vector<8xf32>
    %678 = vector.multi_reduction <add>, %675, %cst_225 [1] : vector<8x32xf32> to vector<8xf32>
    %679 = vector.shape_cast %678 : vector<8xf32> to vector<8x1xf32>
    %cst_226 = arith.constant 3.200000e+01 : f32
    %680 = vector.broadcast %cst_226 : f32 to vector<8x1xf32>
    %681 = arith.divf %679, %680 : vector<8x1xf32>
    %682 = vector.broadcast %681 : vector<8x1xf32> to vector<8x32xf32>
    %683 = arith.subf %675, %682 : vector<8x32xf32>
    %684 = arith.mulf %683, %683 : vector<8x32xf32>
    %cst_227 = arith.constant dense<0.000000e+00> : vector<8xf32>
    %685 = vector.multi_reduction <add>, %684, %cst_227 [1] : vector<8x32xf32> to vector<8xf32>
    %686 = vector.shape_cast %685 : vector<8xf32> to vector<8x1xf32>
    %cst_228 = arith.constant 3.200000e+01 : f32
    %687 = vector.broadcast %cst_228 : f32 to vector<8x1xf32>
    %688 = arith.divf %686, %687 : vector<8x1xf32>
    %689 = vector.broadcast %681 : vector<8x1xf32> to vector<8x32xf32>
    %690 = arith.subf %675, %689 : vector<8x32xf32>
    %cst_229 = arith.constant 9.99999974E-6 : f32
    %691 = vector.broadcast %cst_229 : f32 to vector<8x1xf32>
    %692 = arith.addf %688, %691 : vector<8x1xf32>
    %693 = math.rsqrt %692 : vector<8x1xf32>
    %694 = vector.broadcast %693 : vector<8x1xf32> to vector<8x32xf32>
    %695 = arith.mulf %690, %694 : vector<8x32xf32>
    %696 = vector.broadcast %676 : vector<1x32xf32> to vector<8x32xf32>
    %697 = arith.mulf %695, %696 : vector<8x32xf32>
    %698 = vector.broadcast %677 : vector<1x32xf32> to vector<8x32xf32>
    %699 = arith.addf %697, %698 : vector<8x32xf32>
    %700 = arith.truncf %699 : vector<8x32xf32> to vector<8x32xbf16>
    %cst_230 = arith.constant dense<0.000000e+00> : vector<8x256xf32>
    %701 = tpu.matmul %700, %28, %cst_230 {dimension_numbers = #tpu.dot_dimension_numbers<[1], [0], [0], [1], [0, 0, 1, 1], [], []>} : vector<8x32xbf16>, vector<32x256xbf16>, vector<8x256xf32> -> vector<8x256xf32>
    %c0_231 = arith.constant 0 : index
    %c0_232 = arith.constant 0 : index
    %c0_233 = arith.constant 0 : index
    %702 = vector.load %arg17[%c0_231, %c0_232, %c0_233] : memref<1x8x256xf32, #tpu.memory_space<vmem>>, vector<1x8x256xf32>
    %703 = vector.shape_cast %702 : vector<1x8x256xf32> to vector<8x256xf32>
    %704 = vector.shape_cast %701 : vector<8x256xf32> to vector<1x8x256xf32>
    tpu.vector_store %arg17[%c0_231, %c0_232, %c0_233], %704 {strides = array<i32>} : memref<1x8x256xf32, #tpu.memory_space<vmem>>, vector<1x8x256xf32>,
    return
  }
  func.func @transform_0(%arg0: i32) -> (i32, i32, i32) {
    %c0_i32 = arith.constant 0 : i32
    %c0_i32_0 = arith.constant 0 : i32
    %c0_i32_1 = arith.constant 0 : i32
    return %arg0, %c0_i32, %c0_i32_0 : i32, i32, i32
  }
  func.func @transform_1(%arg0: i32) -> (i32, i32) {
    %c0_i32 = arith.constant 0 : i32
    %c0_i32_0 = arith.constant 0 : i32
    %c0_i32_1 = arith.constant 0 : i32
    return %c0_i32, %c0_i32_0 : i32, i32
  }
  func.func @transform_2(%arg0: i32) -> (i32, i32, i32) {
    %c0_i32 = arith.constant 0 : i32
    %c0_i32_0 = arith.constant 0 : i32
    %c0_i32_1 = arith.constant 0 : i32
    %c0_i32_2 = arith.constant 0 : i32
    return %c0_i32, %c0_i32_0, %c0_i32_1 : i32, i32, i32
  }
  func.func @transform_3(%arg0: i32) -> (i32, i32) {
    %c0_i32 = arith.constant 0 : i32
    %c0_i32_0 = arith.constant 0 : i32
    %c0_i32_1 = arith.constant 0 : i32
    return %c0_i32, %c0_i32_0 : i32, i32
  }
  func.func @transform_4(%arg0: i32) -> (i32, i32, i32) {
    %c0_i32 = arith.constant 0 : i32
    %c0_i32_0 = arith.constant 0 : i32
    %c0_i32_1 = arith.constant 0 : i32
    %c0_i32_2 = arith.constant 0 : i32
    return %c0_i32, %c0_i32_0, %c0_i32_1 : i32, i32, i32
  }
  func.func @transform_5(%arg0: i32) -> (i32, i32, i32) {
    %c0_i32 = arith.constant 0 : i32
    %c0_i32_0 = arith.constant 0 : i32
    %c0_i32_1 = arith.constant 0 : i32
    %c0_i32_2 = arith.constant 0 : i32
    return %c0_i32, %c0_i32_0, %c0_i32_1 : i32, i32, i32
  }
  func.func @transform_6(%arg0: i32) -> (i32, i32, i32) {
    %c0_i32 = arith.constant 0 : i32
    %c0_i32_0 = arith.constant 0 : i32
    %c0_i32_1 = arith.constant 0 : i32
    %c0_i32_2 = arith.constant 0 : i32
    return %c0_i32, %c0_i32_0, %c0_i32_1 : i32, i32, i32
  }
  func.func @transform_7(%arg0: i32) -> (i32, i32, i32) {
    %c0_i32 = arith.constant 0 : i32
    %c0_i32_0 = arith.constant 0 : i32
    %c0_i32_1 = arith.constant 0 : i32
    %c0_i32_2 = arith.constant 0 : i32
    return %c0_i32, %c0_i32_0, %c0_i32_1 : i32, i32, i32
  }
  func.func @transform_8(%arg0: i32) -> (i32, i32, i32) {
    %c0_i32 = arith.constant 0 : i32
    %c0_i32_0 = arith.constant 0 : i32
    %c0_i32_1 = arith.constant 0 : i32
    %c0_i32_2 = arith.constant 0 : i32
    return %c0_i32, %c0_i32_0, %c0_i32_1 : i32, i32, i32
  }
  func.func @transform_9(%arg0: i32) -> (i32, i32, i32) {
    %c0_i32 = arith.constant 0 : i32
    %c0_i32_0 = arith.constant 0 : i32
    %c0_i32_1 = arith.constant 0 : i32
    %c0_i32_2 = arith.constant 0 : i32
    return %c0_i32, %c0_i32_0, %c0_i32_1 : i32, i32, i32
  }
  func.func @transform_10(%arg0: i32) -> (i32, i32, i32) {
    %c0_i32 = arith.constant 0 : i32
    %c0_i32_0 = arith.constant 0 : i32
    %c0_i32_1 = arith.constant 0 : i32
    %c0_i32_2 = arith.constant 0 : i32
    return %c0_i32, %c0_i32_0, %c0_i32_1 : i32, i32, i32
  }
  func.func @transform_11(%arg0: i32) -> (i32, i32, i32) {
    %c0_i32 = arith.constant 0 : i32
    %c0_i32_0 = arith.constant 0 : i32
    %c0_i32_1 = arith.constant 0 : i32
    %c0_i32_2 = arith.constant 0 : i32
    return %c0_i32, %c0_i32_0, %c0_i32_1 : i32, i32, i32
  }
  func.func @transform_12(%arg0: i32) -> (i32, i32, i32) {
    %c0_i32 = arith.constant 0 : i32
    %c0_i32_0 = arith.constant 0 : i32
    %c0_i32_1 = arith.constant 0 : i32
    %c0_i32_2 = arith.constant 0 : i32
    return %c0_i32, %c0_i32_0, %c0_i32_1 : i32, i32, i32
  }
  func.func @transform_13(%arg0: i32) -> (i32, i32, i32) {
    %c0_i32 = arith.constant 0 : i32
    %c0_i32_0 = arith.constant 0 : i32
    %c0_i32_1 = arith.constant 0 : i32
    %c0_i32_2 = arith.constant 0 : i32
    return %c0_i32, %c0_i32_0, %c0_i32_1 : i32, i32, i32
  }
  func.func @transform_14(%arg0: i32) -> (i32, i32, i32) {
    %c0_i32 = arith.constant 0 : i32
    %c0_i32_0 = arith.constant 0 : i32
    %c0_i32_1 = arith.constant 0 : i32
    %c0_i32_2 = arith.constant 0 : i32
    return %c0_i32, %c0_i32_0, %c0_i32_1 : i32, i32, i32
  }
  func.func @transform_15(%arg0: i32) -> (i32, i32, i32) {
    %c0_i32 = arith.constant 0 : i32
    %c0_i32_0 = arith.constant 0 : i32
    %c0_i32_1 = arith.constant 0 : i32
    %c0_i32_2 = arith.constant 0 : i32
    return %c0_i32, %c0_i32_0, %c0_i32_1 : i32, i32, i32
  }
  func.func @transform_16(%arg0: i32) -> (i32, i32, i32) {
    %c0_i32 = arith.constant 0 : i32
    %c0_i32_0 = arith.constant 0 : i32
    %c0_i32_1 = arith.constant 0 : i32
    return %arg0, %c0_i32, %c0_i32_0 : i32, i32, i32
  }
}

</mosaic_0001>

<llo_original>
// kernel: transformer_learner_forward.1
$region0: #{transformer_learner_forward.1}
  #allocation0 [shape = 'u32[]', space=smem, size = 0x4, offset = 0x4, fixed_abs, tag = 'smem constant byte address 0x4 - core index']
  #allocation1 [shape = 'u32[144,128]{1,0:T(1,128)}', space=vmem, size = 0x12000, scoped, tag = 'internal scratch']
  %s0 = inlined_call_operand.vmem [shape: f32[2,32,256], index: 0, kind: input, shape index: {}]
  %s1 = inlined_call_operand.vmem [shape: f32[8,32], index: 1, kind: input, shape index: {}]
  %s2 = inlined_call_operand.vmem [shape: f32[2,32,1], index: 2, kind: input, shape index: {}]
  %s3 = inlined_call_operand.vmem [shape: f32[2,32], index: 3, kind: input, shape index: {}]
  %s4 = inlined_call_operand.vmem [shape: f32[2,6,32], index: 4, kind: input, shape index: {}]
  %s5 = inlined_call_operand.vmem [shape: bf16[2,32,32], index: 5, kind: input, shape index: {}]
  %s6 = inlined_call_operand.vmem [shape: bf16[2,64,32], index: 6, kind: input, shape index: {}]
  %s7 = inlined_call_operand.vmem [shape: bf16[2,32,32], index: 7, kind: input, shape index: {}]
  %s8 = inlined_call_operand.vmem [shape: bf16[2,32,96], index: 8, kind: input, shape index: {}]
  %s9 = inlined_call_operand.vmem [shape: bf16[2,32,32], index: 9, kind: input, shape index: {}]
  %s10 = inlined_call_operand.vmem [shape: bf16[2,32,128], index: 10, kind: input, shape index: {}]
  %s11 = inlined_call_operand.vmem [shape: bf16[2,128,32], index: 11, kind: input, shape index: {}]
  %s12 = inlined_call_operand.vmem [shape: f32[2,4,32], index: 12, kind: input, shape index: {}]
  %s13 = inlined_call_operand.vmem [shape: f32[2,64,1], index: 13, kind: input, shape index: {}]
  %s14 = inlined_call_operand.vmem [shape: f32[2,1,96], index: 14, kind: input, shape index: {}]
  %s15 = inlined_call_operand.vmem [shape: f32[2,1,128], index: 15, kind: input, shape index: {}]
  %s16 = inlined_call_operand.vmem [shape: f32[2,8,256], index: 16, kind: output, shape index: {}]
  %s17 = sld [smem:[#allocation0]]
  $region97: #{transformer_learner_forward.1} parent=0
    _
  %s19 = ssub.s32 1, %s17
  %s20 = scalar_select 0, %s19, %s17
  loop: start=0, step=1, limit=4
  $region2: #{transformer_learner_forward.1} parent=0 // loop_pre_header
    _
  $region3: #{transformer_learner_forward.1} parent=0 // loop_header
    %s22 = sphi 0, %s26
    %p23 = scmp.ge.s32.totalorder %s22, 4
    %s32 = sphi 0, %s34
    %s35 = sphi 0, %s32
    %s36 = sphi 0, %s35
    %s52 = sphi 0, %s36
    %s56 = sphi 0, %s56
    %s58 = sphi 0, %s56
    %s59 = sphi 0, %s58
    %s73 = sphi 0, %s59
    %s77 = sphi 0, %s77
    %s79 = sphi 0, %s77
    %s80 = sphi 0, %s79
    %s94 = sphi 0, %s80
    %s98 = sphi 0, %s98
    %s100 = sphi 0, %s98
    %s101 = sphi 0, %s100
    %s115 = sphi 0, %s101
    %s119 = sphi 0, %s119
    %s121 = sphi 0, %s119
    %s122 = sphi 0, %s121
    %s136 = sphi 0, %s122
    %s140 = sphi 0, %s140
    %s142 = sphi 0, %s140
    %s143 = sphi 0, %s142
    %s157 = sphi 0, %s143
    %s161 = sphi 0, %s161
    %s163 = sphi 0, %s161
    %s164 = sphi 0, %s163
    %s178 = sphi 0, %s164
    %s182 = sphi 0, %s182
    %s184 = sphi 0, %s182
    %s185 = sphi 0, %s184
    %s199 = sphi 0, %s185
    %s203 = sphi 0, %s203
    %s205 = sphi 0, %s203
    %s206 = sphi 0, %s205
    %s220 = sphi 0, %s206
    %s224 = sphi 0, %s224
    %s226 = sphi 0, %s224
    %s227 = sphi 0, %s226
    %s241 = sphi 0, %s227
    %s245 = sphi 0, %s245
    %s247 = sphi 0, %s245
    %s248 = sphi 0, %s247
    %s262 = sphi 0, %s248
    %s266 = sphi 0, %s266
    %s268 = sphi 0, %s266
    %s269 = sphi 0, %s268
    %s283 = sphi 0, %s269
    %s287 = sphi 0, %s287
    %s289 = sphi 0, %s287
    %s290 = sphi 0, %s289
    %s304 = sphi 0, %s290
    %s308 = sphi 0, %s308
    %s310 = sphi 0, %s308
    %s311 = sphi 0, %s310
    %s325 = sphi 0, %s311
    %s329 = sphi 0, %s329
    %s331 = sphi 0, %s329
    %s332 = sphi 0, %s331
    %s346 = sphi 0, %s332
    %s350 = sphi 0, %s350
    %s352 = sphi 0, %s350
    %s353 = sphi 0, %s352
    %s367 = sphi 0, %s353
    %s373 = sphi 0, %s375
    %s376 = sphi 0, %s373
    %s377 = sphi 0, %s376
    %s393 = sphi 0, %s377
  $region4: #{transformer_learner_forward.1} parent=0 // loop_header_branch
    %25 = sbr.rel (%p23) target = $region8
  $region5: #{transformer_learner_forward.1} parent=0 // loop_body
    %s27 = ssub.s32 %s22, 1
    %s28 = ssub.s32 %s22, 2
    %s29 = sadd.s32 %s22, 1
    %s30 = ssub.s32 %s22, %s29
    %p31 = scmp.eq.s32.totalorder %s30, 0
    %s33 = sadd.s32 %s32, 1
    %s34 = scalar_select %p31, %s32, %s33
    %p37 = pneg %p31
    %p38 = scmp.eq.s32.totalorder %s22, 1
    %p39 = por %p37, %p38
    %p40 = scmp.ne.s32.totalorder %s32, %s35
    %p41 = scmp.eq.s32.totalorder %s22, 0
    %p42 = por %p40, %p41
    %p43 = scmp.ne.s32.totalorder %s32, %s35
    %p44 = scmp.eq.s32.totalorder %s27, 1
    %p45 = por %p43, %p44
    %p46 = scmp.ne.s32.totalorder %s35, %s36
    %p47 = scmp.eq.s32.totalorder %s27, 0
    %p48 = por %p46, %p47
    %p49 = scmp.ne.s32.totalorder %s35, %s36
    %p50 = scmp.eq.s32.totalorder %s28, 1
    %p51 = por %p49, %p50
    %p53 = scmp.ne.s32.totalorder %s36, %s52
    %p54 = scmp.eq.s32.totalorder %s28, 0
    %p55 = por %p53, %p54
    %s57 = sadd.s32 %s56, 1
    %p60 = scmp.eq.s32.totalorder %s22, 1
    %p61 = scmp.ne.s32.totalorder %s56, %s58
    %p62 = scmp.eq.s32.totalorder %s22, 0
    %p63 = por %p61, %p62
    %p64 = scmp.ne.s32.totalorder %s56, %s58
    %p65 = scmp.eq.s32.totalorder %s27, 1
    %p66 = por %p64, %p65
    %p67 = scmp.ne.s32.totalorder %s58, %s59
    %p68 = scmp.eq.s32.totalorder %s27, 0
    %p69 = por %p67, %p68
    %p70 = scmp.ne.s32.totalorder %s58, %s59
    %p71 = scmp.eq.s32.totalorder %s28, 1
    %p72 = por %p70, %p71
    %p74 = scmp.ne.s32.totalorder %s59, %s73
    %p75 = scmp.eq.s32.totalorder %s28, 0
    %p76 = por %p74, %p75
    %s78 = sadd.s32 %s77, 1
    %p81 = scmp.eq.s32.totalorder %s22, 1
    %p82 = scmp.ne.s32.totalorder %s77, %s79
    %p83 = scmp.eq.s32.totalorder %s22, 0
    %p84 = por %p82, %p83
    %p85 = scmp.ne.s32.totalorder %s77, %s79
    %p86 = scmp.eq.s32.totalorder %s27, 1
    %p87 = por %p85, %p86
    %p88 = scmp.ne.s32.totalorder %s79, %s80
    %p89 = scmp.eq.s32.totalorder %s27, 0
    %p90 = por %p88, %p89
    %p91 = scmp.ne.s32.totalorder %s79, %s80
    %p92 = scmp.eq.s32.totalorder %s28, 1
    %p93 = por %p91, %p92
    %p95 = scmp.ne.s32.totalorder %s80, %s94
    %p96 = scmp.eq.s32.totalorder %s28, 0
    %p97 = por %p95, %p96
    %s99 = sadd.s32 %s98, 1
    %p102 = scmp.eq.s32.totalorder %s22, 1
    %p103 = scmp.ne.s32.totalorder %s98, %s100
    %p104 = scmp.eq.s32.totalorder %s22, 0
    %p105 = por %p103, %p104
    %p106 = scmp.ne.s32.totalorder %s98, %s100
    %p107 = scmp.eq.s32.totalorder %s27, 1
    %p108 = por %p106, %p107
    %p109 = scmp.ne.s32.totalorder %s100, %s101
    %p110 = scmp.eq.s32.totalorder %s27, 0
    %p111 = por %p109, %p110
    %p112 = scmp.ne.s32.totalorder %s100, %s101
    %p113 = scmp.eq.s32.totalorder %s28, 1
    %p114 = por %p112, %p113
    %p116 = scmp.ne.s32.totalorder %s101, %s115
    %p117 = scmp.eq.s32.totalorder %s28, 0
    %p118 = por %p116, %p117
    %s120 = sadd.s32 %s119, 1
    %p123 = scmp.eq.s32.totalorder %s22, 1
    %p124 = scmp.ne.s32.totalorder %s119, %s121
    %p125 = scmp.eq.s32.totalorder %s22, 0
    %p126 = por %p124, %p125
    %p127 = scmp.ne.s32.totalorder %s119, %s121
    %p128 = scmp.eq.s32.totalorder %s27, 1
    %p129 = por %p127, %p128
    %p130 = scmp.ne.s32.totalorder %s121, %s122
    %p131 = scmp.eq.s32.totalorder %s27, 0
    %p132 = por %p130, %p131
    %p133 = scmp.ne.s32.totalorder %s121, %s122
    %p134 = scmp.eq.s32.totalorder %s28, 1
    %p135 = por %p133, %p134
    %p137 = scmp.ne.s32.totalorder %s122, %s136
    %p138 = scmp.eq.s32.totalorder %s28, 0
    %p139 = por %p137, %p138
    %s141 = sadd.s32 %s140, 1
    %p144 = scmp.eq.s32.totalorder %s22, 1
    %p145 = scmp.ne.s32.totalorder %s140, %s142
    %p146 = scmp.eq.s32.totalorder %s22, 0
    %p147 = por %p145, %p146
    %p148 = scmp.ne.s32.totalorder %s140, %s142
    %p149 = scmp.eq.s32.totalorder %s27, 1
    %p150 = por %p148, %p149
    %p151 = scmp.ne.s32.totalorder %s142, %s143
    %p152 = scmp.eq.s32.totalorder %s27, 0
    %p153 = por %p151, %p152
    %p154 = scmp.ne.s32.totalorder %s142, %s143
    %p155 = scmp.eq.s32.totalorder %s28, 1
    %p156 = por %p154, %p155
    %p158 = scmp.ne.s32.totalorder %s143, %s157
    %p159 = scmp.eq.s32.totalorder %s28, 0
    %p160 = por %p158, %p159
    %s162 = sadd.s32 %s161, 1
    %p165 = scmp.eq.s32.totalorder %s22, 1
    %p166 = scmp.ne.s32.totalorder %s161, %s163
    %p167 = scmp.eq.s32.totalorder %s22, 0
    %p168 = por %p166, %p167
    %p169 = scmp.ne.s32.totalorder %s161, %s163
    %p170 = scmp.eq.s32.totalorder %s27, 1
    %p171 = por %p169, %p170
    %p172 = scmp.ne.s32.totalorder %s163, %s164
    %p173 = scmp.eq.s32.totalorder %s27, 0
    %p174 = por %p172, %p173
    %p175 = scmp.ne.s32.totalorder %s163, %s164
    %p176 = scmp.eq.s32.totalorder %s28, 1
    %p177 = por %p175, %p176
    %p179 = scmp.ne.s32.totalorder %s164, %s178
    %p180 = scmp.eq.s32.totalorder %s28, 0
    %p181 = por %p179, %p180
    %s183 = sadd.s32 %s182, 1
    %p186 = scmp.eq.s32.totalorder %s22, 1
    %p187 = scmp.ne.s32.totalorder %s182, %s184
    %p188 = scmp.eq.s32.totalorder %s22, 0
    %p189 = por %p187, %p188
    %p190 = scmp.ne.s32.totalorder %s182, %s184
    %p191 = scmp.eq.s32.totalorder %s27, 1
    %p192 = por %p190, %p191
    %p193 = scmp.ne.s32.totalorder %s184, %s185
    %p194 = scmp.eq.s32.totalorder %s27, 0
    %p195 = por %p193, %p194
    %p196 = scmp.ne.s32.totalorder %s184, %s185
    %p197 = scmp.eq.s32.totalorder %s28, 1
    %p198 = por %p196, %p197
    %p200 = scmp.ne.s32.totalorder %s185, %s199
    %p201 = scmp.eq.s32.totalorder %s28, 0
    %p202 = por %p200, %p201
    %s204 = sadd.s32 %s203, 1
    %p207 = scmp.eq.s32.totalorder %s22, 1
    %p208 = scmp.ne.s32.totalorder %s203, %s205
    %p209 = scmp.eq.s32.totalorder %s22, 0
    %p210 = por %p208, %p209
    %p211 = scmp.ne.s32.totalorder %s203, %s205
    %p212 = scmp.eq.s32.totalorder %s27, 1
    %p213 = por %p211, %p212
    %p214 = scmp.ne.s32.totalorder %s205, %s206
    %p215 = scmp.eq.s32.totalorder %s27, 0
    %p216 = por %p214, %p215
    %p217 = scmp.ne.s32.totalorder %s205, %s206
    %p218 = scmp.eq.s32.totalorder %s28, 1
    %p219 = por %p217, %p218
    %p221 = scmp.ne.s32.totalorder %s206, %s220
    %p222 = scmp.eq.s32.totalorder %s28, 0
    %p223 = por %p221, %p222
    %s225 = sadd.s32 %s224, 1
    %p228 = scmp.eq.s32.totalorder %s22, 1
    %p229 = scmp.ne.s32.totalorder %s224, %s226
    %p230 = scmp.eq.s32.totalorder %s22, 0
    %p231 = por %p229, %p230
    %p232 = scmp.ne.s32.totalorder %s224, %s226
    %p233 = scmp.eq.s32.totalorder %s27, 1
    %p234 = por %p232, %p233
    %p235 = scmp.ne.s32.totalorder %s226, %s227
    %p236 = scmp.eq.s32.totalorder %s27, 0
    %p237 = por %p235, %p236
    %p238 = scmp.ne.s32.totalorder %s226, %s227
    %p239 = scmp.eq.s32.totalorder %s28, 1
    %p240 = por %p238, %p239
    %p242 = scmp.ne.s32.totalorder %s227, %s241
    %p243 = scmp.eq.s32.totalorder %s28, 0
    %p244 = por %p242, %p243
    %s246 = sadd.s32 %s245, 1
    %p249 = scmp.eq.s32.totalorder %s22, 1
    %p250 = scmp.ne.s32.totalorder %s245, %s247
    %p251 = scmp.eq.s32.totalorder %s22, 0
    %p252 = por %p250, %p251
    %p253 = scmp.ne.s32.totalorder %s245, %s247
    %p254 = scmp.eq.s32.totalorder %s27, 1
    %p255 = por %p253, %p254
    %p256 = scmp.ne.s32.totalorder %s247, %s248
    %p257 = scmp.eq.s32.totalorder %s27, 0
    %p258 = por %p256, %p257
    %p259 = scmp.ne.s32.totalorder %s247, %s248
    %p260 = scmp.eq.s32.totalorder %s28, 1
    %p261 = por %p259, %p260
    %p263 = scmp.ne.s32.totalorder %s248, %s262
    %p264 = scmp.eq.s32.totalorder %s28, 0
    %p265 = por %p263, %p264
    %s267 = sadd.s32 %s266, 1
    %p270 = scmp.eq.s32.totalorder %s22, 1
    %p271 = scmp.ne.s32.totalorder %s266, %s268
    %p272 = scmp.eq.s32.totalorder %s22, 0
    %p273 = por %p271, %p272
    %p274 = scmp.ne.s32.totalorder %s266, %s268
    %p275 = scmp.eq.s32.totalorder %s27, 1
    %p276 = por %p274, %p275
    %p277 = scmp.ne.s32.totalorder %s268, %s269
    %p278 = scmp.eq.s32.totalorder %s27, 0
    %p279 = por %p277, %p278
    %p280 = scmp.ne.s32.totalorder %s268, %s269
    %p281 = scmp.eq.s32.totalorder %s28, 1
    %p282 = por %p280, %p281
    %p284 = scmp.ne.s32.totalorder %s269, %s283
    %p285 = scmp.eq.s32.totalorder %s28, 0
    %p286 = por %p284, %p285
    %s288 = sadd.s32 %s287, 1
    %p291 = scmp.eq.s32.totalorder %s22, 1
    %p292 = scmp.ne.s32.totalorder %s287, %s289
    %p293 = scmp.eq.s32.totalorder %s22, 0
    %p294 = por %p292, %p293
    %p295 = scmp.ne.s32.totalorder %s287, %s289
    %p296 = scmp.eq.s32.totalorder %s27, 1
    %p297 = por %p295, %p296
    %p298 = scmp.ne.s32.totalorder %s289, %s290
    %p299 = scmp.eq.s32.totalorder %s27, 0
    %p300 = por %p298, %p299
    %p301 = scmp.ne.s32.totalorder %s289, %s290
    %p302 = scmp.eq.s32.totalorder %s28, 1
    %p303 = por %p301, %p302
    %p305 = scmp.ne.s32.totalorder %s290, %s304
    %p306 = scmp.eq.s32.totalorder %s28, 0
    %p307 = por %p305, %p306
    %s309 = sadd.s32 %s308, 1
    %p312 = scmp.eq.s32.totalorder %s22, 1
    %p313 = scmp.ne.s32.totalorder %s308, %s310
    %p314 = scmp.eq.s32.totalorder %s22, 0
    %p315 = por %p313, %p314
    %p316 = scmp.ne.s32.totalorder %s308, %s310
    %p317 = scmp.eq.s32.totalorder %s27, 1
    %p318 = por %p316, %p317
    %p319 = scmp.ne.s32.totalorder %s310, %s311
    %p320 = scmp.eq.s32.totalorder %s27, 0
    %p321 = por %p319, %p320
    %p322 = scmp.ne.s32.totalorder %s310, %s311
    %p323 = scmp.eq.s32.totalorder %s28, 1
    %p324 = por %p322, %p323
    %p326 = scmp.ne.s32.totalorder %s311, %s325
    %p327 = scmp.eq.s32.totalorder %s28, 0
    %p328 = por %p326, %p327
    %s330 = sadd.s32 %s329, 1
    %p333 = scmp.eq.s32.totalorder %s22, 1
    %p334 = scmp.ne.s32.totalorder %s329, %s331
    %p335 = scmp.eq.s32.totalorder %s22, 0
    %p336 = por %p334, %p335
    %p337 = scmp.ne.s32.totalorder %s329, %s331
    %p338 = scmp.eq.s32.totalorder %s27, 1
    %p339 = por %p337, %p338
    %p340 = scmp.ne.s32.totalorder %s331, %s332
    %p341 = scmp.eq.s32.totalorder %s27, 0
    %p342 = por %p340, %p341
    %p343 = scmp.ne.s32.totalorder %s331, %s332
    %p344 = scmp.eq.s32.totalorder %s28, 1
    %p345 = por %p343, %p344
    %p347 = scmp.ne.s32.totalorder %s332, %s346
    %p348 = scmp.eq.s32.totalorder %s28, 0
    %p349 = por %p347, %p348
    %s351 = sadd.s32 %s350, 1
    %p354 = scmp.eq.s32.totalorder %s22, 1
    %p355 = scmp.ne.s32.totalorder %s350, %s352
    %p356 = scmp.eq.s32.totalorder %s22, 0
    %p357 = por %p355, %p356
    %p358 = scmp.ne.s32.totalorder %s350, %s352
    %p359 = scmp.eq.s32.totalorder %s27, 1
    %p360 = por %p358, %p359
    %p361 = scmp.ne.s32.totalorder %s352, %s353
    %p362 = scmp.eq.s32.totalorder %s27, 0
    %p363 = por %p361, %p362
    %p364 = scmp.ne.s32.totalorder %s352, %s353
    %p365 = scmp.eq.s32.totalorder %s28, 1
    %p366 = por %p364, %p365
    %p368 = scmp.ne.s32.totalorder %s353, %s367
    %p369 = scmp.eq.s32.totalorder %s28, 0
    %p370 = por %p368, %p369
    %s371 = ssub.s32 %s22, %s29
    %p372 = scmp.eq.s32.totalorder %s371, 0
    %s374 = sadd.s32 %s373, 1
    %s375 = scalar_select %p372, %s373, %s374
    %p378 = pneg %p372
    %p379 = scmp.eq.s32.totalorder %s22, 1
    %p380 = por %p378, %p379
    %p381 = scmp.ne.s32.totalorder %s373, %s376
    %p382 = scmp.eq.s32.totalorder %s22, 0
    %p383 = por %p381, %p382
    %p384 = scmp.ne.s32.totalorder %s373, %s376
    %p385 = scmp.eq.s32.totalorder %s27, 1
    %p386 = por %p384, %p385
    %p387 = scmp.ne.s32.totalorder %s376, %s377
    %p388 = scmp.eq.s32.totalorder %s27, 0
    %p389 = por %p387, %p388
    %p390 = scmp.ne.s32.totalorder %s376, %s377
    %p391 = scmp.eq.s32.totalorder %s28, 1
    %p392 = por %p390, %p391
    %p394 = scmp.ne.s32.totalorder %s377, %s393
    %p395 = scmp.eq.s32.totalorder %s28, 0
    %p396 = por %p394, %p395
    %p397 = scmp.le.s32.totalorder 1, %s22
    %p398 = scmp.lt.s32.totalorder %s22, 3
    %p399 = pnand %p397, %p398
    %p400 = pneg %p399
    // Predicated region
    $region9: #{transformer_learner_forward.1} parent=5 // pred_check
      _
    $region10: #{transformer_learner_forward.1} parent=5 // pred_check_branch
      %402 = sbr.rel (%p399) target = $region12
    $region11: #{transformer_learner_forward.1} parent=5 // pred_region
      %s403 = ssub.s32 %s22, 1
      // Predicated region
      $region13: #{transformer_learner_forward.1} parent=11 // pred_check
        %p404 = pneg %p69
      $region14: #{transformer_learner_forward.1} parent=11 // pred_check_branch
        %406 = sbr.rel (%p404) target = $region16
      $region15: #{transformer_learner_forward.1} parent=11 // pred_region
        _
      $region16: #{transformer_learner_forward.1} parent=11 // pred_fallthru
        _
      // Predicated region
      $region17: #{transformer_learner_forward.1} parent=11 // pred_check
        %p407 = pneg %p90
      $region18: #{transformer_learner_forward.1} parent=11 // pred_check_branch
        %409 = sbr.rel (%p407) target = $region20
      $region19: #{transformer_learner_forward.1} parent=11 // pred_region
        _
      $region20: #{transformer_learner_forward.1} parent=11 // pred_fallthru
        _
      // Predicated region
      $region21: #{transformer_learner_forward.1} parent=11 // pred_check
        %p410 = pneg %p111
      $region22: #{transformer_learner_forward.1} parent=11 // pred_check_branch
        %412 = sbr.rel (%p410) target = $region24
      $region23: #{transformer_learner_forward.1} parent=11 // pred_region
        _
      $region24: #{transformer_learner_forward.1} parent=11 // pred_fallthru
        _
      // Predicated region
      $region25: #{transformer_learner_forward.1} parent=11 // pred_check
        %p413 = pneg %p132
      $region26: #{transformer_learner_forward.1} parent=11 // pred_check_branch
        %415 = sbr.rel (%p413) target = $region28
      $region27: #{transformer_learner_forward.1} parent=11 // pred_region
        _
      $region28: #{transformer_learner_forward.1} parent=11 // pred_fallthru
        _
      // Predicated region
      $region29: #{transformer_learner_forward.1} parent=11 // pred_check
        %p416 = pneg %p153
      $region30: #{transformer_learner_forward.1} parent=11 // pred_check_branch
        %418 = sbr.rel (%p416) target = $region32
      $region31: #{transformer_learner_forward.1} parent=11 // pred_region
        _
      $region32: #{transformer_learner_forward.1} parent=11 // pred_fallthru
        _
      // Predicated region
      $region33: #{transformer_learner_forward.1} parent=11 // pred_check
        %p419 = pneg %p174
      $region34: #{transformer_learner_forward.1} parent=11 // pred_check_branch
        %421 = sbr.rel (%p419) target = $region36
      $region35: #{transformer_learner_forward.1} parent=11 // pred_region
        _
      $region36: #{transformer_learner_forward.1} parent=11 // pred_fallthru
        _
      // Predicated region
      $region37: #{transformer_learner_forward.1} parent=11 // pred_check
        %p422 = pneg %p195
      $region38: #{transformer_learner_forward.1} parent=11 // pred_check_branch
        %424 = sbr.rel (%p422) target = $region40
      $region39: #{transformer_learner_forward.1} parent=11 // pred_region
        _
      $region40: #{transformer_learner_forward.1} parent=11 // pred_fallthru
        _
      // Predicated region
      $region41: #{transformer_learner_forward.1} parent=11 // pred_check
        %p425 = pneg %p216
      $region42: #{transformer_learner_forward.1} parent=11 // pred_check_branch
        %427 = sbr.rel (%p425) target = $region44
      $region43: #{transformer_learner_forward.1} parent=11 // pred_region
        _
      $region44: #{transformer_learner_forward.1} parent=11 // pred_fallthru
        _
      // Predicated region
      $region45: #{transformer_learner_forward.1} parent=11 // pred_check
        %p428 = pneg %p237
      $region46: #{transformer_learner_forward.1} parent=11 // pred_check_branch
        %430 = sbr.rel (%p428) target = $region48
      $region47: #{transformer_learner_forward.1} parent=11 // pred_region
        _
      $region48: #{transformer_learner_forward.1} parent=11 // pred_fallthru
        _
      // Predicated region
      $region49: #{transformer_learner_forward.1} parent=11 // pred_check
        %p431 = pneg %p258
      $region50: #{transformer_learner_forward.1} parent=11 // pred_check_branch
        %433 = sbr.rel (%p431) target = $region52
      $region51: #{transformer_learner_forward.1} parent=11 // pred_region
        _
      $region52: #{transformer_learner_forward.1} parent=11 // pred_fallthru
        _
      // Predicated region
      $region53: #{transformer_learner_forward.1} parent=11 // pred_check
        %p434 = pneg %p279
      $region54: #{transformer_learner_forward.1} parent=11 // pred_check_branch
        %436 = sbr.rel (%p434) target = $region56
      $region55: #{transformer_learner_forward.1} parent=11 // pred_region
        _
      $region56: #{transformer_learner_forward.1} parent=11 // pred_fallthru
        _
      // Predicated region
      $region57: #{transformer_learner_forward.1} parent=11 // pred_check
        %p437 = pneg %p300
      $region58: #{transformer_learner_forward.1} parent=11 // pred_check_branch
        %439 = sbr.rel (%p437) target = $region60
      $region59: #{transformer_learner_forward.1} parent=11 // pred_region
        _
      $region60: #{transformer_learner_forward.1} parent=11 // pred_fallthru
        _
      // Predicated region
      $region61: #{transformer_learner_forward.1} parent=11 // pred_check
        %p440 = pneg %p321
      $region62: #{transformer_learner_forward.1} parent=11 // pred_check_branch
        %442 = sbr.rel (%p440) target = $region64
      $region63: #{transformer_learner_forward.1} parent=11 // pred_region
        _
      $region64: #{transformer_learner_forward.1} parent=11 // pred_fallthru
        _
      // Predicated region
      $region65: #{transformer_learner_forward.1} parent=11 // pred_check
        %p443 = pneg %p342
      $region66: #{transformer_learner_forward.1} parent=11 // pred_check_branch
        %445 = sbr.rel (%p443) target = $region68
      $region67: #{transformer_learner_forward.1} parent=11 // pred_region
        _
      $region68: #{transformer_learner_forward.1} parent=11 // pred_fallthru
        _
      // Predicated region
      $region69: #{transformer_learner_forward.1} parent=11 // pred_check
        %p446 = pneg %p363
      $region70: #{transformer_learner_forward.1} parent=11 // pred_check_branch
        %448 = sbr.rel (%p446) target = $region72
      $region71: #{transformer_learner_forward.1} parent=11 // pred_region
        _
      $region72: #{transformer_learner_forward.1} parent=11 // pred_fallthru
        _
    $region12: #{transformer_learner_forward.1} parent=5 // pred_fallthru
      _
    %p449 = scmp.lt.s32.totalorder %s22, 2
    // Predicated region
    $region73: #{transformer_learner_forward.1} parent=5 // pred_check
      %p450 = pneg %p449
    $region74: #{transformer_learner_forward.1} parent=5 // pred_check_branch
      %452 = sbr.rel (%p450) target = $region76
    $region75: #{transformer_learner_forward.1} parent=5 // pred_region
      // Predicated region
      $region77: #{transformer_learner_forward.1} parent=75 // pred_check
        %p453 = pneg %p42
      $region78: #{transformer_learner_forward.1} parent=75 // pred_check_branch
        %455 = sbr.rel (%p453) target = $region80
      $region79: #{transformer_learner_forward.1} parent=75 // pred_region
        %p456 = scmp.lt.s32.totalorder %s22, 1
        %s457 = scalar_select %p456, %s22, 1
        %s458 = smul.addr %s457, 8
        %s459 = smul.addr %s458, 8
        %s460 = scalar_lea.vmem %s0, %s459
      $region80: #{transformer_learner_forward.1} parent=75 // pred_fallthru
        _
    $region76: #{transformer_learner_forward.1} parent=5 // pred_fallthru
      _
    %p461 = scmp.le.s32.totalorder 1, %s22
    %p462 = scmp.lt.s32.totalorder %s22, 3
    %p463 = pnand %p461, %p462
    %p464 = pneg %p463
    // Predicated region
    $region81: #{transformer_learner_forward.1} parent=5 // pred_check
      _
    $region82: #{transformer_learner_forward.1} parent=5 // pred_check_branch
      %466 = sbr.rel (%p463) target = $region84
    $region83: #{transformer_learner_forward.1} parent=5 // pred_region
      %s467 = ssub.s32 %s22, 1
      %p468 = scmp.lt.s32.totalorder %s27, 1
      %s469 = scalar_select %p468, %s27, 1
      %s470 = smul.addr %s469, 8
      %s471 = smul.addr %s470, 8
      %s472 = scalar_lea.vmem %s0, %s471
      %p473 = pneg %p48
      %p474 = pneg %p45
      %p475 = pneg %p69
      %p476 = pneg %p66
      %p477 = pneg %p90
      %p478 = pneg %p87
      %p479 = pneg %p111
      %p480 = pneg %p108
      %p481 = pneg %p132
      %p482 = pneg %p129
      %p483 = pneg %p153
      %p484 = pneg %p150
      %p485 = pneg %p174
      %p486 = pneg %p171
      %p487 = pneg %p195
      %p488 = pneg %p192
      %p489 = pneg %p216
      %p490 = pneg %p213
      %p491 = pneg %p237
      %p492 = pneg %p234
      %p493 = pneg %p258
      %p494 = pneg %p255
      %p495 = pneg %p279
      %p496 = pneg %p276
      %p497 = pneg %p300
      %p498 = pneg %p297
      %p499 = pneg %p321
      %p500 = pneg %p318
      %p501 = pneg %p342
      %p502 = pneg %p339
      %p503 = pneg %p363
      %p504 = pneg %p360
      %p505 = pneg %p389
      %p506 = pneg %p386
      %p507 = scmp.lt.s32.totalorder %s27, 1
      %s508 = scalar_select %p507, %s27, 1
      %s509 = smul.addr %s508, 2
      %s510 = smul.addr %s509, 8
      %s511 = scalar_lea.vmem %s16, %s510
      %p512 = scmp.lt.s32.totalorder %s27, 1
      %s513 = scalar_select %p512, %s27, 1
      %s514 = smul.addr %s513, 8
      %s515 = smul.addr %s514, 8
      %s516 = scalar_lea.vmem %s0, %s515
      %p517 = scmp.lt.s32.totalorder %s27, 1
      %s518 = scalar_select %p517, %s27, 1
      %s519 = smul.addr %s518, 2
      %s520 = smul.addr %s519, 8
      %s521 = scalar_lea.vmem %s16, %s520
      %v523 = vld [vmem:[%s516] sm:$0xff]
      %v524 = vld [vmem:[%s516 + $0x8] sm:$0xff]
      %v525 = vld [vmem:[%s516 + $0x10] sm:$0xff]
      %v526 = vld [vmem:[%s516 + $0x18] sm:$0xff]
      %v527 = vld [vmem:[%s516 + $0x20] sm:$0xff]
      %v528 = vld [vmem:[%s516 + $0x28] sm:$0xff]
      %v529 = vld [vmem:[%s516 + $0x30] sm:$0xff]
      %v530 = vld [vmem:[%s516 + $0x38] sm:$0xff]
      %v531 = vadd.f32 %v523, %v525
      %v532 = vadd.f32 %v531, %v527
      %v533 = vadd.f32 %v532, %v529
      %v534 = vrot.slane %v533, 4
      %v535 = vadd.f32 %v533, %v534
      %v536 = vrot.slane %v535, 2
      %v537 = vadd.f32 %v535, %v536
      %v538 = vrot.slane %v537, 1
      %v539 = vadd.f32 %v537, %v538
      %v540 = vadd.f32 %v524, %v526
      %v541 = vadd.f32 %v540, %v528
      %v542 = vadd.f32 %v541, %v530
      %v543 = vrot.slane %v542, 4
      %v544 = vadd.f32 %v542, %v543
      %v545 = vrot.slane %v544, 2
      %v546 = vadd.f32 %v544, %v545
      %v547 = vrot.slane %v546, 1
      %v548 = vadd.f32 %v546, %v547
      %v549 = vrcp.pop 32.0
      %v550 = vmul.f32 %v539, %v549
      %v551 = vmul.f32 %v548, %v549
      %v552 = vsub.f32 %v523, %v550
      %v553 = vsub.f32 %v524, %v551
      %v554 = vsub.f32 %v525, %v550
      %v555 = vsub.f32 %v526, %v551
      %v556 = vsub.f32 %v527, %v550
      %v557 = vsub.f32 %v528, %v551
      %v558 = vsub.f32 %v529, %v550
      %v559 = vsub.f32 %v530, %v551
      %v560 = vmul.f32 %v552, %v552
      %v561 = vmul.f32 %v553, %v553
      %v562 = vmul.f32 %v554, %v554
      %v563 = vmul.f32 %v555, %v555
      %v564 = vmul.f32 %v556, %v556
      %v565 = vmul.f32 %v557, %v557
      %v566 = vmul.f32 %v558, %v558
      %v567 = vmul.f32 %v559, %v559
      %v568 = vadd.f32 %v560, %v562
      %v569 = vadd.f32 %v568, %v564
      %v570 = vadd.f32 %v569, %v566
      %v571 = vrot.slane %v570, 4
      %v572 = vadd.f32 %v570, %v571
      %v573 = vrot.slane %v572, 2
      %v574 = vadd.f32 %v572, %v573
      %v575 = vrot.slane %v574, 1
      %v576 = vadd.f32 %v574, %v575
      %v577 = vadd.f32 %v561, %v563
      %v578 = vadd.f32 %v577, %v565
      %v579 = vadd.f32 %v578, %v567
      %v580 = vrot.slane %v579, 4
      %v581 = vadd.f32 %v579, %v580
      %v582 = vrot.slane %v581, 2
      %v583 = vadd.f32 %v581, %v582
      %v584 = vrot.slane %v583, 1
      %v585 = vadd.f32 %v583, %v584
      %v586 = vmul.f32 %v576, %v549
      %v587 = vmul.f32 %v585, %v549
      %v588 = vadd.f32 %v586, 1e-05
      %v589 = vadd.f32 %v587, 1e-05
      %v590 = vrsqrt.pop %v588
      %v591 = vrsqrt.pop %v589
      %v592 = vmul.f32 %v552, %v590
      %v593 = vmul.f32 %v553, %v591
      %v594 = vmul.f32 %v554, %v590
      %v595 = vmul.f32 %v555, %v591
      %v596 = vmul.f32 %v556, %v590
      %v597 = vmul.f32 %v557, %v591
      %v598 = vmul.f32 %v558, %v590
      %v599 = vmul.f32 %v559, %v591
      %v600 = vld [vmem:[%s2] sm:$0xff]
      %v601 = vld [vmem:[%s2 + $0x8] sm:$0xff]
      %v602 = vld [vmem:[%s2 + $0x10] sm:$0xff]
      %v603 = vld [vmem:[%s2 + $0x18] sm:$0xff]
      %605 = vset.pattern.permute.xlu0 0
      %606 = vperm.xlu0 %605, %v600
      %v607 = vpop.permute.xlu0 %606
      %610 = vset.pattern.permute.xlu0 0
      %611 = vperm.xlu0 %610, %v601
      %v612 = vpop.permute.xlu0 %611
      %615 = vset.pattern.permute.xlu0 0
      %616 = vperm.xlu0 %615, %v602
      %v617 = vpop.permute.xlu0 %616
      %620 = vset.pattern.permute.xlu0 0
      %621 = vperm.xlu0 %620, %v603
      %v622 = vpop.permute.xlu0 %621
      %v624 = vmul.f32 %v592, %v607
      %v625 = vmul.f32 %v593, %v607
      %v626 = vmul.f32 %v594, %v612
      %v627 = vmul.f32 %v595, %v612
      %v628 = vmul.f32 %v596, %v617
      %v629 = vmul.f32 %v597, %v617
      %v630 = vmul.f32 %v598, %v622
      %v631 = vmul.f32 %v599, %v622
      %s632 = scalar_lea.vmem %s2, 32
      %v633 = vld [vmem:[%s632] sm:$0xff]
      %v634 = vld [vmem:[%s632 + $0x8] sm:$0xff]
      %v635 = vld [vmem:[%s632 + $0x10] sm:$0xff]
      %v636 = vld [vmem:[%s632 + $0x18] sm:$0xff]
      %638 = vset.pattern.permute.xlu0 0
      %639 = vperm.xlu0 %638, %v633
      %v640 = vpop.permute.xlu0 %639
      %643 = vset.pattern.permute.xlu0 0
      %644 = vperm.xlu0 %643, %v634
      %v645 = vpop.permute.xlu0 %644
      %648 = vset.pattern.permute.xlu0 0
      %649 = vperm.xlu0 %648, %v635
      %v650 = vpop.permute.xlu0 %649
      %653 = vset.pattern.permute.xlu0 0
      %654 = vperm.xlu0 %653, %v636
      %v655 = vpop.permute.xlu0 %654
      %v657 = vadd.f32 %v624, %v640
      %v658 = vadd.f32 %v625, %v640
      %v659 = vadd.f32 %v626, %v645
      %v660 = vadd.f32 %v627, %v645
      %v661 = vadd.f32 %v628, %v650
      %v662 = vadd.f32 %v629, %v650
      %v663 = vadd.f32 %v630, %v655
      %v664 = vadd.f32 %v631, %v655
      %v665 = vpack.c.bf16 %v659, %v657
      %v666 = vpack.c.bf16 %v660, %v658
      %v667 = vpack.c.bf16 %v663, %v661
      %v668 = vpack.c.bf16 %v664, %v662
      %v669 = vld [vmem:[%s1] sm:$0xff]
      %v670 = vld [vmem:[%s4] sm:$0x3f]
      %v671 = vld [vmem:[%s12] sm:$0xf]
      %vm672 = vcmask 261120
      %v673 = vsel %vm672, %v669, 0.0
      %674 = vadd.xlane.f32.xlu0 %v673
      %v675 = vpop.xlane.xlu0 %674
      %v676 = vmul.f32 %v675, %v549
      %v677 = vsub.f32 %v669, %v676
      %v678 = vmul.f32 %v677, %v677
      %v679 = vsel %vm672, %v678, 0.0
      %680 = vadd.xlane.f32.xlu0 %v679
      %v681 = vpop.xlane.xlu0 %680
      %v682 = vmul.f32 %v681, %v549
      %v683 = vadd.f32 %v682, 1e-05
      %v684 = vrsqrt.pop %v683
      %v685 = vmul.f32 %v677, %v684
      %v686 = vlaneseq
      %v687 = vshrl.u32 %v686, 7
      %v688 = vsub.s32 0, %v687
      %v689 = vrot.slane %v670, %v688
      %v690 = vmul.f32 %v685, %v689
      %v691 = vlaneseq
      %v692 = vshrl.u32 %v691, 7
      %v693 = vsub.s32 1, %v692
      %v694 = vrot.slane %v670, %v693
      %v695 = vadd.f32 %v690, %v694
      %v696 = vpack.c.bf16 %v695, %v695
      %v697 = vld [vmem:[%s5] sm:$0xf]
      %v698 = vld [vmem:[%s5 + $0x4] sm:$0xf]
      %v699 = vld [vmem:[%s5 + $0x8] sm:$0xf]
      %v700 = vld [vmem:[%s5 + $0xc] sm:$0xf]
      %v701 = vlaneseq
      %v702 = vshrl.u32 %v701, 7
      %v703 = vsub.s32 0, %v702
      %v704 = vrot.slane %v671, %v703
      %v709 = vunpack.c.l.b16 %v697
      %v710 = vunpack.c.l.b16 %v698
      %v711 = vunpack.c.l.b16 %v699
      %v712 = vunpack.c.l.b16 %v700
      %v713 = vpack.c.b16 %v710, %v709
      %v714 = vpack.c.b16 %v712, %v711
      %v718 = vsel %vm672, %v696, 0
      %720 = vmatprep.subr.bf16.mxu0 0
      %721 = vmatpush1.bf16.msra.mxu0 0
      %722 = vmatprep.subr.bf16.mxu0 0
      %723 = vmatpush1.bf16.msra.mxu0 0
      %724 = vmatprep.subr.bf16.mxu0 0
      %725 = vmatpush1.bf16.msra.mxu0 0
      %726 = vmatprep.subr.bf16.mxu0 0
      %727 = vmatpush1.bf16.msra.mxu0 0
      %728 = vmatprep.subr.bf16.mxu0 0
      %729 = vmatpush1.bf16.msra.mxu0 0
      %730 = vmatprep.subr.bf16.mxu0 0
      %731 = vmatpush1.bf16.msra.mxu0 0
      %732 = vmatprep.subr.bf16.mxu0 0
      %733 = vmatpush1.bf16.msra.mxu0 %v714
      %734 = vmatprep.subr.bf16.mxu0 0
      %735 = vmatpush1.bf16.msra.mxu0 %v713
      %736 = vmatprep.subr.bf16.mxu0 0
      %737 = vmatpush2.bf16.msra.mxu0 0
      %738 = vmatprep.subr.bf16.mxu0 0
      %739 = vmatpush2.bf16.msra.mxu0 0
      %740 = vmatprep.subr.bf16.mxu0 0
      %741 = vmatpush2.bf16.msra.mxu0 0
      %742 = vmatprep.subr.bf16.mxu0 0
      %743 = vmatpush2.bf16.msra.mxu0 0
      %744 = vmatprep.subr.bf16.mxu0 0
      %745 = vmatpush2.bf16.msra.mxu0 0
      %746 = vmatprep.subr.bf16.mxu0 0
      %747 = vmatpush2.bf16.msra.mxu0 0
      %748 = vmatprep.subr.bf16.mxu0 0
      %749 = vmatpush2.bf16.msra.mxu0 0
      %750 = vmatprep.subr.bf16.mxu0 0
      %751 = vmatpush2.bf16.msra.mxu0 0
      %752 = vmatprep.mubr.bf16.mxu0 0
      %753 = vmatmul.mubr.bf16.gmra.mxu0 %v718
      %v754 = vpop.f32.mrf.mxu0
      %v755 = vadd.f32 %v704, %v754
      %v756 = vpop.f32.mrf.mxu0
      %v757 = vpop.f32.mrf.mxu0
      %v758 = vpop.f32.mrf.mxu0
      %759 = vdwg.mxu0
      %v760 = vld [vmem:[%s6] sm:$0xf]
      %v761 = vld [vmem:[%s6 + $0x4] sm:$0xf]
      %v762 = vld [vmem:[%s6 + $0x8] sm:$0xf]
      %v763 = vld [vmem:[%s6 + $0xc] sm:$0xf]
      %v764 = vld [vmem:[%s6 + $0x10] sm:$0xf]
      %v765 = vld [vmem:[%s6 + $0x14] sm:$0xf]
      %v766 = vld [vmem:[%s6 + $0x18] sm:$0xf]
      %v767 = vld [vmem:[%s6 + $0x1c] sm:$0xf]
      %v768 = vld [vmem:[%s13] sm:$0xff]
      %v769 = vld [vmem:[%s13 + $0x8] sm:$0xff]
      %v770 = vld [vmem:[%s13 + $0x10] sm:$0xff]
      %v771 = vld [vmem:[%s13 + $0x18] sm:$0xff]
      %v772 = vld [vmem:[%s13 + $0x20] sm:$0xff]
      %v773 = vld [vmem:[%s13 + $0x28] sm:$0xff]
      %v774 = vld [vmem:[%s13 + $0x30] sm:$0xff]
      %v775 = vld [vmem:[%s13 + $0x38] sm:$0xff]
      %777 = vset.pattern.permute.xlu0 0
      %778 = vperm.xlu0 %777, %v768
      %v779 = vpop.permute.xlu0 %778
      %782 = vset.pattern.permute.xlu0 0
      %783 = vperm.xlu0 %782, %v769
      %v784 = vpop.permute.xlu0 %783
      %787 = vset.pattern.permute.xlu0 0
      %788 = vperm.xlu0 %787, %v770
      %v789 = vpop.permute.xlu0 %788
      %792 = vset.pattern.permute.xlu0 0
      %793 = vperm.xlu0 %792, %v771
      %v794 = vpop.permute.xlu0 %793
      %797 = vset.pattern.permute.xlu0 0
      %798 = vperm.xlu0 %797, %v772
      %v799 = vpop.permute.xlu0 %798
      %802 = vset.pattern.permute.xlu0 0
      %803 = vperm.xlu0 %802, %v773
      %v804 = vpop.permute.xlu0 %803
      %807 = vset.pattern.permute.xlu0 0
      %808 = vperm.xlu0 %807, %v774
      %v809 = vpop.permute.xlu0 %808
      %812 = vset.pattern.permute.xlu0 0
      %813 = vperm.xlu0 %812, %v775
      %v814 = vpop.permute.xlu0 %813
      %v824 = vunpack.c.l.b16 %v760
      %v825 = vunpack.c.l.b16 %v761
      %v826 = vunpack.c.l.b16 %v762
      %v827 = vunpack.c.l.b16 %v763
      %v828 = vunpack.c.l.b16 %v764
      %v829 = vunpack.c.l.b16 %v765
      %v830 = vunpack.c.l.b16 %v766
      %v831 = vunpack.c.l.b16 %v767
      %v832 = vpack.c.b16 %v825, %v824
      %v833 = vpack.c.b16 %v827, %v826
      %v834 = vpack.c.b16 %v829, %v828
      %v835 = vpack.c.b16 %v831, %v830
      %v837 = vsel %vm672, %v832, 0
      %v840 = vsel %vm672, %v833, 0
      %v843 = vsel %vm672, %v834, 0
      %v846 = vsel %vm672, %v835, 0
      %848 = vmatprep.subr.bf16.mxu0 0
      %849 = vmatpush1.bf16.msra.mxu0 0
      %850 = vmatprep.subr.bf16.mxu0 0
      %851 = vmatpush1.bf16.msra.mxu0 0
      %852 = vmatprep.subr.bf16.mxu0 0
      %853 = vmatpush1.bf16.msra.mxu0 0
      %854 = vmatprep.subr.bf16.mxu0 0
      %855 = vmatpush1.bf16.msra.mxu0 0
      %856 = vmatprep.subr.bf16.mxu0 0
      %857 = vmatpush1.bf16.msra.mxu0 0
      %858 = vmatprep.subr.bf16.mxu0 0
      %859 = vmatpush1.bf16.msra.mxu0 0
      %860 = vmatprep.subr.bf16.mxu0 %v668
      %861 = vmatpush1.bf16.msra.mxu0 %v667
      %862 = vmatprep.subr.bf16.mxu0 %v666
      %863 = vmatpush1.bf16.msra.mxu0 %v665
      %864 = vmatprep.subr.bf16.mxu0 0
      %865 = vmatpush2.bf16.msra.mxu0 0
      %866 = vmatprep.subr.bf16.mxu0 0
      %867 = vmatpush2.bf16.msra.mxu0 0
      %868 = vmatprep.subr.bf16.mxu0 0
      %869 = vmatpush2.bf16.msra.mxu0 0
      %870 = vmatprep.subr.bf16.mxu0 0
      %871 = vmatpush2.bf16.msra.mxu0 0
      %872 = vmatprep.subr.bf16.mxu0 0
      %873 = vmatpush2.bf16.msra.mxu0 0
      %874 = vmatprep.subr.bf16.mxu0 0
      %875 = vmatpush2.bf16.msra.mxu0 0
      %876 = vmatprep.subr.bf16.mxu0 0
      %877 = vmatpush2.bf16.msra.mxu0 0
      %878 = vmatprep.subr.bf16.mxu0 0
      %879 = vmatpush2.bf16.msra.mxu0 0
      %880 = vmatprep.mubr.bf16.mxu0 0
      %881 = vmatmul.mubr.bf16.gmra.mxu0 %v837
      %v882 = vpop.f32.mrf.mxu0
      %v883 = vadd.f32 %v779, %v882
      %v884 = vpop.f32.mrf.mxu0
      %v885 = vadd.f32 %v779, %v884
      %v886 = vpop.f32.mrf.mxu0
      %v887 = vadd.f32 %v784, %v886
      %v888 = vpop.f32.mrf.mxu0
      %v889 = vadd.f32 %v784, %v888
      %890 = vmatprep.mubr.bf16.mxu0 0
      %891 = vmatmul.mubr.bf16.gmra.mxu0 %v840
      %v892 = vpop.f32.mrf.mxu0
      %v893 = vadd.f32 %v789, %v892
      %v894 = vpop.f32.mrf.mxu0
      %v895 = vadd.f32 %v789, %v894
      %v896 = vpop.f32.mrf.mxu0
      %v897 = vadd.f32 %v794, %v896
      %v898 = vpop.f32.mrf.mxu0
      %v899 = vadd.f32 %v794, %v898
      %900 = vmatprep.mubr.bf16.mxu0 0
      %901 = vmatmul.mubr.bf16.gmra.mxu0 %v843
      %v902 = vpop.f32.mrf.mxu0
      %v903 = vadd.f32 %v799, %v902
      %v904 = vpop.f32.mrf.mxu0
      %v905 = vadd.f32 %v799, %v904
      %v906 = vpop.f32.mrf.mxu0
      %v907 = vadd.f32 %v804, %v906
      %v908 = vpop.f32.mrf.mxu0
      %v909 = vadd.f32 %v804, %v908
      %910 = vmatprep.mubr.bf16.mxu0 0
      %911 = vmatmul.mubr.bf16.gmra.mxu0 %v846
      %v912 = vpop.f32.mrf.mxu0
      %v913 = vadd.f32 %v809, %v912
      %v914 = vpop.f32.mrf.mxu0
      %v915 = vadd.f32 %v809, %v914
      %v916 = vpop.f32.mrf.mxu0
      %v917 = vadd.f32 %v814, %v916
      %v918 = vpop.f32.mrf.mxu0
      %v919 = vadd.f32 %v814, %v918
      %920 = vdwg.mxu0
      %v921 = vld [vmem:[%s7] sm:$0xf]
      %v922 = vld [vmem:[%s7 + $0x4] sm:$0xf]
      %v923 = vld [vmem:[%s7 + $0x8] sm:$0xf]
      %v924 = vld [vmem:[%s7 + $0xc] sm:$0xf]
      %v925 = vpack.c.bf16 %v755, %v755
      %v926 = vpack.c.bf16 %v883, %v883
      %v927 = vpack.c.bf16 %v885, %v885
      %v928 = vpack.c.bf16 %v903, %v903
      %v929 = vpack.c.bf16 %v905, %v905
      %vm930 = vcmask 64512
      %v932 = vsel %vm930, %v925, 0
      %vm934 = vcmask 1043456
      %v936 = vsel %vm934, %v926, 0
      %v939 = vsel %vm934, %v927, 0
      %941 = vmatprep.subr.bf16.mxu0 0
      %942 = vmatpush1.bf16.msra.mxu0 0
      %943 = vmatprep.subr.bf16.mxu0 0
      %944 = vmatpush1.bf16.msra.mxu0 0
      %945 = vmatprep.subr.bf16.mxu0 0
      %946 = vmatpush1.bf16.msra.mxu0 0
      %947 = vmatprep.subr.bf16.mxu0 0
      %948 = vmatpush1.bf16.msra.mxu0 0
      %949 = vmatprep.subr.bf16.mxu0 0
      %950 = vmatpush1.bf16.msra.mxu0 0
      %951 = vmatprep.subr.bf16.mxu0 0
      %952 = vmatpush1.bf16.msra.mxu0 0
      %953 = vmatprep.subr.bf16.mxu0 0
      %954 = vmatpush1.bf16.msra.mxu0 0
      %955 = vmatprep.subr.bf16.mxu0 %v939
      %956 = vmatpush1.bf16.msra.mxu0 %v936
      %957 = vmatprep.subr.bf16.mxu0 0
      %958 = vmatpush2.bf16.msra.mxu0 0
      %959 = vmatprep.subr.bf16.mxu0 0
      %960 = vmatpush2.bf16.msra.mxu0 0
      %961 = vmatprep.subr.bf16.mxu0 0
      %962 = vmatpush2.bf16.msra.mxu0 0
      %963 = vmatprep.subr.bf16.mxu0 0
      %964 = vmatpush2.bf16.msra.mxu0 0
      %965 = vmatprep.subr.bf16.mxu0 0
      %966 = vmatpush2.bf16.msra.mxu0 0
      %967 = vmatprep.subr.bf16.mxu0 0
      %968 = vmatpush2.bf16.msra.mxu0 0
      %969 = vmatprep.subr.bf16.mxu0 0
      %970 = vmatpush2.bf16.msra.mxu0 0
      %971 = vmatprep.subr.bf16.mxu0 0
      %972 = vmatpush2.bf16.msra.mxu0 0
      %973 = vmatprep.mubr.bf16.mxu0 0
      %974 = vmatmul.mubr.bf16.gmra.mxu0 %v932
      %v975 = vpop.f32.mrf.mxu0
      %v976 = vadd.f32 0.0, %v975
      %v977 = vpop.f32.mrf.mxu0
      %v978 = vadd.f32 0.0, %v977
      %v979 = vpop.f32.mrf.mxu0
      %v980 = vpop.f32.mrf.mxu0
      %981 = vdwg.mxu0
      %v982 = vmax.f32 %v976, %v978
      %983 = vmax.xlane.f32.xlu0 %v982
      %v984 = vpop.xlane.xlu0 %983
      %v985 = vsub.f32 %v976, %v984
      %v986 = vsub.f32 %v978, %v984
      %v987 = vmul.f32 %v985, 1.442695
      %v988 = vpow.pop %v987
      %v989 = vmul.f32 %v986, 1.442695
      %v990 = vpow.pop %v989
      %v991 = vadd.f32 %v988, %v990
      %992 = vadd.xlane.f32.xlu0 %v991
      %v993 = vpop.xlane.xlu0 %992
      %v994 = vrcp.pop %v993
      %v995 = vmul.f32 %v988, %v994
      %v996 = vmul.f32 %v990, %v994
      %v997 = vpack.c.bf16 %v995, %v995
      %v998 = vpack.c.bf16 %v996, %v996
      %999 = vmatprep.subr.bf16.mxu0 0
      %1000 = vmatpush1.bf16.xpose.msra.mxu0 0
      %1001 = vmatprep.subr.bf16.mxu0 0
      %1002 = vmatpush1.bf16.xpose.msra.mxu0 0
      %1003 = vmatprep.subr.bf16.mxu0 0
      %1004 = vmatpush1.bf16.xpose.msra.mxu0 0
      %1005 = vmatprep.subr.bf16.mxu0 0
      %1006 = vmatpush1.bf16.xpose.msra.mxu0 0
      %1007 = vmatprep.subr.bf16.mxu0 0
      %1008 = vmatpush1.bf16.xpose.msra.mxu0 0
      %1009 = vmatprep.subr.bf16.mxu0 0
      %1010 = vmatpush1.bf16.xpose.msra.mxu0 0
      %1011 = vmatprep.subr.bf16.mxu0 0
      %1012 = vmatpush1.bf16.xpose.msra.mxu0 0
      %1013 = vmatprep.subr.bf16.mxu0 %v929
      %1014 = vmatpush1.bf16.xpose.msra.mxu0 %v928
      %1015 = vmatprep.subr.bf16.mxu0 0
      %1016 = vmatpush2.bf16.xpose.msra.mxu0 0
      %1017 = vmatprep.subr.bf16.mxu0 0
      %1018 = vmatpush2.bf16.xpose.msra.mxu0 0
      %1019 = vmatprep.subr.bf16.mxu0 0
      %1020 = vmatpush2.bf16.xpose.msra.mxu0 0
      %1021 = vmatprep.subr.bf16.mxu0 0
      %1022 = vmatpush2.bf16.xpose.msra.mxu0 0
      %1023 = vmatprep.subr.bf16.mxu0 0
      %1024 = vmatpush2.bf16.xpose.msra.mxu0 0
      %1025 = vmatprep.subr.bf16.mxu0 0
      %1026 = vmatpush2.bf16.xpose.msra.mxu0 0
      %1027 = vmatprep.subr.bf16.mxu0 0
      %1028 = vmatpush2.bf16.xpose.msra.mxu0 0
      %1029 = vmatprep.subr.bf16.mxu0 0
      %1030 = vmatpush2.bf16.xpose.msra.mxu0 0
      %1031 = vmatprep.mubr.bf16.mxu0 %v998
      %1032 = vmatmul.mubr.bf16.gmra.mxu0 %v997
      %v1033 = vpop.f32.mrf.mxu0
      %v1034 = vadd.f32 0.0, %v1033
      %v1035 = vpop.f32.mrf.mxu0
      %v1036 = vpop.f32.mrf.mxu0
      %v1037 = vpop.f32.mrf.mxu0
      %1038 = vdwg.mxu0
      %v1039 = vpack.c.bf16 %v887, %v887
      %v1040 = vpack.c.bf16 %v889, %v889
      %v1041 = vpack.c.bf16 %v907, %v907
      %v1042 = vpack.c.bf16 %v909, %v909
      %1044 = vrot.lane.b32.xlu0 %v925, 120
      %v1045 = vpop.permute.xlu0 %1044
      %v1047 = vsel %vm930, %v1045, 0
      %v1050 = vsel %vm934, %v1039, 0
      %v1053 = vsel %vm934, %v1040, 0
      %1055 = vmatprep.subr.bf16.mxu0 0
      %1056 = vmatpush1.bf16.msra.mxu0 0
      %1057 = vmatprep.subr.bf16.mxu0 0
      %1058 = vmatpush1.bf16.msra.mxu0 0
      %1059 = vmatprep.subr.bf16.mxu0 0
      %1060 = vmatpush1.bf16.msra.mxu0 0
      %1061 = vmatprep.subr.bf16.mxu0 0
      %1062 = vmatpush1.bf16.msra.mxu0 0
      %1063 = vmatprep.subr.bf16.mxu0 0
      %1064 = vmatpush1.bf16.msra.mxu0 0
      %1065 = vmatprep.subr.bf16.mxu0 0
      %1066 = vmatpush1.bf16.msra.mxu0 0
      %1067 = vmatprep.subr.bf16.mxu0 0
      %1068 = vmatpush1.bf16.msra.mxu0 0
      %1069 = vmatprep.subr.bf16.mxu0 %v1053
      %1070 = vmatpush1.bf16.msra.mxu0 %v1050
      %1071 = vmatprep.subr.bf16.mxu0 0
      %1072 = vmatpush2.bf16.msra.mxu0 0
      %1073 = vmatprep.subr.bf16.mxu0 0
      %1074 = vmatpush2.bf16.msra.mxu0 0
      %1075 = vmatprep.subr.bf16.mxu0 0
      %1076 = vmatpush2.bf16.msra.mxu0 0
      %1077 = vmatprep.subr.bf16.mxu0 0
      %1078 = vmatpush2.bf16.msra.mxu0 0
      %1079 = vmatprep.subr.bf16.mxu0 0
      %1080 = vmatpush2.bf16.msra.mxu0 0
      %1081 = vmatprep.subr.bf16.mxu0 0
      %1082 = vmatpush2.bf16.msra.mxu0 0
      %1083 = vmatprep.subr.bf16.mxu0 0
      %1084 = vmatpush2.bf16.msra.mxu0 0
      %1085 = vmatprep.subr.bf16.mxu0 0
      %1086 = vmatpush2.bf16.msra.mxu0 0
      %1087 = vmatprep.mubr.bf16.mxu0 0
      %1088 = vmatmul.mubr.bf16.gmra.mxu0 %v1047
      %v1089 = vpop.f32.mrf.mxu0
      %v1090 = vadd.f32 0.0, %v1089
      %v1091 = vpop.f32.mrf.mxu0
      %v1092 = vadd.f32 0.0, %v1091
      %v1093 = vpop.f32.mrf.mxu0
      %v1094 = vpop.f32.mrf.mxu0
      %1095 = vdwg.mxu0
      %v1096 = vmax.f32 %v1090, %v1092
      %1097 = vmax.xlane.f32.xlu0 %v1096
      %v1098 = vpop.xlane.xlu0 %1097
      %v1099 = vsub.f32 %v1090, %v1098
      %v1100 = vsub.f32 %v1092, %v1098
      %v1101 = vmul.f32 %v1099, 1.442695
      %v1102 = vpow.pop %v1101
      %v1103 = vmul.f32 %v1100, 1.442695
      %v1104 = vpow.pop %v1103
      %v1105 = vadd.f32 %v1102, %v1104
      %1106 = vadd.xlane.f32.xlu0 %v1105
      %v1107 = vpop.xlane.xlu0 %1106
      %v1108 = vrcp.pop %v1107
      %v1109 = vmul.f32 %v1102, %v1108
      %v1110 = vmul.f32 %v1104, %v1108
      %v1111 = vpack.c.bf16 %v1109, %v1109
      %v1112 = vpack.c.bf16 %v1110, %v1110
      %1113 = vmatprep.subr.bf16.mxu0 0
      %1114 = vmatpush1.bf16.xpose.msra.mxu0 0
      %1115 = vmatprep.subr.bf16.mxu0 0
      %1116 = vmatpush1.bf16.xpose.msra.mxu0 0
      %1117 = vmatprep.subr.bf16.mxu0 0
      %1118 = vmatpush1.bf16.xpose.msra.mxu0 0
      %1119 = vmatprep.subr.bf16.mxu0 0
      %1120 = vmatpush1.bf16.xpose.msra.mxu0 0
      %1121 = vmatprep.subr.bf16.mxu0 0
      %1122 = vmatpush1.bf16.xpose.msra.mxu0 0
      %1123 = vmatprep.subr.bf16.mxu0 0
      %1124 = vmatpush1.bf16.xpose.msra.mxu0 0
      %1125 = vmatprep.subr.bf16.mxu0 0
      %1126 = vmatpush1.bf16.xpose.msra.mxu0 0
      %1127 = vmatprep.subr.bf16.mxu0 %v1042
      %1128 = vmatpush1.bf16.xpose.msra.mxu0 %v1041
      %1129 = vmatprep.subr.bf16.mxu0 0
      %1130 = vmatpush2.bf16.xpose.msra.mxu0 0
      %1131 = vmatprep.subr.bf16.mxu0 0
      %1132 = vmatpush2.bf16.xpose.msra.mxu0 0
      %1133 = vmatprep.subr.bf16.mxu0 0
      %1134 = vmatpush2.bf16.xpose.msra.mxu0 0
      %1135 = vmatprep.subr.bf16.mxu0 0
      %1136 = vmatpush2.bf16.xpose.msra.mxu0 0
      %1137 = vmatprep.subr.bf16.mxu0 0
      %1138 = vmatpush2.bf16.xpose.msra.mxu0 0
      %1139 = vmatprep.subr.bf16.mxu0 0
      %1140 = vmatpush2.bf16.xpose.msra.mxu0 0
      %1141 = vmatprep.subr.bf16.mxu0 0
      %1142 = vmatpush2.bf16.xpose.msra.mxu0 0
      %1143 = vmatprep.subr.bf16.mxu0 0
      %1144 = vmatpush2.bf16.xpose.msra.mxu0 0
      %1145 = vmatprep.mubr.bf16.mxu0 %v1112
      %1146 = vmatmul.mubr.bf16.gmra.mxu0 %v1111
      %v1147 = vpop.f32.mrf.mxu0
      %v1148 = vadd.f32 0.0, %v1147
      %v1149 = vpop.f32.mrf.mxu0
      %v1150 = vpop.f32.mrf.mxu0
      %v1151 = vpop.f32.mrf.mxu0
      %1152 = vdwg.mxu0
      %v1153 = vpack.c.bf16 %v893, %v893
      %v1154 = vpack.c.bf16 %v895, %v895
      %v1155 = vpack.c.bf16 %v913, %v913
      %v1156 = vpack.c.bf16 %v915, %v915
      %1157 = vrot.lane.b32.xlu0 %v925, 112
      %v1158 = vpop.permute.xlu0 %1157
      %v1160 = vsel %vm930, %v1158, 0
      %v1163 = vsel %vm934, %v1153, 0
      %v1166 = vsel %vm934, %v1154, 0
      %1168 = vmatprep.subr.bf16.mxu0 0
      %1169 = vmatpush1.bf16.msra.mxu0 0
      %1170 = vmatprep.subr.bf16.mxu0 0
      %1171 = vmatpush1.bf16.msra.mxu0 0
      %1172 = vmatprep.subr.bf16.mxu0 0
      %1173 = vmatpush1.bf16.msra.mxu0 0
      %1174 = vmatprep.subr.bf16.mxu0 0
      %1175 = vmatpush1.bf16.msra.mxu0 0
      %1176 = vmatprep.subr.bf16.mxu0 0
      %1177 = vmatpush1.bf16.msra.mxu0 0
      %1178 = vmatprep.subr.bf16.mxu0 0
      %1179 = vmatpush1.bf16.msra.mxu0 0
      %1180 = vmatprep.subr.bf16.mxu0 0
      %1181 = vmatpush1.bf16.msra.mxu0 0
      %1182 = vmatprep.subr.bf16.mxu0 %v1166
      %1183 = vmatpush1.bf16.msra.mxu0 %v1163
      %1184 = vmatprep.subr.bf16.mxu0 0
      %1185 = vmatpush2.bf16.msra.mxu0 0
      %1186 = vmatprep.subr.bf16.mxu0 0
      %1187 = vmatpush2.bf16.msra.mxu0 0
      %1188 = vmatprep.subr.bf16.mxu0 0
      %1189 = vmatpush2.bf16.msra.mxu0 0
      %1190 = vmatprep.subr.bf16.mxu0 0
      %1191 = vmatpush2.bf16.msra.mxu0 0
      %1192 = vmatprep.subr.bf16.mxu0 0
      %1193 = vmatpush2.bf16.msra.mxu0 0
      %1194 = vmatprep.subr.bf16.mxu0 0
      %1195 = vmatpush2.bf16.msra.mxu0 0
      %1196 = vmatprep.subr.bf16.mxu0 0
      %1197 = vmatpush2.bf16.msra.mxu0 0
      %1198 = vmatprep.subr.bf16.mxu0 0
      %1199 = vmatpush2.bf16.msra.mxu0 0
      %1200 = vmatprep.mubr.bf16.mxu0 0
      %1201 = vmatmul.mubr.bf16.gmra.mxu0 %v1160
      %v1202 = vpop.f32.mrf.mxu0
      %v1203 = vadd.f32 0.0, %v1202
      %v1204 = vpop.f32.mrf.mxu0
      %v1205 = vadd.f32 0.0, %v1204
      %v1206 = vpop.f32.mrf.mxu0
      %v1207 = vpop.f32.mrf.mxu0
      %1208 = vdwg.mxu0
      %v1209 = vmax.f32 %v1203, %v1205
      %1210 = vmax.xlane.f32.xlu0 %v1209
      %v1211 = vpop.xlane.xlu0 %1210
      %v1212 = vsub.f32 %v1203, %v1211
      %v1213 = vsub.f32 %v1205, %v1211
      %v1214 = vmul.f32 %v1212, 1.442695
      %v1215 = vpow.pop %v1214
      %v1216 = vmul.f32 %v1213, 1.442695
      %v1217 = vpow.pop %v1216
      %v1218 = vadd.f32 %v1215, %v1217
      %1219 = vadd.xlane.f32.xlu0 %v1218
      %v1220 = vpop.xlane.xlu0 %1219
      %v1221 = vrcp.pop %v1220
      %v1222 = vmul.f32 %v1215, %v1221
      %v1223 = vmul.f32 %v1217, %v1221
      %v1224 = vpack.c.bf16 %v1222, %v1222
      %v1225 = vpack.c.bf16 %v1223, %v1223
      %1226 = vmatprep.subr.bf16.mxu0 0
      %1227 = vmatpush1.bf16.xpose.msra.mxu0 0
      %1228 = vmatprep.subr.bf16.mxu0 0
      %1229 = vmatpush1.bf16.xpose.msra.mxu0 0
      %1230 = vmatprep.subr.bf16.mxu0 0
      %1231 = vmatpush1.bf16.xpose.msra.mxu0 0
      %1232 = vmatprep.subr.bf16.mxu0 0
      %1233 = vmatpush1.bf16.xpose.msra.mxu0 0
      %1234 = vmatprep.subr.bf16.mxu0 0
      %1235 = vmatpush1.bf16.xpose.msra.mxu0 0
      %1236 = vmatprep.subr.bf16.mxu0 0
      %1237 = vmatpush1.bf16.xpose.msra.mxu0 0
      %1238 = vmatprep.subr.bf16.mxu0 0
      %1239 = vmatpush1.bf16.xpose.msra.mxu0 0
      %1240 = vmatprep.subr.bf16.mxu0 %v1156
      %1241 = vmatpush1.bf16.xpose.msra.mxu0 %v1155
      %1242 = vmatprep.subr.bf16.mxu0 0
      %1243 = vmatpush2.bf16.xpose.msra.mxu0 0
      %1244 = vmatprep.subr.bf16.mxu0 0
      %1245 = vmatpush2.bf16.xpose.msra.mxu0 0
      %1246 = vmatprep.subr.bf16.mxu0 0
      %1247 = vmatpush2.bf16.xpose.msra.mxu0 0
      %1248 = vmatprep.subr.bf16.mxu0 0
      %1249 = vmatpush2.bf16.xpose.msra.mxu0 0
      %1250 = vmatprep.subr.bf16.mxu0 0
      %1251 = vmatpush2.bf16.xpose.msra.mxu0 0
      %1252 = vmatprep.subr.bf16.mxu0 0
      %1253 = vmatpush2.bf16.xpose.msra.mxu0 0
      %1254 = vmatprep.subr.bf16.mxu0 0
      %1255 = vmatpush2.bf16.xpose.msra.mxu0 0
      %1256 = vmatprep.subr.bf16.mxu0 0
      %1257 = vmatpush2.bf16.xpose.msra.mxu0 0
      %1258 = vmatprep.mubr.bf16.mxu0 %v1225
      %1259 = vmatmul.mubr.bf16.gmra.mxu0 %v1224
      %v1260 = vpop.f32.mrf.mxu0
      %v1261 = vadd.f32 0.0, %v1260
      %v1262 = vpop.f32.mrf.mxu0
      %v1263 = vpop.f32.mrf.mxu0
      %v1264 = vpop.f32.mrf.mxu0
      %1265 = vdwg.mxu0
      %v1266 = vpack.c.bf16 %v897, %v897
      %v1267 = vpack.c.bf16 %v899, %v899
      %v1268 = vpack.c.bf16 %v917, %v917
      %v1269 = vpack.c.bf16 %v919, %v919
      %1270 = vrot.lane.b32.xlu0 %v925, 104
      %v1271 = vpop.permute.xlu0 %1270
      %v1273 = vsel %vm930, %v1271, 0
      %v1276 = vsel %vm934, %v1266, 0
      %v1279 = vsel %vm934, %v1267, 0
      %1281 = vmatprep.subr.bf16.mxu0 0
      %1282 = vmatpush1.bf16.msra.mxu0 0
      %1283 = vmatprep.subr.bf16.mxu0 0
      %1284 = vmatpush1.bf16.msra.mxu0 0
      %1285 = vmatprep.subr.bf16.mxu0 0
      %1286 = vmatpush1.bf16.msra.mxu0 0
      %1287 = vmatprep.subr.bf16.mxu0 0
      %1288 = vmatpush1.bf16.msra.mxu0 0
      %1289 = vmatprep.subr.bf16.mxu0 0
      %1290 = vmatpush1.bf16.msra.mxu0 0
      %1291 = vmatprep.subr.bf16.mxu0 0
      %1292 = vmatpush1.bf16.msra.mxu0 0
      %1293 = vmatprep.subr.bf16.mxu0 0
      %1294 = vmatpush1.bf16.msra.mxu0 0
      %1295 = vmatprep.subr.bf16.mxu0 %v1279
      %1296 = vmatpush1.bf16.msra.mxu0 %v1276
      %1297 = vmatprep.subr.bf16.mxu0 0
      %1298 = vmatpush2.bf16.msra.mxu0 0
      %1299 = vmatprep.subr.bf16.mxu0 0
      %1300 = vmatpush2.bf16.msra.mxu0 0
      %1301 = vmatprep.subr.bf16.mxu0 0
      %1302 = vmatpush2.bf16.msra.mxu0 0
      %1303 = vmatprep.subr.bf16.mxu0 0
      %1304 = vmatpush2.bf16.msra.mxu0 0
      %1305 = vmatprep.subr.bf16.mxu0 0
      %1306 = vmatpush2.bf16.msra.mxu0 0
      %1307 = vmatprep.subr.bf16.mxu0 0
      %1308 = vmatpush2.bf16.msra.mxu0 0
      %1309 = vmatprep.subr.bf16.mxu0 0
      %1310 = vmatpush2.bf16.msra.mxu0 0
      %1311 = vmatprep.subr.bf16.mxu0 0
      %1312 = vmatpush2.bf16.msra.mxu0 0
      %1313 = vmatprep.mubr.bf16.mxu0 0
      %1314 = vmatmul.mubr.bf16.gmra.mxu0 %v1273
      %v1315 = vpop.f32.mrf.mxu0
      %v1316 = vadd.f32 0.0, %v1315
      %v1317 = vpop.f32.mrf.mxu0
      %v1318 = vadd.f32 0.0, %v1317
      %v1319 = vpop.f32.mrf.mxu0
      %v1320 = vpop.f32.mrf.mxu0
      %1321 = vdwg.mxu0
      %v1322 = vmax.f32 %v1316, %v1318
      %1323 = vmax.xlane.f32.xlu0 %v1322
      %v1324 = vpop.xlane.xlu0 %1323
      %v1325 = vsub.f32 %v1316, %v1324
      %v1326 = vsub.f32 %v1318, %v1324
      %v1327 = vmul.f32 %v1325, 1.442695
      %v1328 = vpow.pop %v1327
      %v1329 = vmul.f32 %v1326, 1.442695
      %v1330 = vpow.pop %v1329
      %v1331 = vadd.f32 %v1328, %v1330
      %1332 = vadd.xlane.f32.xlu0 %v1331
      %v1333 = vpop.xlane.xlu0 %1332
      %v1334 = vrcp.pop %v1333
      %v1335 = vmul.f32 %v1328, %v1334
      %v1336 = vmul.f32 %v1330, %v1334
      %v1337 = vpack.c.bf16 %v1335, %v1335
      %v1338 = vpack.c.bf16 %v1336, %v1336
      %1339 = vmatprep.subr.bf16.mxu0 0
      %1340 = vmatpush1.bf16.xpose.msra.mxu0 0
      %1341 = vmatprep.subr.bf16.mxu0 0
      %1342 = vmatpush1.bf16.xpose.msra.mxu0 0
      %1343 = vmatprep.subr.bf16.mxu0 0
      %1344 = vmatpush1.bf16.xpose.msra.mxu0 0
      %1345 = vmatprep.subr.bf16.mxu0 0
      %1346 = vmatpush1.bf16.xpose.msra.mxu0 0
      %1347 = vmatprep.subr.bf16.mxu0 0
      %1348 = vmatpush1.bf16.xpose.msra.mxu0 0
      %1349 = vmatprep.subr.bf16.mxu0 0
      %1350 = vmatpush1.bf16.xpose.msra.mxu0 0
      %1351 = vmatprep.subr.bf16.mxu0 0
      %1352 = vmatpush1.bf16.xpose.msra.mxu0 0
      %1353 = vmatprep.subr.bf16.mxu0 %v1269
      %1354 = vmatpush1.bf16.xpose.msra.mxu0 %v1268
      %1355 = vmatprep.subr.bf16.mxu0 0
      %1356 = vmatpush2.bf16.xpose.msra.mxu0 0
      %1357 = vmatprep.subr.bf16.mxu0 0
      %1358 = vmatpush2.bf16.xpose.msra.mxu0 0
      %1359 = vmatprep.subr.bf16.mxu0 0
      %1360 = vmatpush2.bf16.xpose.msra.mxu0 0
      %1361 = vmatprep.subr.bf16.mxu0 0
      %1362 = vmatpush2.bf16.xpose.msra.mxu0 0
      %1363 = vmatprep.subr.bf16.mxu0 0
      %1364 = vmatpush2.bf16.xpose.msra.mxu0 0
      %1365 = vmatprep.subr.bf16.mxu0 0
      %1366 = vmatpush2.bf16.xpose.msra.mxu0 0
      %1367 = vmatprep.subr.bf16.mxu0 0
      %1368 = vmatpush2.bf16.xpose.msra.mxu0 0
      %1369 = vmatprep.subr.bf16.mxu0 0
      %1370 = vmatpush2.bf16.xpose.msra.mxu0 0
      %1371 = vmatprep.mubr.bf16.mxu0 %v1338
      %1372 = vmatmul.mubr.bf16.gmra.mxu0 %v1337
      %v1373 = vpop.f32.mrf.mxu0
      %v1374 = vadd.f32 0.0, %v1373
      %v1375 = vpop.f32.mrf.mxu0
      %v1376 = vpop.f32.mrf.mxu0
      %v1377 = vpop.f32.mrf.mxu0
      %1378 = vdwg.mxu0
      %1380 = vrot.lane.b32.xlu0 %v1148, 8
      %v1381 = vpop.permute.xlu0 %1380
      %1384 = vrot.lane.b32.xlu0 %v1261, 16
      %v1385 = vpop.permute.xlu0 %1384
      %1388 = vrot.lane.b32.xlu0 %v1374, 24
      %v1389 = vpop.permute.xlu0 %1388
      %v1391 = vsel %vm930, %v1034, %v1381
      %vm1392 = vcmask 130048
      %v1393 = vsel %vm1392, %v1391, %v1385
      %vm1394 = vcmask 195584
      %v1395 = vsel %vm1394, %v1393, %v1389
      %v1396 = vpack.c.bf16 %v1395, %v1395
      %v1397 = vlaneseq
      %v1398 = vshrl.u32 %v1397, 7
      %v1399 = vsub.s32 1, %v1398
      %v1400 = vrot.slane %v671, %v1399
      %v1405 = vunpack.c.l.b16 %v921
      %v1406 = vunpack.c.l.b16 %v922
      %v1407 = vunpack.c.l.b16 %v923
      %v1408 = vunpack.c.l.b16 %v924
      %v1409 = vpack.c.b16 %v1406, %v1405
      %v1410 = vpack.c.b16 %v1408, %v1407
      %v1414 = vsel %vm672, %v1396, 0
      %1416 = vmatprep.subr.bf16.mxu0 0
      %1417 = vmatpush1.bf16.msra.mxu0 0
      %1418 = vmatprep.subr.bf16.mxu0 0
      %1419 = vmatpush1.bf16.msra.mxu0 0
      %1420 = vmatprep.subr.bf16.mxu0 0
      %1421 = vmatpush1.bf16.msra.mxu0 0
      %1422 = vmatprep.subr.bf16.mxu0 0
      %1423 = vmatpush1.bf16.msra.mxu0 0
      %1424 = vmatprep.subr.bf16.mxu0 0
      %1425 = vmatpush1.bf16.msra.mxu0 0
      %1426 = vmatprep.subr.bf16.mxu0 0
      %1427 = vmatpush1.bf16.msra.mxu0 0
      %1428 = vmatprep.subr.bf16.mxu0 0
      %1429 = vmatpush1.bf16.msra.mxu0 %v1410
      %1430 = vmatprep.subr.bf16.mxu0 0
      %1431 = vmatpush1.bf16.msra.mxu0 %v1409
      %1432 = vmatprep.subr.bf16.mxu0 0
      %1433 = vmatpush2.bf16.msra.mxu0 0
      %1434 = vmatprep.subr.bf16.mxu0 0
      %1435 = vmatpush2.bf16.msra.mxu0 0
      %1436 = vmatprep.subr.bf16.mxu0 0
      %1437 = vmatpush2.bf16.msra.mxu0 0
      %1438 = vmatprep.subr.bf16.mxu0 0
      %1439 = vmatpush2.bf16.msra.mxu0 0
      %1440 = vmatprep.subr.bf16.mxu0 0
      %1441 = vmatpush2.bf16.msra.mxu0 0
      %1442 = vmatprep.subr.bf16.mxu0 0
      %1443 = vmatpush2.bf16.msra.mxu0 0
      %1444 = vmatprep.subr.bf16.mxu0 0
      %1445 = vmatpush2.bf16.msra.mxu0 0
      %1446 = vmatprep.subr.bf16.mxu0 0
      %1447 = vmatpush2.bf16.msra.mxu0 0
      %1448 = vmatprep.mubr.bf16.mxu0 0
      %1449 = vmatmul.mubr.bf16.gmra.mxu0 %v1414
      %v1450 = vpop.f32.mrf.mxu0
      %v1451 = vadd.f32 %v1400, %v1450
      %v1452 = vpop.f32.mrf.mxu0
      %v1453 = vpop.f32.mrf.mxu0
      %v1454 = vpop.f32.mrf.mxu0
      %1455 = vdwg.mxu0
      %v1456 = vadd.f32 %v669, %v1451
      %v1457 = vsel %vm672, %v1456, 0.0
      %1458 = vadd.xlane.f32.xlu0 %v1457
      %v1459 = vpop.xlane.xlu0 %1458
      %v1460 = vmul.f32 %v1459, %v549
      %v1461 = vsub.f32 %v1456, %v1460
      %v1462 = vmul.f32 %v1461, %v1461
      %v1463 = vsel %vm672, %v1462, 0.0
      %1464 = vadd.xlane.f32.xlu0 %v1463
      %v1465 = vpop.xlane.xlu0 %1464
      %v1466 = vmul.f32 %v1465, %v549
      %v1467 = vadd.f32 %v1466, 1e-05
      %v1468 = vrsqrt.pop %v1467
      %v1469 = vmul.f32 %v1461, %v1468
      %v1470 = vlaneseq
      %v1471 = vshrl.u32 %v1470, 7
      %v1472 = vsub.s32 2, %v1471
      %v1473 = vrot.slane %v670, %v1472
      %v1474 = vmul.f32 %v1469, %v1473
      %v1475 = vlaneseq
      %v1476 = vshrl.u32 %v1475, 7
      %v1477 = vsub.s32 3, %v1476
      %v1478 = vrot.slane %v670, %v1477
      %v1479 = vadd.f32 %v1474, %v1478
      %v1480 = vpack.c.bf16 %v1479, %v1479
      %v1481 = vld [vmem:[%s8] sm:$0xf]
      %v1482 = vld [vmem:[%s8 + $0x4] sm:$0xf]
      %v1483 = vld [vmem:[%s8 + $0x8] sm:$0xf]
      %v1484 = vld [vmem:[%s8 + $0xc] sm:$0xf]
      %v1485 = vld [vmem:[%s14] sm:$0x1]
      %v1487 = vlaneseq
      %v1488 = vshrl.u32 %v1487, 7
      %v1489 = vsub.s32 0, %v1488
      %v1490 = vrot.slane %v1485, %v1489
      %v1496 = vunpack.c.l.b16 %v1481
      %v1497 = vunpack.c.l.b16 %v1482
      %v1498 = vunpack.c.l.b16 %v1483
      %v1499 = vunpack.c.l.b16 %v1484
      %v1500 = vpack.c.b16 %v1497, %v1496
      %v1501 = vpack.c.b16 %v1499, %v1498
      %v1505 = vsel %vm672, %v1480, 0
      %1507 = vmatprep.subr.bf16.mxu0 0
      %1508 = vmatpush1.bf16.msra.mxu0 0
      %1509 = vmatprep.subr.bf16.mxu0 0
      %1510 = vmatpush1.bf16.msra.mxu0 0
      %1511 = vmatprep.subr.bf16.mxu0 0
      %1512 = vmatpush1.bf16.msra.mxu0 0
      %1513 = vmatprep.subr.bf16.mxu0 0
      %1514 = vmatpush1.bf16.msra.mxu0 0
      %1515 = vmatprep.subr.bf16.mxu0 0
      %1516 = vmatpush1.bf16.msra.mxu0 0
      %1517 = vmatprep.subr.bf16.mxu0 0
      %1518 = vmatpush1.bf16.msra.mxu0 0
      %1519 = vmatprep.subr.bf16.mxu0 0
      %1520 = vmatpush1.bf16.msra.mxu0 %v1501
      %1521 = vmatprep.subr.bf16.mxu0 0
      %1522 = vmatpush1.bf16.msra.mxu0 %v1500
      %1523 = vmatprep.subr.bf16.mxu0 0
      %1524 = vmatpush2.bf16.msra.mxu0 0
      %1525 = vmatprep.subr.bf16.mxu0 0
      %1526 = vmatpush2.bf16.msra.mxu0 0
      %1527 = vmatprep.subr.bf16.mxu0 0
      %1528 = vmatpush2.bf16.msra.mxu0 0
      %1529 = vmatprep.subr.bf16.mxu0 0
      %1530 = vmatpush2.bf16.msra.mxu0 0
      %1531 = vmatprep.subr.bf16.mxu0 0
      %1532 = vmatpush2.bf16.msra.mxu0 0
      %1533 = vmatprep.subr.bf16.mxu0 0
      %1534 = vmatpush2.bf16.msra.mxu0 0
      %1535 = vmatprep.subr.bf16.mxu0 0
      %1536 = vmatpush2.bf16.msra.mxu0 0
      %1537 = vmatprep.subr.bf16.mxu0 0
      %1538 = vmatpush2.bf16.msra.mxu0 0
      %1539 = vmatprep.mubr.bf16.mxu0 0
      %1540 = vmatmul.mubr.bf16.gmra.mxu0 %v1505
      %v1541 = vpop.f32.mrf.mxu0
      %v1542 = vadd.f32 %v1490, %v1541
      %v1543 = vpop.f32.mrf.mxu0
      %v1544 = vpop.f32.mrf.mxu0
      %v1545 = vpop.f32.mrf.mxu0
      %1546 = vdwg.mxu0
      %v1547 = vld [vmem:[%s9] sm:$0xf]
      %v1548 = vld [vmem:[%s9 + $0x4] sm:$0xf]
      %v1549 = vld [vmem:[%s9 + $0x8] sm:$0xf]
      %v1550 = vld [vmem:[%s9 + $0xc] sm:$0xf]
      %v1551 = vpack.c.bf16 %v1542, %v1542
      %1553 = vrot.lane.b32.xlu0 %v1551, 96
      %v1554 = vpop.permute.xlu0 %1553
      %v1556 = vsel %vm930, %v1551, 0
      %v1559 = vsel %vm930, %v1554, 0
      %1561 = vmatprep.subr.bf16.mxu0 0
      %1562 = vmatpush1.bf16.xpose.msra.mxu0 0
      %1563 = vmatprep.subr.bf16.mxu0 0
      %1564 = vmatpush1.bf16.xpose.msra.mxu0 0
      %1565 = vmatprep.subr.bf16.mxu0 0
      %1566 = vmatpush1.bf16.xpose.msra.mxu0 0
      %1567 = vmatprep.subr.bf16.mxu0 0
      %1568 = vmatpush1.bf16.xpose.msra.mxu0 0
      %1569 = vmatprep.subr.bf16.mxu0 0
      %1570 = vmatpush1.bf16.xpose.msra.mxu0 0
      %1571 = vmatprep.subr.bf16.mxu0 0
      %1572 = vmatpush1.bf16.xpose.msra.mxu0 0
      %1573 = vmatprep.subr.bf16.mxu0 0
      %1574 = vmatpush1.bf16.xpose.msra.mxu0 0
      %1575 = vmatprep.subr.bf16.mxu0 0
      %1576 = vmatpush1.bf16.xpose.msra.mxu0 %v1559
      %1577 = vmatprep.subr.bf16.mxu0 0
      %1578 = vmatpush2.bf16.xpose.msra.mxu0 0
      %1579 = vmatprep.subr.bf16.mxu0 0
      %1580 = vmatpush2.bf16.xpose.msra.mxu0 0
      %1581 = vmatprep.subr.bf16.mxu0 0
      %1582 = vmatpush2.bf16.xpose.msra.mxu0 0
      %1583 = vmatprep.subr.bf16.mxu0 0
      %1584 = vmatpush2.bf16.xpose.msra.mxu0 0
      %1585 = vmatprep.subr.bf16.mxu0 0
      %1586 = vmatpush2.bf16.xpose.msra.mxu0 0
      %1587 = vmatprep.subr.bf16.mxu0 0
      %1588 = vmatpush2.bf16.xpose.msra.mxu0 0
      %1589 = vmatprep.subr.bf16.mxu0 0
      %1590 = vmatpush2.bf16.xpose.msra.mxu0 0
      %1591 = vmatprep.subr.bf16.mxu0 0
      %1592 = vmatpush2.bf16.xpose.msra.mxu0 0
      %1593 = vmatprep.mubr.bf16.mxu0 0
      %1594 = vmatmul.mubr.bf16.gmra.mxu0 %v1556
      %v1595 = vpop.f32.mrf.mxu0
      %v1596 = vadd.f32 0.0, %v1595
      %v1597 = vpop.f32.mrf.mxu0
      %v1598 = vpop.f32.mrf.mxu0
      %v1599 = vpop.f32.mrf.mxu0
      %1600 = vdwg.mxu0
      %v1601 = vsel %vm930, %v1596, -inf
      %1602 = vmax.xlane.f32.xlu0 %v1601
      %v1603 = vpop.xlane.xlu0 %1602
      %v1604 = vsub.f32 %v1596, %v1603
      %v1605 = vmul.f32 %v1604, 1.442695
      %v1606 = vpow.pop %v1605
      %v1607 = vsel %vm930, %v1606, 0.0
      %1608 = vadd.xlane.f32.xlu0 %v1607
      %v1609 = vpop.xlane.xlu0 %1608
      %v1610 = vrcp.pop %v1609
      %v1611 = vmul.f32 %v1606, %v1610
      %v1612 = vpack.c.bf16 %v1611, %v1611
      %1613 = vrot.lane.b32.xlu0 %v1551, 64
      %v1614 = vpop.permute.xlu0 %1613
      %v1616 = vsel %vm930, %v1612, 0
      %v1619 = vsel %vm934, %v1614, 0
      %1621 = vmatprep.subr.bf16.mxu0 0
      %1622 = vmatpush1.bf16.msra.mxu0 0
      %1623 = vmatprep.subr.bf16.mxu0 0
      %1624 = vmatpush1.bf16.msra.mxu0 0
      %1625 = vmatprep.subr.bf16.mxu0 0
      %1626 = vmatpush1.bf16.msra.mxu0 0
      %1627 = vmatprep.subr.bf16.mxu0 0
      %1628 = vmatpush1.bf16.msra.mxu0 0
      %1629 = vmatprep.subr.bf16.mxu0 0
      %1630 = vmatpush1.bf16.msra.mxu0 0
      %1631 = vmatprep.subr.bf16.mxu0 0
      %1632 = vmatpush1.bf16.msra.mxu0 0
      %1633 = vmatprep.subr.bf16.mxu0 0
      %1634 = vmatpush1.bf16.msra.mxu0 0
      %1635 = vmatprep.subr.bf16.mxu0 0
      %1636 = vmatpush1.bf16.msra.mxu0 %v1619
      %1637 = vmatprep.subr.bf16.mxu0 0
      %1638 = vmatpush2.bf16.msra.mxu0 0
      %1639 = vmatprep.subr.bf16.mxu0 0
      %1640 = vmatpush2.bf16.msra.mxu0 0
      %1641 = vmatprep.subr.bf16.mxu0 0
      %1642 = vmatpush2.bf16.msra.mxu0 0
      %1643 = vmatprep.subr.bf16.mxu0 0
      %1644 = vmatpush2.bf16.msra.mxu0 0
      %1645 = vmatprep.subr.bf16.mxu0 0
      %1646 = vmatpush2.bf16.msra.mxu0 0
      %1647 = vmatprep.subr.bf16.mxu0 0
      %1648 = vmatpush2.bf16.msra.mxu0 0
      %1649 = vmatprep.subr.bf16.mxu0 0
      %1650 = vmatpush2.bf16.msra.mxu0 0
      %1651 = vmatprep.subr.bf16.mxu0 0
      %1652 = vmatpush2.bf16.msra.mxu0 0
      %1653 = vmatprep.mubr.bf16.mxu0 0
      %1654 = vmatmul.mubr.bf16.gmra.mxu0 %v1616
      %v1655 = vpop.f32.mrf.mxu0
      %v1656 = vadd.f32 0.0, %v1655
      %v1657 = vpop.f32.mrf.mxu0
      %v1658 = vpop.f32.mrf.mxu0
      %v1659 = vpop.f32.mrf.mxu0
      %1660 = vdwg.mxu0
      %1661 = vrot.lane.b32.xlu0 %v1551, 120
      %v1662 = vpop.permute.xlu0 %1661
      %1663 = vrot.lane.b32.xlu0 %v1551, 88
      %v1664 = vpop.permute.xlu0 %1663
      %v1666 = vsel %vm930, %v1662, 0
      %v1669 = vsel %vm930, %v1664, 0
      %1671 = vmatprep.subr.bf16.mxu0 0
      %1672 = vmatpush1.bf16.xpose.msra.mxu0 0
      %1673 = vmatprep.subr.bf16.mxu0 0
      %1674 = vmatpush1.bf16.xpose.msra.mxu0 0
      %1675 = vmatprep.subr.bf16.mxu0 0
      %1676 = vmatpush1.bf16.xpose.msra.mxu0 0
      %1677 = vmatprep.subr.bf16.mxu0 0
      %1678 = vmatpush1.bf16.xpose.msra.mxu0 0
      %1679 = vmatprep.subr.bf16.mxu0 0
      %1680 = vmatpush1.bf16.xpose.msra.mxu0 0
      %1681 = vmatprep.subr.bf16.mxu0 0
      %1682 = vmatpush1.bf16.xpose.msra.mxu0 0
      %1683 = vmatprep.subr.bf16.mxu0 0
      %1684 = vmatpush1.bf16.xpose.msra.mxu0 0
      %1685 = vmatprep.subr.bf16.mxu0 0
      %1686 = vmatpush1.bf16.xpose.msra.mxu0 %v1669
      %1687 = vmatprep.subr.bf16.mxu0 0
      %1688 = vmatpush2.bf16.xpose.msra.mxu0 0
      %1689 = vmatprep.subr.bf16.mxu0 0
      %1690 = vmatpush2.bf16.xpose.msra.mxu0 0
      %1691 = vmatprep.subr.bf16.mxu0 0
      %1692 = vmatpush2.bf16.xpose.msra.mxu0 0
      %1693 = vmatprep.subr.bf16.mxu0 0
      %1694 = vmatpush2.bf16.xpose.msra.mxu0 0
      %1695 = vmatprep.subr.bf16.mxu0 0
      %1696 = vmatpush2.bf16.xpose.msra.mxu0 0
      %1697 = vmatprep.subr.bf16.mxu0 0
      %1698 = vmatpush2.bf16.xpose.msra.mxu0 0
      %1699 = vmatprep.subr.bf16.mxu0 0
      %1700 = vmatpush2.bf16.xpose.msra.mxu0 0
      %1701 = vmatprep.subr.bf16.mxu0 0
      %1702 = vmatpush2.bf16.xpose.msra.mxu0 0
      %1703 = vmatprep.mubr.bf16.mxu0 0
      %1704 = vmatmul.mubr.bf16.gmra.mxu0 %v1666
      %v1705 = vpop.f32.mrf.mxu0
      %v1706 = vadd.f32 0.0, %v1705
      %v1707 = vpop.f32.mrf.mxu0
      %v1708 = vpop.f32.mrf.mxu0
      %v1709 = vpop.f32.mrf.mxu0
      %1710 = vdwg.mxu0
      %v1711 = vsel %vm930, %v1706, -inf
      %1712 = vmax.xlane.f32.xlu0 %v1711
      %v1713 = vpop.xlane.xlu0 %1712
      %v1714 = vsub.f32 %v1706, %v1713
      %v1715 = vmul.f32 %v1714, 1.442695
      %v1716 = vpow.pop %v1715
      %v1717 = vsel %vm930, %v1716, 0.0
      %1718 = vadd.xlane.f32.xlu0 %v1717
      %v1719 = vpop.xlane.xlu0 %1718
      %v1720 = vrcp.pop %v1719
      %v1721 = vmul.f32 %v1716, %v1720
      %v1722 = vpack.c.bf16 %v1721, %v1721
      %1723 = vrot.lane.b32.xlu0 %v1551, 56
      %v1724 = vpop.permute.xlu0 %1723
      %v1726 = vsel %vm930, %v1722, 0
      %v1729 = vsel %vm934, %v1724, 0
      %1731 = vmatprep.subr.bf16.mxu0 0
      %1732 = vmatpush1.bf16.msra.mxu0 0
      %1733 = vmatprep.subr.bf16.mxu0 0
      %1734 = vmatpush1.bf16.msra.mxu0 0
      %1735 = vmatprep.subr.bf16.mxu0 0
      %1736 = vmatpush1.bf16.msra.mxu0 0
      %1737 = vmatprep.subr.bf16.mxu0 0
      %1738 = vmatpush1.bf16.msra.mxu0 0
      %1739 = vmatprep.subr.bf16.mxu0 0
      %1740 = vmatpush1.bf16.msra.mxu0 0
      %1741 = vmatprep.subr.bf16.mxu0 0
      %1742 = vmatpush1.bf16.msra.mxu0 0
      %1743 = vmatprep.subr.bf16.mxu0 0
      %1744 = vmatpush1.bf16.msra.mxu0 0
      %1745 = vmatprep.subr.bf16.mxu0 0
      %1746 = vmatpush1.bf16.msra.mxu0 %v1729
      %1747 = vmatprep.subr.bf16.mxu0 0
      %1748 = vmatpush2.bf16.msra.mxu0 0
      %1749 = vmatprep.subr.bf16.mxu0 0
      %1750 = vmatpush2.bf16.msra.mxu0 0
      %1751 = vmatprep.subr.bf16.mxu0 0
      %1752 = vmatpush2.bf16.msra.mxu0 0
      %1753 = vmatprep.subr.bf16.mxu0 0
      %1754 = vmatpush2.bf16.msra.mxu0 0
      %1755 = vmatprep.subr.bf16.mxu0 0
      %1756 = vmatpush2.bf16.msra.mxu0 0
      %1757 = vmatprep.subr.bf16.mxu0 0
      %1758 = vmatpush2.bf16.msra.mxu0 0
      %1759 = vmatprep.subr.bf16.mxu0 0
      %1760 = vmatpush2.bf16.msra.mxu0 0
      %1761 = vmatprep.subr.bf16.mxu0 0
      %1762 = vmatpush2.bf16.msra.mxu0 0
      %1763 = vmatprep.mubr.bf16.mxu0 0
      %1764 = vmatmul.mubr.bf16.gmra.mxu0 %v1726
      %v1765 = vpop.f32.mrf.mxu0
      %v1766 = vadd.f32 0.0, %v1765
      %v1767 = vpop.f32.mrf.mxu0
      %v1768 = vpop.f32.mrf.mxu0
      %v1769 = vpop.f32.mrf.mxu0
      %1770 = vdwg.mxu0
      %1771 = vrot.lane.b32.xlu0 %v1551, 112
      %v1772 = vpop.permute.xlu0 %1771
      %1773 = vrot.lane.b32.xlu0 %v1551, 80
      %v1774 = vpop.permute.xlu0 %1773
      %v1776 = vsel %vm930, %v1772, 0
      %v1779 = vsel %vm930, %v1774, 0
      %1781 = vmatprep.subr.bf16.mxu0 0
      %1782 = vmatpush1.bf16.xpose.msra.mxu0 0
      %1783 = vmatprep.subr.bf16.mxu0 0
      %1784 = vmatpush1.bf16.xpose.msra.mxu0 0
      %1785 = vmatprep.subr.bf16.mxu0 0
      %1786 = vmatpush1.bf16.xpose.msra.mxu0 0
      %1787 = vmatprep.subr.bf16.mxu0 0
      %1788 = vmatpush1.bf16.xpose.msra.mxu0 0
      %1789 = vmatprep.subr.bf16.mxu0 0
      %1790 = vmatpush1.bf16.xpose.msra.mxu0 0
      %1791 = vmatprep.subr.bf16.mxu0 0
      %1792 = vmatpush1.bf16.xpose.msra.mxu0 0
      %1793 = vmatprep.subr.bf16.mxu0 0
      %1794 = vmatpush1.bf16.xpose.msra.mxu0 0
      %1795 = vmatprep.subr.bf16.mxu0 0
      %1796 = vmatpush1.bf16.xpose.msra.mxu0 %v1779
      %1797 = vmatprep.subr.bf16.mxu0 0
      %1798 = vmatpush2.bf16.xpose.msra.mxu0 0
      %1799 = vmatprep.subr.bf16.mxu0 0
      %1800 = vmatpush2.bf16.xpose.msra.mxu0 0
      %1801 = vmatprep.subr.bf16.mxu0 0
      %1802 = vmatpush2.bf16.xpose.msra.mxu0 0
      %1803 = vmatprep.subr.bf16.mxu0 0
      %1804 = vmatpush2.bf16.xpose.msra.mxu0 0
      %1805 = vmatprep.subr.bf16.mxu0 0
      %1806 = vmatpush2.bf16.xpose.msra.mxu0 0
      %1807 = vmatprep.subr.bf16.mxu0 0
      %1808 = vmatpush2.bf16.xpose.msra.mxu0 0
      %1809 = vmatprep.subr.bf16.mxu0 0
      %1810 = vmatpush2.bf16.xpose.msra.mxu0 0
      %1811 = vmatprep.subr.bf16.mxu0 0
      %1812 = vmatpush2.bf16.xpose.msra.mxu0 0
      %1813 = vmatprep.mubr.bf16.mxu0 0
      %1814 = vmatmul.mubr.bf16.gmra.mxu0 %v1776
      %v1815 = vpop.f32.mrf.mxu0
      %v1816 = vadd.f32 0.0, %v1815
      %v1817 = vpop.f32.mrf.mxu0
      %v1818 = vpop.f32.mrf.mxu0
      %v1819 = vpop.f32.mrf.mxu0
      %1820 = vdwg.mxu0
      %v1821 = vsel %vm930, %v1816, -inf
      %1822 = vmax.xlane.f32.xlu0 %v1821
      %v1823 = vpop.xlane.xlu0 %1822
      %v1824 = vsub.f32 %v1816, %v1823
      %v1825 = vmul.f32 %v1824, 1.442695
      %v1826 = vpow.pop %v1825
      %v1827 = vsel %vm930, %v1826, 0.0
      %1828 = vadd.xlane.f32.xlu0 %v1827
      %v1829 = vpop.xlane.xlu0 %1828
      %v1830 = vrcp.pop %v1829
      %v1831 = vmul.f32 %v1826, %v1830
      %v1832 = vpack.c.bf16 %v1831, %v1831
      %1833 = vrot.lane.b32.xlu0 %v1551, 48
      %v1834 = vpop.permute.xlu0 %1833
      %v1836 = vsel %vm930, %v1832, 0
      %v1839 = vsel %vm934, %v1834, 0
      %1841 = vmatprep.subr.bf16.mxu0 0
      %1842 = vmatpush1.bf16.msra.mxu0 0
      %1843 = vmatprep.subr.bf16.mxu0 0
      %1844 = vmatpush1.bf16.msra.mxu0 0
      %1845 = vmatprep.subr.bf16.mxu0 0
      %1846 = vmatpush1.bf16.msra.mxu0 0
      %1847 = vmatprep.subr.bf16.mxu0 0
      %1848 = vmatpush1.bf16.msra.mxu0 0
      %1849 = vmatprep.subr.bf16.mxu0 0
      %1850 = vmatpush1.bf16.msra.mxu0 0
      %1851 = vmatprep.subr.bf16.mxu0 0
      %1852 = vmatpush1.bf16.msra.mxu0 0
      %1853 = vmatprep.subr.bf16.mxu0 0
      %1854 = vmatpush1.bf16.msra.mxu0 0
      %1855 = vmatprep.subr.bf16.mxu0 0
      %1856 = vmatpush1.bf16.msra.mxu0 %v1839
      %1857 = vmatprep.subr.bf16.mxu0 0
      %1858 = vmatpush2.bf16.msra.mxu0 0
      %1859 = vmatprep.subr.bf16.mxu0 0
      %1860 = vmatpush2.bf16.msra.mxu0 0
      %1861 = vmatprep.subr.bf16.mxu0 0
      %1862 = vmatpush2.bf16.msra.mxu0 0
      %1863 = vmatprep.subr.bf16.mxu0 0
      %1864 = vmatpush2.bf16.msra.mxu0 0
      %1865 = vmatprep.subr.bf16.mxu0 0
      %1866 = vmatpush2.bf16.msra.mxu0 0
      %1867 = vmatprep.subr.bf16.mxu0 0
      %1868 = vmatpush2.bf16.msra.mxu0 0
      %1869 = vmatprep.subr.bf16.mxu0 0
      %1870 = vmatpush2.bf16.msra.mxu0 0
      %1871 = vmatprep.subr.bf16.mxu0 0
      %1872 = vmatpush2.bf16.msra.mxu0 0
      %1873 = vmatprep.mubr.bf16.mxu0 0
      %1874 = vmatmul.mubr.bf16.gmra.mxu0 %v1836
      %v1875 = vpop.f32.mrf.mxu0
      %v1876 = vadd.f32 0.0, %v1875
      %v1877 = vpop.f32.mrf.mxu0
      %v1878 = vpop.f32.mrf.mxu0
      %v1879 = vpop.f32.mrf.mxu0
      %1880 = vdwg.mxu0
      %1881 = vrot.lane.b32.xlu0 %v1551, 104
      %v1882 = vpop.permute.xlu0 %1881
      %1883 = vrot.lane.b32.xlu0 %v1551, 72
      %v1884 = vpop.permute.xlu0 %1883
      %v1886 = vsel %vm930, %v1882, 0
      %v1889 = vsel %vm930, %v1884, 0
      %1891 = vmatprep.subr.bf16.mxu0 0
      %1892 = vmatpush1.bf16.xpose.msra.mxu0 0
      %1893 = vmatprep.subr.bf16.mxu0 0
      %1894 = vmatpush1.bf16.xpose.msra.mxu0 0
      %1895 = vmatprep.subr.bf16.mxu0 0
      %1896 = vmatpush1.bf16.xpose.msra.mxu0 0
      %1897 = vmatprep.subr.bf16.mxu0 0
      %1898 = vmatpush1.bf16.xpose.msra.mxu0 0
      %1899 = vmatprep.subr.bf16.mxu0 0
      %1900 = vmatpush1.bf16.xpose.msra.mxu0 0
      %1901 = vmatprep.subr.bf16.mxu0 0
      %1902 = vmatpush1.bf16.xpose.msra.mxu0 0
      %1903 = vmatprep.subr.bf16.mxu0 0
      %1904 = vmatpush1.bf16.xpose.msra.mxu0 0
      %1905 = vmatprep.subr.bf16.mxu0 0
      %1906 = vmatpush1.bf16.xpose.msra.mxu0 %v1889
      %1907 = vmatprep.subr.bf16.mxu0 0
      %1908 = vmatpush2.bf16.xpose.msra.mxu0 0
      %1909 = vmatprep.subr.bf16.mxu0 0
      %1910 = vmatpush2.bf16.xpose.msra.mxu0 0
      %1911 = vmatprep.subr.bf16.mxu0 0
      %1912 = vmatpush2.bf16.xpose.msra.mxu0 0
      %1913 = vmatprep.subr.bf16.mxu0 0
      %1914 = vmatpush2.bf16.xpose.msra.mxu0 0
      %1915 = vmatprep.subr.bf16.mxu0 0
      %1916 = vmatpush2.bf16.xpose.msra.mxu0 0
      %1917 = vmatprep.subr.bf16.mxu0 0
      %1918 = vmatpush2.bf16.xpose.msra.mxu0 0
      %1919 = vmatprep.subr.bf16.mxu0 0
      %1920 = vmatpush2.bf16.xpose.msra.mxu0 0
      %1921 = vmatprep.subr.bf16.mxu0 0
      %1922 = vmatpush2.bf16.xpose.msra.mxu0 0
      %1923 = vmatprep.mubr.bf16.mxu0 0
      %1924 = vmatmul.mubr.bf16.gmra.mxu0 %v1886
      %v1925 = vpop.f32.mrf.mxu0
      %v1926 = vadd.f32 0.0, %v1925
      %v1927 = vpop.f32.mrf.mxu0
      %v1928 = vpop.f32.mrf.mxu0
      %v1929 = vpop.f32.mrf.mxu0
      %1930 = vdwg.mxu0
      %v1931 = vsel %vm930, %v1926, -inf
      %1932 = vmax.xlane.f32.xlu0 %v1931
      %v1933 = vpop.xlane.xlu0 %1932
      %v1934 = vsub.f32 %v1926, %v1933
      %v1935 = vmul.f32 %v1934, 1.442695
      %v1936 = vpow.pop %v1935
      %v1937 = vsel %vm930, %v1936, 0.0
      %1938 = vadd.xlane.f32.xlu0 %v1937
      %v1939 = vpop.xlane.xlu0 %1938
      %v1940 = vrcp.pop %v1939
      %v1941 = vmul.f32 %v1936, %v1940
      %v1942 = vpack.c.bf16 %v1941, %v1941
      %1943 = vrot.lane.b32.xlu0 %v1551, 40
      %v1944 = vpop.permute.xlu0 %1943
      %v1946 = vsel %vm930, %v1942, 0
      %v1949 = vsel %vm934, %v1944, 0
      %1951 = vmatprep.subr.bf16.mxu0 0
      %1952 = vmatpush1.bf16.msra.mxu0 0
      %1953 = vmatprep.subr.bf16.mxu0 0
      %1954 = vmatpush1.bf16.msra.mxu0 0
      %1955 = vmatprep.subr.bf16.mxu0 0
      %1956 = vmatpush1.bf16.msra.mxu0 0
      %1957 = vmatprep.subr.bf16.mxu0 0
      %1958 = vmatpush1.bf16.msra.mxu0 0
      %1959 = vmatprep.subr.bf16.mxu0 0
      %1960 = vmatpush1.bf16.msra.mxu0 0
      %1961 = vmatprep.subr.bf16.mxu0 0
      %1962 = vmatpush1.bf16.msra.mxu0 0
      %1963 = vmatprep.subr.bf16.mxu0 0
      %1964 = vmatpush1.bf16.msra.mxu0 0
      %1965 = vmatprep.subr.bf16.mxu0 0
      %1966 = vmatpush1.bf16.msra.mxu0 %v1949
      %1967 = vmatprep.subr.bf16.mxu0 0
      %1968 = vmatpush2.bf16.msra.mxu0 0
      %1969 = vmatprep.subr.bf16.mxu0 0
      %1970 = vmatpush2.bf16.msra.mxu0 0
      %1971 = vmatprep.subr.bf16.mxu0 0
      %1972 = vmatpush2.bf16.msra.mxu0 0
      %1973 = vmatprep.subr.bf16.mxu0 0
      %1974 = vmatpush2.bf16.msra.mxu0 0
      %1975 = vmatprep.subr.bf16.mxu0 0
      %1976 = vmatpush2.bf16.msra.mxu0 0
      %1977 = vmatprep.subr.bf16.mxu0 0
      %1978 = vmatpush2.bf16.msra.mxu0 0
      %1979 = vmatprep.subr.bf16.mxu0 0
      %1980 = vmatpush2.bf16.msra.mxu0 0
      %1981 = vmatprep.subr.bf16.mxu0 0
      %1982 = vmatpush2.bf16.msra.mxu0 0
      %1983 = vmatprep.mubr.bf16.mxu0 0
      %1984 = vmatmul.mubr.bf16.gmra.mxu0 %v1946
      %v1985 = vpop.f32.mrf.mxu0
      %v1986 = vadd.f32 0.0, %v1985
      %v1987 = vpop.f32.mrf.mxu0
      %v1988 = vpop.f32.mrf.mxu0
      %v1989 = vpop.f32.mrf.mxu0
      %1990 = vdwg.mxu0
      %1992 = vrot.lane.b32.xlu0 %v1766, 8
      %v1993 = vpop.permute.xlu0 %1992
      %1996 = vrot.lane.b32.xlu0 %v1876, 16
      %v1997 = vpop.permute.xlu0 %1996
      %2000 = vrot.lane.b32.xlu0 %v1986, 24
      %v2001 = vpop.permute.xlu0 %2000
      %v2003 = vsel %vm930, %v1656, %v1993
      %v2004 = vsel %vm1392, %v2003, %v1997
      %v2005 = vsel %vm1394, %v2004, %v2001
      %v2006 = vpack.c.bf16 %v2005, %v2005
      %v2007 = vlaneseq
      %v2008 = vshrl.u32 %v2007, 7
      %v2009 = vsub.s32 2, %v2008
      %v2010 = vrot.slane %v671, %v2009
      %v2015 = vunpack.c.l.b16 %v1547
      %v2016 = vunpack.c.l.b16 %v1548
      %v2017 = vunpack.c.l.b16 %v1549
      %v2018 = vunpack.c.l.b16 %v1550
      %v2019 = vpack.c.b16 %v2016, %v2015
      %v2020 = vpack.c.b16 %v2018, %v2017
      %v2024 = vsel %vm672, %v2006, 0
      %2026 = vmatprep.subr.bf16.mxu0 0
      %2027 = vmatpush1.bf16.msra.mxu0 0
      %2028 = vmatprep.subr.bf16.mxu0 0
      %2029 = vmatpush1.bf16.msra.mxu0 0
      %2030 = vmatprep.subr.bf16.mxu0 0
      %2031 = vmatpush1.bf16.msra.mxu0 0
      %2032 = vmatprep.subr.bf16.mxu0 0
      %2033 = vmatpush1.bf16.msra.mxu0 0
      %2034 = vmatprep.subr.bf16.mxu0 0
      %2035 = vmatpush1.bf16.msra.mxu0 0
      %2036 = vmatprep.subr.bf16.mxu0 0
      %2037 = vmatpush1.bf16.msra.mxu0 0
      %2038 = vmatprep.subr.bf16.mxu0 0
      %2039 = vmatpush1.bf16.msra.mxu0 %v2020
      %2040 = vmatprep.subr.bf16.mxu0 0
      %2041 = vmatpush1.bf16.msra.mxu0 %v2019
      %2042 = vmatprep.subr.bf16.mxu0 0
      %2043 = vmatpush2.bf16.msra.mxu0 0
      %2044 = vmatprep.subr.bf16.mxu0 0
      %2045 = vmatpush2.bf16.msra.mxu0 0
      %2046 = vmatprep.subr.bf16.mxu0 0
      %2047 = vmatpush2.bf16.msra.mxu0 0
      %2048 = vmatprep.subr.bf16.mxu0 0
      %2049 = vmatpush2.bf16.msra.mxu0 0
      %2050 = vmatprep.subr.bf16.mxu0 0
      %2051 = vmatpush2.bf16.msra.mxu0 0
      %2052 = vmatprep.subr.bf16.mxu0 0
      %2053 = vmatpush2.bf16.msra.mxu0 0
      %2054 = vmatprep.subr.bf16.mxu0 0
      %2055 = vmatpush2.bf16.msra.mxu0 0
      %2056 = vmatprep.subr.bf16.mxu0 0
      %2057 = vmatpush2.bf16.msra.mxu0 0
      %2058 = vmatprep.mubr.bf16.mxu0 0
      %2059 = vmatmul.mubr.bf16.gmra.mxu0 %v2024
      %v2060 = vpop.f32.mrf.mxu0
      %v2061 = vadd.f32 %v2010, %v2060
      %v2062 = vpop.f32.mrf.mxu0
      %v2063 = vpop.f32.mrf.mxu0
      %v2064 = vpop.f32.mrf.mxu0
      %2065 = vdwg.mxu0
      %v2066 = vadd.f32 %v1456, %v2061
      %v2067 = vsel %vm672, %v2066, 0.0
      %2068 = vadd.xlane.f32.xlu0 %v2067
      %v2069 = vpop.xlane.xlu0 %2068
      %v2070 = vmul.f32 %v2069, %v549
      %v2071 = vsub.f32 %v2066, %v2070
      %v2072 = vmul.f32 %v2071, %v2071
      %v2073 = vsel %vm672, %v2072, 0.0
      %2074 = vadd.xlane.f32.xlu0 %v2073
      %v2075 = vpop.xlane.xlu0 %2074
      %v2076 = vmul.f32 %v2075, %v549
      %v2077 = vadd.f32 %v2076, 1e-05
      %v2078 = vrsqrt.pop %v2077
      %v2079 = vmul.f32 %v2071, %v2078
      %v2080 = vlaneseq
      %v2081 = vshrl.u32 %v2080, 7
      %v2082 = vsub.s32 4, %v2081
      %v2083 = vrot.slane %v670, %v2082
      %v2084 = vmul.f32 %v2079, %v2083
      %v2085 = vlaneseq
      %v2086 = vshrl.u32 %v2085, 7
      %v2087 = vsub.s32 5, %v2086
      %v2088 = vrot.slane %v670, %v2087
      %v2089 = vadd.f32 %v2084, %v2088
      %v2090 = vpack.c.bf16 %v2089, %v2089
      %v2091 = vld [vmem:[%s10] sm:$0xf]
      %v2092 = vld [vmem:[%s10 + $0x4] sm:$0xf]
      %v2093 = vld [vmem:[%s10 + $0x8] sm:$0xf]
      %v2094 = vld [vmem:[%s10 + $0xc] sm:$0xf]
      %v2095 = vld [vmem:[%s15] sm:$0x1]
      %v2097 = vlaneseq
      %v2098 = vshrl.u32 %v2097, 7
      %v2099 = vsub.s32 0, %v2098
      %v2100 = vrot.slane %v2095, %v2099
      %v2106 = vunpack.c.l.b16 %v2091
      %v2107 = vunpack.c.l.b16 %v2092
      %v2108 = vunpack.c.l.b16 %v2093
      %v2109 = vunpack.c.l.b16 %v2094
      %v2110 = vpack.c.b16 %v2107, %v2106
      %v2111 = vpack.c.b16 %v2109, %v2108
      %v2115 = vsel %vm672, %v2090, 0
      %2117 = vmatprep.subr.bf16.mxu0 0
      %2118 = vmatpush1.bf16.msra.mxu0 0
      %2119 = vmatprep.subr.bf16.mxu0 0
      %2120 = vmatpush1.bf16.msra.mxu0 0
      %2121 = vmatprep.subr.bf16.mxu0 0
      %2122 = vmatpush1.bf16.msra.mxu0 0
      %2123 = vmatprep.subr.bf16.mxu0 0
      %2124 = vmatpush1.bf16.msra.mxu0 0
      %2125 = vmatprep.subr.bf16.mxu0 0
      %2126 = vmatpush1.bf16.msra.mxu0 0
      %2127 = vmatprep.subr.bf16.mxu0 0
      %2128 = vmatpush1.bf16.msra.mxu0 0
      %2129 = vmatprep.subr.bf16.mxu0 0
      %2130 = vmatpush1.bf16.msra.mxu0 %v2111
      %2131 = vmatprep.subr.bf16.mxu0 0
      %2132 = vmatpush1.bf16.msra.mxu0 %v2110
      %2133 = vmatprep.subr.bf16.mxu0 0
      %2134 = vmatpush2.bf16.msra.mxu0 0
      %2135 = vmatprep.subr.bf16.mxu0 0
      %2136 = vmatpush2.bf16.msra.mxu0 0
      %2137 = vmatprep.subr.bf16.mxu0 0
      %2138 = vmatpush2.bf16.msra.mxu0 0
      %2139 = vmatprep.subr.bf16.mxu0 0
      %2140 = vmatpush2.bf16.msra.mxu0 0
      %2141 = vmatprep.subr.bf16.mxu0 0
      %2142 = vmatpush2.bf16.msra.mxu0 0
      %2143 = vmatprep.subr.bf16.mxu0 0
      %2144 = vmatpush2.bf16.msra.mxu0 0
      %2145 = vmatprep.subr.bf16.mxu0 0
      %2146 = vmatpush2.bf16.msra.mxu0 0
      %2147 = vmatprep.subr.bf16.mxu0 0
      %2148 = vmatpush2.bf16.msra.mxu0 0
      %2149 = vmatprep.mubr.bf16.mxu0 0
      %2150 = vmatmul.mubr.bf16.gmra.mxu0 %v2115
      %v2151 = vpop.f32.mrf.mxu0
      %v2152 = vadd.f32 %v2100, %v2151
      %v2153 = vpop.f32.mrf.mxu0
      %v2154 = vpop.f32.mrf.mxu0
      %v2155 = vpop.f32.mrf.mxu0
      %2156 = vdwg.mxu0
      %v2157 = vmul.f32 %v2152, 0.5
      %v2158 = vmul.f32 %v2152, 0.70710677
      %v2159 = vand.u32 2147483647, %v2158
      %v2160 = vmul.f32 %v2159, 0.3275911
      %v2161 = vadd.f32 %v2160, 1.0
      %v2162 = vrcp.pop %v2161
      %v2163 = vmul.f32 %v2162, 1.0614054
      %v2164 = vadd.f32 %v2163, -1.4531521
      %v2165 = vmul.f32 %v2164, %v2162
      %v2166 = vadd.f32 %v2165, 1.4214138
      %v2167 = vmul.f32 %v2166, %v2162
      %v2168 = vadd.f32 %v2167, -0.28449672
      %v2169 = vmul.f32 %v2168, %v2162
      %v2170 = vadd.f32 %v2169, 0.2548296
      %v2171 = vmul.f32 %v2170, %v2162
      %v2172 = vsub.f32 0.0, %v2159
      %v2173 = vmul.f32 %v2172, %v2159
      %v2174 = vmul.f32 %v2173, 1.442695
      %v2175 = vpow.pop %v2174
      %v2176 = vmul.f32 %v2171, %v2175
      %v2177 = vsub.f32 1.0, %v2176
      %vm2178 = vcmp.ge.f32.partialorder %v2158, 0.0
      %v2179 = vsub.f32 0.0, %v2177
      %v2180 = vsel %vm2178, %v2177, %v2179
      %v2181 = vadd.f32 %v2180, 1.0
      %v2182 = vmul.f32 %v2157, %v2181
      %v2183 = vpack.c.bf16 %v2182, %v2182
      %v2184 = vld [vmem:[%s11] sm:$0xf]
      %v2185 = vld [vmem:[%s11 + $0x4] sm:$0xf]
      %v2186 = vld [vmem:[%s11 + $0x8] sm:$0xf]
      %v2187 = vld [vmem:[%s11 + $0xc] sm:$0xf]
      %v2188 = vld [vmem:[%s11 + $0x10] sm:$0xf]
      %v2189 = vld [vmem:[%s11 + $0x14] sm:$0xf]
      %v2190 = vld [vmem:[%s11 + $0x18] sm:$0xf]
      %v2191 = vld [vmem:[%s11 + $0x1c] sm:$0xf]
      %v2192 = vld [vmem:[%s11 + $0x20] sm:$0xf]
      %v2193 = vld [vmem:[%s11 + $0x24] sm:$0xf]
      %v2194 = vld [vmem:[%s11 + $0x28] sm:$0xf]
      %v2195 = vld [vmem:[%s11 + $0x2c] sm:$0xf]
      %v2196 = vld [vmem:[%s11 + $0x30] sm:$0xf]
      %v2197 = vld [vmem:[%s11 + $0x34] sm:$0xf]
      %v2198 = vld [vmem:[%s11 + $0x38] sm:$0xf]
      %v2199 = vld [vmem:[%s11 + $0x3c] sm:$0xf]
      %v2216 = vunpack.c.l.b16 %v2184
      %v2217 = vunpack.c.l.b16 %v2185
      %v2218 = vunpack.c.l.b16 %v2186
      %v2219 = vunpack.c.l.b16 %v2187
      %v2220 = vunpack.c.l.b16 %v2188
      %v2221 = vunpack.c.l.b16 %v2189
      %v2222 = vunpack.c.l.b16 %v2190
      %v2223 = vunpack.c.l.b16 %v2191
      %v2224 = vunpack.c.l.b16 %v2192
      %v2225 = vunpack.c.l.b16 %v2193
      %v2226 = vunpack.c.l.b16 %v2194
      %v2227 = vunpack.c.l.b16 %v2195
      %v2228 = vunpack.c.l.b16 %v2196
      %v2229 = vunpack.c.l.b16 %v2197
      %v2230 = vunpack.c.l.b16 %v2198
      %v2231 = vunpack.c.l.b16 %v2199
      %v2232 = vpack.c.b16 %v2217, %v2216
      %v2233 = vpack.c.b16 %v2219, %v2218
      %v2234 = vpack.c.b16 %v2221, %v2220
      %v2235 = vpack.c.b16 %v2223, %v2222
      %v2236 = vpack.c.b16 %v2225, %v2224
      %v2237 = vpack.c.b16 %v2227, %v2226
      %v2238 = vpack.c.b16 %v2229, %v2228
      %v2239 = vpack.c.b16 %v2231, %v2230
      %2248 = vmatprep.subr.bf16.mxu0 0
      %2249 = vmatpush1.bf16.msra.mxu0 %v2239
      %2250 = vmatprep.subr.bf16.mxu0 0
      %2251 = vmatpush1.bf16.msra.mxu0 %v2238
      %2252 = vmatprep.subr.bf16.mxu0 0
      %2253 = vmatpush1.bf16.msra.mxu0 %v2237
      %2254 = vmatprep.subr.bf16.mxu0 0
      %2255 = vmatpush1.bf16.msra.mxu0 %v2236
      %2256 = vmatprep.subr.bf16.mxu0 0
      %2257 = vmatpush1.bf16.msra.mxu0 %v2235
      %2258 = vmatprep.subr.bf16.mxu0 0
      %2259 = vmatpush1.bf16.msra.mxu0 %v2234
      %2260 = vmatprep.subr.bf16.mxu0 0
      %2261 = vmatpush1.bf16.msra.mxu0 %v2233
      %2262 = vmatprep.subr.bf16.mxu0 0
      %2263 = vmatpush1.bf16.msra.mxu0 %v2232
      %2264 = vmatprep.subr.bf16.mxu0 0
      %2265 = vmatpush2.bf16.msra.mxu0 0
      %2266 = vmatprep.subr.bf16.mxu0 0
      %2267 = vmatpush2.bf16.msra.mxu0 0
      %2268 = vmatprep.subr.bf16.mxu0 0
      %2269 = vmatpush2.bf16.msra.mxu0 0
      %2270 = vmatprep.subr.bf16.mxu0 0
      %2271 = vmatpush2.bf16.msra.mxu0 0
      %2272 = vmatprep.subr.bf16.mxu0 0
      %2273 = vmatpush2.bf16.msra.mxu0 0
      %2274 = vmatprep.subr.bf16.mxu0 0
      %2275 = vmatpush2.bf16.msra.mxu0 0
      %2276 = vmatprep.subr.bf16.mxu0 0
      %2277 = vmatpush2.bf16.msra.mxu0 0
      %2278 = vmatprep.subr.bf16.mxu0 0
      %2279 = vmatpush2.bf16.msra.mxu0 0
      %2280 = vmatprep.mubr.bf16.mxu0 0
      %2281 = vmatmul.mubr.bf16.gmra.mxu0 %v2183
      %v2282 = vpop.f32.mrf.mxu0
      %v2283 = vadd.f32 0.0, %v2282
      %v2284 = vpop.f32.mrf.mxu0
      %v2285 = vpop.f32.mrf.mxu0
      %v2286 = vpop.f32.mrf.mxu0
      %2287 = vdwg.mxu0
      %v2288 = vadd.f32 %v2066, %v2283
      %v2289 = vlaneseq
      %v2290 = vshrl.u32 %v2289, 7
      %v2291 = vsub.s32 3, %v2290
      %v2292 = vrot.slane %v671, %v2291
      %v2293 = vadd.f32 %v2288, %v2292
      %s2294 = scalar_lea.vmem %s4, 8
      %v2295 = vld [vmem:[%s2294] sm:$0x3f]
      %s2296 = scalar_lea.vmem %s12, 4
      %v2297 = vld [vmem:[%s2296] sm:$0xf]
      %v2298 = vsel %vm672, %v2293, 0.0
      %2299 = vadd.xlane.f32.xlu0 %v2298
      %v2300 = vpop.xlane.xlu0 %2299
      %v2301 = vmul.f32 %v2300, %v549
      %v2302 = vsub.f32 %v2293, %v2301
      %v2303 = vmul.f32 %v2302, %v2302
      %v2304 = vsel %vm672, %v2303, 0.0
      %2305 = vadd.xlane.f32.xlu0 %v2304
      %v2306 = vpop.xlane.xlu0 %2305
      %v2307 = vmul.f32 %v2306, %v549
      %v2308 = vadd.f32 %v2307, 1e-05
      %v2309 = vrsqrt.pop %v2308
      %v2310 = vmul.f32 %v2302, %v2309
      %v2311 = vlaneseq
      %v2312 = vshrl.u32 %v2311, 7
      %v2313 = vsub.s32 0, %v2312
      %v2314 = vrot.slane %v2295, %v2313
      %v2315 = vmul.f32 %v2310, %v2314
      %v2316 = vlaneseq
      %v2317 = vshrl.u32 %v2316, 7
      %v2318 = vsub.s32 1, %v2317
      %v2319 = vrot.slane %v2295, %v2318
      %v2320 = vadd.f32 %v2315, %v2319
      %v2321 = vpack.c.bf16 %v2320, %v2320
      %s2322 = scalar_lea.vmem %s5, 16
      %v2323 = vld [vmem:[%s2322] sm:$0xf]
      %v2324 = vld [vmem:[%s2322 + $0x4] sm:$0xf]
      %v2325 = vld [vmem:[%s2322 + $0x8] sm:$0xf]
      %v2326 = vld [vmem:[%s2322 + $0xc] sm:$0xf]
      %v2327 = vlaneseq
      %v2328 = vshrl.u32 %v2327, 7
      %v2329 = vsub.s32 0, %v2328
      %v2330 = vrot.slane %v2297, %v2329
      %v2335 = vunpack.c.l.b16 %v2323
      %v2336 = vunpack.c.l.b16 %v2324
      %v2337 = vunpack.c.l.b16 %v2325
      %v2338 = vunpack.c.l.b16 %v2326
      %v2339 = vpack.c.b16 %v2336, %v2335
      %v2340 = vpack.c.b16 %v2338, %v2337
      %v2344 = vsel %vm672, %v2321, 0
      %2346 = vmatprep.subr.bf16.mxu0 0
      %2347 = vmatpush1.bf16.msra.mxu0 0
      %2348 = vmatprep.subr.bf16.mxu0 0
      %2349 = vmatpush1.bf16.msra.mxu0 0
      %2350 = vmatprep.subr.bf16.mxu0 0
      %2351 = vmatpush1.bf16.msra.mxu0 0
      %2352 = vmatprep.subr.bf16.mxu0 0
      %2353 = vmatpush1.bf16.msra.mxu0 0
      %2354 = vmatprep.subr.bf16.mxu0 0
      %2355 = vmatpush1.bf16.msra.mxu0 0
      %2356 = vmatprep.subr.bf16.mxu0 0
      %2357 = vmatpush1.bf16.msra.mxu0 0
      %2358 = vmatprep.subr.bf16.mxu0 0
      %2359 = vmatpush1.bf16.msra.mxu0 %v2340
      %2360 = vmatprep.subr.bf16.mxu0 0
      %2361 = vmatpush1.bf16.msra.mxu0 %v2339
      %2362 = vmatprep.subr.bf16.mxu0 0
      %2363 = vmatpush2.bf16.msra.mxu0 0
      %2364 = vmatprep.subr.bf16.mxu0 0
      %2365 = vmatpush2.bf16.msra.mxu0 0
      %2366 = vmatprep.subr.bf16.mxu0 0
      %2367 = vmatpush2.bf16.msra.mxu0 0
      %2368 = vmatprep.subr.bf16.mxu0 0
      %2369 = vmatpush2.bf16.msra.mxu0 0
      %2370 = vmatprep.subr.bf16.mxu0 0
      %2371 = vmatpush2.bf16.msra.mxu0 0
      %2372 = vmatprep.subr.bf16.mxu0 0
      %2373 = vmatpush2.bf16.msra.mxu0 0
      %2374 = vmatprep.subr.bf16.mxu0 0
      %2375 = vmatpush2.bf16.msra.mxu0 0
      %2376 = vmatprep.subr.bf16.mxu0 0
      %2377 = vmatpush2.bf16.msra.mxu0 0
      %2378 = vmatprep.mubr.bf16.mxu0 0
      %2379 = vmatmul.mubr.bf16.gmra.mxu0 %v2344
      %v2380 = vpop.f32.mrf.mxu0
      %v2381 = vadd.f32 %v2330, %v2380
      %v2382 = vpop.f32.mrf.mxu0
      %v2383 = vpop.f32.mrf.mxu0
      %v2384 = vpop.f32.mrf.mxu0
      %2385 = vdwg.mxu0
      %s2386 = scalar_lea.vmem %s6, 32
      %v2387 = vld [vmem:[%s2386] sm:$0xf]
      %v2388 = vld [vmem:[%s2386 + $0x4] sm:$0xf]
      %v2389 = vld [vmem:[%s2386 + $0x8] sm:$0xf]
      %v2390 = vld [vmem:[%s2386 + $0xc] sm:$0xf]
      %v2391 = vld [vmem:[%s2386 + $0x10] sm:$0xf]
      %v2392 = vld [vmem:[%s2386 + $0x14] sm:$0xf]
      %v2393 = vld [vmem:[%s2386 + $0x18] sm:$0xf]
      %v2394 = vld [vmem:[%s2386 + $0x1c] sm:$0xf]
      %s2395 = scalar_lea.vmem %s13, 64
      %v2396 = vld [vmem:[%s2395] sm:$0xff]
      %v2397 = vld [vmem:[%s2395 + $0x8] sm:$0xff]
      %v2398 = vld [vmem:[%s2395 + $0x10] sm:$0xff]
      %v2399 = vld [vmem:[%s2395 + $0x18] sm:$0xff]
      %v2400 = vld [vmem:[%s2395 + $0x20] sm:$0xff]
      %v2401 = vld [vmem:[%s2395 + $0x28] sm:$0xff]
      %v2402 = vld [vmem:[%s2395 + $0x30] sm:$0xff]
      %v2403 = vld [vmem:[%s2395 + $0x38] sm:$0xff]
      %2405 = vset.pattern.permute.xlu0 0
      %2406 = vperm.xlu0 %2405, %v2396
      %v2407 = vpop.permute.xlu0 %2406
      %2410 = vset.pattern.permute.xlu0 0
      %2411 = vperm.xlu0 %2410, %v2397
      %v2412 = vpop.permute.xlu0 %2411
      %2415 = vset.pattern.permute.xlu0 0
      %2416 = vperm.xlu0 %2415, %v2398
      %v2417 = vpop.permute.xlu0 %2416
      %2420 = vset.pattern.permute.xlu0 0
      %2421 = vperm.xlu0 %2420, %v2399
      %v2422 = vpop.permute.xlu0 %2421
      %2425 = vset.pattern.permute.xlu0 0
      %2426 = vperm.xlu0 %2425, %v2400
      %v2427 = vpop.permute.xlu0 %2426
      %2430 = vset.pattern.permute.xlu0 0
      %2431 = vperm.xlu0 %2430, %v2401
      %v2432 = vpop.permute.xlu0 %2431
      %2435 = vset.pattern.permute.xlu0 0
      %2436 = vperm.xlu0 %2435, %v2402
      %v2437 = vpop.permute.xlu0 %2436
      %2440 = vset.pattern.permute.xlu0 0
      %2441 = vperm.xlu0 %2440, %v2403
      %v2442 = vpop.permute.xlu0 %2441
      %v2452 = vunpack.c.l.b16 %v2387
      %v2453 = vunpack.c.l.b16 %v2388
      %v2454 = vunpack.c.l.b16 %v2389
      %v2455 = vunpack.c.l.b16 %v2390
      %v2456 = vunpack.c.l.b16 %v2391
      %v2457 = vunpack.c.l.b16 %v2392
      %v2458 = vunpack.c.l.b16 %v2393
      %v2459 = vunpack.c.l.b16 %v2394
      %v2460 = vpack.c.b16 %v2453, %v2452
      %v2461 = vpack.c.b16 %v2455, %v2454
      %v2462 = vpack.c.b16 %v2457, %v2456
      %v2463 = vpack.c.b16 %v2459, %v2458
      %v2465 = vsel %vm672, %v2460, 0
      %v2468 = vsel %vm672, %v2461, 0
      %v2471 = vsel %vm672, %v2462, 0
      %v2474 = vsel %vm672, %v2463, 0
      %2476 = vmatprep.subr.bf16.mxu0 0
      %2477 = vmatpush1.bf16.msra.mxu0 0
      %2478 = vmatprep.subr.bf16.mxu0 0
      %2479 = vmatpush1.bf16.msra.mxu0 0
      %2480 = vmatprep.subr.bf16.mxu0 0
      %2481 = vmatpush1.bf16.msra.mxu0 0
      %2482 = vmatprep.subr.bf16.mxu0 0
      %2483 = vmatpush1.bf16.msra.mxu0 0
      %2484 = vmatprep.subr.bf16.mxu0 0
      %2485 = vmatpush1.bf16.msra.mxu0 0
      %2486 = vmatprep.subr.bf16.mxu0 0
      %2487 = vmatpush1.bf16.msra.mxu0 0
      %2488 = vmatprep.subr.bf16.mxu0 %v668
      %2489 = vmatpush1.bf16.msra.mxu0 %v667
      %2490 = vmatprep.subr.bf16.mxu0 %v666
      %2491 = vmatpush1.bf16.msra.mxu0 %v665
      %2492 = vmatprep.subr.bf16.mxu0 0
      %2493 = vmatpush2.bf16.msra.mxu0 0
      %2494 = vmatprep.subr.bf16.mxu0 0
      %2495 = vmatpush2.bf16.msra.mxu0 0
      %2496 = vmatprep.subr.bf16.mxu0 0
      %2497 = vmatpush2.bf16.msra.mxu0 0
      %2498 = vmatprep.subr.bf16.mxu0 0
      %2499 = vmatpush2.bf16.msra.mxu0 0
      %2500 = vmatprep.subr.bf16.mxu0 0
      %2501 = vmatpush2.bf16.msra.mxu0 0
      %2502 = vmatprep.subr.bf16.mxu0 0
      %2503 = vmatpush2.bf16.msra.mxu0 0
      %2504 = vmatprep.subr.bf16.mxu0 0
      %2505 = vmatpush2.bf16.msra.mxu0 0
      %2506 = vmatprep.subr.bf16.mxu0 0
      %2507 = vmatpush2.bf16.msra.mxu0 0
      %2508 = vmatprep.mubr.bf16.mxu0 0
      %2509 = vmatmul.mubr.bf16.gmra.mxu0 %v2465
      %v2510 = vpop.f32.mrf.mxu0
      %v2511 = vadd.f32 %v2407, %v2510
      %v2512 = vpop.f32.mrf.mxu0
      %v2513 = vadd.f32 %v2407, %v2512
      %v2514 = vpop.f32.mrf.mxu0
      %v2515 = vadd.f32 %v2412, %v2514
      %v2516 = vpop.f32.mrf.mxu0
      %v2517 = vadd.f32 %v2412, %v2516
      %2518 = vmatprep.mubr.bf16.mxu0 0
      %2519 = vmatmul.mubr.bf16.gmra.mxu0 %v2468
      %v2520 = vpop.f32.mrf.mxu0
      %v2521 = vadd.f32 %v2417, %v2520
      %v2522 = vpop.f32.mrf.mxu0
      %v2523 = vadd.f32 %v2417, %v2522
      %v2524 = vpop.f32.mrf.mxu0
      %v2525 = vadd.f32 %v2422, %v2524
      %v2526 = vpop.f32.mrf.mxu0
      %v2527 = vadd.f32 %v2422, %v2526
      %2528 = vmatprep.mubr.bf16.mxu0 0
      %2529 = vmatmul.mubr.bf16.gmra.mxu0 %v2471
      %v2530 = vpop.f32.mrf.mxu0
      %v2531 = vadd.f32 %v2427, %v2530
      %v2532 = vpop.f32.mrf.mxu0
      %v2533 = vadd.f32 %v2427, %v2532
      %v2534 = vpop.f32.mrf.mxu0
      %v2535 = vadd.f32 %v2432, %v2534
      %v2536 = vpop.f32.mrf.mxu0
      %v2537 = vadd.f32 %v2432, %v2536
      %2538 = vmatprep.mubr.bf16.mxu0 0
      %2539 = vmatmul.mubr.bf16.gmra.mxu0 %v2474
      %v2540 = vpop.f32.mrf.mxu0
      %v2541 = vadd.f32 %v2437, %v2540
      %v2542 = vpop.f32.mrf.mxu0
      %v2543 = vadd.f32 %v2437, %v2542
      %v2544 = vpop.f32.mrf.mxu0
      %v2545 = vadd.f32 %v2442, %v2544
      %v2546 = vpop.f32.mrf.mxu0
      %v2547 = vadd.f32 %v2442, %v2546
      %2548 = vdwg.mxu0
      %s2549 = scalar_lea.vmem %s7, 16
      %v2550 = vld [vmem:[%s2549] sm:$0xf]
      %v2551 = vld [vmem:[%s2549 + $0x4] sm:$0xf]
      %v2552 = vld [vmem:[%s2549 + $0x8] sm:$0xf]
      %v2553 = vld [vmem:[%s2549 + $0xc] sm:$0xf]
      %v2554 = vpack.c.bf16 %v2381, %v2381
      %v2555 = vpack.c.bf16 %v2511, %v2511
      %v2556 = vpack.c.bf16 %v2513, %v2513
      %v2557 = vpack.c.bf16 %v2531, %v2531
      %v2558 = vpack.c.bf16 %v2533, %v2533
      %v2560 = vsel %vm930, %v2554, 0
      %v2563 = vsel %vm934, %v2555, 0
      %v2566 = vsel %vm934, %v2556, 0
      %2568 = vmatprep.subr.bf16.mxu0 0
      %2569 = vmatpush1.bf16.msra.mxu0 0
      %2570 = vmatprep.subr.bf16.mxu0 0
      %2571 = vmatpush1.bf16.msra.mxu0 0
      %2572 = vmatprep.subr.bf16.mxu0 0
      %2573 = vmatpush1.bf16.msra.mxu0 0
      %2574 = vmatprep.subr.bf16.mxu0 0
      %2575 = vmatpush1.bf16.msra.mxu0 0
      %2576 = vmatprep.subr.bf16.mxu0 0
      %2577 = vmatpush1.bf16.msra.mxu0 0
      %2578 = vmatprep.subr.bf16.mxu0 0
      %2579 = vmatpush1.bf16.msra.mxu0 0
      %2580 = vmatprep.subr.bf16.mxu0 0
      %2581 = vmatpush1.bf16.msra.mxu0 0
      %2582 = vmatprep.subr.bf16.mxu0 %v2566
      %2583 = vmatpush1.bf16.msra.mxu0 %v2563
      %2584 = vmatprep.subr.bf16.mxu0 0
      %2585 = vmatpush2.bf16.msra.mxu0 0
      %2586 = vmatprep.subr.bf16.mxu0 0
      %2587 = vmatpush2.bf16.msra.mxu0 0
      %2588 = vmatprep.subr.bf16.mxu0 0
      %2589 = vmatpush2.bf16.msra.mxu0 0
      %2590 = vmatprep.subr.bf16.mxu0 0
      %2591 = vmatpush2.bf16.msra.mxu0 0
      %2592 = vmatprep.subr.bf16.mxu0 0
      %2593 = vmatpush2.bf16.msra.mxu0 0
      %2594 = vmatprep.subr.bf16.mxu0 0
      %2595 = vmatpush2.bf16.msra.mxu0 0
      %2596 = vmatprep.subr.bf16.mxu0 0
      %2597 = vmatpush2.bf16.msra.mxu0 0
      %2598 = vmatprep.subr.bf16.mxu0 0
      %2599 = vmatpush2.bf16.msra.mxu0 0
      %2600 = vmatprep.mubr.bf16.mxu0 0
      %2601 = vmatmul.mubr.bf16.gmra.mxu0 %v2560
      %v2602 = vpop.f32.mrf.mxu0
      %v2603 = vadd.f32 0.0, %v2602
      %v2604 = vpop.f32.mrf.mxu0
      %v2605 = vadd.f32 0.0, %v2604
      %v2606 = vpop.f32.mrf.mxu0
      %v2607 = vpop.f32.mrf.mxu0
      %2608 = vdwg.mxu0
      %v2609 = vmax.f32 %v2603, %v2605
      %2610 = vmax.xlane.f32.xlu0 %v2609
      %v2611 = vpop.xlane.xlu0 %2610
      %v2612 = vsub.f32 %v2603, %v2611
      %v2613 = vsub.f32 %v2605, %v2611
      %v2614 = vmul.f32 %v2612, 1.442695
      %v2615 = vpow.pop %v2614
      %v2616 = vmul.f32 %v2613, 1.442695
      %v2617 = vpow.pop %v2616
      %v2618 = vadd.f32 %v2615, %v2617
      %2619 = vadd.xlane.f32.xlu0 %v2618
      %v2620 = vpop.xlane.xlu0 %2619
      %v2621 = vrcp.pop %v2620
      %v2622 = vmul.f32 %v2615, %v2621
      %v2623 = vmul.f32 %v2617, %v2621
      %v2624 = vpack.c.bf16 %v2622, %v2622
      %v2625 = vpack.c.bf16 %v2623, %v2623
      %2626 = vmatprep.subr.bf16.mxu0 0
      %2627 = vmatpush1.bf16.xpose.msra.mxu0 0
      %2628 = vmatprep.subr.bf16.mxu0 0
      %2629 = vmatpush1.bf16.xpose.msra.mxu0 0
      %2630 = vmatprep.subr.bf16.mxu0 0
      %2631 = vmatpush1.bf16.xpose.msra.mxu0 0
      %2632 = vmatprep.subr.bf16.mxu0 0
      %2633 = vmatpush1.bf16.xpose.msra.mxu0 0
      %2634 = vmatprep.subr.bf16.mxu0 0
      %2635 = vmatpush1.bf16.xpose.msra.mxu0 0
      %2636 = vmatprep.subr.bf16.mxu0 0
      %2637 = vmatpush1.bf16.xpose.msra.mxu0 0
      %2638 = vmatprep.subr.bf16.mxu0 0
      %2639 = vmatpush1.bf16.xpose.msra.mxu0 0
      %2640 = vmatprep.subr.bf16.mxu0 %v2558
      %2641 = vmatpush1.bf16.xpose.msra.mxu0 %v2557
      %2642 = vmatprep.subr.bf16.mxu0 0
      %2643 = vmatpush2.bf16.xpose.msra.mxu0 0
      %2644 = vmatprep.subr.bf16.mxu0 0
      %2645 = vmatpush2.bf16.xpose.msra.mxu0 0
      %2646 = vmatprep.subr.bf16.mxu0 0
      %2647 = vmatpush2.bf16.xpose.msra.mxu0 0
      %2648 = vmatprep.subr.bf16.mxu0 0
      %2649 = vmatpush2.bf16.xpose.msra.mxu0 0
      %2650 = vmatprep.subr.bf16.mxu0 0
      %2651 = vmatpush2.bf16.xpose.msra.mxu0 0
      %2652 = vmatprep.subr.bf16.mxu0 0
      %2653 = vmatpush2.bf16.xpose.msra.mxu0 0
      %2654 = vmatprep.subr.bf16.mxu0 0
      %2655 = vmatpush2.bf16.xpose.msra.mxu0 0
      %2656 = vmatprep.subr.bf16.mxu0 0
      %2657 = vmatpush2.bf16.xpose.msra.mxu0 0
      %2658 = vmatprep.mubr.bf16.mxu0 %v2625
      %2659 = vmatmul.mubr.bf16.gmra.mxu0 %v2624
      %v2660 = vpop.f32.mrf.mxu0
      %v2661 = vadd.f32 0.0, %v2660
      %v2662 = vpop.f32.mrf.mxu0
      %v2663 = vpop.f32.mrf.mxu0
      %v2664 = vpop.f32.mrf.mxu0
      %2665 = vdwg.mxu0
      %v2666 = vpack.c.bf16 %v2515, %v2515
      %v2667 = vpack.c.bf16 %v2517, %v2517
      %v2668 = vpack.c.bf16 %v2535, %v2535
      %v2669 = vpack.c.bf16 %v2537, %v2537
      %2671 = vrot.lane.b32.xlu0 %v2554, 120
      %v2672 = vpop.permute.xlu0 %2671
      %v2674 = vsel %vm930, %v2672, 0
      %v2677 = vsel %vm934, %v2666, 0
      %v2680 = vsel %vm934, %v2667, 0
      %2682 = vmatprep.subr.bf16.mxu0 0
      %2683 = vmatpush1.bf16.msra.mxu0 0
      %2684 = vmatprep.subr.bf16.mxu0 0
      %2685 = vmatpush1.bf16.msra.mxu0 0
      %2686 = vmatprep.subr.bf16.mxu0 0
      %2687 = vmatpush1.bf16.msra.mxu0 0
      %2688 = vmatprep.subr.bf16.mxu0 0
      %2689 = vmatpush1.bf16.msra.mxu0 0
      %2690 = vmatprep.subr.bf16.mxu0 0
      %2691 = vmatpush1.bf16.msra.mxu0 0
      %2692 = vmatprep.subr.bf16.mxu0 0
      %2693 = vmatpush1.bf16.msra.mxu0 0
      %2694 = vmatprep.subr.bf16.mxu0 0
      %2695 = vmatpush1.bf16.msra.mxu0 0
      %2696 = vmatprep.subr.bf16.mxu0 %v2680
      %2697 = vmatpush1.bf16.msra.mxu0 %v2677
      %2698 = vmatprep.subr.bf16.mxu0 0
      %2699 = vmatpush2.bf16.msra.mxu0 0
      %2700 = vmatprep.subr.bf16.mxu0 0
      %2701 = vmatpush2.bf16.msra.mxu0 0
      %2702 = vmatprep.subr.bf16.mxu0 0
      %2703 = vmatpush2.bf16.msra.mxu0 0
      %2704 = vmatprep.subr.bf16.mxu0 0
      %2705 = vmatpush2.bf16.msra.mxu0 0
      %2706 = vmatprep.subr.bf16.mxu0 0
      %2707 = vmatpush2.bf16.msra.mxu0 0
      %2708 = vmatprep.subr.bf16.mxu0 0
      %2709 = vmatpush2.bf16.msra.mxu0 0
      %2710 = vmatprep.subr.bf16.mxu0 0
      %2711 = vmatpush2.bf16.msra.mxu0 0
      %2712 = vmatprep.subr.bf16.mxu0 0
      %2713 = vmatpush2.bf16.msra.mxu0 0
      %2714 = vmatprep.mubr.bf16.mxu0 0
      %2715 = vmatmul.mubr.bf16.gmra.mxu0 %v2674
      %v2716 = vpop.f32.mrf.mxu0
      %v2717 = vadd.f32 0.0, %v2716
      %v2718 = vpop.f32.mrf.mxu0
      %v2719 = vadd.f32 0.0, %v2718
      %v2720 = vpop.f32.mrf.mxu0
      %v2721 = vpop.f32.mrf.mxu0
      %2722 = vdwg.mxu0
      %v2723 = vmax.f32 %v2717, %v2719
      %2724 = vmax.xlane.f32.xlu0 %v2723
      %v2725 = vpop.xlane.xlu0 %2724
      %v2726 = vsub.f32 %v2717, %v2725
      %v2727 = vsub.f32 %v2719, %v2725
      %v2728 = vmul.f32 %v2726, 1.442695
      %v2729 = vpow.pop %v2728
      %v2730 = vmul.f32 %v2727, 1.442695
      %v2731 = vpow.pop %v2730
      %v2732 = vadd.f32 %v2729, %v2731
      %2733 = vadd.xlane.f32.xlu0 %v2732
      %v2734 = vpop.xlane.xlu0 %2733
      %v2735 = vrcp.pop %v2734
      %v2736 = vmul.f32 %v2729, %v2735
      %v2737 = vmul.f32 %v2731, %v2735
      %v2738 = vpack.c.bf16 %v2736, %v2736
      %v2739 = vpack.c.bf16 %v2737, %v2737
      %2740 = vmatprep.subr.bf16.mxu0 0
      %2741 = vmatpush1.bf16.xpose.msra.mxu0 0
      %2742 = vmatprep.subr.bf16.mxu0 0
      %2743 = vmatpush1.bf16.xpose.msra.mxu0 0
      %2744 = vmatprep.subr.bf16.mxu0 0
      %2745 = vmatpush1.bf16.xpose.msra.mxu0 0
      %2746 = vmatprep.subr.bf16.mxu0 0
      %2747 = vmatpush1.bf16.xpose.msra.mxu0 0
      %2748 = vmatprep.subr.bf16.mxu0 0
      %2749 = vmatpush1.bf16.xpose.msra.mxu0 0
      %2750 = vmatprep.subr.bf16.mxu0 0
      %2751 = vmatpush1.bf16.xpose.msra.mxu0 0
      %2752 = vmatprep.subr.bf16.mxu0 0
      %2753 = vmatpush1.bf16.xpose.msra.mxu0 0
      %2754 = vmatprep.subr.bf16.mxu0 %v2669
      %2755 = vmatpush1.bf16.xpose.msra.mxu0 %v2668
      %2756 = vmatprep.subr.bf16.mxu0 0
      %2757 = vmatpush2.bf16.xpose.msra.mxu0 0
      %2758 = vmatprep.subr.bf16.mxu0 0
      %2759 = vmatpush2.bf16.xpose.msra.mxu0 0
      %2760 = vmatprep.subr.bf16.mxu0 0
      %2761 = vmatpush2.bf16.xpose.msra.mxu0 0
      %2762 = vmatprep.subr.bf16.mxu0 0
      %2763 = vmatpush2.bf16.xpose.msra.mxu0 0
      %2764 = vmatprep.subr.bf16.mxu0 0
      %2765 = vmatpush2.bf16.xpose.msra.mxu0 0
      %2766 = vmatprep.subr.bf16.mxu0 0
      %2767 = vmatpush2.bf16.xpose.msra.mxu0 0
      %2768 = vmatprep.subr.bf16.mxu0 0
      %2769 = vmatpush2.bf16.xpose.msra.mxu0 0
      %2770 = vmatprep.subr.bf16.mxu0 0
      %2771 = vmatpush2.bf16.xpose.msra.mxu0 0
      %2772 = vmatprep.mubr.bf16.mxu0 %v2739
      %2773 = vmatmul.mubr.bf16.gmra.mxu0 %v2738
      %v2774 = vpop.f32.mrf.mxu0
      %v2775 = vadd.f32 0.0, %v2774
      %v2776 = vpop.f32.mrf.mxu0
      %v2777 = vpop.f32.mrf.mxu0
      %v2778 = vpop.f32.mrf.mxu0
      %2779 = vdwg.mxu0
      %v2780 = vpack.c.bf16 %v2521, %v2521
      %v2781 = vpack.c.bf16 %v2523, %v2523
      %v2782 = vpack.c.bf16 %v2541, %v2541
      %v2783 = vpack.c.bf16 %v2543, %v2543
      %2784 = vrot.lane.b32.xlu0 %v2554, 112
      %v2785 = vpop.permute.xlu0 %2784
      %v2787 = vsel %vm930, %v2785, 0
      %v2790 = vsel %vm934, %v2780, 0
      %v2793 = vsel %vm934, %v2781, 0
      %2795 = vmatprep.subr.bf16.mxu0 0
      %2796 = vmatpush1.bf16.msra.mxu0 0
      %2797 = vmatprep.subr.bf16.mxu0 0
      %2798 = vmatpush1.bf16.msra.mxu0 0
      %2799 = vmatprep.subr.bf16.mxu0 0
      %2800 = vmatpush1.bf16.msra.mxu0 0
      %2801 = vmatprep.subr.bf16.mxu0 0
      %2802 = vmatpush1.bf16.msra.mxu0 0
      %2803 = vmatprep.subr.bf16.mxu0 0
      %2804 = vmatpush1.bf16.msra.mxu0 0
      %2805 = vmatprep.subr.bf16.mxu0 0
      %2806 = vmatpush1.bf16.msra.mxu0 0
      %2807 = vmatprep.subr.bf16.mxu0 0
      %2808 = vmatpush1.bf16.msra.mxu0 0
      %2809 = vmatprep.subr.bf16.mxu0 %v2793
      %2810 = vmatpush1.bf16.msra.mxu0 %v2790
      %2811 = vmatprep.subr.bf16.mxu0 0
      %2812 = vmatpush2.bf16.msra.mxu0 0
      %2813 = vmatprep.subr.bf16.mxu0 0
      %2814 = vmatpush2.bf16.msra.mxu0 0
      %2815 = vmatprep.subr.bf16.mxu0 0
      %2816 = vmatpush2.bf16.msra.mxu0 0
      %2817 = vmatprep.subr.bf16.mxu0 0
      %2818 = vmatpush2.bf16.msra.mxu0 0
      %2819 = vmatprep.subr.bf16.mxu0 0
      %2820 = vmatpush2.bf16.msra.mxu0 0
      %2821 = vmatprep.subr.bf16.mxu0 0
      %2822 = vmatpush2.bf16.msra.mxu0 0
      %2823 = vmatprep.subr.bf16.mxu0 0
      %2824 = vmatpush2.bf16.msra.mxu0 0
      %2825 = vmatprep.subr.bf16.mxu0 0
      %2826 = vmatpush2.bf16.msra.mxu0 0
      %2827 = vmatprep.mubr.bf16.mxu0 0
      %2828 = vmatmul.mubr.bf16.gmra.mxu0 %v2787
      %v2829 = vpop.f32.mrf.mxu0
      %v2830 = vadd.f32 0.0, %v2829
      %v2831 = vpop.f32.mrf.mxu0
      %v2832 = vadd.f32 0.0, %v2831
      %v2833 = vpop.f32.mrf.mxu0
      %v2834 = vpop.f32.mrf.mxu0
      %2835 = vdwg.mxu0
      %v2836 = vmax.f32 %v2830, %v2832
      %2837 = vmax.xlane.f32.xlu0 %v2836
      %v2838 = vpop.xlane.xlu0 %2837
      %v2839 = vsub.f32 %v2830, %v2838
      %v2840 = vsub.f32 %v2832, %v2838
      %v2841 = vmul.f32 %v2839, 1.442695
      %v2842 = vpow.pop %v2841
      %v2843 = vmul.f32 %v2840, 1.442695
      %v2844 = vpow.pop %v2843
      %v2845 = vadd.f32 %v2842, %v2844
      %2846 = vadd.xlane.f32.xlu0 %v2845
      %v2847 = vpop.xlane.xlu0 %2846
      %v2848 = vrcp.pop %v2847
      %v2849 = vmul.f32 %v2842, %v2848
      %v2850 = vmul.f32 %v2844, %v2848
      %v2851 = vpack.c.bf16 %v2849, %v2849
      %v2852 = vpack.c.bf16 %v2850, %v2850
      %2853 = vmatprep.subr.bf16.mxu0 0
      %2854 = vmatpush1.bf16.xpose.msra.mxu0 0
      %2855 = vmatprep.subr.bf16.mxu0 0
      %2856 = vmatpush1.bf16.xpose.msra.mxu0 0
      %2857 = vmatprep.subr.bf16.mxu0 0
      %2858 = vmatpush1.bf16.xpose.msra.mxu0 0
      %2859 = vmatprep.subr.bf16.mxu0 0
      %2860 = vmatpush1.bf16.xpose.msra.mxu0 0
      %2861 = vmatprep.subr.bf16.mxu0 0
      %2862 = vmatpush1.bf16.xpose.msra.mxu0 0
      %2863 = vmatprep.subr.bf16.mxu0 0
      %2864 = vmatpush1.bf16.xpose.msra.mxu0 0
      %2865 = vmatprep.subr.bf16.mxu0 0
      %2866 = vmatpush1.bf16.xpose.msra.mxu0 0
      %2867 = vmatprep.subr.bf16.mxu0 %v2783
      %2868 = vmatpush1.bf16.xpose.msra.mxu0 %v2782
      %2869 = vmatprep.subr.bf16.mxu0 0
      %2870 = vmatpush2.bf16.xpose.msra.mxu0 0
      %2871 = vmatprep.subr.bf16.mxu0 0
      %2872 = vmatpush2.bf16.xpose.msra.mxu0 0
      %2873 = vmatprep.subr.bf16.mxu0 0
      %2874 = vmatpush2.bf16.xpose.msra.mxu0 0
      %2875 = vmatprep.subr.bf16.mxu0 0
      %2876 = vmatpush2.bf16.xpose.msra.mxu0 0
      %2877 = vmatprep.subr.bf16.mxu0 0
      %2878 = vmatpush2.bf16.xpose.msra.mxu0 0
      %2879 = vmatprep.subr.bf16.mxu0 0
      %2880 = vmatpush2.bf16.xpose.msra.mxu0 0
      %2881 = vmatprep.subr.bf16.mxu0 0
      %2882 = vmatpush2.bf16.xpose.msra.mxu0 0
      %2883 = vmatprep.subr.bf16.mxu0 0
      %2884 = vmatpush2.bf16.xpose.msra.mxu0 0
      %2885 = vmatprep.mubr.bf16.mxu0 %v2852
      %2886 = vmatmul.mubr.bf16.gmra.mxu0 %v2851
      %v2887 = vpop.f32.mrf.mxu0
      %v2888 = vadd.f32 0.0, %v2887
      %v2889 = vpop.f32.mrf.mxu0
      %v2890 = vpop.f32.mrf.mxu0
      %v2891 = vpop.f32.mrf.mxu0
      %2892 = vdwg.mxu0
      %v2893 = vpack.c.bf16 %v2525, %v2525
      %v2894 = vpack.c.bf16 %v2527, %v2527
      %v2895 = vpack.c.bf16 %v2545, %v2545
      %v2896 = vpack.c.bf16 %v2547, %v2547
      %2897 = vrot.lane.b32.xlu0 %v2554, 104
      %v2898 = vpop.permute.xlu0 %2897
      %v2900 = vsel %vm930, %v2898, 0
      %v2903 = vsel %vm934, %v2893, 0
      %v2906 = vsel %vm934, %v2894, 0
      %2908 = vmatprep.subr.bf16.mxu0 0
      %2909 = vmatpush1.bf16.msra.mxu0 0
      %2910 = vmatprep.subr.bf16.mxu0 0
      %2911 = vmatpush1.bf16.msra.mxu0 0
      %2912 = vmatprep.subr.bf16.mxu0 0
      %2913 = vmatpush1.bf16.msra.mxu0 0
      %2914 = vmatprep.subr.bf16.mxu0 0
      %2915 = vmatpush1.bf16.msra.mxu0 0
      %2916 = vmatprep.subr.bf16.mxu0 0
      %2917 = vmatpush1.bf16.msra.mxu0 0
      %2918 = vmatprep.subr.bf16.mxu0 0
      %2919 = vmatpush1.bf16.msra.mxu0 0
      %2920 = vmatprep.subr.bf16.mxu0 0
      %2921 = vmatpush1.bf16.msra.mxu0 0
      %2922 = vmatprep.subr.bf16.mxu0 %v2906
      %2923 = vmatpush1.bf16.msra.mxu0 %v2903
      %2924 = vmatprep.subr.bf16.mxu0 0
      %2925 = vmatpush2.bf16.msra.mxu0 0
      %2926 = vmatprep.subr.bf16.mxu0 0
      %2927 = vmatpush2.bf16.msra.mxu0 0
      %2928 = vmatprep.subr.bf16.mxu0 0
      %2929 = vmatpush2.bf16.msra.mxu0 0
      %2930 = vmatprep.subr.bf16.mxu0 0
      %2931 = vmatpush2.bf16.msra.mxu0 0
      %2932 = vmatprep.subr.bf16.mxu0 0
      %2933 = vmatpush2.bf16.msra.mxu0 0
      %2934 = vmatprep.subr.bf16.mxu0 0
      %2935 = vmatpush2.bf16.msra.mxu0 0
      %2936 = vmatprep.subr.bf16.mxu0 0
      %2937 = vmatpush2.bf16.msra.mxu0 0
      %2938 = vmatprep.subr.bf16.mxu0 0
      %2939 = vmatpush2.bf16.msra.mxu0 0
      %2940 = vmatprep.mubr.bf16.mxu0 0
      %2941 = vmatmul.mubr.bf16.gmra.mxu0 %v2900
      %v2942 = vpop.f32.mrf.mxu0
      %v2943 = vadd.f32 0.0, %v2942
      %v2944 = vpop.f32.mrf.mxu0
      %v2945 = vadd.f32 0.0, %v2944
      %v2946 = vpop.f32.mrf.mxu0
      %v2947 = vpop.f32.mrf.mxu0
      %2948 = vdwg.mxu0
      %v2949 = vmax.f32 %v2943, %v2945
      %2950 = vmax.xlane.f32.xlu0 %v2949
      %v2951 = vpop.xlane.xlu0 %2950
      %v2952 = vsub.f32 %v2943, %v2951
      %v2953 = vsub.f32 %v2945, %v2951
      %v2954 = vmul.f32 %v2952, 1.442695
      %v2955 = vpow.pop %v2954
      %v2956 = vmul.f32 %v2953, 1.442695
      %v2957 = vpow.pop %v2956
      %v2958 = vadd.f32 %v2955, %v2957
      %2959 = vadd.xlane.f32.xlu0 %v2958
      %v2960 = vpop.xlane.xlu0 %2959
      %v2961 = vrcp.pop %v2960
      %v2962 = vmul.f32 %v2955, %v2961
      %v2963 = vmul.f32 %v2957, %v2961
      %v2964 = vpack.c.bf16 %v2962, %v2962
      %v2965 = vpack.c.bf16 %v2963, %v2963
      %2966 = vmatprep.subr.bf16.mxu0 0
      %2967 = vmatpush1.bf16.xpose.msra.mxu0 0
      %2968 = vmatprep.subr.bf16.mxu0 0
      %2969 = vmatpush1.bf16.xpose.msra.mxu0 0
      %2970 = vmatprep.subr.bf16.mxu0 0
      %2971 = vmatpush1.bf16.xpose.msra.mxu0 0
      %2972 = vmatprep.subr.bf16.mxu0 0
      %2973 = vmatpush1.bf16.xpose.msra.mxu0 0
      %2974 = vmatprep.subr.bf16.mxu0 0
      %2975 = vmatpush1.bf16.xpose.msra.mxu0 0
      %2976 = vmatprep.subr.bf16.mxu0 0
      %2977 = vmatpush1.bf16.xpose.msra.mxu0 0
      %2978 = vmatprep.subr.bf16.mxu0 0
      %2979 = vmatpush1.bf16.xpose.msra.mxu0 0
      %2980 = vmatprep.subr.bf16.mxu0 %v2896
      %2981 = vmatpush1.bf16.xpose.msra.mxu0 %v2895
      %2982 = vmatprep.subr.bf16.mxu0 0
      %2983 = vmatpush2.bf16.xpose.msra.mxu0 0
      %2984 = vmatprep.subr.bf16.mxu0 0
      %2985 = vmatpush2.bf16.xpose.msra.mxu0 0
      %2986 = vmatprep.subr.bf16.mxu0 0
      %2987 = vmatpush2.bf16.xpose.msra.mxu0 0
      %2988 = vmatprep.subr.bf16.mxu0 0
      %2989 = vmatpush2.bf16.xpose.msra.mxu0 0
      %2990 = vmatprep.subr.bf16.mxu0 0
      %2991 = vmatpush2.bf16.xpose.msra.mxu0 0
      %2992 = vmatprep.subr.bf16.mxu0 0
      %2993 = vmatpush2.bf16.xpose.msra.mxu0 0
      %2994 = vmatprep.subr.bf16.mxu0 0
      %2995 = vmatpush2.bf16.xpose.msra.mxu0 0
      %2996 = vmatprep.subr.bf16.mxu0 0
      %2997 = vmatpush2.bf16.xpose.msra.mxu0 0
      %2998 = vmatprep.mubr.bf16.mxu0 %v2965
      %2999 = vmatmul.mubr.bf16.gmra.mxu0 %v2964
      %v3000 = vpop.f32.mrf.mxu0
      %v3001 = vadd.f32 0.0, %v3000
      %v3002 = vpop.f32.mrf.mxu0
      %v3003 = vpop.f32.mrf.mxu0
      %v3004 = vpop.f32.mrf.mxu0
      %3005 = vdwg.mxu0
      %3007 = vrot.lane.b32.xlu0 %v2775, 8
      %v3008 = vpop.permute.xlu0 %3007
      %3011 = vrot.lane.b32.xlu0 %v2888, 16
      %v3012 = vpop.permute.xlu0 %3011
      %3015 = vrot.lane.b32.xlu0 %v3001, 24
      %v3016 = vpop.permute.xlu0 %3015
      %v3018 = vsel %vm930, %v2661, %v3008
      %v3019 = vsel %vm1392, %v3018, %v3012
      %v3020 = vsel %vm1394, %v3019, %v3016
      %v3021 = vpack.c.bf16 %v3020, %v3020
      %v3022 = vlaneseq
      %v3023 = vshrl.u32 %v3022, 7
      %v3024 = vsub.s32 1, %v3023
      %v3025 = vrot.slane %v2297, %v3024
      %v3030 = vunpack.c.l.b16 %v2550
      %v3031 = vunpack.c.l.b16 %v2551
      %v3032 = vunpack.c.l.b16 %v2552
      %v3033 = vunpack.c.l.b16 %v2553
      %v3034 = vpack.c.b16 %v3031, %v3030
      %v3035 = vpack.c.b16 %v3033, %v3032
      %v3039 = vsel %vm672, %v3021, 0
      %3041 = vmatprep.subr.bf16.mxu0 0
      %3042 = vmatpush1.bf16.msra.mxu0 0
      %3043 = vmatprep.subr.bf16.mxu0 0
      %3044 = vmatpush1.bf16.msra.mxu0 0
      %3045 = vmatprep.subr.bf16.mxu0 0
      %3046 = vmatpush1.bf16.msra.mxu0 0
      %3047 = vmatprep.subr.bf16.mxu0 0
      %3048 = vmatpush1.bf16.msra.mxu0 0
      %3049 = vmatprep.subr.bf16.mxu0 0
      %3050 = vmatpush1.bf16.msra.mxu0 0
      %3051 = vmatprep.subr.bf16.mxu0 0
      %3052 = vmatpush1.bf16.msra.mxu0 0
      %3053 = vmatprep.subr.bf16.mxu0 0
      %3054 = vmatpush1.bf16.msra.mxu0 %v3035
      %3055 = vmatprep.subr.bf16.mxu0 0
      %3056 = vmatpush1.bf16.msra.mxu0 %v3034
      %3057 = vmatprep.subr.bf16.mxu0 0
      %3058 = vmatpush2.bf16.msra.mxu0 0
      %3059 = vmatprep.subr.bf16.mxu0 0
      %3060 = vmatpush2.bf16.msra.mxu0 0
      %3061 = vmatprep.subr.bf16.mxu0 0
      %3062 = vmatpush2.bf16.msra.mxu0 0
      %3063 = vmatprep.subr.bf16.mxu0 0
      %3064 = vmatpush2.bf16.msra.mxu0 0
      %3065 = vmatprep.subr.bf16.mxu0 0
      %3066 = vmatpush2.bf16.msra.mxu0 0
      %3067 = vmatprep.subr.bf16.mxu0 0
      %3068 = vmatpush2.bf16.msra.mxu0 0
      %3069 = vmatprep.subr.bf16.mxu0 0
      %3070 = vmatpush2.bf16.msra.mxu0 0
      %3071 = vmatprep.subr.bf16.mxu0 0
      %3072 = vmatpush2.bf16.msra.mxu0 0
      %3073 = vmatprep.mubr.bf16.mxu0 0
      %3074 = vmatmul.mubr.bf16.gmra.mxu0 %v3039
      %v3075 = vpop.f32.mrf.mxu0
      %v3076 = vadd.f32 %v3025, %v3075
      %v3077 = vpop.f32.mrf.mxu0
      %v3078 = vpop.f32.mrf.mxu0
      %v3079 = vpop.f32.mrf.mxu0
      %3080 = vdwg.mxu0
      %v3081 = vadd.f32 %v2293, %v3076
      %v3082 = vsel %vm672, %v3081, 0.0
      %3083 = vadd.xlane.f32.xlu0 %v3082
      %v3084 = vpop.xlane.xlu0 %3083
      %v3085 = vmul.f32 %v3084, %v549
      %v3086 = vsub.f32 %v3081, %v3085
      %v3087 = vmul.f32 %v3086, %v3086
      %v3088 = vsel %vm672, %v3087, 0.0
      %3089 = vadd.xlane.f32.xlu0 %v3088
      %v3090 = vpop.xlane.xlu0 %3089
      %v3091 = vmul.f32 %v3090, %v549
      %v3092 = vadd.f32 %v3091, 1e-05
      %v3093 = vrsqrt.pop %v3092
      %v3094 = vmul.f32 %v3086, %v3093
      %v3095 = vlaneseq
      %v3096 = vshrl.u32 %v3095, 7
      %v3097 = vsub.s32 2, %v3096
      %v3098 = vrot.slane %v2295, %v3097
      %v3099 = vmul.f32 %v3094, %v3098
      %v3100 = vlaneseq
      %v3101 = vshrl.u32 %v3100, 7
      %v3102 = vsub.s32 3, %v3101
      %v3103 = vrot.slane %v2295, %v3102
      %v3104 = vadd.f32 %v3099, %v3103
      %v3105 = vpack.c.bf16 %v3104, %v3104
      %s3106 = scalar_lea.vmem %s8, 16
      %v3107 = vld [vmem:[%s3106] sm:$0xf]
      %v3108 = vld [vmem:[%s3106 + $0x4] sm:$0xf]
      %v3109 = vld [vmem:[%s3106 + $0x8] sm:$0xf]
      %v3110 = vld [vmem:[%s3106 + $0xc] sm:$0xf]
      %s3111 = scalar_lea.vmem %s14, 1
      %v3112 = vld [vmem:[%s3111] sm:$0x1]
      %v3114 = vlaneseq
      %v3115 = vshrl.u32 %v3114, 7
      %v3116 = vsub.s32 0, %v3115
      %v3117 = vrot.slane %v3112, %v3116
      %v3123 = vunpack.c.l.b16 %v3107
      %v3124 = vunpack.c.l.b16 %v3108
      %v3125 = vunpack.c.l.b16 %v3109
      %v3126 = vunpack.c.l.b16 %v3110
      %v3127 = vpack.c.b16 %v3124, %v3123
      %v3128 = vpack.c.b16 %v3126, %v3125
      %v3132 = vsel %vm672, %v3105, 0
      %3134 = vmatprep.subr.bf16.mxu0 0
      %3135 = vmatpush1.bf16.msra.mxu0 0
      %3136 = vmatprep.subr.bf16.mxu0 0
      %3137 = vmatpush1.bf16.msra.mxu0 0
      %3138 = vmatprep.subr.bf16.mxu0 0
      %3139 = vmatpush1.bf16.msra.mxu0 0
      %3140 = vmatprep.subr.bf16.mxu0 0
      %3141 = vmatpush1.bf16.msra.mxu0 0
      %3142 = vmatprep.subr.bf16.mxu0 0
      %3143 = vmatpush1.bf16.msra.mxu0 0
      %3144 = vmatprep.subr.bf16.mxu0 0
      %3145 = vmatpush1.bf16.msra.mxu0 0
      %3146 = vmatprep.subr.bf16.mxu0 0
      %3147 = vmatpush1.bf16.msra.mxu0 %v3128
      %3148 = vmatprep.subr.bf16.mxu0 0
      %3149 = vmatpush1.bf16.msra.mxu0 %v3127
      %3150 = vmatprep.subr.bf16.mxu0 0
      %3151 = vmatpush2.bf16.msra.mxu0 0
      %3152 = vmatprep.subr.bf16.mxu0 0
      %3153 = vmatpush2.bf16.msra.mxu0 0
      %3154 = vmatprep.subr.bf16.mxu0 0
      %3155 = vmatpush2.bf16.msra.mxu0 0
      %3156 = vmatprep.subr.bf16.mxu0 0
      %3157 = vmatpush2.bf16.msra.mxu0 0
      %3158 = vmatprep.subr.bf16.mxu0 0
      %3159 = vmatpush2.bf16.msra.mxu0 0
      %3160 = vmatprep.subr.bf16.mxu0 0
      %3161 = vmatpush2.bf16.msra.mxu0 0
      %3162 = vmatprep.subr.bf16.mxu0 0
      %3163 = vmatpush2.bf16.msra.mxu0 0
      %3164 = vmatprep.subr.bf16.mxu0 0
      %3165 = vmatpush2.bf16.msra.mxu0 0
      %3166 = vmatprep.mubr.bf16.mxu0 0
      %3167 = vmatmul.mubr.bf16.gmra.mxu0 %v3132
      %v3168 = vpop.f32.mrf.mxu0
      %v3169 = vadd.f32 %v3117, %v3168
      %v3170 = vpop.f32.mrf.mxu0
      %v3171 = vpop.f32.mrf.mxu0
      %v3172 = vpop.f32.mrf.mxu0
      %3173 = vdwg.mxu0
      %s3174 = scalar_lea.vmem %s9, 16
      %v3175 = vld [vmem:[%s3174] sm:$0xf]
      %v3176 = vld [vmem:[%s3174 + $0x4] sm:$0xf]
      %v3177 = vld [vmem:[%s3174 + $0x8] sm:$0xf]
      %v3178 = vld [vmem:[%s3174 + $0xc] sm:$0xf]
      %v3179 = vpack.c.bf16 %v3169, %v3169
      %3181 = vrot.lane.b32.xlu0 %v3179, 96
      %v3182 = vpop.permute.xlu0 %3181
      %v3184 = vsel %vm930, %v3179, 0
      %v3187 = vsel %vm930, %v3182, 0
      %3189 = vmatprep.subr.bf16.mxu0 0
      %3190 = vmatpush1.bf16.xpose.msra.mxu0 0
      %3191 = vmatprep.subr.bf16.mxu0 0
      %3192 = vmatpush1.bf16.xpose.msra.mxu0 0
      %3193 = vmatprep.subr.bf16.mxu0 0
      %3194 = vmatpush1.bf16.xpose.msra.mxu0 0
      %3195 = vmatprep.subr.bf16.mxu0 0
      %3196 = vmatpush1.bf16.xpose.msra.mxu0 0
      %3197 = vmatprep.subr.bf16.mxu0 0
      %3198 = vmatpush1.bf16.xpose.msra.mxu0 0
      %3199 = vmatprep.subr.bf16.mxu0 0
      %3200 = vmatpush1.bf16.xpose.msra.mxu0 0
      %3201 = vmatprep.subr.bf16.mxu0 0
      %3202 = vmatpush1.bf16.xpose.msra.mxu0 0
      %3203 = vmatprep.subr.bf16.mxu0 0
      %3204 = vmatpush1.bf16.xpose.msra.mxu0 %v3187
      %3205 = vmatprep.subr.bf16.mxu0 0
      %3206 = vmatpush2.bf16.xpose.msra.mxu0 0
      %3207 = vmatprep.subr.bf16.mxu0 0
      %3208 = vmatpush2.bf16.xpose.msra.mxu0 0
      %3209 = vmatprep.subr.bf16.mxu0 0
      %3210 = vmatpush2.bf16.xpose.msra.mxu0 0
      %3211 = vmatprep.subr.bf16.mxu0 0
      %3212 = vmatpush2.bf16.xpose.msra.mxu0 0
      %3213 = vmatprep.subr.bf16.mxu0 0
      %3214 = vmatpush2.bf16.xpose.msra.mxu0 0
      %3215 = vmatprep.subr.bf16.mxu0 0
      %3216 = vmatpush2.bf16.xpose.msra.mxu0 0
      %3217 = vmatprep.subr.bf16.mxu0 0
      %3218 = vmatpush2.bf16.xpose.msra.mxu0 0
      %3219 = vmatprep.subr.bf16.mxu0 0
      %3220 = vmatpush2.bf16.xpose.msra.mxu0 0
      %3221 = vmatprep.mubr.bf16.mxu0 0
      %3222 = vmatmul.mubr.bf16.gmra.mxu0 %v3184
      %v3223 = vpop.f32.mrf.mxu0
      %v3224 = vadd.f32 0.0, %v3223
      %v3225 = vpop.f32.mrf.mxu0
      %v3226 = vpop.f32.mrf.mxu0
      %v3227 = vpop.f32.mrf.mxu0
      %3228 = vdwg.mxu0
      %v3229 = vsel %vm930, %v3224, -inf
      %3230 = vmax.xlane.f32.xlu0 %v3229
      %v3231 = vpop.xlane.xlu0 %3230
      %v3232 = vsub.f32 %v3224, %v3231
      %v3233 = vmul.f32 %v3232, 1.442695
      %v3234 = vpow.pop %v3233
      %v3235 = vsel %vm930, %v3234, 0.0
      %3236 = vadd.xlane.f32.xlu0 %v3235
      %v3237 = vpop.xlane.xlu0 %3236
      %v3238 = vrcp.pop %v3237
      %v3239 = vmul.f32 %v3234, %v3238
      %v3240 = vpack.c.bf16 %v3239, %v3239
      %3241 = vrot.lane.b32.xlu0 %v3179, 64
      %v3242 = vpop.permute.xlu0 %3241
      %v3244 = vsel %vm930, %v3240, 0
      %v3247 = vsel %vm934, %v3242, 0
      %3249 = vmatprep.subr.bf16.mxu0 0
      %3250 = vmatpush1.bf16.msra.mxu0 0
      %3251 = vmatprep.subr.bf16.mxu0 0
      %3252 = vmatpush1.bf16.msra.mxu0 0
      %3253 = vmatprep.subr.bf16.mxu0 0
      %3254 = vmatpush1.bf16.msra.mxu0 0
      %3255 = vmatprep.subr.bf16.mxu0 0
      %3256 = vmatpush1.bf16.msra.mxu0 0
      %3257 = vmatprep.subr.bf16.mxu0 0
      %3258 = vmatpush1.bf16.msra.mxu0 0
      %3259 = vmatprep.subr.bf16.mxu0 0
      %3260 = vmatpush1.bf16.msra.mxu0 0
      %3261 = vmatprep.subr.bf16.mxu0 0
      %3262 = vmatpush1.bf16.msra.mxu0 0
      %3263 = vmatprep.subr.bf16.mxu0 0
      %3264 = vmatpush1.bf16.msra.mxu0 %v3247
      %3265 = vmatprep.subr.bf16.mxu0 0
      %3266 = vmatpush2.bf16.msra.mxu0 0
      %3267 = vmatprep.subr.bf16.mxu0 0
      %3268 = vmatpush2.bf16.msra.mxu0 0
      %3269 = vmatprep.subr.bf16.mxu0 0
      %3270 = vmatpush2.bf16.msra.mxu0 0
      %3271 = vmatprep.subr.bf16.mxu0 0
      %3272 = vmatpush2.bf16.msra.mxu0 0
      %3273 = vmatprep.subr.bf16.mxu0 0
      %3274 = vmatpush2.bf16.msra.mxu0 0
      %3275 = vmatprep.subr.bf16.mxu0 0
      %3276 = vmatpush2.bf16.msra.mxu0 0
      %3277 = vmatprep.subr.bf16.mxu0 0
      %3278 = vmatpush2.bf16.msra.mxu0 0
      %3279 = vmatprep.subr.bf16.mxu0 0
      %3280 = vmatpush2.bf16.msra.mxu0 0
      %3281 = vmatprep.mubr.bf16.mxu0 0
      %3282 = vmatmul.mubr.bf16.gmra.mxu0 %v3244
      %v3283 = vpop.f32.mrf.mxu0
      %v3284 = vadd.f32 0.0, %v3283
      %v3285 = vpop.f32.mrf.mxu0
      %v3286 = vpop.f32.mrf.mxu0
      %v3287 = vpop.f32.mrf.mxu0
      %3288 = vdwg.mxu0
      %3289 = vrot.lane.b32.xlu0 %v3179, 120
      %v3290 = vpop.permute.xlu0 %3289
      %3291 = vrot.lane.b32.xlu0 %v3179, 88
      %v3292 = vpop.permute.xlu0 %3291
      %v3294 = vsel %vm930, %v3290, 0
      %v3297 = vsel %vm930, %v3292, 0
      %3299 = vmatprep.subr.bf16.mxu0 0
      %3300 = vmatpush1.bf16.xpose.msra.mxu0 0
      %3301 = vmatprep.subr.bf16.mxu0 0
      %3302 = vmatpush1.bf16.xpose.msra.mxu0 0
      %3303 = vmatprep.subr.bf16.mxu0 0
      %3304 = vmatpush1.bf16.xpose.msra.mxu0 0
      %3305 = vmatprep.subr.bf16.mxu0 0
      %3306 = vmatpush1.bf16.xpose.msra.mxu0 0
      %3307 = vmatprep.subr.bf16.mxu0 0
      %3308 = vmatpush1.bf16.xpose.msra.mxu0 0
      %3309 = vmatprep.subr.bf16.mxu0 0
      %3310 = vmatpush1.bf16.xpose.msra.mxu0 0
      %3311 = vmatprep.subr.bf16.mxu0 0
      %3312 = vmatpush1.bf16.xpose.msra.mxu0 0
      %3313 = vmatprep.subr.bf16.mxu0 0
      %3314 = vmatpush1.bf16.xpose.msra.mxu0 %v3297
      %3315 = vmatprep.subr.bf16.mxu0 0
      %3316 = vmatpush2.bf16.xpose.msra.mxu0 0
      %3317 = vmatprep.subr.bf16.mxu0 0
      %3318 = vmatpush2.bf16.xpose.msra.mxu0 0
      %3319 = vmatprep.subr.bf16.mxu0 0
      %3320 = vmatpush2.bf16.xpose.msra.mxu0 0
      %3321 = vmatprep.subr.bf16.mxu0 0
      %3322 = vmatpush2.bf16.xpose.msra.mxu0 0
      %3323 = vmatprep.subr.bf16.mxu0 0
      %3324 = vmatpush2.bf16.xpose.msra.mxu0 0
      %3325 = vmatprep.subr.bf16.mxu0 0
      %3326 = vmatpush2.bf16.xpose.msra.mxu0 0
      %3327 = vmatprep.subr.bf16.mxu0 0
      %3328 = vmatpush2.bf16.xpose.msra.mxu0 0
      %3329 = vmatprep.subr.bf16.mxu0 0
      %3330 = vmatpush2.bf16.xpose.msra.mxu0 0
      %3331 = vmatprep.mubr.bf16.mxu0 0
      %3332 = vmatmul.mubr.bf16.gmra.mxu0 %v3294
      %v3333 = vpop.f32.mrf.mxu0
      %v3334 = vadd.f32 0.0, %v3333
      %v3335 = vpop.f32.mrf.mxu0
      %v3336 = vpop.f32.mrf.mxu0
      %v3337 = vpop.f32.mrf.mxu0
      %3338 = vdwg.mxu0
      %v3339 = vsel %vm930, %v3334, -inf
      %3340 = vmax.xlane.f32.xlu0 %v3339
      %v3341 = vpop.xlane.xlu0 %3340
      %v3342 = vsub.f32 %v3334, %v3341
      %v3343 = vmul.f32 %v3342, 1.442695
      %v3344 = vpow.pop %v3343
      %v3345 = vsel %vm930, %v3344, 0.0
      %3346 = vadd.xlane.f32.xlu0 %v3345
      %v3347 = vpop.xlane.xlu0 %3346
      %v3348 = vrcp.pop %v3347
      %v3349 = vmul.f32 %v3344, %v3348
      %v3350 = vpack.c.bf16 %v3349, %v3349
      %3351 = vrot.lane.b32.xlu0 %v3179, 56
      %v3352 = vpop.permute.xlu0 %3351
      %v3354 = vsel %vm930, %v3350, 0
      %v3357 = vsel %vm934, %v3352, 0
      %3359 = vmatprep.subr.bf16.mxu0 0
      %3360 = vmatpush1.bf16.msra.mxu0 0
      %3361 = vmatprep.subr.bf16.mxu0 0
      %3362 = vmatpush1.bf16.msra.mxu0 0
      %3363 = vmatprep.subr.bf16.mxu0 0
      %3364 = vmatpush1.bf16.msra.mxu0 0
      %3365 = vmatprep.subr.bf16.mxu0 0
      %3366 = vmatpush1.bf16.msra.mxu0 0
      %3367 = vmatprep.subr.bf16.mxu0 0
      %3368 = vmatpush1.bf16.msra.mxu0 0
      %3369 = vmatprep.subr.bf16.mxu0 0
      %3370 = vmatpush1.bf16.msra.mxu0 0
      %3371 = vmatprep.subr.bf16.mxu0 0
      %3372 = vmatpush1.bf16.msra.mxu0 0
      %3373 = vmatprep.subr.bf16.mxu0 0
      %3374 = vmatpush1.bf16.msra.mxu0 %v3357
      %3375 = vmatprep.subr.bf16.mxu0 0
      %3376 = vmatpush2.bf16.msra.mxu0 0
      %3377 = vmatprep.subr.bf16.mxu0 0
      %3378 = vmatpush2.bf16.msra.mxu0 0
      %3379 = vmatprep.subr.bf16.mxu0 0
      %3380 = vmatpush2.bf16.msra.mxu0 0
      %3381 = vmatprep.subr.bf16.mxu0 0
      %3382 = vmatpush2.bf16.msra.mxu0 0
      %3383 = vmatprep.subr.bf16.mxu0 0
      %3384 = vmatpush2.bf16.msra.mxu0 0
      %3385 = vmatprep.subr.bf16.mxu0 0
      %3386 = vmatpush2.bf16.msra.mxu0 0
      %3387 = vmatprep.subr.bf16.mxu0 0
      %3388 = vmatpush2.bf16.msra.mxu0 0
      %3389 = vmatprep.subr.bf16.mxu0 0
      %3390 = vmatpush2.bf16.msra.mxu0 0
      %3391 = vmatprep.mubr.bf16.mxu0 0
      %3392 = vmatmul.mubr.bf16.gmra.mxu0 %v3354
      %v3393 = vpop.f32.mrf.mxu0
      %v3394 = vadd.f32 0.0, %v3393
      %v3395 = vpop.f32.mrf.mxu0
      %v3396 = vpop.f32.mrf.mxu0
      %v3397 = vpop.f32.mrf.mxu0
      %3398 = vdwg.mxu0
      %3399 = vrot.lane.b32.xlu0 %v3179, 112
      %v3400 = vpop.permute.xlu0 %3399
      %3401 = vrot.lane.b32.xlu0 %v3179, 80
      %v3402 = vpop.permute.xlu0 %3401
      %v3404 = vsel %vm930, %v3400, 0
      %v3407 = vsel %vm930, %v3402, 0
      %3409 = vmatprep.subr.bf16.mxu0 0
      %3410 = vmatpush1.bf16.xpose.msra.mxu0 0
      %3411 = vmatprep.subr.bf16.mxu0 0
      %3412 = vmatpush1.bf16.xpose.msra.mxu0 0
      %3413 = vmatprep.subr.bf16.mxu0 0
      %3414 = vmatpush1.bf16.xpose.msra.mxu0 0
      %3415 = vmatprep.subr.bf16.mxu0 0
      %3416 = vmatpush1.bf16.xpose.msra.mxu0 0
      %3417 = vmatprep.subr.bf16.mxu0 0
      %3418 = vmatpush1.bf16.xpose.msra.mxu0 0
      %3419 = vmatprep.subr.bf16.mxu0 0
      %3420 = vmatpush1.bf16.xpose.msra.mxu0 0
      %3421 = vmatprep.subr.bf16.mxu0 0
      %3422 = vmatpush1.bf16.xpose.msra.mxu0 0
      %3423 = vmatprep.subr.bf16.mxu0 0
      %3424 = vmatpush1.bf16.xpose.msra.mxu0 %v3407
      %3425 = vmatprep.subr.bf16.mxu0 0
      %3426 = vmatpush2.bf16.xpose.msra.mxu0 0
      %3427 = vmatprep.subr.bf16.mxu0 0
      %3428 = vmatpush2.bf16.xpose.msra.mxu0 0
      %3429 = vmatprep.subr.bf16.mxu0 0
      %3430 = vmatpush2.bf16.xpose.msra.mxu0 0
      %3431 = vmatprep.subr.bf16.mxu0 0
      %3432 = vmatpush2.bf16.xpose.msra.mxu0 0
      %3433 = vmatprep.subr.bf16.mxu0 0
      %3434 = vmatpush2.bf16.xpose.msra.mxu0 0
      %3435 = vmatprep.subr.bf16.mxu0 0
      %3436 = vmatpush2.bf16.xpose.msra.mxu0 0
      %3437 = vmatprep.subr.bf16.mxu0 0
      %3438 = vmatpush2.bf16.xpose.msra.mxu0 0
      %3439 = vmatprep.subr.bf16.mxu0 0
      %3440 = vmatpush2.bf16.xpose.msra.mxu0 0
      %3441 = vmatprep.mubr.bf16.mxu0 0
      %3442 = vmatmul.mubr.bf16.gmra.mxu0 %v3404
      %v3443 = vpop.f32.mrf.mxu0
      %v3444 = vadd.f32 0.0, %v3443
      %v3445 = vpop.f32.mrf.mxu0
      %v3446 = vpop.f32.mrf.mxu0
      %v3447 = vpop.f32.mrf.mxu0
      %3448 = vdwg.mxu0
      %v3449 = vsel %vm930, %v3444, -inf
      %3450 = vmax.xlane.f32.xlu0 %v3449
      %v3451 = vpop.xlane.xlu0 %3450
      %v3452 = vsub.f32 %v3444, %v3451
      %v3453 = vmul.f32 %v3452, 1.442695
      %v3454 = vpow.pop %v3453
      %v3455 = vsel %vm930, %v3454, 0.0
      %3456 = vadd.xlane.f32.xlu0 %v3455
      %v3457 = vpop.xlane.xlu0 %3456
      %v3458 = vrcp.pop %v3457
      %v3459 = vmul.f32 %v3454, %v3458
      %v3460 = vpack.c.bf16 %v3459, %v3459
      %3461 = vrot.lane.b32.xlu0 %v3179, 48
      %v3462 = vpop.permute.xlu0 %3461
      %v3464 = vsel %vm930, %v3460, 0
      %v3467 = vsel %vm934, %v3462, 0
      %3469 = vmatprep.subr.bf16.mxu0 0
      %3470 = vmatpush1.bf16.msra.mxu0 0
      %3471 = vmatprep.subr.bf16.mxu0 0
      %3472 = vmatpush1.bf16.msra.mxu0 0
      %3473 = vmatprep.subr.bf16.mxu0 0
      %3474 = vmatpush1.bf16.msra.mxu0 0
      %3475 = vmatprep.subr.bf16.mxu0 0
      %3476 = vmatpush1.bf16.msra.mxu0 0
      %3477 = vmatprep.subr.bf16.mxu0 0
      %3478 = vmatpush1.bf16.msra.mxu0 0
      %3479 = vmatprep.subr.bf16.mxu0 0
      %3480 = vmatpush1.bf16.msra.mxu0 0
      %3481 = vmatprep.subr.bf16.mxu0 0
      %3482 = vmatpush1.bf16.msra.mxu0 0
      %3483 = vmatprep.subr.bf16.mxu0 0
      %3484 = vmatpush1.bf16.msra.mxu0 %v3467
      %3485 = vmatprep.subr.bf16.mxu0 0
      %3486 = vmatpush2.bf16.msra.mxu0 0
      %3487 = vmatprep.subr.bf16.mxu0 0
      %3488 = vmatpush2.bf16.msra.mxu0 0
      %3489 = vmatprep.subr.bf16.mxu0 0
      %3490 = vmatpush2.bf16.msra.mxu0 0
      %3491 = vmatprep.subr.bf16.mxu0 0
      %3492 = vmatpush2.bf16.msra.mxu0 0
      %3493 = vmatprep.subr.bf16.mxu0 0
      %3494 = vmatpush2.bf16.msra.mxu0 0
      %3495 = vmatprep.subr.bf16.mxu0 0
      %3496 = vmatpush2.bf16.msra.mxu0 0
      %3497 = vmatprep.subr.bf16.mxu0 0
      %3498 = vmatpush2.bf16.msra.mxu0 0
      %3499 = vmatprep.subr.bf16.mxu0 0
      %3500 = vmatpush2.bf16.msra.mxu0 0
      %3501 = vmatprep.mubr.bf16.mxu0 0
      %3502 = vmatmul.mubr.bf16.gmra.mxu0 %v3464
      %v3503 = vpop.f32.mrf.mxu0
      %v3504 = vadd.f32 0.0, %v3503
      %v3505 = vpop.f32.mrf.mxu0
      %v3506 = vpop.f32.mrf.mxu0
      %v3507 = vpop.f32.mrf.mxu0
      %3508 = vdwg.mxu0
      %3509 = vrot.lane.b32.xlu0 %v3179, 104
      %v3510 = vpop.permute.xlu0 %3509
      %3511 = vrot.lane.b32.xlu0 %v3179, 72
      %v3512 = vpop.permute.xlu0 %3511
      %v3514 = vsel %vm930, %v3510, 0
      %v3517 = vsel %vm930, %v3512, 0
      %3519 = vmatprep.subr.bf16.mxu0 0
      %3520 = vmatpush1.bf16.xpose.msra.mxu0 0
      %3521 = vmatprep.subr.bf16.mxu0 0
      %3522 = vmatpush1.bf16.xpose.msra.mxu0 0
      %3523 = vmatprep.subr.bf16.mxu0 0
      %3524 = vmatpush1.bf16.xpose.msra.mxu0 0
      %3525 = vmatprep.subr.bf16.mxu0 0
      %3526 = vmatpush1.bf16.xpose.msra.mxu0 0
      %3527 = vmatprep.subr.bf16.mxu0 0
      %3528 = vmatpush1.bf16.xpose.msra.mxu0 0
      %3529 = vmatprep.subr.bf16.mxu0 0
      %3530 = vmatpush1.bf16.xpose.msra.mxu0 0
      %3531 = vmatprep.subr.bf16.mxu0 0
      %3532 = vmatpush1.bf16.xpose.msra.mxu0 0
      %3533 = vmatprep.subr.bf16.mxu0 0
      %3534 = vmatpush1.bf16.xpose.msra.mxu0 %v3517
      %3535 = vmatprep.subr.bf16.mxu0 0
      %3536 = vmatpush2.bf16.xpose.msra.mxu0 0
      %3537 = vmatprep.subr.bf16.mxu0 0
      %3538 = vmatpush2.bf16.xpose.msra.mxu0 0
      %3539 = vmatprep.subr.bf16.mxu0 0
      %3540 = vmatpush2.bf16.xpose.msra.mxu0 0
      %3541 = vmatprep.subr.bf16.mxu0 0
      %3542 = vmatpush2.bf16.xpose.msra.mxu0 0
      %3543 = vmatprep.subr.bf16.mxu0 0
      %3544 = vmatpush2.bf16.xpose.msra.mxu0 0
      %3545 = vmatprep.subr.bf16.mxu0 0
      %3546 = vmatpush2.bf16.xpose.msra.mxu0 0
      %3547 = vmatprep.subr.bf16.mxu0 0
      %3548 = vmatpush2.bf16.xpose.msra.mxu0 0
      %3549 = vmatprep.subr.bf16.mxu0 0
      %3550 = vmatpush2.bf16.xpose.msra.mxu0 0
      %3551 = vmatprep.mubr.bf16.mxu0 0
      %3552 = vmatmul.mubr.bf16.gmra.mxu0 %v3514
      %v3553 = vpop.f32.mrf.mxu0
      %v3554 = vadd.f32 0.0, %v3553
      %v3555 = vpop.f32.mrf.mxu0
      %v3556 = vpop.f32.mrf.mxu0
      %v3557 = vpop.f32.mrf.mxu0
      %3558 = vdwg.mxu0
      %v3559 = vsel %vm930, %v3554, -inf
      %3560 = vmax.xlane.f32.xlu0 %v3559
      %v3561 = vpop.xlane.xlu0 %3560
      %v3562 = vsub.f32 %v3554, %v3561
      %v3563 = vmul.f32 %v3562, 1.442695
      %v3564 = vpow.pop %v3563
      %v3565 = vsel %vm930, %v3564, 0.0
      %3566 = vadd.xlane.f32.xlu0 %v3565
      %v3567 = vpop.xlane.xlu0 %3566
      %v3568 = vrcp.pop %v3567
      %v3569 = vmul.f32 %v3564, %v3568
      %v3570 = vpack.c.bf16 %v3569, %v3569
      %3571 = vrot.lane.b32.xlu0 %v3179, 40
      %v3572 = vpop.permute.xlu0 %3571
      %v3574 = vsel %vm930, %v3570, 0
      %v3577 = vsel %vm934, %v3572, 0
      %3579 = vmatprep.subr.bf16.mxu0 0
      %3580 = vmatpush1.bf16.msra.mxu0 0
      %3581 = vmatprep.subr.bf16.mxu0 0
      %3582 = vmatpush1.bf16.msra.mxu0 0
      %3583 = vmatprep.subr.bf16.mxu0 0
      %3584 = vmatpush1.bf16.msra.mxu0 0
      %3585 = vmatprep.subr.bf16.mxu0 0
      %3586 = vmatpush1.bf16.msra.mxu0 0
      %3587 = vmatprep.subr.bf16.mxu0 0
      %3588 = vmatpush1.bf16.msra.mxu0 0
      %3589 = vmatprep.subr.bf16.mxu0 0
      %3590 = vmatpush1.bf16.msra.mxu0 0
      %3591 = vmatprep.subr.bf16.mxu0 0
      %3592 = vmatpush1.bf16.msra.mxu0 0
      %3593 = vmatprep.subr.bf16.mxu0 0
      %3594 = vmatpush1.bf16.msra.mxu0 %v3577
      %3595 = vmatprep.subr.bf16.mxu0 0
      %3596 = vmatpush2.bf16.msra.mxu0 0
      %3597 = vmatprep.subr.bf16.mxu0 0
      %3598 = vmatpush2.bf16.msra.mxu0 0
      %3599 = vmatprep.subr.bf16.mxu0 0
      %3600 = vmatpush2.bf16.msra.mxu0 0
      %3601 = vmatprep.subr.bf16.mxu0 0
      %3602 = vmatpush2.bf16.msra.mxu0 0
      %3603 = vmatprep.subr.bf16.mxu0 0
      %3604 = vmatpush2.bf16.msra.mxu0 0
      %3605 = vmatprep.subr.bf16.mxu0 0
      %3606 = vmatpush2.bf16.msra.mxu0 0
      %3607 = vmatprep.subr.bf16.mxu0 0
      %3608 = vmatpush2.bf16.msra.mxu0 0
      %3609 = vmatprep.subr.bf16.mxu0 0
      %3610 = vmatpush2.bf16.msra.mxu0 0
      %3611 = vmatprep.mubr.bf16.mxu0 0
      %3612 = vmatmul.mubr.bf16.gmra.mxu0 %v3574
      %v3613 = vpop.f32.mrf.mxu0
      %v3614 = vadd.f32 0.0, %v3613
      %v3615 = vpop.f32.mrf.mxu0
      %v3616 = vpop.f32.mrf.mxu0
      %v3617 = vpop.f32.mrf.mxu0
      %3618 = vdwg.mxu0
      %3620 = vrot.lane.b32.xlu0 %v3394, 8
      %v3621 = vpop.permute.xlu0 %3620
      %3624 = vrot.lane.b32.xlu0 %v3504, 16
      %v3625 = vpop.permute.xlu0 %3624
      %3628 = vrot.lane.b32.xlu0 %v3614, 24
      %v3629 = vpop.permute.xlu0 %3628
      %v3631 = vsel %vm930, %v3284, %v3621
      %v3632 = vsel %vm1392, %v3631, %v3625
      %v3633 = vsel %vm1394, %v3632, %v3629
      %v3634 = vpack.c.bf16 %v3633, %v3633
      %v3635 = vlaneseq
      %v3636 = vshrl.u32 %v3635, 7
      %v3637 = vsub.s32 2, %v3636
      %v3638 = vrot.slane %v2297, %v3637
      %v3643 = vunpack.c.l.b16 %v3175
      %v3644 = vunpack.c.l.b16 %v3176
      %v3645 = vunpack.c.l.b16 %v3177
      %v3646 = vunpack.c.l.b16 %v3178
      %v3647 = vpack.c.b16 %v3644, %v3643
      %v3648 = vpack.c.b16 %v3646, %v3645
      %v3652 = vsel %vm672, %v3634, 0
      %3654 = vmatprep.subr.bf16.mxu0 0
      %3655 = vmatpush1.bf16.msra.mxu0 0
      %3656 = vmatprep.subr.bf16.mxu0 0
      %3657 = vmatpush1.bf16.msra.mxu0 0
      %3658 = vmatprep.subr.bf16.mxu0 0
      %3659 = vmatpush1.bf16.msra.mxu0 0
      %3660 = vmatprep.subr.bf16.mxu0 0
      %3661 = vmatpush1.bf16.msra.mxu0 0
      %3662 = vmatprep.subr.bf16.mxu0 0
      %3663 = vmatpush1.bf16.msra.mxu0 0
      %3664 = vmatprep.subr.bf16.mxu0 0
      %3665 = vmatpush1.bf16.msra.mxu0 0
      %3666 = vmatprep.subr.bf16.mxu0 0
      %3667 = vmatpush1.bf16.msra.mxu0 %v3648
      %3668 = vmatprep.subr.bf16.mxu0 0
      %3669 = vmatpush1.bf16.msra.mxu0 %v3647
      %3670 = vmatprep.subr.bf16.mxu0 0
      %3671 = vmatpush2.bf16.msra.mxu0 0
      %3672 = vmatprep.subr.bf16.mxu0 0
      %3673 = vmatpush2.bf16.msra.mxu0 0
      %3674 = vmatprep.subr.bf16.mxu0 0
      %3675 = vmatpush2.bf16.msra.mxu0 0
      %3676 = vmatprep.subr.bf16.mxu0 0
      %3677 = vmatpush2.bf16.msra.mxu0 0
      %3678 = vmatprep.subr.bf16.mxu0 0
      %3679 = vmatpush2.bf16.msra.mxu0 0
      %3680 = vmatprep.subr.bf16.mxu0 0
      %3681 = vmatpush2.bf16.msra.mxu0 0
      %3682 = vmatprep.subr.bf16.mxu0 0
      %3683 = vmatpush2.bf16.msra.mxu0 0
      %3684 = vmatprep.subr.bf16.mxu0 0
      %3685 = vmatpush2.bf16.msra.mxu0 0
      %3686 = vmatprep.mubr.bf16.mxu0 0
      %3687 = vmatmul.mubr.bf16.gmra.mxu0 %v3652
      %v3688 = vpop.f32.mrf.mxu0
      %v3689 = vadd.f32 %v3638, %v3688
      %v3690 = vpop.f32.mrf.mxu0
      %v3691 = vpop.f32.mrf.mxu0
      %v3692 = vpop.f32.mrf.mxu0
      %3693 = vdwg.mxu0
      %v3694 = vadd.f32 %v3081, %v3689
      %v3695 = vsel %vm672, %v3694, 0.0
      %3696 = vadd.xlane.f32.xlu0 %v3695
      %v3697 = vpop.xlane.xlu0 %3696
      %v3698 = vmul.f32 %v3697, %v549
      %v3699 = vsub.f32 %v3694, %v3698
      %v3700 = vmul.f32 %v3699, %v3699
      %v3701 = vsel %vm672, %v3700, 0.0
      %3702 = vadd.xlane.f32.xlu0 %v3701
      %v3703 = vpop.xlane.xlu0 %3702
      %v3704 = vmul.f32 %v3703, %v549
      %v3705 = vadd.f32 %v3704, 1e-05
      %v3706 = vrsqrt.pop %v3705
      %v3707 = vmul.f32 %v3699, %v3706
      %v3708 = vlaneseq
      %v3709 = vshrl.u32 %v3708, 7
      %v3710 = vsub.s32 4, %v3709
      %v3711 = vrot.slane %v2295, %v3710
      %v3712 = vmul.f32 %v3707, %v3711
      %v3713 = vlaneseq
      %v3714 = vshrl.u32 %v3713, 7
      %v3715 = vsub.s32 5, %v3714
      %v3716 = vrot.slane %v2295, %v3715
      %v3717 = vadd.f32 %v3712, %v3716
      %v3718 = vpack.c.bf16 %v3717, %v3717
      %s3719 = scalar_lea.vmem %s10, 16
      %v3720 = vld [vmem:[%s3719] sm:$0xf]
      %v3721 = vld [vmem:[%s3719 + $0x4] sm:$0xf]
      %v3722 = vld [vmem:[%s3719 + $0x8] sm:$0xf]
      %v3723 = vld [vmem:[%s3719 + $0xc] sm:$0xf]
      %s3724 = scalar_lea.vmem %s15, 1
      %v3725 = vld [vmem:[%s3724] sm:$0x1]
      %v3727 = vlaneseq
      %v3728 = vshrl.u32 %v3727, 7
      %v3729 = vsub.s32 0, %v3728
      %v3730 = vrot.slane %v3725, %v3729
      %v3736 = vunpack.c.l.b16 %v3720
      %v3737 = vunpack.c.l.b16 %v3721
      %v3738 = vunpack.c.l.b16 %v3722
      %v3739 = vunpack.c.l.b16 %v3723
      %v3740 = vpack.c.b16 %v3737, %v3736
      %v3741 = vpack.c.b16 %v3739, %v3738
      %v3745 = vsel %vm672, %v3718, 0
      %3747 = vmatprep.subr.bf16.mxu0 0
      %3748 = vmatpush1.bf16.msra.mxu0 0
      %3749 = vmatprep.subr.bf16.mxu0 0
      %3750 = vmatpush1.bf16.msra.mxu0 0
      %3751 = vmatprep.subr.bf16.mxu0 0
      %3752 = vmatpush1.bf16.msra.mxu0 0
      %3753 = vmatprep.subr.bf16.mxu0 0
      %3754 = vmatpush1.bf16.msra.mxu0 0
      %3755 = vmatprep.subr.bf16.mxu0 0
      %3756 = vmatpush1.bf16.msra.mxu0 0
      %3757 = vmatprep.subr.bf16.mxu0 0
      %3758 = vmatpush1.bf16.msra.mxu0 0
      %3759 = vmatprep.subr.bf16.mxu0 0
      %3760 = vmatpush1.bf16.msra.mxu0 %v3741
      %3761 = vmatprep.subr.bf16.mxu0 0
      %3762 = vmatpush1.bf16.msra.mxu0 %v3740
      %3763 = vmatprep.subr.bf16.mxu0 0
      %3764 = vmatpush2.bf16.msra.mxu0 0
      %3765 = vmatprep.subr.bf16.mxu0 0
      %3766 = vmatpush2.bf16.msra.mxu0 0
      %3767 = vmatprep.subr.bf16.mxu0 0
      %3768 = vmatpush2.bf16.msra.mxu0 0
      %3769 = vmatprep.subr.bf16.mxu0 0
      %3770 = vmatpush2.bf16.msra.mxu0 0
      %3771 = vmatprep.subr.bf16.mxu0 0
      %3772 = vmatpush2.bf16.msra.mxu0 0
      %3773 = vmatprep.subr.bf16.mxu0 0
      %3774 = vmatpush2.bf16.msra.mxu0 0
      %3775 = vmatprep.subr.bf16.mxu0 0
      %3776 = vmatpush2.bf16.msra.mxu0 0
      %3777 = vmatprep.subr.bf16.mxu0 0
      %3778 = vmatpush2.bf16.msra.mxu0 0
      %3779 = vmatprep.mubr.bf16.mxu0 0
      %3780 = vmatmul.mubr.bf16.gmra.mxu0 %v3745
      %v3781 = vpop.f32.mrf.mxu0
      %v3782 = vadd.f32 %v3730, %v3781
      %v3783 = vpop.f32.mrf.mxu0
      %v3784 = vpop.f32.mrf.mxu0
      %v3785 = vpop.f32.mrf.mxu0
      %3786 = vdwg.mxu0
      %v3787 = vmul.f32 %v3782, 0.5
      %v3788 = vmul.f32 %v3782, 0.70710677
      %v3789 = vand.u32 2147483647, %v3788
      %v3790 = vmul.f32 %v3789, 0.3275911
      %v3791 = vadd.f32 %v3790, 1.0
      %v3792 = vrcp.pop %v3791
      %v3793 = vmul.f32 %v3792, 1.0614054
      %v3794 = vadd.f32 %v3793, -1.4531521
      %v3795 = vmul.f32 %v3794, %v3792
      %v3796 = vadd.f32 %v3795, 1.4214138
      %v3797 = vmul.f32 %v3796, %v3792
      %v3798 = vadd.f32 %v3797, -0.28449672
      %v3799 = vmul.f32 %v3798, %v3792
      %v3800 = vadd.f32 %v3799, 0.2548296
      %v3801 = vmul.f32 %v3800, %v3792
      %v3802 = vsub.f32 0.0, %v3789
      %v3803 = vmul.f32 %v3802, %v3789
      %v3804 = vmul.f32 %v3803, 1.442695
      %v3805 = vpow.pop %v3804
      %v3806 = vmul.f32 %v3801, %v3805
      %v3807 = vsub.f32 1.0, %v3806
      %vm3808 = vcmp.ge.f32.partialorder %v3788, 0.0
      %v3809 = vsub.f32 0.0, %v3807
      %v3810 = vsel %vm3808, %v3807, %v3809
      %v3811 = vadd.f32 %v3810, 1.0
      %v3812 = vmul.f32 %v3787, %v3811
      %v3813 = vpack.c.bf16 %v3812, %v3812
      %s3814 = scalar_lea.vmem %s11, 64
      %v3815 = vld [vmem:[%s3814] sm:$0xf]
      %v3816 = vld [vmem:[%s3814 + $0x4] sm:$0xf]
      %v3817 = vld [vmem:[%s3814 + $0x8] sm:$0xf]
      %v3818 = vld [vmem:[%s3814 + $0xc] sm:$0xf]
      %v3819 = vld [vmem:[%s3814 + $0x10] sm:$0xf]
      %v3820 = vld [vmem:[%s3814 + $0x14] sm:$0xf]
      %v3821 = vld [vmem:[%s3814 + $0x18] sm:$0xf]
      %v3822 = vld [vmem:[%s3814 + $0x1c] sm:$0xf]
      %v3823 = vld [vmem:[%s3814 + $0x20] sm:$0xf]
      %v3824 = vld [vmem:[%s3814 + $0x24] sm:$0xf]
      %v3825 = vld [vmem:[%s3814 + $0x28] sm:$0xf]
      %v3826 = vld [vmem:[%s3814 + $0x2c] sm:$0xf]
      %v3827 = vld [vmem:[%s3814 + $0x30] sm:$0xf]
      %v3828 = vld [vmem:[%s3814 + $0x34] sm:$0xf]
      %v3829 = vld [vmem:[%s3814 + $0x38] sm:$0xf]
      %v3830 = vld [vmem:[%s3814 + $0x3c] sm:$0xf]
      %v3847 = vunpack.c.l.b16 %v3815
      %v3848 = vunpack.c.l.b16 %v3816
      %v3849 = vunpack.c.l.b16 %v3817
      %v3850 = vunpack.c.l.b16 %v3818
      %v3851 = vunpack.c.l.b16 %v3819
      %v3852 = vunpack.c.l.b16 %v3820
      %v3853 = vunpack.c.l.b16 %v3821
      %v3854 = vunpack.c.l.b16 %v3822
      %v3855 = vunpack.c.l.b16 %v3823
      %v3856 = vunpack.c.l.b16 %v3824
      %v3857 = vunpack.c.l.b16 %v3825
      %v3858 = vunpack.c.l.b16 %v3826
      %v3859 = vunpack.c.l.b16 %v3827
      %v3860 = vunpack.c.l.b16 %v3828
      %v3861 = vunpack.c.l.b16 %v3829
      %v3862 = vunpack.c.l.b16 %v3830
      %v3863 = vpack.c.b16 %v3848, %v3847
      %v3864 = vpack.c.b16 %v3850, %v3849
      %v3865 = vpack.c.b16 %v3852, %v3851
      %v3866 = vpack.c.b16 %v3854, %v3853
      %v3867 = vpack.c.b16 %v3856, %v3855
      %v3868 = vpack.c.b16 %v3858, %v3857
      %v3869 = vpack.c.b16 %v3860, %v3859
      %v3870 = vpack.c.b16 %v3862, %v3861
      %3879 = vmatprep.subr.bf16.mxu0 0
      %3880 = vmatpush1.bf16.msra.mxu0 %v3870
      %3881 = vmatprep.subr.bf16.mxu0 0
      %3882 = vmatpush1.bf16.msra.mxu0 %v3869
      %3883 = vmatprep.subr.bf16.mxu0 0
      %3884 = vmatpush1.bf16.msra.mxu0 %v3868
      %3885 = vmatprep.subr.bf16.mxu0 0
      %3886 = vmatpush1.bf16.msra.mxu0 %v3867
      %3887 = vmatprep.subr.bf16.mxu0 0
      %3888 = vmatpush1.bf16.msra.mxu0 %v3866
      %3889 = vmatprep.subr.bf16.mxu0 0
      %3890 = vmatpush1.bf16.msra.mxu0 %v3865
      %3891 = vmatprep.subr.bf16.mxu0 0
      %3892 = vmatpush1.bf16.msra.mxu0 %v3864
      %3893 = vmatprep.subr.bf16.mxu0 0
      %3894 = vmatpush1.bf16.msra.mxu0 %v3863
      %3895 = vmatprep.subr.bf16.mxu0 0
      %3896 = vmatpush2.bf16.msra.mxu0 0
      %3897 = vmatprep.subr.bf16.mxu0 0
      %3898 = vmatpush2.bf16.msra.mxu0 0
      %3899 = vmatprep.subr.bf16.mxu0 0
      %3900 = vmatpush2.bf16.msra.mxu0 0
      %3901 = vmatprep.subr.bf16.mxu0 0
      %3902 = vmatpush2.bf16.msra.mxu0 0
      %3903 = vmatprep.subr.bf16.mxu0 0
      %3904 = vmatpush2.bf16.msra.mxu0 0
      %3905 = vmatprep.subr.bf16.mxu0 0
      %3906 = vmatpush2.bf16.msra.mxu0 0
      %3907 = vmatprep.subr.bf16.mxu0 0
      %3908 = vmatpush2.bf16.msra.mxu0 0
      %3909 = vmatprep.subr.bf16.mxu0 0
      %3910 = vmatpush2.bf16.msra.mxu0 0
      %3911 = vmatprep.mubr.bf16.mxu0 0
      %3912 = vmatmul.mubr.bf16.gmra.mxu0 %v3813
      %v3913 = vpop.f32.mrf.mxu0
      %v3914 = vadd.f32 0.0, %v3913
      %v3915 = vpop.f32.mrf.mxu0
      %v3916 = vpop.f32.mrf.mxu0
      %v3917 = vpop.f32.mrf.mxu0
      %3918 = vdwg.mxu0
      %v3919 = vadd.f32 %v3694, %v3914
      %v3920 = vlaneseq
      %v3921 = vshrl.u32 %v3920, 7
      %v3922 = vsub.s32 3, %v3921
      %v3923 = vrot.slane %v2297, %v3922
      %v3924 = vadd.f32 %v3919, %v3923
      %v3925 = vld [vmem:[%s3] sm:$0x1]
      %v3926 = vld [vmem:[%s3 + $0x1] sm:$0x1]
      %v3927 = vsel %vm672, %v3924, 0.0
      %3928 = vadd.xlane.f32.xlu0 %v3927
      %v3929 = vpop.xlane.xlu0 %3928
      %v3930 = vmul.f32 %v3929, %v549
      %v3931 = vsub.f32 %v3924, %v3930
      %v3932 = vmul.f32 %v3931, %v3931
      %v3933 = vsel %vm672, %v3932, 0.0
      %3934 = vadd.xlane.f32.xlu0 %v3933
      %v3935 = vpop.xlane.xlu0 %3934
      %v3936 = vmul.f32 %v3935, %v549
      %v3937 = vadd.f32 %v3936, 1e-05
      %v3938 = vrsqrt.pop %v3937
      %v3939 = vmul.f32 %v3931, %v3938
      %v3940 = vlaneseq
      %v3941 = vshrl.u32 %v3940, 7
      %v3942 = vsub.s32 0, %v3941
      %v3943 = vrot.slane %v3925, %v3942
      %v3944 = vmul.f32 %v3939, %v3943
      %v3945 = vlaneseq
      %v3946 = vshrl.u32 %v3945, 7
      %v3947 = vsub.s32 0, %v3946
      %v3948 = vrot.slane %v3926, %v3947
      %v3949 = vadd.f32 %v3944, %v3948
      %v3950 = vpack.c.bf16 %v3949, %v3949
      %v3952 = vsel %vm672, %v3950, 0
      %3954 = vmatprep.subr.bf16.mxu0 0
      %3955 = vmatpush1.bf16.msra.mxu0 0
      %3956 = vmatprep.subr.bf16.mxu0 0
      %3957 = vmatpush1.bf16.msra.mxu0 0
      %3958 = vmatprep.subr.bf16.mxu0 0
      %3959 = vmatpush1.bf16.msra.mxu0 0
      %3960 = vmatprep.subr.bf16.mxu0 0
      %3961 = vmatpush1.bf16.msra.mxu0 0
      %3962 = vmatprep.subr.bf16.mxu0 0
      %3963 = vmatpush1.bf16.msra.mxu0 0
      %3964 = vmatprep.subr.bf16.mxu0 0
      %3965 = vmatpush1.bf16.msra.mxu0 0
      %3966 = vmatprep.subr.bf16.mxu0 %v668
      %3967 = vmatpush1.bf16.msra.mxu0 %v667
      %3968 = vmatprep.subr.bf16.mxu0 %v666
      %3969 = vmatpush1.bf16.msra.mxu0 %v665
      %3970 = vmatprep.subr.bf16.mxu0 0
      %3971 = vmatpush2.bf16.msra.mxu0 0
      %3972 = vmatprep.subr.bf16.mxu0 0
      %3973 = vmatpush2.bf16.msra.mxu0 0
      %3974 = vmatprep.subr.bf16.mxu0 0
      %3975 = vmatpush2.bf16.msra.mxu0 0
      %3976 = vmatprep.subr.bf16.mxu0 0
      %3977 = vmatpush2.bf16.msra.mxu0 0
      %3978 = vmatprep.subr.bf16.mxu0 0
      %3979 = vmatpush2.bf16.msra.mxu0 0
      %3980 = vmatprep.subr.bf16.mxu0 0
      %3981 = vmatpush2.bf16.msra.mxu0 0
      %3982 = vmatprep.subr.bf16.mxu0 0
      %3983 = vmatpush2.bf16.msra.mxu0 0
      %3984 = vmatprep.subr.bf16.mxu0 0
      %3985 = vmatpush2.bf16.msra.mxu0 0
      %3986 = vmatprep.mubr.bf16.mxu0 0
      %3987 = vmatmul.mubr.bf16.gmra.mxu0 %v3952
      %v3988 = vpop.f32.mrf.mxu0
      %v3989 = vadd.f32 0.0, %v3988
      %v3990 = vpop.f32.mrf.mxu0
      %v3991 = vadd.f32 0.0, %v3990
      %v3992 = vpop.f32.mrf.mxu0
      %v3993 = vpop.f32.mrf.mxu0
      %3994 = vdwg.mxu0
      %3995 = vst [vmem:[%s521] sm:$0xff] %v3989
      %3996 = vst [vmem:[%s521 + $0x8] sm:$0xff] %v3991
      %p3997 = scmp.lt.s32.totalorder %s27, 1
      %s3998 = scalar_select %p3997, %s27, 1
      %s3999 = smul.addr %s3998, 2
      %s4000 = smul.addr %s3999, 8
      %s4001 = scalar_lea.vmem %s16, %s4000
      // Predicated region
      $region85: #{transformer_learner_forward.1} parent=83 // pred_check
        %p4002 = pneg %p386
      $region86: #{transformer_learner_forward.1} parent=83 // pred_check_branch
        %4004 = sbr.rel (%p4002) target = $region88
      $region87: #{transformer_learner_forward.1} parent=83 // pred_region
        _
      $region88: #{transformer_learner_forward.1} parent=83 // pred_fallthru
        _
    $region84: #{transformer_learner_forward.1} parent=5 // pred_fallthru
      _
    %p4005 = scmp.le.s32.totalorder 2, %s22
    // Predicated region
    $region89: #{transformer_learner_forward.1} parent=5 // pred_check
      %p4006 = pneg %p4005
    $region90: #{transformer_learner_forward.1} parent=5 // pred_check_branch
      %4008 = sbr.rel (%p4006) target = $region92
    $region91: #{transformer_learner_forward.1} parent=5 // pred_region
      %s4009 = ssub.s32 %s22, 2
      // Predicated region
      $region93: #{transformer_learner_forward.1} parent=91 // pred_check
        %p4010 = pneg %p392
      $region94: #{transformer_learner_forward.1} parent=91 // pred_check_branch
        %4012 = sbr.rel (%p4010) target = $region96
      $region95: #{transformer_learner_forward.1} parent=91 // pred_region
        %p4013 = scmp.lt.s32.totalorder %s28, 1
        %s4014 = scalar_select %p4013, %s28, 1
        %s4015 = smul.addr %s4014, 2
        %s4016 = smul.addr %s4015, 8
        %s4017 = scalar_lea.vmem %s16, %s4016
      $region96: #{transformer_learner_forward.1} parent=91 // pred_fallthru
        _
    $region92: #{transformer_learner_forward.1} parent=5 // pred_fallthru
      _
  $region6: #{transformer_learner_forward.1} parent=0 // loop_footer
    %s26 = sadd.s32 1, %s22
  $region7: #{transformer_learner_forward.1} parent=0 // loop_footer_branch
    %21 = sbr.rel target = $region3
  $region8: #{transformer_learner_forward.1} parent=0 // loop_exit
    _

// kernel: transformer_learner_forward.1
$region0: #{transformer_learner_forward.1}
  #allocation0 [shape = 'u32[]', space=smem, size = 0x4, offset = 0x4, fixed_abs, tag = 'smem constant byte address 0x4 - core index']
  #allocation1 [shape = 'u32[144,128]{1,0:T(1,128)}', space=vmem, size = 0x12000, scoped, tag = 'internal scratch']
  %s0 = inlined_call_operand.vmem [shape: f32[2,32,256], index: 0, kind: input, shape index: {}]
  %s1 = inlined_call_operand.vmem [shape: f32[8,32], index: 1, kind: input, shape index: {}]
  %s2 = inlined_call_operand.vmem [shape: f32[2,32,1], index: 2, kind: input, shape index: {}]
  %s3 = inlined_call_operand.vmem [shape: f32[2,32], index: 3, kind: input, shape index: {}]
  %s4 = inlined_call_operand.vmem [shape: f32[2,6,32], index: 4, kind: input, shape index: {}]
  %s5 = inlined_call_operand.vmem [shape: bf16[2,32,32], index: 5, kind: input, shape index: {}]
  %s6 = inlined_call_operand.vmem [shape: bf16[2,64,32], index: 6, kind: input, shape index: {}]
  %s7 = inlined_call_operand.vmem [shape: bf16[2,32,32], index: 7, kind: input, shape index: {}]
  %s8 = inlined_call_operand.vmem [shape: bf16[2,32,96], index: 8, kind: input, shape index: {}]
  %s9 = inlined_call_operand.vmem [shape: bf16[2,32,32], index: 9, kind: input, shape index: {}]
  %s10 = inlined_call_operand.vmem [shape: bf16[2,32,128], index: 10, kind: input, shape index: {}]
  %s11 = inlined_call_operand.vmem [shape: bf16[2,128,32], index: 11, kind: input, shape index: {}]
  %s12 = inlined_call_operand.vmem [shape: f32[2,4,32], index: 12, kind: input, shape index: {}]
  %s13 = inlined_call_operand.vmem [shape: f32[2,64,1], index: 13, kind: input, shape index: {}]
  %s14 = inlined_call_operand.vmem [shape: f32[2,1,96], index: 14, kind: input, shape index: {}]
  %s15 = inlined_call_operand.vmem [shape: f32[2,1,128], index: 15, kind: input, shape index: {}]
  %s16 = inlined_call_operand.vmem [shape: f32[2,8,256], index: 16, kind: output, shape index: {}]
  %s17 = sld [smem:[#allocation0]]
  $region97: #{transformer_learner_forward.1} parent=0
    _
  %s19 = ssub.s32 1, %s17
  %s20 = scalar_select 0, %s19, %s17
  loop: start=0, step=1, limit=4
  $region2: #{transformer_learner_forward.1} parent=0 // loop_pre_header
    _
  $region3: #{transformer_learner_forward.1} parent=0 // loop_header
    %s22 = sphi 0, %s26
    %p23 = scmp.ge.s32.totalorder %s22, 4
    %s32 = sphi 0, %s34
    %s35 = sphi 0, %s32
    %s36 = sphi 0, %s35
    %s52 = sphi 0, %s36
    %s56 = sphi 0, %s56
    %s58 = sphi 0, %s56
    %s59 = sphi 0, %s58
    %s73 = sphi 0, %s59
    %s77 = sphi 0, %s77
    %s79 = sphi 0, %s77
    %s80 = sphi 0, %s79
    %s94 = sphi 0, %s80
    %s98 = sphi 0, %s98
    %s100 = sphi 0, %s98
    %s101 = sphi 0, %s100
    %s115 = sphi 0, %s101
    %s119 = sphi 0, %s119
    %s121 = sphi 0, %s119
    %s122 = sphi 0, %s121
    %s136 = sphi 0, %s122
    %s140 = sphi 0, %s140
    %s142 = sphi 0, %s140
    %s143 = sphi 0, %s142
    %s157 = sphi 0, %s143
    %s161 = sphi 0, %s161
    %s163 = sphi 0, %s161
    %s164 = sphi 0, %s163
    %s178 = sphi 0, %s164
    %s182 = sphi 0, %s182
    %s184 = sphi 0, %s182
    %s185 = sphi 0, %s184
    %s199 = sphi 0, %s185
    %s203 = sphi 0, %s203
    %s205 = sphi 0, %s203
    %s206 = sphi 0, %s205
    %s220 = sphi 0, %s206
    %s224 = sphi 0, %s224
    %s226 = sphi 0, %s224
    %s227 = sphi 0, %s226
    %s241 = sphi 0, %s227
    %s245 = sphi 0, %s245
    %s247 = sphi 0, %s245
    %s248 = sphi 0, %s247
    %s262 = sphi 0, %s248
    %s266 = sphi 0, %s266
    %s268 = sphi 0, %s266
    %s269 = sphi 0, %s268
    %s283 = sphi 0, %s269
    %s287 = sphi 0, %s287
    %s289 = sphi 0, %s287
    %s290 = sphi 0, %s289
    %s304 = sphi 0, %s290
    %s308 = sphi 0, %s308
    %s310 = sphi 0, %s308
    %s311 = sphi 0, %s310
    %s325 = sphi 0, %s311
    %s329 = sphi 0, %s329
    %s331 = sphi 0, %s329
    %s332 = sphi 0, %s331
    %s346 = sphi 0, %s332
    %s350 = sphi 0, %s350
    %s352 = sphi 0, %s350
    %s353 = sphi 0, %s352
    %s367 = sphi 0, %s353
    %s373 = sphi 0, %s375
    %s376 = sphi 0, %s373
    %s377 = sphi 0, %s376
    %s393 = sphi 0, %s377
  $region4: #{transformer_learner_forward.1} parent=0 // loop_header_branch
    %25 = sbr.rel (%p23) target = $region8
  $region5: #{transformer_learner_forward.1} parent=0 // loop_body
    %s27 = ssub.s32 %s22, 1
    %s28 = ssub.s32 %s22, 2
    %s29 = sadd.s32 %s22, 1
    %s30 = ssub.s32 %s22, %s29
    %p31 = scmp.eq.s32.totalorder %s30, 0
    %s33 = sadd.s32 %s32, 1
    %s34 = scalar_select %p31, %s32, %s33
    %p37 = pneg %p31
    %p38 = scmp.eq.s32.totalorder %s22, 1
    %p39 = por %p37, %p38
    %p40 = scmp.ne.s32.totalorder %s32, %s35
    %p41 = scmp.eq.s32.totalorder %s22, 0
    %p42 = por %p40, %p41
    %p43 = scmp.ne.s32.totalorder %s32, %s35
    %p44 = scmp.eq.s32.totalorder %s27, 1
    %p45 = por %p43, %p44
    %p46 = scmp.ne.s32.totalorder %s35, %s36
    %p47 = scmp.eq.s32.totalorder %s27, 0
    %p48 = por %p46, %p47
    %p49 = scmp.ne.s32.totalorder %s35, %s36
    %p50 = scmp.eq.s32.totalorder %s28, 1
    %p51 = por %p49, %p50
    %p53 = scmp.ne.s32.totalorder %s36, %s52
    %p54 = scmp.eq.s32.totalorder %s28, 0
    %p55 = por %p53, %p54
    %s57 = sadd.s32 %s56, 1
    %p60 = scmp.eq.s32.totalorder %s22, 1
    %p61 = scmp.ne.s32.totalorder %s56, %s58
    %p62 = scmp.eq.s32.totalorder %s22, 0
    %p63 = por %p61, %p62
    %p64 = scmp.ne.s32.totalorder %s56, %s58
    %p65 = scmp.eq.s32.totalorder %s27, 1
    %p66 = por %p64, %p65
    %p67 = scmp.ne.s32.totalorder %s58, %s59
    %p68 = scmp.eq.s32.totalorder %s27, 0
    %p69 = por %p67, %p68
    %p70 = scmp.ne.s32.totalorder %s58, %s59
    %p71 = scmp.eq.s32.totalorder %s28, 1
    %p72 = por %p70, %p71
    %p74 = scmp.ne.s32.totalorder %s59, %s73
    %p75 = scmp.eq.s32.totalorder %s28, 0
    %p76 = por %p74, %p75
    %s78 = sadd.s32 %s77, 1
    %p81 = scmp.eq.s32.totalorder %s22, 1
    %p82 = scmp.ne.s32.totalorder %s77, %s79
    %p83 = scmp.eq.s32.totalorder %s22, 0
    %p84 = por %p82, %p83
    %p85 = scmp.ne.s32.totalorder %s77, %s79
    %p86 = scmp.eq.s32.totalorder %s27, 1
    %p87 = por %p85, %p86
    %p88 = scmp.ne.s32.totalorder %s79, %s80
    %p89 = scmp.eq.s32.totalorder %s27, 0
    %p90 = por %p88, %p89
    %p91 = scmp.ne.s32.totalorder %s79, %s80
    %p92 = scmp.eq.s32.totalorder %s28, 1
    %p93 = por %p91, %p92
    %p95 = scmp.ne.s32.totalorder %s80, %s94
    %p96 = scmp.eq.s32.totalorder %s28, 0
    %p97 = por %p95, %p96
    %s99 = sadd.s32 %s98, 1
    %p102 = scmp.eq.s32.totalorder %s22, 1
    %p103 = scmp.ne.s32.totalorder %s98, %s100
    %p104 = scmp.eq.s32.totalorder %s22, 0
    %p105 = por %p103, %p104
    %p106 = scmp.ne.s32.totalorder %s98, %s100
    %p107 = scmp.eq.s32.totalorder %s27, 1
    %p108 = por %p106, %p107
    %p109 = scmp.ne.s32.totalorder %s100, %s101
    %p110 = scmp.eq.s32.totalorder %s27, 0
    %p111 = por %p109, %p110
    %p112 = scmp.ne.s32.totalorder %s100, %s101
    %p113 = scmp.eq.s32.totalorder %s28, 1
    %p114 = por %p112, %p113
    %p116 = scmp.ne.s32.totalorder %s101, %s115
    %p117 = scmp.eq.s32.totalorder %s28, 0
    %p118 = por %p116, %p117
    %s120 = sadd.s32 %s119, 1
    %p123 = scmp.eq.s32.totalorder %s22, 1
    %p124 = scmp.ne.s32.totalorder %s119, %s121
    %p125 = scmp.eq.s32.totalorder %s22, 0
    %p126 = por %p124, %p125
    %p127 = scmp.ne.s32.totalorder %s119, %s121
    %p128 = scmp.eq.s32.totalorder %s27, 1
    %p129 = por %p127, %p128
    %p130 = scmp.ne.s32.totalorder %s121, %s122
    %p131 = scmp.eq.s32.totalorder %s27, 0
    %p132 = por %p130, %p131
    %p133 = scmp.ne.s32.totalorder %s121, %s122
    %p134 = scmp.eq.s32.totalorder %s28, 1
    %p135 = por %p133, %p134
    %p137 = scmp.ne.s32.totalorder %s122, %s136
    %p138 = scmp.eq.s32.totalorder %s28, 0
    %p139 = por %p137, %p138
    %s141 = sadd.s32 %s140, 1
    %p144 = scmp.eq.s32.totalorder %s22, 1
    %p145 = scmp.ne.s32.totalorder %s140, %s142
    %p146 = scmp.eq.s32.totalorder %s22, 0
    %p147 = por %p145, %p146
    %p148 = scmp.ne.s32.totalorder %s140, %s142
    %p149 = scmp.eq.s32.totalorder %s27, 1
    %p150 = por %p148, %p149
    %p151 = scmp.ne.s32.totalorder %s142, %s143
    %p152 = scmp.eq.s32.totalorder %s27, 0
    %p153 = por %p151, %p152
    %p154 = scmp.ne.s32.totalorder %s142, %s143
    %p155 = scmp.eq.s32.totalorder %s28, 1
    %p156 = por %p154, %p155
    %p158 = scmp.ne.s32.totalorder %s143, %s157
    %p159 = scmp.eq.s32.totalorder %s28, 0
    %p160 = por %p158, %p159
    %s162 = sadd.s32 %s161, 1
    %p165 = scmp.eq.s32.totalorder %s22, 1
    %p166 = scmp.ne.s32.totalorder %s161, %s163
    %p167 = scmp.eq.s32.totalorder %s22, 0
    %p168 = por %p166, %p167
    %p169 = scmp.ne.s32.totalorder %s161, %s163
    %p170 = scmp.eq.s32.totalorder %s27, 1
    %p171 = por %p169, %p170
    %p172 = scmp.ne.s32.totalorder %s163, %s164
    %p173 = scmp.eq.s32.totalorder %s27, 0
    %p174 = por %p172, %p173
    %p175 = scmp.ne.s32.totalorder %s163, %s164
    %p176 = scmp.eq.s32.totalorder %s28, 1
    %p177 = por %p175, %p176
    %p179 = scmp.ne.s32.totalorder %s164, %s178
    %p180 = scmp.eq.s32.totalorder %s28, 0
    %p181 = por %p179, %p180
    %s183 = sadd.s32 %s182, 1
    %p186 = scmp.eq.s32.totalorder %s22, 1
    %p187 = scmp.ne.s32.totalorder %s182, %s184
    %p188 = scmp.eq.s32.totalorder %s22, 0
    %p189 = por %p187, %p188
    %p190 = scmp.ne.s32.totalorder %s182, %s184
    %p191 = scmp.eq.s32.totalorder %s27, 1
    %p192 = por %p190, %p191
    %p193 = scmp.ne.s32.totalorder %s184, %s185
    %p194 = scmp.eq.s32.totalorder %s27, 0
    %p195 = por %p193, %p194
    %p196 = scmp.ne.s32.totalorder %s184, %s185
    %p197 = scmp.eq.s32.totalorder %s28, 1
    %p198 = por %p196, %p197
    %p200 = scmp.ne.s32.totalorder %s185, %s199
    %p201 = scmp.eq.s32.totalorder %s28, 0
    %p202 = por %p200, %p201
    %s204 = sadd.s32 %s203, 1
    %p207 = scmp.eq.s32.totalorder %s22, 1
    %p208 = scmp.ne.s32.totalorder %s203, %s205
    %p209 = scmp.eq.s32.totalorder %s22, 0
    %p210 = por %p208, %p209
    %p211 = scmp.ne.s32.totalorder %s203, %s205
    %p212 = scmp.eq.s32.totalorder %s27, 1
    %p213 = por %p211, %p212
    %p214 = scmp.ne.s32.totalorder %s205, %s206
    %p215 = scmp.eq.s32.totalorder %s27, 0
    %p216 = por %p214, %p215
    %p217 = scmp.ne.s32.totalorder %s205, %s206
    %p218 = scmp.eq.s32.totalorder %s28, 1
    %p219 = por %p217, %p218
    %p221 = scmp.ne.s32.totalorder %s206, %s220
    %p222 = scmp.eq.s32.totalorder %s28, 0
    %p223 = por %p221, %p222
    %s225 = sadd.s32 %s224, 1
    %p228 = scmp.eq.s32.totalorder %s22, 1
    %p229 = scmp.ne.s32.totalorder %s224, %s226
    %p230 = scmp.eq.s32.totalorder %s22, 0
    %p231 = por %p229, %p230
    %p232 = scmp.ne.s32.totalorder %s224, %s226
    %p233 = scmp.eq.s32.totalorder %s27, 1
    %p234 = por %p232, %p233
    %p235 = scmp.ne.s32.totalorder %s226, %s227
    %p236 = scmp.eq.s32.totalorder %s27, 0
    %p237 = por %p235, %p236
    %p238 = scmp.ne.s32.totalorder %s226, %s227
    %p239 = scmp.eq.s32.totalorder %s28, 1
    %p240 = por %p238, %p239
    %p242 = scmp.ne.s32.totalorder %s227, %s241
    %p243 = scmp.eq.s32.totalorder %s28, 0
    %p244 = por %p242, %p243
    %s246 = sadd.s32 %s245, 1
    %p249 = scmp.eq.s32.totalorder %s22, 1
    %p250 = scmp.ne.s32.totalorder %s245, %s247
    %p251 = scmp.eq.s32.totalorder %s22, 0
    %p252 = por %p250, %p251
    %p253 = scmp.ne.s32.totalorder %s245, %s247
    %p254 = scmp.eq.s32.totalorder %s27, 1
    %p255 = por %p253, %p254
    %p256 = scmp.ne.s32.totalorder %s247, %s248
    %p257 = scmp.eq.s32.totalorder %s27, 0
    %p258 = por %p256, %p257
    %p259 = scmp.ne.s32.totalorder %s247, %s248
    %p260 = scmp.eq.s32.totalorder %s28, 1
    %p261 = por %p259, %p260
    %p263 = scmp.ne.s32.totalorder %s248, %s262
    %p264 = scmp.eq.s32.totalorder %s28, 0
    %p265 = por %p263, %p264
    %s267 = sadd.s32 %s266, 1
    %p270 = scmp.eq.s32.totalorder %s22, 1
    %p271 = scmp.ne.s32.totalorder %s266, %s268
    %p272 = scmp.eq.s32.totalorder %s22, 0
    %p273 = por %p271, %p272
    %p274 = scmp.ne.s32.totalorder %s266, %s268
    %p275 = scmp.eq.s32.totalorder %s27, 1
    %p276 = por %p274, %p275
    %p277 = scmp.ne.s32.totalorder %s268, %s269
    %p278 = scmp.eq.s32.totalorder %s27, 0
    %p279 = por %p277, %p278
    %p280 = scmp.ne.s32.totalorder %s268, %s269
    %p281 = scmp.eq.s32.totalorder %s28, 1
    %p282 = por %p280, %p281
    %p284 = scmp.ne.s32.totalorder %s269, %s283
    %p285 = scmp.eq.s32.totalorder %s28, 0
    %p286 = por %p284, %p285
    %s288 = sadd.s32 %s287, 1
    %p291 = scmp.eq.s32.totalorder %s22, 1
    %p292 = scmp.ne.s32.totalorder %s287, %s289
    %p293 = scmp.eq.s32.totalorder %s22, 0
    %p294 = por %p292, %p293
    %p295 = scmp.ne.s32.totalorder %s287, %s289
    %p296 = scmp.eq.s32.totalorder %s27, 1
    %p297 = por %p295, %p296
    %p298 = scmp.ne.s32.totalorder %s289, %s290
    %p299 = scmp.eq.s32.totalorder %s27, 0
    %p300 = por %p298, %p299
    %p301 = scmp.ne.s32.totalorder %s289, %s290
    %p302 = scmp.eq.s32.totalorder %s28, 1
    %p303 = por %p301, %p302
    %p305 = scmp.ne.s32.totalorder %s290, %s304
    %p306 = scmp.eq.s32.totalorder %s28, 0
    %p307 = por %p305, %p306
    %s309 = sadd.s32 %s308, 1
    %p312 = scmp.eq.s32.totalorder %s22, 1
    %p313 = scmp.ne.s32.totalorder %s308, %s310
    %p314 = scmp.eq.s32.totalorder %s22, 0
    %p315 = por %p313, %p314
    %p316 = scmp.ne.s32.totalorder %s308, %s310
    %p317 = scmp.eq.s32.totalorder %s27, 1
    %p318 = por %p316, %p317
    %p319 = scmp.ne.s32.totalorder %s310, %s311
    %p320 = scmp.eq.s32.totalorder %s27, 0
    %p321 = por %p319, %p320
    %p322 = scmp.ne.s32.totalorder %s310, %s311
    %p323 = scmp.eq.s32.totalorder %s28, 1
    %p324 = por %p322, %p323
    %p326 = scmp.ne.s32.totalorder %s311, %s325
    %p327 = scmp.eq.s32.totalorder %s28, 0
    %p328 = por %p326, %p327
    %s330 = sadd.s32 %s329, 1
    %p333 = scmp.eq.s32.totalorder %s22, 1
    %p334 = scmp.ne.s32.totalorder %s329, %s331
    %p335 = scmp.eq.s32.totalorder %s22, 0
    %p336 = por %p334, %p335
    %p337 = scmp.ne.s32.totalorder %s329, %s331
    %p338 = scmp.eq.s32.totalorder %s27, 1
    %p339 = por %p337, %p338
    %p340 = scmp.ne.s32.totalorder %s331, %s332
    %p341 = scmp.eq.s32.totalorder %s27, 0
    %p342 = por %p340, %p341
    %p343 = scmp.ne.s32.totalorder %s331, %s332
    %p344 = scmp.eq.s32.totalorder %s28, 1
    %p345 = por %p343, %p344
    %p347 = scmp.ne.s32.totalorder %s332, %s346
    %p348 = scmp.eq.s32.totalorder %s28, 0
    %p349 = por %p347, %p348
    %s351 = sadd.s32 %s350, 1
    %p354 = scmp.eq.s32.totalorder %s22, 1
    %p355 = scmp.ne.s32.totalorder %s350, %s352
    %p356 = scmp.eq.s32.totalorder %s22, 0
    %p357 = por %p355, %p356
    %p358 = scmp.ne.s32.totalorder %s350, %s352
    %p359 = scmp.eq.s32.totalorder %s27, 1
    %p360 = por %p358, %p359
    %p361 = scmp.ne.s32.totalorder %s352, %s353
    %p362 = scmp.eq.s32.totalorder %s27, 0
    %p363 = por %p361, %p362
    %p364 = scmp.ne.s32.totalorder %s352, %s353
    %p365 = scmp.eq.s32.totalorder %s28, 1
    %p366 = por %p364, %p365
    %p368 = scmp.ne.s32.totalorder %s353, %s367
    %p369 = scmp.eq.s32.totalorder %s28, 0
    %p370 = por %p368, %p369
    %s371 = ssub.s32 %s22, %s29
    %p372 = scmp.eq.s32.totalorder %s371, 0
    %s374 = sadd.s32 %s373, 1
    %s375 = scalar_select %p372, %s373, %s374
    %p378 = pneg %p372
    %p379 = scmp.eq.s32.totalorder %s22, 1
    %p380 = por %p378, %p379
    %p381 = scmp.ne.s32.totalorder %s373, %s376
    %p382 = scmp.eq.s32.totalorder %s22, 0
    %p383 = por %p381, %p382
    %p384 = scmp.ne.s32.totalorder %s373, %s376
    %p385 = scmp.eq.s32.totalorder %s27, 1
    %p386 = por %p384, %p385
    %p387 = scmp.ne.s32.totalorder %s376, %s377
    %p388 = scmp.eq.s32.totalorder %s27, 0
    %p389 = por %p387, %p388
    %p390 = scmp.ne.s32.totalorder %s376, %s377
    %p391 = scmp.eq.s32.totalorder %s28, 1
    %p392 = por %p390, %p391
    %p394 = scmp.ne.s32.totalorder %s377, %s393
    %p395 = scmp.eq.s32.totalorder %s28, 0
    %p396 = por %p394, %p395
    %p397 = scmp.le.s32.totalorder 1, %s22
    %p398 = scmp.lt.s32.totalorder %s22, 3
    %p399 = pnand %p397, %p398
    %p400 = pneg %p399
    // Predicated region
    $region9: #{transformer_learner_forward.1} parent=5 // pred_check
      _
    $region10: #{transformer_learner_forward.1} parent=5 // pred_check_branch
      %402 = sbr.rel (%p399) target = $region12
    $region11: #{transformer_learner_forward.1} parent=5 // pred_region
      %s403 = ssub.s32 %s22, 1
      // Predicated region
      $region13: #{transformer_learner_forward.1} parent=11 // pred_check
        %p404 = pneg %p69
      $region14: #{transformer_learner_forward.1} parent=11 // pred_check_branch
        %406 = sbr.rel (%p404) target = $region16
      $region15: #{transformer_learner_forward.1} parent=11 // pred_region
        _
      $region16: #{transformer_learner_forward.1} parent=11 // pred_fallthru
        _
      // Predicated region
      $region17: #{transformer_learner_forward.1} parent=11 // pred_check
        %p407 = pneg %p90
      $region18: #{transformer_learner_forward.1} parent=11 // pred_check_branch
        %409 = sbr.rel (%p407) target = $region20
      $region19: #{transformer_learner_forward.1} parent=11 // pred_region
        _
      $region20: #{transformer_learner_forward.1} parent=11 // pred_fallthru
        _
      // Predicated region
      $region21: #{transformer_learner_forward.1} parent=11 // pred_check
        %p410 = pneg %p111
      $region22: #{transformer_learner_forward.1} parent=11 // pred_check_branch
        %412 = sbr.rel (%p410) target = $region24
      $region23: #{transformer_learner_forward.1} parent=11 // pred_region
        _
      $region24: #{transformer_learner_forward.1} parent=11 // pred_fallthru
        _
      // Predicated region
      $region25: #{transformer_learner_forward.1} parent=11 // pred_check
        %p413 = pneg %p132
      $region26: #{transformer_learner_forward.1} parent=11 // pred_check_branch
        %415 = sbr.rel (%p413) target = $region28
      $region27: #{transformer_learner_forward.1} parent=11 // pred_region
        _
      $region28: #{transformer_learner_forward.1} parent=11 // pred_fallthru
        _
      // Predicated region
      $region29: #{transformer_learner_forward.1} parent=11 // pred_check
        %p416 = pneg %p153
      $region30: #{transformer_learner_forward.1} parent=11 // pred_check_branch
        %418 = sbr.rel (%p416) target = $region32
      $region31: #{transformer_learner_forward.1} parent=11 // pred_region
        _
      $region32: #{transformer_learner_forward.1} parent=11 // pred_fallthru
        _
      // Predicated region
      $region33: #{transformer_learner_forward.1} parent=11 // pred_check
        %p419 = pneg %p174
      $region34: #{transformer_learner_forward.1} parent=11 // pred_check_branch
        %421 = sbr.rel (%p419) target = $region36
      $region35: #{transformer_learner_forward.1} parent=11 // pred_region
        _
      $region36: #{transformer_learner_forward.1} parent=11 // pred_fallthru
        _
      // Predicated region
      $region37: #{transformer_learner_forward.1} parent=11 // pred_check
        %p422 = pneg %p195
      $region38: #{transformer_learner_forward.1} parent=11 // pred_check_branch
        %424 = sbr.rel (%p422) target = $region40
      $region39: #{transformer_learner_forward.1} parent=11 // pred_region
        _
      $region40: #{transformer_learner_forward.1} parent=11 // pred_fallthru
        _
      // Predicated region
      $region41: #{transformer_learner_forward.1} parent=11 // pred_check
        %p425 = pneg %p216
      $region42: #{transformer_learner_forward.1} parent=11 // pred_check_branch
        %427 = sbr.rel (%p425) target = $region44
      $region43: #{transformer_learner_forward.1} parent=11 // pred_region
        _
      $region44: #{transformer_learner_forward.1} parent=11 // pred_fallthru
        _
      // Predicated region
      $region45: #{transformer_learner_forward.1} parent=11 // pred_check
        %p428 = pneg %p237
      $region46: #{transformer_learner_forward.1} parent=11 // pred_check_branch
        %430 = sbr.rel (%p428) target = $region48
      $region47: #{transformer_learner_forward.1} parent=11 // pred_region
        _
      $region48: #{transformer_learner_forward.1} parent=11 // pred_fallthru
        _
      // Predicated region
      $region49: #{transformer_learner_forward.1} parent=11 // pred_check
        %p431 = pneg %p258
      $region50: #{transformer_learner_forward.1} parent=11 // pred_check_branch
        %433 = sbr.rel (%p431) target = $region52
      $region51: #{transformer_learner_forward.1} parent=11 // pred_region
        _
      $region52: #{transformer_learner_forward.1} parent=11 // pred_fallthru
        _
      // Predicated region
      $region53: #{transformer_learner_forward.1} parent=11 // pred_check
        %p434 = pneg %p279
      $region54: #{transformer_learner_forward.1} parent=11 // pred_check_branch
        %436 = sbr.rel (%p434) target = $region56
      $region55: #{transformer_learner_forward.1} parent=11 // pred_region
        _
      $region56: #{transformer_learner_forward.1} parent=11 // pred_fallthru
        _
      // Predicated region
      $region57: #{transformer_learner_forward.1} parent=11 // pred_check
        %p437 = pneg %p300
      $region58: #{transformer_learner_forward.1} parent=11 // pred_check_branch
        %439 = sbr.rel (%p437) target = $region60
      $region59: #{transformer_learner_forward.1} parent=11 // pred_region
        _
      $region60: #{transformer_learner_forward.1} parent=11 // pred_fallthru
        _
      // Predicated region
      $region61: #{transformer_learner_forward.1} parent=11 // pred_check
        %p440 = pneg %p321
      $region62: #{transformer_learner_forward.1} parent=11 // pred_check_branch
        %442 = sbr.rel (%p440) target = $region64
      $region63: #{transformer_learner_forward.1} parent=11 // pred_region
        _
      $region64: #{transformer_learner_forward.1} parent=11 // pred_fallthru
        _
      // Predicated region
      $region65: #{transformer_learner_forward.1} parent=11 // pred_check
        %p443 = pneg %p342
      $region66: #{transformer_learner_forward.1} parent=11 // pred_check_branch
        %445 = sbr.rel (%p443) target = $region68
      $region67: #{transformer_learner_forward.1} parent=11 // pred_region
        _
      $region68: #{transformer_learner_forward.1} parent=11 // pred_fallthru
        _
      // Predicated region
      $region69: #{transformer_learner_forward.1} parent=11 // pred_check
        %p446 = pneg %p363
      $region70: #{transformer_learner_forward.1} parent=11 // pred_check_branch
        %448 = sbr.rel (%p446) target = $region72
      $region71: #{transformer_learner_forward.1} parent=11 // pred_region
        _
      $region72: #{transformer_learner_forward.1} parent=11 // pred_fallthru
        _
    $region12: #{transformer_learner_forward.1} parent=5 // pred_fallthru
      _
    %p449 = scmp.lt.s32.totalorder %s22, 2
    // Predicated region
    $region73: #{transformer_learner_forward.1} parent=5 // pred_check
      %p450 = pneg %p449
    $region74: #{transformer_learner_forward.1} parent=5 // pred_check_branch
      %452 = sbr.rel (%p450) target = $region76
    $region75: #{transformer_learner_forward.1} parent=5 // pred_region
      // Predicated region
      $region77: #{transformer_learner_forward.1} parent=75 // pred_check
        %p453 = pneg %p42
      $region78: #{transformer_learner_forward.1} parent=75 // pred_check_branch
        %455 = sbr.rel (%p453) target = $region80
      $region79: #{transformer_learner_forward.1} parent=75 // pred_region
        %p456 = scmp.lt.s32.totalorder %s22, 1
        %s457 = scalar_select %p456, %s22, 1
        %s458 = smul.addr %s457, 8
        %s459 = smul.addr %s458, 8
        %s460 = scalar_lea.vmem %s0, %s459
      $region80: #{transformer_learner_forward.1} parent=75 // pred_fallthru
        _
    $region76: #{transformer_learner_forward.1} parent=5 // pred_fallthru
      _
    %p461 = scmp.le.s32.totalorder 1, %s22
    %p462 = scmp.lt.s32.totalorder %s22, 3
    %p463 = pnand %p461, %p462
    %p464 = pneg %p463
    // Predicated region
    $region81: #{transformer_learner_forward.1} parent=5 // pred_check
      _
    $region82: #{transformer_learner_forward.1} parent=5 // pred_check_branch
      %466 = sbr.rel (%p463) target = $region84
    $region83: #{transformer_learner_forward.1} parent=5 // pred_region
      %s467 = ssub.s32 %s22, 1
      %p468 = scmp.lt.s32.totalorder %s27, 1
      %s469 = scalar_select %p468, %s27, 1
      %s470 = smul.addr %s469, 8
      %s471 = smul.addr %s470, 8
      %s472 = scalar_lea.vmem %s0, %s471
      %p473 = pneg %p48
      %p474 = pneg %p45
      %p475 = pneg %p69
      %p476 = pneg %p66
      %p477 = pneg %p90
      %p478 = pneg %p87
      %p479 = pneg %p111
      %p480 = pneg %p108
      %p481 = pneg %p132
      %p482 = pneg %p129
      %p483 = pneg %p153
      %p484 = pneg %p150
      %p485 = pneg %p174
      %p486 = pneg %p171
      %p487 = pneg %p195
      %p488 = pneg %p192
      %p489 = pneg %p216
      %p490 = pneg %p213
      %p491 = pneg %p237
      %p492 = pneg %p234
      %p493 = pneg %p258
      %p494 = pneg %p255
      %p495 = pneg %p279
      %p496 = pneg %p276
      %p497 = pneg %p300
      %p498 = pneg %p297
      %p499 = pneg %p321
      %p500 = pneg %p318
      %p501 = pneg %p342
      %p502 = pneg %p339
      %p503 = pneg %p363
      %p504 = pneg %p360
      %p505 = pneg %p389
      %p506 = pneg %p386
      %p507 = scmp.lt.s32.totalorder %s27, 1
      %s508 = scalar_select %p507, %s27, 1
      %s509 = smul.addr %s508, 2
      %s510 = smul.addr %s509, 8
      %s511 = scalar_lea.vmem %s16, %s510
      %p512 = scmp.lt.s32.totalorder %s27, 1
      %s513 = scalar_select %p512, %s27, 1
      %s514 = smul.addr %s513, 8
      %s515 = smul.addr %s514, 8
      %s516 = scalar_lea.vmem %s0, %s515
      %p517 = scmp.lt.s32.totalorder %s27, 1
      %s518 = scalar_select %p517, %s27, 1
      %s519 = smul.addr %s518, 2
      %s520 = smul.addr %s519, 8
      %s521 = scalar_lea.vmem %s16, %s520
      %v523 = vld [vmem:[%s516] sm:$0xff]
      %v524 = vld [vmem:[%s516 + $0x8] sm:$0xff]
      %v525 = vld [vmem:[%s516 + $0x10] sm:$0xff]
      %v526 = vld [vmem:[%s516 + $0x18] sm:$0xff]
      %v527 = vld [vmem:[%s516 + $0x20] sm:$0xff]
      %v528 = vld [vmem:[%s516 + $0x28] sm:$0xff]
      %v529 = vld [vmem:[%s516 + $0x30] sm:$0xff]
      %v530 = vld [vmem:[%s516 + $0x38] sm:$0xff]
      %v531 = vadd.f32 %v523, %v525
      %v532 = vadd.f32 %v531, %v527
      %v533 = vadd.f32 %v532, %v529
      %v534 = vrot.slane %v533, 4
      %v535 = vadd.f32 %v533, %v534
      %v536 = vrot.slane %v535, 2
      %v537 = vadd.f32 %v535, %v536
      %v538 = vrot.slane %v537, 1
      %v539 = vadd.f32 %v537, %v538
      %v540 = vadd.f32 %v524, %v526
      %v541 = vadd.f32 %v540, %v528
      %v542 = vadd.f32 %v541, %v530
      %v543 = vrot.slane %v542, 4
      %v544 = vadd.f32 %v542, %v543
      %v545 = vrot.slane %v544, 2
      %v546 = vadd.f32 %v544, %v545
      %v547 = vrot.slane %v546, 1
      %v548 = vadd.f32 %v546, %v547
      %v549 = vrcp.pop 32.0
      %v550 = vmul.f32 %v539, %v549
      %v551 = vmul.f32 %v548, %v549
      %v552 = vsub.f32 %v523, %v550
      %v553 = vsub.f32 %v524, %v551
      %v554 = vsub.f32 %v525, %v550
      %v555 = vsub.f32 %v526, %v551
      %v556 = vsub.f32 %v527, %v550
      %v557 = vsub.f32 %v528, %v551
      %v558 = vsub.f32 %v529, %v550
      %v559 = vsub.f32 %v530, %v551
      %v560 = vmul.f32 %v552, %v552
      %v561 = vmul.f32 %v553, %v553
      %v562 = vmul.f32 %v554, %v554
      %v563 = vmul.f32 %v555, %v555
      %v564 = vmul.f32 %v556, %v556
      %v565 = vmul.f32 %v557, %v557
      %v566 = vmul.f32 %v558, %v558
      %v567 = vmul.f32 %v559, %v559
      %v568 = vadd.f32 %v560, %v562
      %v569 = vadd.f32 %v568, %v564
      %v570 = vadd.f32 %v569, %v566
      %v571 = vrot.slane %v570, 4
      %v572 = vadd.f32 %v570, %v571
      %v573 = vrot.slane %v572, 2
      %v574 = vadd.f32 %v572, %v573
      %v575 = vrot.slane %v574, 1
      %v576 = vadd.f32 %v574, %v575
      %v577 = vadd.f32 %v561, %v563
      %v578 = vadd.f32 %v577, %v565
      %v579 = vadd.f32 %v578, %v567
      %v580 = vrot.slane %v579, 4
      %v581 = vadd.f32 %v579, %v580
      %v582 = vrot.slane %v581, 2
      %v583 = vadd.f32 %v581, %v582
      %v584 = vrot.slane %v583, 1
      %v585 = vadd.f32 %v583, %v584
      %v586 = vmul.f32 %v576, %v549
      %v587 = vmul.f32 %v585, %v549
      %v588 = vadd.f32 %v586, 1e-05
      %v589 = vadd.f32 %v587, 1e-05
      %v590 = vrsqrt.pop %v588
      %v591 = vrsqrt.pop %v589
      %v592 = vmul.f32 %v552, %v590
      %v593 = vmul.f32 %v553, %v591
      %v594 = vmul.f32 %v554, %v590
      %v595 = vmul.f32 %v555, %v591
      %v596 = vmul.f32 %v556, %v590
      %v597 = vmul.f32 %v557, %v591
      %v598 = vmul.f32 %v558, %v590
      %v599 = vmul.f32 %v559, %v591
      %v600 = vld [vmem:[%s2] sm:$0xff]
      %v601 = vld [vmem:[%s2 + $0x8] sm:$0xff]
      %v602 = vld [vmem:[%s2 + $0x10] sm:$0xff]
      %v603 = vld [vmem:[%s2 + $0x18] sm:$0xff]
      %605 = vset.pattern.permute.xlu0 0
      %606 = vperm.xlu0 %605, %v600
      %v607 = vpop.permute.xlu0 %606
      %610 = vset.pattern.permute.xlu0 0
      %611 = vperm.xlu0 %610, %v601
      %v612 = vpop.permute.xlu0 %611
      %615 = vset.pattern.permute.xlu0 0
      %616 = vperm.xlu0 %615, %v602
      %v617 = vpop.permute.xlu0 %616
      %620 = vset.pattern.permute.xlu0 0
      %621 = vperm.xlu0 %620, %v603
      %v622 = vpop.permute.xlu0 %621
      %v624 = vmul.f32 %v592, %v607
      %v625 = vmul.f32 %v593, %v607
      %v626 = vmul.f32 %v594, %v612
      %v627 = vmul.f32 %v595, %v612
      %v628 = vmul.f32 %v596, %v617
      %v629 = vmul.f32 %v597, %v617
      %v630 = vmul.f32 %v598, %v622
      %v631 = vmul.f32 %v599, %v622
      %s632 = scalar_lea.vmem %s2, 32
      %v633 = vld [vmem:[%s632] sm:$0xff]
      %v634 = vld [vmem:[%s632 + $0x8] sm:$0xff]
      %v635 = vld [vmem:[%s632 + $0x10] sm:$0xff]
      %v636 = vld [vmem:[%s632 + $0x18] sm:$0xff]
      %638 = vset.pattern.permute.xlu0 0
      %639 = vperm.xlu0 %638, %v633
      %v640 = vpop.permute.xlu0 %639
      %643 = vset.pattern.permute.xlu0 0
      %644 = vperm.xlu0 %643, %v634
      %v645 = vpop.permute.xlu0 %644
      %648 = vset.pattern.permute.xlu0 0
      %649 = vperm.xlu0 %648, %v635
      %v650 = vpop.permute.xlu0 %649
      %653 = vset.pattern.permute.xlu0 0
      %654 = vperm.xlu0 %653, %v636
      %v655 = vpop.permute.xlu0 %654
      %v657 = vadd.f32 %v624, %v640
      %v658 = vadd.f32 %v625, %v640
      %v659 = vadd.f32 %v626, %v645
      %v660 = vadd.f32 %v627, %v645
      %v661 = vadd.f32 %v628, %v650
      %v662 = vadd.f32 %v629, %v650
      %v663 = vadd.f32 %v630, %v655
      %v664 = vadd.f32 %v631, %v655
      %v665 = vpack.c.bf16 %v659, %v657
      %v666 = vpack.c.bf16 %v660, %v658
      %v667 = vpack.c.bf16 %v663, %v661
      %v668 = vpack.c.bf16 %v664, %v662
      %v669 = vld [vmem:[%s1] sm:$0xff]
      %v670 = vld [vmem:[%s4] sm:$0x3f]
      %v671 = vld [vmem:[%s12] sm:$0xf]
      %vm672 = vcmask 261120
      %v673 = vsel %vm672, %v669, 0.0
      %674 = vadd.xlane.f32.xlu0 %v673
      %v675 = vpop.xlane.xlu0 %674
      %v676 = vmul.f32 %v675, %v549
      %v677 = vsub.f32 %v669, %v676
      %v678 = vmul.f32 %v677, %v677
      %v679 = vsel %vm672, %v678, 0.0
      %680 = vadd.xlane.f32.xlu0 %v679
      %v681 = vpop.xlane.xlu0 %680
      %v682 = vmul.f32 %v681, %v549
      %v683 = vadd.f32 %v682, 1e-05
      %v684 = vrsqrt.pop %v683
      %v685 = vmul.f32 %v677, %v684
      %v686 = vlaneseq
      %v687 = vshrl.u32 %v686, 7
      %v688 = vsub.s32 0, %v687
      %v689 = vrot.slane %v670, %v688
      %v690 = vmul.f32 %v685, %v689
      %v691 = vlaneseq
      %v692 = vshrl.u32 %v691, 7
      %v693 = vsub.s32 1, %v692
      %v694 = vrot.slane %v670, %v693
      %v695 = vadd.f32 %v690, %v694
      %v696 = vpack.c.bf16 %v695, %v695
      %v697 = vld [vmem:[%s5] sm:$0xf]
      %v698 = vld [vmem:[%s5 + $0x4] sm:$0xf]
      %v699 = vld [vmem:[%s5 + $0x8] sm:$0xf]
      %v700 = vld [vmem:[%s5 + $0xc] sm:$0xf]
      %v701 = vlaneseq
      %v702 = vshrl.u32 %v701, 7
      %v703 = vsub.s32 0, %v702
      %v704 = vrot.slane %v671, %v703
      %v709 = vunpack.c.l.b16 %v697
      %v710 = vunpack.c.l.b16 %v698
      %v711 = vunpack.c.l.b16 %v699
      %v712 = vunpack.c.l.b16 %v700
      %v713 = vpack.c.b16 %v710, %v709
      %v714 = vpack.c.b16 %v712, %v711
      %v718 = vsel %vm672, %v696, 0
      %720 = vmatprep.subr.bf16.mxu0 0
      %721 = vmatpush1.bf16.msra.mxu0 0
      %722 = vmatprep.subr.bf16.mxu0 0
      %723 = vmatpush1.bf16.msra.mxu0 0
      %724 = vmatprep.subr.bf16.mxu0 0
      %725 = vmatpush1.bf16.msra.mxu0 0
      %726 = vmatprep.subr.bf16.mxu0 0
      %727 = vmatpush1.bf16.msra.mxu0 0
      %728 = vmatprep.subr.bf16.mxu0 0
      %729 = vmatpush1.bf16.msra.mxu0 0
      %730 = vmatprep.subr.bf16.mxu0 0
      %731 = vmatpush1.bf16.msra.mxu0 0
      %732 = vmatprep.subr.bf16.mxu0 0
      %733 = vmatpush1.bf16.msra.mxu0 %v714
      %734 = vmatprep.subr.bf16.mxu0 0
      %735 = vmatpush1.bf16.msra.mxu0 %v713
      %736 = vmatprep.subr.bf16.mxu0 0
      %737 = vmatpush2.bf16.msra.mxu0 0
      %738 = vmatprep.subr.bf16.mxu0 0
      %739 = vmatpush2.bf16.msra.mxu0 0
      %740 = vmatprep.subr.bf16.mxu0 0
      %741 = vmatpush2.bf16.msra.mxu0 0
      %742 = vmatprep.subr.bf16.mxu0 0
      %743 = vmatpush2.bf16.msra.mxu0 0
      %744 = vmatprep.subr.bf16.mxu0 0
      %745 = vmatpush2.bf16.msra.mxu0 0
      %746 = vmatprep.subr.bf16.mxu0 0
      %747 = vmatpush2.bf16.msra.mxu0 0
      %748 = vmatprep.subr.bf16.mxu0 0
      %749 = vmatpush2.bf16.msra.mxu0 0
      %750 = vmatprep.subr.bf16.mxu0 0
      %751 = vmatpush2.bf16.msra.mxu0 0
      %752 = vmatprep.mubr.bf16.mxu0 0
      %753 = vmatmul.mubr.bf16.gmra.mxu0 %v718
      %v754 = vpop.f32.mrf.mxu0
      %v755 = vadd.f32 %v704, %v754
      %v756 = vpop.f32.mrf.mxu0
      %v757 = vpop.f32.mrf.mxu0
      %v758 = vpop.f32.mrf.mxu0
      %759 = vdwg.mxu0
      %v760 = vld [vmem:[%s6] sm:$0xf]
      %v761 = vld [vmem:[%s6 + $0x4] sm:$0xf]
      %v762 = vld [vmem:[%s6 + $0x8] sm:$0xf]
      %v763 = vld [vmem:[%s6 + $0xc] sm:$0xf]
      %v764 = vld [vmem:[%s6 + $0x10] sm:$0xf]
      %v765 = vld [vmem:[%s6 + $0x14] sm:$0xf]
      %v766 = vld [vmem:[%s6 + $0x18] sm:$0xf]
      %v767 = vld [vmem:[%s6 + $0x1c] sm:$0xf]
      %v768 = vld [vmem:[%s13] sm:$0xff]
      %v769 = vld [vmem:[%s13 + $0x8] sm:$0xff]
      %v770 = vld [vmem:[%s13 + $0x10] sm:$0xff]
      %v771 = vld [vmem:[%s13 + $0x18] sm:$0xff]
      %v772 = vld [vmem:[%s13 + $0x20] sm:$0xff]
      %v773 = vld [vmem:[%s13 + $0x28] sm:$0xff]
      %v774 = vld [vmem:[%s13 + $0x30] sm:$0xff]
      %v775 = vld [vmem:[%s13 + $0x38] sm:$0xff]
      %777 = vset.pattern.permute.xlu0 0
      %778 = vperm.xlu0 %777, %v768
      %v779 = vpop.permute.xlu0 %778
      %782 = vset.pattern.permute.xlu0 0
      %783 = vperm.xlu0 %782, %v769
      %v784 = vpop.permute.xlu0 %783
      %787 = vset.pattern.permute.xlu0 0
      %788 = vperm.xlu0 %787, %v770
      %v789 = vpop.permute.xlu0 %788
      %792 = vset.pattern.permute.xlu0 0
      %793 = vperm.xlu0 %792, %v771
      %v794 = vpop.permute.xlu0 %793
      %797 = vset.pattern.permute.xlu0 0
      %798 = vperm.xlu0 %797, %v772
      %v799 = vpop.permute.xlu0 %798
      %802 = vset.pattern.permute.xlu0 0
      %803 = vperm.xlu0 %802, %v773
      %v804 = vpop.permute.xlu0 %803
      %807 = vset.pattern.permute.xlu0 0
      %808 = vperm.xlu0 %807, %v774
      %v809 = vpop.permute.xlu0 %808
      %812 = vset.pattern.permute.xlu0 0
      %813 = vperm.xlu0 %812, %v775
      %v814 = vpop.permute.xlu0 %813
      %v824 = vunpack.c.l.b16 %v760
      %v825 = vunpack.c.l.b16 %v761
      %v826 = vunpack.c.l.b16 %v762
      %v827 = vunpack.c.l.b16 %v763
      %v828 = vunpack.c.l.b16 %v764
      %v829 = vunpack.c.l.b16 %v765
      %v830 = vunpack.c.l.b16 %v766
      %v831 = vunpack.c.l.b16 %v767
      %v832 = vpack.c.b16 %v825, %v824
      %v833 = vpack.c.b16 %v827, %v826
      %v834 = vpack.c.b16 %v829, %v828
      %v835 = vpack.c.b16 %v831, %v830
      %v837 = vsel %vm672, %v832, 0
      %v840 = vsel %vm672, %v833, 0
      %v843 = vsel %vm672, %v834, 0
      %v846 = vsel %vm672, %v835, 0
      %848 = vmatprep.subr.bf16.mxu0 0
      %849 = vmatpush1.bf16.msra.mxu0 0
      %850 = vmatprep.subr.bf16.mxu0 0
      %851 = vmatpush1.bf16.msra.mxu0 0
      %852 = vmatprep.subr.bf16.mxu0 0
      %853 = vmatpush1.bf16.msra.mxu0 0
      %854 = vmatprep.subr.bf16.mxu0 0
      %855 = vmatpush1.bf16.msra.mxu0 0
      %856 = vmatprep.subr.bf16.mxu0 0
      %857 = vmatpush1.bf16.msra.mxu0 0
      %858 = vmatprep.subr.bf16.mxu0 0
      %859 = vmatpush1.bf16.msra.mxu0 0
      %860 = vmatprep.subr.bf16.mxu0 %v668
      %861 = vmatpush1.bf16.msra.mxu0 %v667
      %862 = vmatprep.subr.bf16.mxu0 %v666
      %863 = vmatpush1.bf16.msra.mxu0 %v665
      %864 = vmatprep.subr.bf16.mxu0 0
      %865 = vmatpush2.bf16.msra.mxu0 0
      %866 = vmatprep.subr.bf16.mxu0 0
      %867 = vmatpush2.bf16.msra.mxu0 0
      %868 = vmatprep.subr.bf16.mxu0 0
      %869 = vmatpush2.bf16.msra.mxu0 0
      %870 = vmatprep.subr.bf16.mxu0 0
      %871 = vmatpush2.bf16.msra.mxu0 0
      %872 = vmatprep.subr.bf16.mxu0 0
      %873 = vmatpush2.bf16.msra.mxu0 0
      %874 = vmatprep.subr.bf16.mxu0 0
      %875 = vmatpush2.bf16.msra.mxu0 0
      %876 = vmatprep.subr.bf16.mxu0 0
      %877 = vmatpush2.bf16.msra.mxu0 0
      %878 = vmatprep.subr.bf16.mxu0 0
      %879 = vmatpush2.bf16.msra.mxu0 0
      %880 = vmatprep.mubr.bf16.mxu0 0
      %881 = vmatmul.mubr.bf16.gmra.mxu0 %v837
      %v882 = vpop.f32.mrf.mxu0
      %v883 = vadd.f32 %v779, %v882
      %v884 = vpop.f32.mrf.mxu0
      %v885 = vadd.f32 %v779, %v884
      %v886 = vpop.f32.mrf.mxu0
      %v887 = vadd.f32 %v784, %v886
      %v888 = vpop.f32.mrf.mxu0
      %v889 = vadd.f32 %v784, %v888
      %890 = vmatprep.mubr.bf16.mxu0 0
      %891 = vmatmul.mubr.bf16.gmra.mxu0 %v840
      %v892 = vpop.f32.mrf.mxu0
      %v893 = vadd.f32 %v789, %v892
      %v894 = vpop.f32.mrf.mxu0
      %v895 = vadd.f32 %v789, %v894
      %v896 = vpop.f32.mrf.mxu0
      %v897 = vadd.f32 %v794, %v896
      %v898 = vpop.f32.mrf.mxu0
      %v899 = vadd.f32 %v794, %v898
      %900 = vmatprep.mubr.bf16.mxu0 0
      %901 = vmatmul.mubr.bf16.gmra.mxu0 %v843
      %v902 = vpop.f32.mrf.mxu0
      %v903 = vadd.f32 %v799, %v902
      %v904 = vpop.f32.mrf.mxu0
      %v905 = vadd.f32 %v799, %v904
      %v906 = vpop.f32.mrf.mxu0
      %v907 = vadd.f32 %v804, %v906
      %v908 = vpop.f32.mrf.mxu0
      %v909 = vadd.f32 %v804, %v908
      %910 = vmatprep.mubr.bf16.mxu0 0
      %911 = vmatmul.mubr.bf16.gmra.mxu0 %v846
      %v912 = vpop.f32.mrf.mxu0
      %v913 = vadd.f32 %v809, %v912
      %v914 = vpop.f32.mrf.mxu0
      %v915 = vadd.f32 %v809, %v914
      %v916 = vpop.f32.mrf.mxu0
      %v917 = vadd.f32 %v814, %v916
      %v918 = vpop.f32.mrf.mxu0
      %v919 = vadd.f32 %v814, %v918
      %920 = vdwg.mxu0
      %v921 = vld [vmem:[%s7] sm:$0xf]
      %v922 = vld [vmem:[%s7 + $0x4] sm:$0xf]
      %v923 = vld [vmem:[%s7 + $0x8] sm:$0xf]
      %v924 = vld [vmem:[%s7 + $0xc] sm:$0xf]
      %v925 = vpack.c.bf16 %v755, %v755
      %v926 = vpack.c.bf16 %v883, %v883
      %v927 = vpack.c.bf16 %v885, %v885
      %v928 = vpack.c.bf16 %v903, %v903
      %v929 = vpack.c.bf16 %v905, %v905
      %vm930 = vcmask 64512
      %v932 = vsel %vm930, %v925, 0
      %vm934 = vcmask 1043456
      %v936 = vsel %vm934, %v926, 0
      %v939 = vsel %vm934, %v927, 0
      %941 = vmatprep.subr.bf16.mxu0 0
      %942 = vmatpush1.bf16.msra.mxu0 0
      %943 = vmatprep.subr.bf16.mxu0 0
      %944 = vmatpush1.bf16.msra.mxu0 0
      %945 = vmatprep.subr.bf16.mxu0 0
      %946 = vmatpush1.bf16.msra.mxu0 0
      %947 = vmatprep.subr.bf16.mxu0 0
      %948 = vmatpush1.bf16.msra.mxu0 0
      %949 = vmatprep.subr.bf16.mxu0 0
      %950 = vmatpush1.bf16.msra.mxu0 0
      %951 = vmatprep.subr.bf16.mxu0 0
      %952 = vmatpush1.bf16.msra.mxu0 0
      %953 = vmatprep.subr.bf16.mxu0 0
      %954 = vmatpush1.bf16.msra.mxu0 0
      %955 = vmatprep.subr.bf16.mxu0 %v939
      %956 = vmatpush1.bf16.msra.mxu0 %v936
      %957 = vmatprep.subr.bf16.mxu0 0
      %958 = vmatpush2.bf16.msra.mxu0 0
      %959 = vmatprep.subr.bf16.mxu0 0
      %960 = vmatpush2.bf16.msra.mxu0 0
      %961 = vmatprep.subr.bf16.mxu0 0
      %962 = vmatpush2.bf16.msra.mxu0 0
      %963 = vmatprep.subr.bf16.mxu0 0
      %964 = vmatpush2.bf16.msra.mxu0 0
      %965 = vmatprep.subr.bf16.mxu0 0
      %966 = vmatpush2.bf16.msra.mxu0 0
      %967 = vmatprep.subr.bf16.mxu0 0
      %968 = vmatpush2.bf16.msra.mxu0 0
      %969 = vmatprep.subr.bf16.mxu0 0
      %970 = vmatpush2.bf16.msra.mxu0 0
      %971 = vmatprep.subr.bf16.mxu0 0
      %972 = vmatpush2.bf16.msra.mxu0 0
      %973 = vmatprep.mubr.bf16.mxu0 0
      %974 = vmatmul.mubr.bf16.gmra.mxu0 %v932
      %v975 = vpop.f32.mrf.mxu0
      %v976 = vadd.f32 0.0, %v975
      %v977 = vpop.f32.mrf.mxu0
      %v978 = vadd.f32 0.0, %v977
      %v979 = vpop.f32.mrf.mxu0
      %v980 = vpop.f32.mrf.mxu0
      %981 = vdwg.mxu0
      %v982 = vmax.f32 %v976, %v978
      %983 = vmax.xlane.f32.xlu0 %v982
      %v984 = vpop.xlane.xlu0 %983
      %v985 = vsub.f32 %v976, %v984
      %v986 = vsub.f32 %v978, %v984
      %v987 = vmul.f32 %v985, 1.442695
      %v988 = vpow.pop %v987
      %v989 = vmul.f32 %v986, 1.442695
      %v990 = vpow.pop %v989
      %v991 = vadd.f32 %v988, %v990
      %992 = vadd.xlane.f32.xlu0 %v991
      %v993 = vpop.xlane.xlu0 %992
      %v994 = vrcp.pop %v993
      %v995 = vmul.f32 %v988, %v994
      %v996 = vmul.f32 %v990, %v994
      %v997 = vpack.c.bf16 %v995, %v995
      %v998 = vpack.c.bf16 %v996, %v996
      %999 = vmatprep.subr.bf16.mxu0 0
      %1000 = vmatpush1.bf16.xpose.msra.mxu0 0
      %1001 = vmatprep.subr.bf16.mxu0 0
      %1002 = vmatpush1.bf16.xpose.msra.mxu0 0
      %1003 = vmatprep.subr.bf16.mxu0 0
      %1004 = vmatpush1.bf16.xpose.msra.mxu0 0
      %1005 = vmatprep.subr.bf16.mxu0 0
      %1006 = vmatpush1.bf16.xpose.msra.mxu0 0
      %1007 = vmatprep.subr.bf16.mxu0 0
      %1008 = vmatpush1.bf16.xpose.msra.mxu0 0
      %1009 = vmatprep.subr.bf16.mxu0 0
      %1010 = vmatpush1.bf16.xpose.msra.mxu0 0
      %1011 = vmatprep.subr.bf16.mxu0 0
      %1012 = vmatpush1.bf16.xpose.msra.mxu0 0
      %1013 = vmatprep.subr.bf16.mxu0 %v929
      %1014 = vmatpush1.bf16.xpose.msra.mxu0 %v928
      %1015 = vmatprep.subr.bf16.mxu0 0
      %1016 = vmatpush2.bf16.xpose.msra.mxu0 0
      %1017 = vmatprep.subr.bf16.mxu0 0
      %1018 = vmatpush2.bf16.xpose.msra.mxu0 0
      %1019 = vmatprep.subr.bf16.mxu0 0
      %1020 = vmatpush2.bf16.xpose.msra.mxu0 0
      %1021 = vmatprep.subr.bf16.mxu0 0
      %1022 = vmatpush2.bf16.xpose.msra.mxu0 0
      %1023 = vmatprep.subr.bf16.mxu0 0
      %1024 = vmatpush2.bf16.xpose.msra.mxu0 0
      %1025 = vmatprep.subr.bf16.mxu0 0
      %1026 = vmatpush2.bf16.xpose.msra.mxu0 0
      %1027 = vmatprep.subr.bf16.mxu0 0
      %1028 = vmatpush2.bf16.xpose.msra.mxu0 0
      %1029 = vmatprep.subr.bf16.mxu0 0
      %1030 = vmatpush2.bf16.xpose.msra.mxu0 0
      %1031 = vmatprep.mubr.bf16.mxu0 %v998
      %1032 = vmatmul.mubr.bf16.gmra.mxu0 %v997
      %v1033 = vpop.f32.mrf.mxu0
      %v1034 = vadd.f32 0.0, %v1033
      %v1035 = vpop.f32.mrf.mxu0
      %v1036 = vpop.f32.mrf.mxu0
      %v1037 = vpop.f32.mrf.mxu0
      %1038 = vdwg.mxu0
      %v1039 = vpack.c.bf16 %v887, %v887
      %v1040 = vpack.c.bf16 %v889, %v889
      %v1041 = vpack.c.bf16 %v907, %v907
      %v1042 = vpack.c.bf16 %v909, %v909
      %1044 = vrot.lane.b32.xlu0 %v925, 120
      %v1045 = vpop.permute.xlu0 %1044
      %v1047 = vsel %vm930, %v1045, 0
      %v1050 = vsel %vm934, %v1039, 0
      %v1053 = vsel %vm934, %v1040, 0
      %1055 = vmatprep.subr.bf16.mxu0 0
      %1056 = vmatpush1.bf16.msra.mxu0 0
      %1057 = vmatprep.subr.bf16.mxu0 0
      %1058 = vmatpush1.bf16.msra.mxu0 0
      %1059 = vmatprep.subr.bf16.mxu0 0
      %1060 = vmatpush1.bf16.msra.mxu0 0
      %1061 = vmatprep.subr.bf16.mxu0 0
      %1062 = vmatpush1.bf16.msra.mxu0 0
      %1063 = vmatprep.subr.bf16.mxu0 0
      %1064 = vmatpush1.bf16.msra.mxu0 0
      %1065 = vmatprep.subr.bf16.mxu0 0
      %1066 = vmatpush1.bf16.msra.mxu0 0
      %1067 = vmatprep.subr.bf16.mxu0 0
      %1068 = vmatpush1.bf16.msra.mxu0 0
      %1069 = vmatprep.subr.bf16.mxu0 %v1053
      %1070 = vmatpush1.bf16.msra.mxu0 %v1050
      %1071 = vmatprep.subr.bf16.mxu0 0
      %1072 = vmatpush2.bf16.msra.mxu0 0
      %1073 = vmatprep.subr.bf16.mxu0 0
      %1074 = vmatpush2.bf16.msra.mxu0 0
      %1075 = vmatprep.subr.bf16.mxu0 0
      %1076 = vmatpush2.bf16.msra.mxu0 0
      %1077 = vmatprep.subr.bf16.mxu0 0
      %1078 = vmatpush2.bf16.msra.mxu0 0
      %1079 = vmatprep.subr.bf16.mxu0 0
      %1080 = vmatpush2.bf16.msra.mxu0 0
      %1081 = vmatprep.subr.bf16.mxu0 0
      %1082 = vmatpush2.bf16.msra.mxu0 0
      %1083 = vmatprep.subr.bf16.mxu0 0
      %1084 = vmatpush2.bf16.msra.mxu0 0
      %1085 = vmatprep.subr.bf16.mxu0 0
      %1086 = vmatpush2.bf16.msra.mxu0 0
      %1087 = vmatprep.mubr.bf16.mxu0 0
      %1088 = vmatmul.mubr.bf16.gmra.mxu0 %v1047
      %v1089 = vpop.f32.mrf.mxu0
      %v1090 = vadd.f32 0.0, %v1089
      %v1091 = vpop.f32.mrf.mxu0
      %v1092 = vadd.f32 0.0, %v1091
      %v1093 = vpop.f32.mrf.mxu0
      %v1094 = vpop.f32.mrf.mxu0
      %1095 = vdwg.mxu0
      %v1096 = vmax.f32 %v1090, %v1092
      %1097 = vmax.xlane.f32.xlu0 %v1096
      %v1098 = vpop.xlane.xlu0 %1097
      %v1099 = vsub.f32 %v1090, %v1098
      %v1100 = vsub.f32 %v1092, %v1098
      %v1101 = vmul.f32 %v1099, 1.442695
      %v1102 = vpow.pop %v1101
      %v1103 = vmul.f32 %v1100, 1.442695
      %v1104 = vpow.pop %v1103
      %v1105 = vadd.f32 %v1102, %v1104
      %1106 = vadd.xlane.f32.xlu0 %v1105
      %v1107 = vpop.xlane.xlu0 %1106
      %v1108 = vrcp.pop %v1107
      %v1109 = vmul.f32 %v1102, %v1108
      %v1110 = vmul.f32 %v1104, %v1108
      %v1111 = vpack.c.bf16 %v1109, %v1109
      %v1112 = vpack.c.bf16 %v1110, %v1110
      %1113 = vmatprep.subr.bf16.mxu0 0
      %1114 = vmatpush1.bf16.xpose.msra.mxu0 0
      %1115 = vmatprep.subr.bf16.mxu0 0
      %1116 = vmatpush1.bf16.xpose.msra.mxu0 0
      %1117 = vmatprep.subr.bf16.mxu0 0
      %1118 = vmatpush1.bf16.xpose.msra.mxu0 0
      %1119 = vmatprep.subr.bf16.mxu0 0
      %1120 = vmatpush1.bf16.xpose.msra.mxu0 0
      %1121 = vmatprep.subr.bf16.mxu0 0
      %1122 = vmatpush1.bf16.xpose.msra.mxu0 0
      %1123 = vmatprep.subr.bf16.mxu0 0
      %1124 = vmatpush1.bf16.xpose.msra.mxu0 0
      %1125 = vmatprep.subr.bf16.mxu0 0
      %1126 = vmatpush1.bf16.xpose.msra.mxu0 0
      %1127 = vmatprep.subr.bf16.mxu0 %v1042
      %1128 = vmatpush1.bf16.xpose.msra.mxu0 %v1041
      %1129 = vmatprep.subr.bf16.mxu0 0
      %1130 = vmatpush2.bf16.xpose.msra.mxu0 0
      %1131 = vmatprep.subr.bf16.mxu0 0
      %1132 = vmatpush2.bf16.xpose.msra.mxu0 0
      %1133 = vmatprep.subr.bf16.mxu0 0
      %1134 = vmatpush2.bf16.xpose.msra.mxu0 0
      %1135 = vmatprep.subr.bf16.mxu0 0
      %1136 = vmatpush2.bf16.xpose.msra.mxu0 0
      %1137 = vmatprep.subr.bf16.mxu0 0
      %1138 = vmatpush2.bf16.xpose.msra.mxu0 0
      %1139 = vmatprep.subr.bf16.mxu0 0
      %1140 = vmatpush2.bf16.xpose.msra.mxu0 0
      %1141 = vmatprep.subr.bf16.mxu0 0
      %1142 = vmatpush2.bf16.xpose.msra.mxu0 0
      %1143 = vmatprep.subr.bf16.mxu0 0
      %1144 = vmatpush2.bf16.xpose.msra.mxu0 0
      %1145 = vmatprep.mubr.bf16.mxu0 %v1112
      %1146 = vmatmul.mubr.bf16.gmra.mxu0 %v1111
      %v1147 = vpop.f32.mrf.mxu0
      %v1148 = vadd.f32 0.0, %v1147
      %v1149 = vpop.f32.mrf.mxu0
      %v1150 = vpop.f32.mrf.mxu0
      %v1151 = vpop.f32.mrf.mxu0
      %1152 = vdwg.mxu0
      %v1153 = vpack.c.bf16 %v893, %v893
      %v1154 = vpack.c.bf16 %v895, %v895
      %v1155 = vpack.c.bf16 %v913, %v913
      %v1156 = vpack.c.bf16 %v915, %v915
      %1157 = vrot.lane.b32.xlu0 %v925, 112
      %v1158 = vpop.permute.xlu0 %1157
      %v1160 = vsel %vm930, %v1158, 0
      %v1163 = vsel %vm934, %v1153, 0
      %v1166 = vsel %vm934, %v1154, 0
      %1168 = vmatprep.subr.bf16.mxu0 0
      %1169 = vmatpush1.bf16.msra.mxu0 0
      %1170 = vmatprep.subr.bf16.mxu0 0
      %1171 = vmatpush1.bf16.msra.mxu0 0
      %1172 = vmatprep.subr.bf16.mxu0 0
      %1173 = vmatpush1.bf16.msra.mxu0 0
      %1174 = vmatprep.subr.bf16.mxu0 0
      %1175 = vmatpush1.bf16.msra.mxu0 0
      %1176 = vmatprep.subr.bf16.mxu0 0
      %1177 = vmatpush1.bf16.msra.mxu0 0
      %1178 = vmatprep.subr.bf16.mxu0 0
      %1179 = vmatpush1.bf16.msra.mxu0 0
      %1180 = vmatprep.subr.bf16.mxu0 0
      %1181 = vmatpush1.bf16.msra.mxu0 0
      %1182 = vmatprep.subr.bf16.mxu0 %v1166
      %1183 = vmatpush1.bf16.msra.mxu0 %v1163
      %1184 = vmatprep.subr.bf16.mxu0 0
      %1185 = vmatpush2.bf16.msra.mxu0 0
      %1186 = vmatprep.subr.bf16.mxu0 0
      %1187 = vmatpush2.bf16.msra.mxu0 0
      %1188 = vmatprep.subr.bf16.mxu0 0
      %1189 = vmatpush2.bf16.msra.mxu0 0
      %1190 = vmatprep.subr.bf16.mxu0 0
      %1191 = vmatpush2.bf16.msra.mxu0 0
      %1192 = vmatprep.subr.bf16.mxu0 0
      %1193 = vmatpush2.bf16.msra.mxu0 0
      %1194 = vmatprep.subr.bf16.mxu0 0
      %1195 = vmatpush2.bf16.msra.mxu0 0
      %1196 = vmatprep.subr.bf16.mxu0 0
      %1197 = vmatpush2.bf16.msra.mxu0 0
      %1198 = vmatprep.subr.bf16.mxu0 0
      %1199 = vmatpush2.bf16.msra.mxu0 0
      %1200 = vmatprep.mubr.bf16.mxu0 0
      %1201 = vmatmul.mubr.bf16.gmra.mxu0 %v1160
      %v1202 = vpop.f32.mrf.mxu0
      %v1203 = vadd.f32 0.0, %v1202
      %v1204 = vpop.f32.mrf.mxu0
      %v1205 = vadd.f32 0.0, %v1204
      %v1206 = vpop.f32.mrf.mxu0
      %v1207 = vpop.f32.mrf.mxu0
      %1208 = vdwg.mxu0
      %v1209 = vmax.f32 %v1203, %v1205
      %1210 = vmax.xlane.f32.xlu0 %v1209
      %v1211 = vpop.xlane.xlu0 %1210
      %v1212 = vsub.f32 %v1203, %v1211
      %v1213 = vsub.f32 %v1205, %v1211
      %v1214 = vmul.f32 %v1212, 1.442695
      %v1215 = vpow.pop %v1214
      %v1216 = vmul.f32 %v1213, 1.442695
      %v1217 = vpow.pop %v1216
      %v1218 = vadd.f32 %v1215, %v1217
      %1219 = vadd.xlane.f32.xlu0 %v1218
      %v1220 = vpop.xlane.xlu0 %1219
      %v1221 = vrcp.pop %v1220
      %v1222 = vmul.f32 %v1215, %v1221
      %v1223 = vmul.f32 %v1217, %v1221
      %v1224 = vpack.c.bf16 %v1222, %v1222
      %v1225 = vpack.c.bf16 %v1223, %v1223
      %1226 = vmatprep.subr.bf16.mxu0 0
      %1227 = vmatpush1.bf16.xpose.msra.mxu0 0
      %1228 = vmatprep.subr.bf16.mxu0 0
      %1229 = vmatpush1.bf16.xpose.msra.mxu0 0
      %1230 = vmatprep.subr.bf16.mxu0 0
      %1231 = vmatpush1.bf16.xpose.msra.mxu0 0
      %1232 = vmatprep.subr.bf16.mxu0 0
      %1233 = vmatpush1.bf16.xpose.msra.mxu0 0
      %1234 = vmatprep.subr.bf16.mxu0 0
      %1235 = vmatpush1.bf16.xpose.msra.mxu0 0
      %1236 = vmatprep.subr.bf16.mxu0 0
      %1237 = vmatpush1.bf16.xpose.msra.mxu0 0
      %1238 = vmatprep.subr.bf16.mxu0 0
      %1239 = vmatpush1.bf16.xpose.msra.mxu0 0
      %1240 = vmatprep.subr.bf16.mxu0 %v1156
      %1241 = vmatpush1.bf16.xpose.msra.mxu0 %v1155
      %1242 = vmatprep.subr.bf16.mxu0 0
      %1243 = vmatpush2.bf16.xpose.msra.mxu0 0
      %1244 = vmatprep.subr.bf16.mxu0 0
      %1245 = vmatpush2.bf16.xpose.msra.mxu0 0
      %1246 = vmatprep.subr.bf16.mxu0 0
      %1247 = vmatpush2.bf16.xpose.msra.mxu0 0
      %1248 = vmatprep.subr.bf16.mxu0 0
      %1249 = vmatpush2.bf16.xpose.msra.mxu0 0
      %1250 = vmatprep.subr.bf16.mxu0 0
      %1251 = vmatpush2.bf16.xpose.msra.mxu0 0
      %1252 = vmatprep.subr.bf16.mxu0 0
      %1253 = vmatpush2.bf16.xpose.msra.mxu0 0
      %1254 = vmatprep.subr.bf16.mxu0 0
      %1255 = vmatpush2.bf16.xpose.msra.mxu0 0
      %1256 = vmatprep.subr.bf16.mxu0 0
      %1257 = vmatpush2.bf16.xpose.msra.mxu0 0
      %1258 = vmatprep.mubr.bf16.mxu0 %v1225
      %1259 = vmatmul.mubr.bf16.gmra.mxu0 %v1224
      %v1260 = vpop.f32.mrf.mxu0
      %v1261 = vadd.f32 0.0, %v1260
      %v1262 = vpop.f32.mrf.mxu0
      %v1263 = vpop.f32.mrf.mxu0
      %v1264 = vpop.f32.mrf.mxu0
      %1265 = vdwg.mxu0
      %v1266 = vpack.c.bf16 %v897, %v897
      %v1267 = vpack.c.bf16 %v899, %v899
      %v1268 = vpack.c.bf16 %v917, %v917
      %v1269 = vpack.c.bf16 %v919, %v919
      %1270 = vrot.lane.b32.xlu0 %v925, 104
      %v1271 = vpop.permute.xlu0 %1270
      %v1273 = vsel %vm930, %v1271, 0
      %v1276 = vsel %vm934, %v1266, 0
      %v1279 = vsel %vm934, %v1267, 0
      %1281 = vmatprep.subr.bf16.mxu0 0
      %1282 = vmatpush1.bf16.msra.mxu0 0
      %1283 = vmatprep.subr.bf16.mxu0 0
      %1284 = vmatpush1.bf16.msra.mxu0 0
      %1285 = vmatprep.subr.bf16.mxu0 0
      %1286 = vmatpush1.bf16.msra.mxu0 0
      %1287 = vmatprep.subr.bf16.mxu0 0
      %1288 = vmatpush1.bf16.msra.mxu0 0
      %1289 = vmatprep.subr.bf16.mxu0 0
      %1290 = vmatpush1.bf16.msra.mxu0 0
      %1291 = vmatprep.subr.bf16.mxu0 0
      %1292 = vmatpush1.bf16.msra.mxu0 0
      %1293 = vmatprep.subr.bf16.mxu0 0
      %1294 = vmatpush1.bf16.msra.mxu0 0
      %1295 = vmatprep.subr.bf16.mxu0 %v1279
      %1296 = vmatpush1.bf16.msra.mxu0 %v1276
      %1297 = vmatprep.subr.bf16.mxu0 0
      %1298 = vmatpush2.bf16.msra.mxu0 0
      %1299 = vmatprep.subr.bf16.mxu0 0
      %1300 = vmatpush2.bf16.msra.mxu0 0
      %1301 = vmatprep.subr.bf16.mxu0 0
      %1302 = vmatpush2.bf16.msra.mxu0 0
      %1303 = vmatprep.subr.bf16.mxu0 0
      %1304 = vmatpush2.bf16.msra.mxu0 0
      %1305 = vmatprep.subr.bf16.mxu0 0
      %1306 = vmatpush2.bf16.msra.mxu0 0
      %1307 = vmatprep.subr.bf16.mxu0 0
      %1308 = vmatpush2.bf16.msra.mxu0 0
      %1309 = vmatprep.subr.bf16.mxu0 0
      %1310 = vmatpush2.bf16.msra.mxu0 0
      %1311 = vmatprep.subr.bf16.mxu0 0
      %1312 = vmatpush2.bf16.msra.mxu0 0
      %1313 = vmatprep.mubr.bf16.mxu0 0
      %1314 = vmatmul.mubr.bf16.gmra.mxu0 %v1273
      %v1315 = vpop.f32.mrf.mxu0
      %v1316 = vadd.f32 0.0, %v1315
      %v1317 = vpop.f32.mrf.mxu0
      %v1318 = vadd.f32 0.0, %v1317
      %v1319 = vpop.f32.mrf.mxu0
      %v1320 = vpop.f32.mrf.mxu0
      %1321 = vdwg.mxu0
      %v1322 = vmax.f32 %v1316, %v1318
      %1323 = vmax.xlane.f32.xlu0 %v1322
      %v1324 = vpop.xlane.xlu0 %1323
      %v1325 = vsub.f32 %v1316, %v1324
      %v1326 = vsub.f32 %v1318, %v1324
      %v1327 = vmul.f32 %v1325, 1.442695
      %v1328 = vpow.pop %v1327
      %v1329 = vmul.f32 %v1326, 1.442695
      %v1330 = vpow.pop %v1329
      %v1331 = vadd.f32 %v1328, %v1330
      %1332 = vadd.xlane.f32.xlu0 %v1331
      %v1333 = vpop.xlane.xlu0 %1332
      %v1334 = vrcp.pop %v1333
      %v1335 = vmul.f32 %v1328, %v1334
      %v1336 = vmul.f32 %v1330, %v1334
      %v1337 = vpack.c.bf16 %v1335, %v1335
      %v1338 = vpack.c.bf16 %v1336, %v1336
      %1339 = vmatprep.subr.bf16.mxu0 0
      %1340 = vmatpush1.bf16.xpose.msra.mxu0 0
      %1341 = vmatprep.subr.bf16.mxu0 0
      %1342 = vmatpush1.bf16.xpose.msra.mxu0 0
      %1343 = vmatprep.subr.bf16.mxu0 0
      %1344 = vmatpush1.bf16.xpose.msra.mxu0 0
      %1345 = vmatprep.subr.bf16.mxu0 0
      %1346 = vmatpush1.bf16.xpose.msra.mxu0 0
      %1347 = vmatprep.subr.bf16.mxu0 0
      %1348 = vmatpush1.bf16.xpose.msra.mxu0 0
      %1349 = vmatprep.subr.bf16.mxu0 0
      %1350 = vmatpush1.bf16.xpose.msra.mxu0 0
      %1351 = vmatprep.subr.bf16.mxu0 0
      %1352 = vmatpush1.bf16.xpose.msra.mxu0 0
      %1353 = vmatprep.subr.bf16.mxu0 %v1269
      %1354 = vmatpush1.bf16.xpose.msra.mxu0 %v1268
      %1355 = vmatprep.subr.bf16.mxu0 0
      %1356 = vmatpush2.bf16.xpose.msra.mxu0 0
      %1357 = vmatprep.subr.bf16.mxu0 0
      %1358 = vmatpush2.bf16.xpose.msra.mxu0 0
      %1359 = vmatprep.subr.bf16.mxu0 0
      %1360 = vmatpush2.bf16.xpose.msra.mxu0 0
      %1361 = vmatprep.subr.bf16.mxu0 0
      %1362 = vmatpush2.bf16.xpose.msra.mxu0 0
      %1363 = vmatprep.subr.bf16.mxu0 0
      %1364 = vmatpush2.bf16.xpose.msra.mxu0 0
      %1365 = vmatprep.subr.bf16.mxu0 0
      %1366 = vmatpush2.bf16.xpose.msra.mxu0 0
      %1367 = vmatprep.subr.bf16.mxu0 0
      %1368 = vmatpush2.bf16.xpose.msra.mxu0 0
      %1369 = vmatprep.subr.bf16.mxu0 0
      %1370 = vmatpush2.bf16.xpose.msra.mxu0 0
      %1371 = vmatprep.mubr.bf16.mxu0 %v1338
      %1372 = vmatmul.mubr.bf16.gmra.mxu0 %v1337
      %v1373 = vpop.f32.mrf.mxu0
      %v1374 = vadd.f32 0.0, %v1373
      %v1375 = vpop.f32.mrf.mxu0
      %v1376 = vpop.f32.mrf.mxu0
      %v1377 = vpop.f32.mrf.mxu0
      %1378 = vdwg.mxu0
      %1380 = vrot.lane.b32.xlu0 %v1148, 8
      %v1381 = vpop.permute.xlu0 %1380
      %1384 = vrot.lane.b32.xlu0 %v1261, 16
      %v1385 = vpop.permute.xlu0 %1384
      %1388 = vrot.lane.b32.xlu0 %v1374, 24
      %v1389 = vpop.permute.xlu0 %1388
      %v1391 = vsel %vm930, %v1034, %v1381
      %vm1392 = vcmask 130048
      %v1393 = vsel %vm1392, %v1391, %v1385
      %vm1394 = vcmask 195584
      %v1395 = vsel %vm1394, %v1393, %v1389
      %v1396 = vpack.c.bf16 %v1395, %v1395
      %v1397 = vlaneseq
      %v1398 = vshrl.u32 %v1397, 7
      %v1399 = vsub.s32 1, %v1398
      %v1400 = vrot.slane %v671, %v1399
      %v1405 = vunpack.c.l.b16 %v921
      %v1406 = vunpack.c.l.b16 %v922
      %v1407 = vunpack.c.l.b16 %v923
      %v1408 = vunpack.c.l.b16 %v924
      %v1409 = vpack.c.b16 %v1406, %v1405
      %v1410 = vpack.c.b16 %v1408, %v1407
      %v1414 = vsel %vm672, %v1396, 0
      %1416 = vmatprep.subr.bf16.mxu0 0
      %1417 = vmatpush1.bf16.msra.mxu0 0
      %1418 = vmatprep.subr.bf16.mxu0 0
      %1419 = vmatpush1.bf16.msra.mxu0 0
      %1420 = vmatprep.subr.bf16.mxu0 0
      %1421 = vmatpush1.bf16.msra.mxu0 0
      %1422 = vmatprep.subr.bf16.mxu0 0
      %1423 = vmatpush1.bf16.msra.mxu0 0
      %1424 = vmatprep.subr.bf16.mxu0 0
      %1425 = vmatpush1.bf16.msra.mxu0 0
      %1426 = vmatprep.subr.bf16.mxu0 0
      %1427 = vmatpush1.bf16.msra.mxu0 0
      %1428 = vmatprep.subr.bf16.mxu0 0
      %1429 = vmatpush1.bf16.msra.mxu0 %v1410
      %1430 = vmatprep.subr.bf16.mxu0 0
      %1431 = vmatpush1.bf16.msra.mxu0 %v1409
      %1432 = vmatprep.subr.bf16.mxu0 0
      %1433 = vmatpush2.bf16.msra.mxu0 0
      %1434 = vmatprep.subr.bf16.mxu0 0
      %1435 = vmatpush2.bf16.msra.mxu0 0
      %1436 = vmatprep.subr.bf16.mxu0 0
      %1437 = vmatpush2.bf16.msra.mxu0 0
      %1438 = vmatprep.subr.bf16.mxu0 0
      %1439 = vmatpush2.bf16.msra.mxu0 0
      %1440 = vmatprep.subr.bf16.mxu0 0
      %1441 = vmatpush2.bf16.msra.mxu0 0
      %1442 = vmatprep.subr.bf16.mxu0 0
      %1443 = vmatpush2.bf16.msra.mxu0 0
      %1444 = vmatprep.subr.bf16.mxu0 0
      %1445 = vmatpush2.bf16.msra.mxu0 0
      %1446 = vmatprep.subr.bf16.mxu0 0
      %1447 = vmatpush2.bf16.msra.mxu0 0
      %1448 = vmatprep.mubr.bf16.mxu0 0
      %1449 = vmatmul.mubr.bf16.gmra.mxu0 %v1414
      %v1450 = vpop.f32.mrf.mxu0
      %v1451 = vadd.f32 %v1400, %v1450
      %v1452 = vpop.f32.mrf.mxu0
      %v1453 = vpop.f32.mrf.mxu0
      %v1454 = vpop.f32.mrf.mxu0
      %1455 = vdwg.mxu0
      %v1456 = vadd.f32 %v669, %v1451
      %v1457 = vsel %vm672, %v1456, 0.0
      %1458 = vadd.xlane.f32.xlu0 %v1457
      %v1459 = vpop.xlane.xlu0 %1458
      %v1460 = vmul.f32 %v1459, %v549
      %v1461 = vsub.f32 %v1456, %v1460
      %v1462 = vmul.f32 %v1461, %v1461
      %v1463 = vsel %vm672, %v1462, 0.0
      %1464 = vadd.xlane.f32.xlu0 %v1463
      %v1465 = vpop.xlane.xlu0 %1464
      %v1466 = vmul.f32 %v1465, %v549
      %v1467 = vadd.f32 %v1466, 1e-05
      %v1468 = vrsqrt.pop %v1467
      %v1469 = vmul.f32 %v1461, %v1468
      %v1470 = vlaneseq
      %v1471 = vshrl.u32 %v1470, 7
      %v1472 = vsub.s32 2, %v1471
      %v1473 = vrot.slane %v670, %v1472
      %v1474 = vmul.f32 %v1469, %v1473
      %v1475 = vlaneseq
      %v1476 = vshrl.u32 %v1475, 7
      %v1477 = vsub.s32 3, %v1476
      %v1478 = vrot.slane %v670, %v1477
      %v1479 = vadd.f32 %v1474, %v1478
      %v1480 = vpack.c.bf16 %v1479, %v1479
      %v1481 = vld [vmem:[%s8] sm:$0xf]
      %v1482 = vld [vmem:[%s8 + $0x4] sm:$0xf]
      %v1483 = vld [vmem:[%s8 + $0x8] sm:$0xf]
      %v1484 = vld [vmem:[%s8 + $0xc] sm:$0xf]
      %v1485 = vld [vmem:[%s14] sm:$0x1]
      %v1487 = vlaneseq
      %v1488 = vshrl.u32 %v1487, 7
      %v1489 = vsub.s32 0, %v1488
      %v1490 = vrot.slane %v1485, %v1489
      %v1496 = vunpack.c.l.b16 %v1481
      %v1497 = vunpack.c.l.b16 %v1482
      %v1498 = vunpack.c.l.b16 %v1483
      %v1499 = vunpack.c.l.b16 %v1484
      %v1500 = vpack.c.b16 %v1497, %v1496
      %v1501 = vpack.c.b16 %v1499, %v1498
      %v1505 = vsel %vm672, %v1480, 0
      %1507 = vmatprep.subr.bf16.mxu0 0
      %1508 = vmatpush1.bf16.msra.mxu0 0
      %1509 = vmatprep.subr.bf16.mxu0 0
      %1510 = vmatpush1.bf16.msra.mxu0 0
      %1511 = vmatprep.subr.bf16.mxu0 0
      %1512 = vmatpush1.bf16.msra.mxu0 0
      %1513 = vmatprep.subr.bf16.mxu0 0
      %1514 = vmatpush1.bf16.msra.mxu0 0
      %1515 = vmatprep.subr.bf16.mxu0 0
      %1516 = vmatpush1.bf16.msra.mxu0 0
      %1517 = vmatprep.subr.bf16.mxu0 0
      %1518 = vmatpush1.bf16.msra.mxu0 0
      %1519 = vmatprep.subr.bf16.mxu0 0
      %1520 = vmatpush1.bf16.msra.mxu0 %v1501
      %1521 = vmatprep.subr.bf16.mxu0 0
      %1522 = vmatpush1.bf16.msra.mxu0 %v1500
      %1523 = vmatprep.subr.bf16.mxu0 0
      %1524 = vmatpush2.bf16.msra.mxu0 0
      %1525 = vmatprep.subr.bf16.mxu0 0
      %1526 = vmatpush2.bf16.msra.mxu0 0
      %1527 = vmatprep.subr.bf16.mxu0 0
      %1528 = vmatpush2.bf16.msra.mxu0 0
      %1529 = vmatprep.subr.bf16.mxu0 0
      %1530 = vmatpush2.bf16.msra.mxu0 0
      %1531 = vmatprep.subr.bf16.mxu0 0
      %1532 = vmatpush2.bf16.msra.mxu0 0
      %1533 = vmatprep.subr.bf16.mxu0 0
      %1534 = vmatpush2.bf16.msra.mxu0 0
      %1535 = vmatprep.subr.bf16.mxu0 0
      %1536 = vmatpush2.bf16.msra.mxu0 0
      %1537 = vmatprep.subr.bf16.mxu0 0
      %1538 = vmatpush2.bf16.msra.mxu0 0
      %1539 = vmatprep.mubr.bf16.mxu0 0
      %1540 = vmatmul.mubr.bf16.gmra.mxu0 %v1505
      %v1541 = vpop.f32.mrf.mxu0
      %v1542 = vadd.f32 %v1490, %v1541
      %v1543 = vpop.f32.mrf.mxu0
      %v1544 = vpop.f32.mrf.mxu0
      %v1545 = vpop.f32.mrf.mxu0
      %1546 = vdwg.mxu0
      %v1547 = vld [vmem:[%s9] sm:$0xf]
      %v1548 = vld [vmem:[%s9 + $0x4] sm:$0xf]
      %v1549 = vld [vmem:[%s9 + $0x8] sm:$0xf]
      %v1550 = vld [vmem:[%s9 + $0xc] sm:$0xf]
      %v1551 = vpack.c.bf16 %v1542, %v1542
      %1553 = vrot.lane.b32.xlu0 %v1551, 96
      %v1554 = vpop.permute.xlu0 %1553
      %v1556 = vsel %vm930, %v1551, 0
      %v1559 = vsel %vm930, %v1554, 0
      %1561 = vmatprep.subr.bf16.mxu0 0
      %1562 = vmatpush1.bf16.xpose.msra.mxu0 0
      %1563 = vmatprep.subr.bf16.mxu0 0
      %1564 = vmatpush1.bf16.xpose.msra.mxu0 0
      %1565 = vmatprep.subr.bf16.mxu0 0
      %1566 = vmatpush1.bf16.xpose.msra.mxu0 0
      %1567 = vmatprep.subr.bf16.mxu0 0
      %1568 = vmatpush1.bf16.xpose.msra.mxu0 0
      %1569 = vmatprep.subr.bf16.mxu0 0
      %1570 = vmatpush1.bf16.xpose.msra.mxu0 0
      %1571 = vmatprep.subr.bf16.mxu0 0
      %1572 = vmatpush1.bf16.xpose.msra.mxu0 0
      %1573 = vmatprep.subr.bf16.mxu0 0
      %1574 = vmatpush1.bf16.xpose.msra.mxu0 0
      %1575 = vmatprep.subr.bf16.mxu0 0
      %1576 = vmatpush1.bf16.xpose.msra.mxu0 %v1559
      %1577 = vmatprep.subr.bf16.mxu0 0
      %1578 = vmatpush2.bf16.xpose.msra.mxu0 0
      %1579 = vmatprep.subr.bf16.mxu0 0
      %1580 = vmatpush2.bf16.xpose.msra.mxu0 0
      %1581 = vmatprep.subr.bf16.mxu0 0
      %1582 = vmatpush2.bf16.xpose.msra.mxu0 0
      %1583 = vmatprep.subr.bf16.mxu0 0
      %1584 = vmatpush2.bf16.xpose.msra.mxu0 0
      %1585 = vmatprep.subr.bf16.mxu0 0
      %1586 = vmatpush2.bf16.xpose.msra.mxu0 0
      %1587 = vmatprep.subr.bf16.mxu0 0
      %1588 = vmatpush2.bf16.xpose.msra.mxu0 0
      %1589 = vmatprep.subr.bf16.mxu0 0
      %1590 = vmatpush2.bf16.xpose.msra.mxu0 0
      %1591 = vmatprep.subr.bf16.mxu0 0
      %1592 = vmatpush2.bf16.xpose.msra.mxu0 0
      %1593 = vmatprep.mubr.bf16.mxu0 0
      %1594 = vmatmul.mubr.bf16.gmra.mxu0 %v1556
      %v1595 = vpop.f32.mrf.mxu0
      %v1596 = vadd.f32 0.0, %v1595
      %v1597 = vpop.f32.mrf.mxu0
      %v1598 = vpop.f32.mrf.mxu0
      %v1599 = vpop.f32.mrf.mxu0
      %1600 = vdwg.mxu0
      %v1601 = vsel %vm930, %v1596, -inf
      %1602 = vmax.xlane.f32.xlu0 %v1601
      %v1603 = vpop.xlane.xlu0 %1602
      %v1604 = vsub.f32 %v1596, %v1603
      %v1605 = vmul.f32 %v1604, 1.442695
      %v1606 = vpow.pop %v1605
      %v1607 = vsel %vm930, %v1606, 0.0
      %1608 = vadd.xlane.f32.xlu0 %v1607
      %v1609 = vpop.xlane.xlu0 %1608
      %v1610 = vrcp.pop %v1609
      %v1611 = vmul.f32 %v1606, %v1610
      %v1612 = vpack.c.bf16 %v1611, %v1611
      %1613 = vrot.lane.b32.xlu0 %v1551, 64
      %v1614 = vpop.permute.xlu0 %1613
      %v1616 = vsel %vm930, %v1612, 0
      %v1619 = vsel %vm934, %v1614, 0
      %1621 = vmatprep.subr.bf16.mxu0 0
      %1622 = vmatpush1.bf16.msra.mxu0 0
      %1623 = vmatprep.subr.bf16.mxu0 0
      %1624 = vmatpush1.bf16.msra.mxu0 0
      %1625 = vmatprep.subr.bf16.mxu0 0
      %1626 = vmatpush1.bf16.msra.mxu0 0
      %1627 = vmatprep.subr.bf16.mxu0 0
      %1628 = vmatpush1.bf16.msra.mxu0 0
      %1629 = vmatprep.subr.bf16.mxu0 0
      %1630 = vmatpush1.bf16.msra.mxu0 0
      %1631 = vmatprep.subr.bf16.mxu0 0
      %1632 = vmatpush1.bf16.msra.mxu0 0
      %1633 = vmatprep.subr.bf16.mxu0 0
      %1634 = vmatpush1.bf16.msra.mxu0 0
      %1635 = vmatprep.subr.bf16.mxu0 0
      %1636 = vmatpush1.bf16.msra.mxu0 %v1619
      %1637 = vmatprep.subr.bf16.mxu0 0
      %1638 = vmatpush2.bf16.msra.mxu0 0
      %1639 = vmatprep.subr.bf16.mxu0 0
      %1640 = vmatpush2.bf16.msra.mxu0 0
      %1641 = vmatprep.subr.bf16.mxu0 0
      %1642 = vmatpush2.bf16.msra.mxu0 0
      %1643 = vmatprep.subr.bf16.mxu0 0
      %1644 = vmatpush2.bf16.msra.mxu0 0
      %1645 = vmatprep.subr.bf16.mxu0 0
      %1646 = vmatpush2.bf16.msra.mxu0 0
      %1647 = vmatprep.subr.bf16.mxu0 0
      %1648 = vmatpush2.bf16.msra.mxu0 0
      %1649 = vmatprep.subr.bf16.mxu0 0
      %1650 = vmatpush2.bf16.msra.mxu0 0
      %1651 = vmatprep.subr.bf16.mxu0 0
      %1652 = vmatpush2.bf16.msra.mxu0 0
      %1653 = vmatprep.mubr.bf16.mxu0 0
      %1654 = vmatmul.mubr.bf16.gmra.mxu0 %v1616
      %v1655 = vpop.f32.mrf.mxu0
      %v1656 = vadd.f32 0.0, %v1655
      %v1657 = vpop.f32.mrf.mxu0
      %v1658 = vpop.f32.mrf.mxu0
      %v1659 = vpop.f32.mrf.mxu0
      %1660 = vdwg.mxu0
      %1661 = vrot.lane.b32.xlu0 %v1551, 120
      %v1662 = vpop.permute.xlu0 %1661
      %1663 = vrot.lane.b32.xlu0 %v1551, 88
      %v1664 = vpop.permute.xlu0 %1663
      %v1666 = vsel %vm930, %v1662, 0
      %v1669 = vsel %vm930, %v1664, 0
      %1671 = vmatprep.subr.bf16.mxu0 0
      %1672 = vmatpush1.bf16.xpose.msra.mxu0 0
      %1673 = vmatprep.subr.bf16.mxu0 0
      %1674 = vmatpush1.bf16.xpose.msra.mxu0 0
      %1675 = vmatprep.subr.bf16.mxu0 0
      %1676 = vmatpush1.bf16.xpose.msra.mxu0 0
      %1677 = vmatprep.subr.bf16.mxu0 0
      %1678 = vmatpush1.bf16.xpose.msra.mxu0 0
      %1679 = vmatprep.subr.bf16.mxu0 0
      %1680 = vmatpush1.bf16.xpose.msra.mxu0 0
      %1681 = vmatprep.subr.bf16.mxu0 0
      %1682 = vmatpush1.bf16.xpose.msra.mxu0 0
      %1683 = vmatprep.subr.bf16.mxu0 0
      %1684 = vmatpush1.bf16.xpose.msra.mxu0 0
      %1685 = vmatprep.subr.bf16.mxu0 0
      %1686 = vmatpush1.bf16.xpose.msra.mxu0 %v1669
      %1687 = vmatprep.subr.bf16.mxu0 0
      %1688 = vmatpush2.bf16.xpose.msra.mxu0 0
      %1689 = vmatprep.subr.bf16.mxu0 0
      %1690 = vmatpush2.bf16.xpose.msra.mxu0 0
      %1691 = vmatprep.subr.bf16.mxu0 0
      %1692 = vmatpush2.bf16.xpose.msra.mxu0 0
      %1693 = vmatprep.subr.bf16.mxu0 0
      %1694 = vmatpush2.bf16.xpose.msra.mxu0 0
      %1695 = vmatprep.subr.bf16.mxu0 0
      %1696 = vmatpush2.bf16.xpose.msra.mxu0 0
      %1697 = vmatprep.subr.bf16.mxu0 0
      %1698 = vmatpush2.bf16.xpose.msra.mxu0 0
      %1699 = vmatprep.subr.bf16.mxu0 0
      %1700 = vmatpush2.bf16.xpose.msra.mxu0 0
      %1701 = vmatprep.subr.bf16.mxu0 0
      %1702 = vmatpush2.bf16.xpose.msra.mxu0 0
      %1703 = vmatprep.mubr.bf16.mxu0 0
      %1704 = vmatmul.mubr.bf16.gmra.mxu0 %v1666
      %v1705 = vpop.f32.mrf.mxu0
      %v1706 = vadd.f32 0.0, %v1705
      %v1707 = vpop.f32.mrf.mxu0
      %v1708 = vpop.f32.mrf.mxu0
      %v1709 = vpop.f32.mrf.mxu0
      %1710 = vdwg.mxu0
      %v1711 = vsel %vm930, %v1706, -inf
      %1712 = vmax.xlane.f32.xlu0 %v1711
      %v1713 = vpop.xlane.xlu0 %1712
      %v1714 = vsub.f32 %v1706, %v1713
      %v1715 = vmul.f32 %v1714, 1.442695
      %v1716 = vpow.pop %v1715
      %v1717 = vsel %vm930, %v1716, 0.0
      %1718 = vadd.xlane.f32.xlu0 %v1717
      %v1719 = vpop.xlane.xlu0 %1718
      %v1720 = vrcp.pop %v1719
      %v1721 = vmul.f32 %v1716, %v1720
      %v1722 = vpack.c.bf16 %v1721, %v1721
      %1723 = vrot.lane.b32.xlu0 %v1551, 56
      %v1724 = vpop.permute.xlu0 %1723
      %v1726 = vsel %vm930, %v1722, 0
      %v1729 = vsel %vm934, %v1724, 0
      %1731 = vmatprep.subr.bf16.mxu0 0
      %1732 = vmatpush1.bf16.msra.mxu0 0
      %1733 = vmatprep.subr.bf16.mxu0 0
      %1734 = vmatpush1.bf16.msra.mxu0 0
      %1735 = vmatprep.subr.bf16.mxu0 0
      %1736 = vmatpush1.bf16.msra.mxu0 0
      %1737 = vmatprep.subr.bf16.mxu0 0
      %1738 = vmatpush1.bf16.msra.mxu0 0
      %1739 = vmatprep.subr.bf16.mxu0 0
      %1740 = vmatpush1.bf16.msra.mxu0 0
      %1741 = vmatprep.subr.bf16.mxu0 0
      %1742 = vmatpush1.bf16.msra.mxu0 0
      %1743 = vmatprep.subr.bf16.mxu0 0
      %1744 = vmatpush1.bf16.msra.mxu0 0
      %1745 = vmatprep.subr.bf16.mxu0 0
      %1746 = vmatpush1.bf16.msra.mxu0 %v1729
      %1747 = vmatprep.subr.bf16.mxu0 0
      %1748 = vmatpush2.bf16.msra.mxu0 0
      %1749 = vmatprep.subr.bf16.mxu0 0
      %1750 = vmatpush2.bf16.msra.mxu0 0
      %1751 = vmatprep.subr.bf16.mxu0 0
      %1752 = vmatpush2.bf16.msra.mxu0 0
      %1753 = vmatprep.subr.bf16.mxu0 0
      %1754 = vmatpush2.bf16.msra.mxu0 0
      %1755 = vmatprep.subr.bf16.mxu0 0
      %1756 = vmatpush2.bf16.msra.mxu0 0
      %1757 = vmatprep.subr.bf16.mxu0 0
      %1758 = vmatpush2.bf16.msra.mxu0 0
      %1759 = vmatprep.subr.bf16.mxu0 0
      %1760 = vmatpush2.bf16.msra.mxu0 0
      %1761 = vmatprep.subr.bf16.mxu0 0
      %1762 = vmatpush2.bf16.msra.mxu0 0
      %1763 = vmatprep.mubr.bf16.mxu0 0
      %1764 = vmatmul.mubr.bf16.gmra.mxu0 %v1726
      %v1765 = vpop.f32.mrf.mxu0
      %v1766 = vadd.f32 0.0, %v1765
      %v1767 = vpop.f32.mrf.mxu0
      %v1768 = vpop.f32.mrf.mxu0
      %v1769 = vpop.f32.mrf.mxu0
      %1770 = vdwg.mxu0
      %1771 = vrot.lane.b32.xlu0 %v1551, 112
      %v1772 = vpop.permute.xlu0 %1771
      %1773 = vrot.lane.b32.xlu0 %v1551, 80
      %v1774 = vpop.permute.xlu0 %1773
      %v1776 = vsel %vm930, %v1772, 0
      %v1779 = vsel %vm930, %v1774, 0
      %1781 = vmatprep.subr.bf16.mxu0 0
      %1782 = vmatpush1.bf16.xpose.msra.mxu0 0
      %1783 = vmatprep.subr.bf16.mxu0 0
      %1784 = vmatpush1.bf16.xpose.msra.mxu0 0
      %1785 = vmatprep.subr.bf16.mxu0 0
      %1786 = vmatpush1.bf16.xpose.msra.mxu0 0
      %1787 = vmatprep.subr.bf16.mxu0 0
      %1788 = vmatpush1.bf16.xpose.msra.mxu0 0
      %1789 = vmatprep.subr.bf16.mxu0 0
      %1790 = vmatpush1.bf16.xpose.msra.mxu0 0
      %1791 = vmatprep.subr.bf16.mxu0 0
      %1792 = vmatpush1.bf16.xpose.msra.mxu0 0
      %1793 = vmatprep.subr.bf16.mxu0 0
      %1794 = vmatpush1.bf16.xpose.msra.mxu0 0
      %1795 = vmatprep.subr.bf16.mxu0 0
      %1796 = vmatpush1.bf16.xpose.msra.mxu0 %v1779
      %1797 = vmatprep.subr.bf16.mxu0 0
      %1798 = vmatpush2.bf16.xpose.msra.mxu0 0
      %1799 = vmatprep.subr.bf16.mxu0 0
      %1800 = vmatpush2.bf16.xpose.msra.mxu0 0
      %1801 = vmatprep.subr.bf16.mxu0 0
      %1802 = vmatpush2.bf16.xpose.msra.mxu0 0
      %1803 = vmatprep.subr.bf16.mxu0 0
      %1804 = vmatpush2.bf16.xpose.msra.mxu0 0
      %1805 = vmatprep.subr.bf16.mxu0 0
      %1806 = vmatpush2.bf16.xpose.msra.mxu0 0
      %1807 = vmatprep.subr.bf16.mxu0 0
      %1808 = vmatpush2.bf16.xpose.msra.mxu0 0
      %1809 = vmatprep.subr.bf16.mxu0 0
      %1810 = vmatpush2.bf16.xpose.msra.mxu0 0
      %1811 = vmatprep.subr.bf16.mxu0 0
      %1812 = vmatpush2.bf16.xpose.msra.mxu0 0
      %1813 = vmatprep.mubr.bf16.mxu0 0
      %1814 = vmatmul.mubr.bf16.gmra.mxu0 %v1776
      %v1815 = vpop.f32.mrf.mxu0
      %v1816 = vadd.f32 0.0, %v1815
      %v1817 = vpop.f32.mrf.mxu0
      %v1818 = vpop.f32.mrf.mxu0
      %v1819 = vpop.f32.mrf.mxu0
      %1820 = vdwg.mxu0
      %v1821 = vsel %vm930, %v1816, -inf
      %1822 = vmax.xlane.f32.xlu0 %v1821
      %v1823 = vpop.xlane.xlu0 %1822
      %v1824 = vsub.f32 %v1816, %v1823
      %v1825 = vmul.f32 %v1824, 1.442695
      %v1826 = vpow.pop %v1825
      %v1827 = vsel %vm930, %v1826, 0.0
      %1828 = vadd.xlane.f32.xlu0 %v1827
      %v1829 = vpop.xlane.xlu0 %1828
      %v1830 = vrcp.pop %v1829
      %v1831 = vmul.f32 %v1826, %v1830
      %v1832 = vpack.c.bf16 %v1831, %v1831
      %1833 = vrot.lane.b32.xlu0 %v1551, 48
      %v1834 = vpop.permute.xlu0 %1833
      %v1836 = vsel %vm930, %v1832, 0
      %v1839 = vsel %vm934, %v1834, 0
      %1841 = vmatprep.subr.bf16.mxu0 0
      %1842 = vmatpush1.bf16.msra.mxu0 0
      %1843 = vmatprep.subr.bf16.mxu0 0
      %1844 = vmatpush1.bf16.msra.mxu0 0
      %1845 = vmatprep.subr.bf16.mxu0 0
      %1846 = vmatpush1.bf16.msra.mxu0 0
      %1847 = vmatprep.subr.bf16.mxu0 0
      %1848 = vmatpush1.bf16.msra.mxu0 0
      %1849 = vmatprep.subr.bf16.mxu0 0
      %1850 = vmatpush1.bf16.msra.mxu0 0
      %1851 = vmatprep.subr.bf16.mxu0 0
      %1852 = vmatpush1.bf16.msra.mxu0 0
      %1853 = vmatprep.subr.bf16.mxu0 0
      %1854 = vmatpush1.bf16.msra.mxu0 0
      %1855 = vmatprep.subr.bf16.mxu0 0
      %1856 = vmatpush1.bf16.msra.mxu0 %v1839
      %1857 = vmatprep.subr.bf16.mxu0 0
      %1858 = vmatpush2.bf16.msra.mxu0 0
      %1859 = vmatprep.subr.bf16.mxu0 0
      %1860 = vmatpush2.bf16.msra.mxu0 0
      %1861 = vmatprep.subr.bf16.mxu0 0
      %1862 = vmatpush2.bf16.msra.mxu0 0
      %1863 = vmatprep.subr.bf16.mxu0 0
      %1864 = vmatpush2.bf16.msra.mxu0 0
      %1865 = vmatprep.subr.bf16.mxu0 0
      %1866 = vmatpush2.bf16.msra.mxu0 0
      %1867 = vmatprep.subr.bf16.mxu0 0
      %1868 = vmatpush2.bf16.msra.mxu0 0
      %1869 = vmatprep.subr.bf16.mxu0 0
      %1870 = vmatpush2.bf16.msra.mxu0 0
      %1871 = vmatprep.subr.bf16.mxu0 0
      %1872 = vmatpush2.bf16.msra.mxu0 0
      %1873 = vmatprep.mubr.bf16.mxu0 0
      %1874 = vmatmul.mubr.bf16.gmra.mxu0 %v1836
      %v1875 = vpop.f32.mrf.mxu0
      %v1876 = vadd.f32 0.0, %v1875
      %v1877 = vpop.f32.mrf.mxu0
      %v1878 = vpop.f32.mrf.mxu0
      %v1879 = vpop.f32.mrf.mxu0
      %1880 = vdwg.mxu0
      %1881 = vrot.lane.b32.xlu0 %v1551, 104
      %v1882 = vpop.permute.xlu0 %1881
      %1883 = vrot.lane.b32.xlu0 %v1551, 72
      %v1884 = vpop.permute.xlu0 %1883
      %v1886 = vsel %vm930, %v1882, 0
      %v1889 = vsel %vm930, %v1884, 0
      %1891 = vmatprep.subr.bf16.mxu0 0
      %1892 = vmatpush1.bf16.xpose.msra.mxu0 0
      %1893 = vmatprep.subr.bf16.mxu0 0
      %1894 = vmatpush1.bf16.xpose.msra.mxu0 0
      %1895 = vmatprep.subr.bf16.mxu0 0
      %1896 = vmatpush1.bf16.xpose.msra.mxu0 0
      %1897 = vmatprep.subr.bf16.mxu0 0
      %1898 = vmatpush1.bf16.xpose.msra.mxu0 0
      %1899 = vmatprep.subr.bf16.mxu0 0
      %1900 = vmatpush1.bf16.xpose.msra.mxu0 0
      %1901 = vmatprep.subr.bf16.mxu0 0
      %1902 = vmatpush1.bf16.xpose.msra.mxu0 0
      %1903 = vmatprep.subr.bf16.mxu0 0
      %1904 = vmatpush1.bf16.xpose.msra.mxu0 0
      %1905 = vmatprep.subr.bf16.mxu0 0
      %1906 = vmatpush1.bf16.xpose.msra.mxu0 %v1889
      %1907 = vmatprep.subr.bf16.mxu0 0
      %1908 = vmatpush2.bf16.xpose.msra.mxu0 0
      %1909 = vmatprep.subr.bf16.mxu0 0
      %1910 = vmatpush2.bf16.xpose.msra.mxu0 0
      %1911 = vmatprep.subr.bf16.mxu0 0
      %1912 = vmatpush2.bf16.xpose.msra.mxu0 0
      %1913 = vmatprep.subr.bf16.mxu0 0
      %1914 = vmatpush2.bf16.xpose.msra.mxu0 0
      %1915 = vmatprep.subr.bf16.mxu0 0
      %1916 = vmatpush2.bf16.xpose.msra.mxu0 0
      %1917 = vmatprep.subr.bf16.mxu0 0
      %1918 = vmatpush2.bf16.xpose.msra.mxu0 0
      %1919 = vmatprep.subr.bf16.mxu0 0
      %1920 = vmatpush2.bf16.xpose.msra.mxu0 0
      %1921 = vmatprep.subr.bf16.mxu0 0
      %1922 = vmatpush2.bf16.xpose.msra.mxu0 0
      %1923 = vmatprep.mubr.bf16.mxu0 0
      %1924 = vmatmul.mubr.bf16.gmra.mxu0 %v1886
      %v1925 = vpop.f32.mrf.mxu0
      %v1926 = vadd.f32 0.0, %v1925
      %v1927 = vpop.f32.mrf.mxu0
      %v1928 = vpop.f32.mrf.mxu0
      %v1929 = vpop.f32.mrf.mxu0
      %1930 = vdwg.mxu0
      %v1931 = vsel %vm930, %v1926, -inf
      %1932 = vmax.xlane.f32.xlu0 %v1931
      %v1933 = vpop.xlane.xlu0 %1932
      %v1934 = vsub.f32 %v1926, %v1933
      %v1935 = vmul.f32 %v1934, 1.442695
      %v1936 = vpow.pop %v1935
      %v1937 = vsel %vm930, %v1936, 0.0
      %1938 = vadd.xlane.f32.xlu0 %v1937
      %v1939 = vpop.xlane.xlu0 %1938
      %v1940 = vrcp.pop %v1939
      %v1941 = vmul.f32 %v1936, %v1940
      %v1942 = vpack.c.bf16 %v1941, %v1941
      %1943 = vrot.lane.b32.xlu0 %v1551, 40
      %v1944 = vpop.permute.xlu0 %1943
      %v1946 = vsel %vm930, %v1942, 0
      %v1949 = vsel %vm934, %v1944, 0
      %1951 = vmatprep.subr.bf16.mxu0 0
      %1952 = vmatpush1.bf16.msra.mxu0 0
      %1953 = vmatprep.subr.bf16.mxu0 0
      %1954 = vmatpush1.bf16.msra.mxu0 0
      %1955 = vmatprep.subr.bf16.mxu0 0
      %1956 = vmatpush1.bf16.msra.mxu0 0
      %1957 = vmatprep.subr.bf16.mxu0 0
      %1958 = vmatpush1.bf16.msra.mxu0 0
      %1959 = vmatprep.subr.bf16.mxu0 0
      %1960 = vmatpush1.bf16.msra.mxu0 0
      %1961 = vmatprep.subr.bf16.mxu0 0
      %1962 = vmatpush1.bf16.msra.mxu0 0
      %1963 = vmatprep.subr.bf16.mxu0 0
      %1964 = vmatpush1.bf16.msra.mxu0 0
      %1965 = vmatprep.subr.bf16.mxu0 0
      %1966 = vmatpush1.bf16.msra.mxu0 %v1949
      %1967 = vmatprep.subr.bf16.mxu0 0
      %1968 = vmatpush2.bf16.msra.mxu0 0
      %1969 = vmatprep.subr.bf16.mxu0 0
      %1970 = vmatpush2.bf16.msra.mxu0 0
      %1971 = vmatprep.subr.bf16.mxu0 0
      %1972 = vmatpush2.bf16.msra.mxu0 0
      %1973 = vmatprep.subr.bf16.mxu0 0
      %1974 = vmatpush2.bf16.msra.mxu0 0
      %1975 = vmatprep.subr.bf16.mxu0 0
      %1976 = vmatpush2.bf16.msra.mxu0 0
      %1977 = vmatprep.subr.bf16.mxu0 0
      %1978 = vmatpush2.bf16.msra.mxu0 0
      %1979 = vmatprep.subr.bf16.mxu0 0
      %1980 = vmatpush2.bf16.msra.mxu0 0
      %1981 = vmatprep.subr.bf16.mxu0 0
      %1982 = vmatpush2.bf16.msra.mxu0 0
      %1983 = vmatprep.mubr.bf16.mxu0 0
      %1984 = vmatmul.mubr.bf16.gmra.mxu0 %v1946
      %v1985 = vpop.f32.mrf.mxu0
      %v1986 = vadd.f32 0.0, %v1985
      %v1987 = vpop.f32.mrf.mxu0
      %v1988 = vpop.f32.mrf.mxu0
      %v1989 = vpop.f32.mrf.mxu0
      %1990 = vdwg.mxu0
      %1992 = vrot.lane.b32.xlu0 %v1766, 8
      %v1993 = vpop.permute.xlu0 %1992
      %1996 = vrot.lane.b32.xlu0 %v1876, 16
      %v1997 = vpop.permute.xlu0 %1996
      %2000 = vrot.lane.b32.xlu0 %v1986, 24
      %v2001 = vpop.permute.xlu0 %2000
      %v2003 = vsel %vm930, %v1656, %v1993
      %v2004 = vsel %vm1392, %v2003, %v1997
      %v2005 = vsel %vm1394, %v2004, %v2001
      %v2006 = vpack.c.bf16 %v2005, %v2005
      %v2007 = vlaneseq
      %v2008 = vshrl.u32 %v2007, 7
      %v2009 = vsub.s32 2, %v2008
      %v2010 = vrot.slane %v671, %v2009
      %v2015 = vunpack.c.l.b16 %v1547
      %v2016 = vunpack.c.l.b16 %v1548
      %v2017 = vunpack.c.l.b16 %v1549
      %v2018 = vunpack.c.l.b16 %v1550
      %v2019 = vpack.c.b16 %v2016, %v2015
      %v2020 = vpack.c.b16 %v2018, %v2017
      %v2024 = vsel %vm672, %v2006, 0
      %2026 = vmatprep.subr.bf16.mxu0 0
      %2027 = vmatpush1.bf16.msra.mxu0 0
      %2028 = vmatprep.subr.bf16.mxu0 0
      %2029 = vmatpush1.bf16.msra.mxu0 0
      %2030 = vmatprep.subr.bf16.mxu0 0
      %2031 = vmatpush1.bf16.msra.mxu0 0
      %2032 = vmatprep.subr.bf16.mxu0 0
      %2033 = vmatpush1.bf16.msra.mxu0 0
      %2034 = vmatprep.subr.bf16.mxu0 0
      %2035 = vmatpush1.bf16.msra.mxu0 0
      %2036 = vmatprep.subr.bf16.mxu0 0
      %2037 = vmatpush1.bf16.msra.mxu0 0
      %2038 = vmatprep.subr.bf16.mxu0 0
      %2039 = vmatpush1.bf16.msra.mxu0 %v2020
      %2040 = vmatprep.subr.bf16.mxu0 0
      %2041 = vmatpush1.bf16.msra.mxu0 %v2019
      %2042 = vmatprep.subr.bf16.mxu0 0
      %2043 = vmatpush2.bf16.msra.mxu0 0
      %2044 = vmatprep.subr.bf16.mxu0 0
      %2045 = vmatpush2.bf16.msra.mxu0 0
      %2046 = vmatprep.subr.bf16.mxu0 0
      %2047 = vmatpush2.bf16.msra.mxu0 0
      %2048 = vmatprep.subr.bf16.mxu0 0
      %2049 = vmatpush2.bf16.msra.mxu0 0
      %2050 = vmatprep.subr.bf16.mxu0 0
      %2051 = vmatpush2.bf16.msra.mxu0 0
      %2052 = vmatprep.subr.bf16.mxu0 0
      %2053 = vmatpush2.bf16.msra.mxu0 0
      %2054 = vmatprep.subr.bf16.mxu0 0
      %2055 = vmatpush2.bf16.msra.mxu0 0
      %2056 = vmatprep.subr.bf16.mxu0 0
      %2057 = vmatpush2.bf16.msra.mxu0 0
      %2058 = vmatprep.mubr.bf16.mxu0 0
      %2059 = vmatmul.mubr.bf16.gmra.mxu0 %v2024
      %v2060 = vpop.f32.mrf.mxu0
      %v2061 = vadd.f32 %v2010, %v2060
      %v2062 = vpop.f32.mrf.mxu0
      %v2063 = vpop.f32.mrf.mxu0
      %v2064 = vpop.f32.mrf.mxu0
      %2065 = vdwg.mxu0
      %v2066 = vadd.f32 %v1456, %v2061
      %v2067 = vsel %vm672, %v2066, 0.0
      %2068 = vadd.xlane.f32.xlu0 %v2067
      %v2069 = vpop.xlane.xlu0 %2068
      %v2070 = vmul.f32 %v2069, %v549
      %v2071 = vsub.f32 %v2066, %v2070
      %v2072 = vmul.f32 %v2071, %v2071
      %v2073 = vsel %vm672, %v2072, 0.0
      %2074 = vadd.xlane.f32.xlu0 %v2073
      %v2075 = vpop.xlane.xlu0 %2074
      %v2076 = vmul.f32 %v2075, %v549
      %v2077 = vadd.f32 %v2076, 1e-05
      %v2078 = vrsqrt.pop %v2077
      %v2079 = vmul.f32 %v2071, %v2078
      %v2080 = vlaneseq
      %v2081 = vshrl.u32 %v2080, 7
      %v2082 = vsub.s32 4, %v2081
      %v2083 = vrot.slane %v670, %v2082
      %v2084 = vmul.f32 %v2079, %v2083
      %v2085 = vlaneseq
      %v2086 = vshrl.u32 %v2085, 7
      %v2087 = vsub.s32 5, %v2086
      %v2088 = vrot.slane %v670, %v2087
      %v2089 = vadd.f32 %v2084, %v2088
      %v2090 = vpack.c.bf16 %v2089, %v2089
      %v2091 = vld [vmem:[%s10] sm:$0xf]
      %v2092 = vld [vmem:[%s10 + $0x4] sm:$0xf]
      %v2093 = vld [vmem:[%s10 + $0x8] sm:$0xf]
      %v2094 = vld [vmem:[%s10 + $0xc] sm:$0xf]
      %v2095 = vld [vmem:[%s15] sm:$0x1]
      %v2097 = vlaneseq
      %v2098 = vshrl.u32 %v2097, 7
      %v2099 = vsub.s32 0, %v2098
      %v2100 = vrot.slane %v2095, %v2099
      %v2106 = vunpack.c.l.b16 %v2091
      %v2107 = vunpack.c.l.b16 %v2092
      %v2108 = vunpack.c.l.b16 %v2093
      %v2109 = vunpack.c.l.b16 %v2094
      %v2110 = vpack.c.b16 %v2107, %v2106
      %v2111 = vpack.c.b16 %v2109, %v2108
      %v2115 = vsel %vm672, %v2090, 0
      %2117 = vmatprep.subr.bf16.mxu0 0
      %2118 = vmatpush1.bf16.msra.mxu0 0
      %2119 = vmatprep.subr.bf16.mxu0 0
      %2120 = vmatpush1.bf16.msra.mxu0 0
      %2121 = vmatprep.subr.bf16.mxu0 0
      %2122 = vmatpush1.bf16.msra.mxu0 0
      %2123 = vmatprep.subr.bf16.mxu0 0
      %2124 = vmatpush1.bf16.msra.mxu0 0
      %2125 = vmatprep.subr.bf16.mxu0 0
      %2126 = vmatpush1.bf16.msra.mxu0 0
      %2127 = vmatprep.subr.bf16.mxu0 0
      %2128 = vmatpush1.bf16.msra.mxu0 0
      %2129 = vmatprep.subr.bf16.mxu0 0
      %2130 = vmatpush1.bf16.msra.mxu0 %v2111
      %2131 = vmatprep.subr.bf16.mxu0 0
      %2132 = vmatpush1.bf16.msra.mxu0 %v2110
      %2133 = vmatprep.subr.bf16.mxu0 0
      %2134 = vmatpush2.bf16.msra.mxu0 0
      %2135 = vmatprep.subr.bf16.mxu0 0
      %2136 = vmatpush2.bf16.msra.mxu0 0
      %2137 = vmatprep.subr.bf16.mxu0 0
      %2138 = vmatpush2.bf16.msra.mxu0 0
      %2139 = vmatprep.subr.bf16.mxu0 0
      %2140 = vmatpush2.bf16.msra.mxu0 0
      %2141 = vmatprep.subr.bf16.mxu0 0
      %2142 = vmatpush2.bf16.msra.mxu0 0
      %2143 = vmatprep.subr.bf16.mxu0 0
      %2144 = vmatpush2.bf16.msra.mxu0 0
      %2145 = vmatprep.subr.bf16.mxu0 0
      %2146 = vmatpush2.bf16.msra.mxu0 0
      %2147 = vmatprep.subr.bf16.mxu0 0
      %2148 = vmatpush2.bf16.msra.mxu0 0
      %2149 = vmatprep.mubr.bf16.mxu0 0
      %2150 = vmatmul.mubr.bf16.gmra.mxu0 %v2115
      %v2151 = vpop.f32.mrf.mxu0
      %v2152 = vadd.f32 %v2100, %v2151
      %v2153 = vpop.f32.mrf.mxu0
      %v2154 = vpop.f32.mrf.mxu0
      %v2155 = vpop.f32.mrf.mxu0
      %2156 = vdwg.mxu0
      %v2157 = vmul.f32 %v2152, 0.5
      %v2158 = vmul.f32 %v2152, 0.70710677
      %v2159 = vand.u32 2147483647, %v2158
      %v2160 = vmul.f32 %v2159, 0.3275911
      %v2161 = vadd.f32 %v2160, 1.0
      %v2162 = vrcp.pop %v2161
      %v2163 = vmul.f32 %v2162, 1.0614054
      %v2164 = vadd.f32 %v2163, -1.4531521
      %v2165 = vmul.f32 %v2164, %v2162
      %v2166 = vadd.f32 %v2165, 1.4214138
      %v2167 = vmul.f32 %v2166, %v2162
      %v2168 = vadd.f32 %v2167, -0.28449672
      %v2169 = vmul.f32 %v2168, %v2162
      %v2170 = vadd.f32 %v2169, 0.2548296
      %v2171 = vmul.f32 %v2170, %v2162
      %v2172 = vsub.f32 0.0, %v2159
      %v2173 = vmul.f32 %v2172, %v2159
      %v2174 = vmul.f32 %v2173, 1.442695
      %v2175 = vpow.pop %v2174
      %v2176 = vmul.f32 %v2171, %v2175
      %v2177 = vsub.f32 1.0, %v2176
      %vm2178 = vcmp.ge.f32.partialorder %v2158, 0.0
      %v2179 = vsub.f32 0.0, %v2177
      %v2180 = vsel %vm2178, %v2177, %v2179
      %v2181 = vadd.f32 %v2180, 1.0
      %v2182 = vmul.f32 %v2157, %v2181
      %v2183 = vpack.c.bf16 %v2182, %v2182
      %v2184 = vld [vmem:[%s11] sm:$0xf]
      %v2185 = vld [vmem:[%s11 + $0x4] sm:$0xf]
      %v2186 = vld [vmem:[%s11 + $0x8] sm:$0xf]
      %v2187 = vld [vmem:[%s11 + $0xc] sm:$0xf]
      %v2188 = vld [vmem:[%s11 + $0x10] sm:$0xf]
      %v2189 = vld [vmem:[%s11 + $0x14] sm:$0xf]
      %v2190 = vld [vmem:[%s11 + $0x18] sm:$0xf]
      %v2191 = vld [vmem:[%s11 + $0x1c] sm:$0xf]
      %v2192 = vld [vmem:[%s11 + $0x20] sm:$0xf]
      %v2193 = vld [vmem:[%s11 + $0x24] sm:$0xf]
      %v2194 = vld [vmem:[%s11 + $0x28] sm:$0xf]
      %v2195 = vld [vmem:[%s11 + $0x2c] sm:$0xf]
      %v2196 = vld [vmem:[%s11 + $0x30] sm:$0xf]
      %v2197 = vld [vmem:[%s11 + $0x34] sm:$0xf]
      %v2198 = vld [vmem:[%s11 + $0x38] sm:$0xf]
      %v2199 = vld [vmem:[%s11 + $0x3c] sm:$0xf]
      %v2216 = vunpack.c.l.b16 %v2184
      %v2217 = vunpack.c.l.b16 %v2185
      %v2218 = vunpack.c.l.b16 %v2186
      %v2219 = vunpack.c.l.b16 %v2187
      %v2220 = vunpack.c.l.b16 %v2188
      %v2221 = vunpack.c.l.b16 %v2189
      %v2222 = vunpack.c.l.b16 %v2190
      %v2223 = vunpack.c.l.b16 %v2191
      %v2224 = vunpack.c.l.b16 %v2192
      %v2225 = vunpack.c.l.b16 %v2193
      %v2226 = vunpack.c.l.b16 %v2194
      %v2227 = vunpack.c.l.b16 %v2195
      %v2228 = vunpack.c.l.b16 %v2196
      %v2229 = vunpack.c.l.b16 %v2197
      %v2230 = vunpack.c.l.b16 %v2198
      %v2231 = vunpack.c.l.b16 %v2199
      %v2232 = vpack.c.b16 %v2217, %v2216
      %v2233 = vpack.c.b16 %v2219, %v2218
      %v2234 = vpack.c.b16 %v2221, %v2220
      %v2235 = vpack.c.b16 %v2223, %v2222
      %v2236 = vpack.c.b16 %v2225, %v2224
      %v2237 = vpack.c.b16 %v2227, %v2226
      %v2238 = vpack.c.b16 %v2229, %v2228
      %v2239 = vpack.c.b16 %v2231, %v2230
      %2248 = vmatprep.subr.bf16.mxu0 0
      %2249 = vmatpush1.bf16.msra.mxu0 %v2239
      %2250 = vmatprep.subr.bf16.mxu0 0
      %2251 = vmatpush1.bf16.msra.mxu0 %v2238
      %2252 = vmatprep.subr.bf16.mxu0 0
      %2253 = vmatpush1.bf16.msra.mxu0 %v2237
      %2254 = vmatprep.subr.bf16.mxu0 0
      %2255 = vmatpush1.bf16.msra.mxu0 %v2236
      %2256 = vmatprep.subr.bf16.mxu0 0
      %2257 = vmatpush1.bf16.msra.mxu0 %v2235
      %2258 = vmatprep.subr.bf16.mxu0 0
      %2259 = vmatpush1.bf16.msra.mxu0 %v2234
      %2260 = vmatprep.subr.bf16.mxu0 0
      %2261 = vmatpush1.bf16.msra.mxu0 %v2233
      %2262 = vmatprep.subr.bf16.mxu0 0
      %2263 = vmatpush1.bf16.msra.mxu0 %v2232
      %2264 = vmatprep.subr.bf16.mxu0 0
      %2265 = vmatpush2.bf16.msra.mxu0 0
      %2266 = vmatprep.subr.bf16.mxu0 0
      %2267 = vmatpush2.bf16.msra.mxu0 0
      %2268 = vmatprep.subr.bf16.mxu0 0
      %2269 = vmatpush2.bf16.msra.mxu0 0
      %2270 = vmatprep.subr.bf16.mxu0 0
      %2271 = vmatpush2.bf16.msra.mxu0 0
      %2272 = vmatprep.subr.bf16.mxu0 0
      %2273 = vmatpush2.bf16.msra.mxu0 0
      %2274 = vmatprep.subr.bf16.mxu0 0
      %2275 = vmatpush2.bf16.msra.mxu0 0
      %2276 = vmatprep.subr.bf16.mxu0 0
      %2277 = vmatpush2.bf16.msra.mxu0 0
      %2278 = vmatprep.subr.bf16.mxu0 0
      %2279 = vmatpush2.bf16.msra.mxu0 0
      %2280 = vmatprep.mubr.bf16.mxu0 0
      %2281 = vmatmul.mubr.bf16.gmra.mxu0 %v2183
      %v2282 = vpop.f32.mrf.mxu0
      %v2283 = vadd.f32 0.0, %v2282
      %v2284 = vpop.f32.mrf.mxu0
      %v2285 = vpop.f32.mrf.mxu0
      %v2286 = vpop.f32.mrf.mxu0
      %2287 = vdwg.mxu0
      %v2288 = vadd.f32 %v2066, %v2283
      %v2289 = vlaneseq
      %v2290 = vshrl.u32 %v2289, 7
      %v2291 = vsub.s32 3, %v2290
      %v2292 = vrot.slane %v671, %v2291
      %v2293 = vadd.f32 %v2288, %v2292
      %s2294 = scalar_lea.vmem %s4, 8
      %v2295 = vld [vmem:[%s2294] sm:$0x3f]
      %s2296 = scalar_lea.vmem %s12, 4
      %v2297 = vld [vmem:[%s2296] sm:$0xf]
      %v2298 = vsel %vm672, %v2293, 0.0
      %2299 = vadd.xlane.f32.xlu0 %v2298
      %v2300 = vpop.xlane.xlu0 %2299
      %v2301 = vmul.f32 %v2300, %v549
      %v2302 = vsub.f32 %v2293, %v2301
      %v2303 = vmul.f32 %v2302, %v2302
      %v2304 = vsel %vm672, %v2303, 0.0
      %2305 = vadd.xlane.f32.xlu0 %v2304
      %v2306 = vpop.xlane.xlu0 %2305
      %v2307 = vmul.f32 %v2306, %v549
      %v2308 = vadd.f32 %v2307, 1e-05
      %v2309 = vrsqrt.pop %v2308
      %v2310 = vmul.f32 %v2302, %v2309
      %v2311 = vlaneseq
      %v2312 = vshrl.u32 %v2311, 7
      %v2313 = vsub.s32 0, %v2312
      %v2314 = vrot.slane %v2295, %v2313
      %v2315 = vmul.f32 %v2310, %v2314
      %v2316 = vlaneseq
      %v2317 = vshrl.u32 %v2316, 7
      %v2318 = vsub.s32 1, %v2317
      %v2319 = vrot.slane %v2295, %v2318
      %v2320 = vadd.f32 %v2315, %v2319
      %v2321 = vpack.c.bf16 %v2320, %v2320
      %s2322 = scalar_lea.vmem %s5, 16
      %v2323 = vld [vmem:[%s2322] sm:$0xf]
      %v2324 = vld [vmem:[%s2322 + $0x4] sm:$0xf]
      %v2325 = vld [vmem:[%s2322 + $0x8] sm:$0xf]
      %v2326 = vld [vmem:[%s2322 + $0xc] sm:$0xf]
      %v2327 = vlaneseq
      %v2328 = vshrl.u32 %v2327, 7
      %v2329 = vsub.s32 0, %v2328
      %v2330 = vrot.slane %v2297, %v2329
      %v2335 = vunpack.c.l.b16 %v2323
      %v2336 = vunpack.c.l.b16 %v2324
      %v2337 = vunpack.c.l.b16 %v2325
      %v2338 = vunpack.c.l.b16 %v2326
      %v2339 = vpack.c.b16 %v2336, %v2335
      %v2340 = vpack.c.b16 %v2338, %v2337
      %v2344 = vsel %vm672, %v2321, 0
      %2346 = vmatprep.subr.bf16.mxu0 0
      %2347 = vmatpush1.bf16.msra.mxu0 0
      %2348 = vmatprep.subr.bf16.mxu0 0
      %2349 = vmatpush1.bf16.msra.mxu0 0
      %2350 = vmatprep.subr.bf16.mxu0 0
      %2351 = vmatpush1.bf16.msra.mxu0 0
      %2352 = vmatprep.subr.bf16.mxu0 0
      %2353 = vmatpush1.bf16.msra.mxu0 0
      %2354 = vmatprep.subr.bf16.mxu0 0
      %2355 = vmatpush1.bf16.msra.mxu0 0
      %2356 = vmatprep.subr.bf16.mxu0 0
      %2357 = vmatpush1.bf16.msra.mxu0 0
      %2358 = vmatprep.subr.bf16.mxu0 0
      %2359 = vmatpush1.bf16.msra.mxu0 %v2340
      %2360 = vmatprep.subr.bf16.mxu0 0
      %2361 = vmatpush1.bf16.msra.mxu0 %v2339
      %2362 = vmatprep.subr.bf16.mxu0 0
      %2363 = vmatpush2.bf16.msra.mxu0 0
      %2364 = vmatprep.subr.bf16.mxu0 0
      %2365 = vmatpush2.bf16.msra.mxu0 0
      %2366 = vmatprep.subr.bf16.mxu0 0
      %2367 = vmatpush2.bf16.msra.mxu0 0
      %2368 = vmatprep.subr.bf16.mxu0 0
      %2369 = vmatpush2.bf16.msra.mxu0 0
      %2370 = vmatprep.subr.bf16.mxu0 0
      %2371 = vmatpush2.bf16.msra.mxu0 0
      %2372 = vmatprep.subr.bf16.mxu0 0
      %2373 = vmatpush2.bf16.msra.mxu0 0
      %2374 = vmatprep.subr.bf16.mxu0 0
      %2375 = vmatpush2.bf16.msra.mxu0 0
      %2376 = vmatprep.subr.bf16.mxu0 0
      %2377 = vmatpush2.bf16.msra.mxu0 0
      %2378 = vmatprep.mubr.bf16.mxu0 0
      %2379 = vmatmul.mubr.bf16.gmra.mxu0 %v2344
      %v2380 = vpop.f32.mrf.mxu0
      %v2381 = vadd.f32 %v2330, %v2380
      %v2382 = vpop.f32.mrf.mxu0
      %v2383 = vpop.f32.mrf.mxu0
      %v2384 = vpop.f32.mrf.mxu0
      %2385 = vdwg.mxu0
      %s2386 = scalar_lea.vmem %s6, 32
      %v2387 = vld [vmem:[%s2386] sm:$0xf]
      %v2388 = vld [vmem:[%s2386 + $0x4] sm:$0xf]
      %v2389 = vld [vmem:[%s2386 + $0x8] sm:$0xf]
      %v2390 = vld [vmem:[%s2386 + $0xc] sm:$0xf]
      %v2391 = vld [vmem:[%s2386 + $0x10] sm:$0xf]
      %v2392 = vld [vmem:[%s2386 + $0x14] sm:$0xf]
      %v2393 = vld [vmem:[%s2386 + $0x18] sm:$0xf]
      %v2394 = vld [vmem:[%s2386 + $0x1c] sm:$0xf]
      %s2395 = scalar_lea.vmem %s13, 64
      %v2396 = vld [vmem:[%s2395] sm:$0xff]
      %v2397 = vld [vmem:[%s2395 + $0x8] sm:$0xff]
      %v2398 = vld [vmem:[%s2395 + $0x10] sm:$0xff]
      %v2399 = vld [vmem:[%s2395 + $0x18] sm:$0xff]
      %v2400 = vld [vmem:[%s2395 + $0x20] sm:$0xff]
      %v2401 = vld [vmem:[%s2395 + $0x28] sm:$0xff]
      %v2402 = vld [vmem:[%s2395 + $0x30] sm:$0xff]
      %v2403 = vld [vmem:[%s2395 + $0x38] sm:$0xff]
      %2405 = vset.pattern.permute.xlu0 0
      %2406 = vperm.xlu0 %2405, %v2396
      %v2407 = vpop.permute.xlu0 %2406
      %2410 = vset.pattern.permute.xlu0 0
      %2411 = vperm.xlu0 %2410, %v2397
      %v2412 = vpop.permute.xlu0 %2411
      %2415 = vset.pattern.permute.xlu0 0
      %2416 = vperm.xlu0 %2415, %v2398
      %v2417 = vpop.permute.xlu0 %2416
      %2420 = vset.pattern.permute.xlu0 0
      %2421 = vperm.xlu0 %2420, %v2399
      %v2422 = vpop.permute.xlu0 %2421
      %2425 = vset.pattern.permute.xlu0 0
      %2426 = vperm.xlu0 %2425, %v2400
      %v2427 = vpop.permute.xlu0 %2426
      %2430 = vset.pattern.permute.xlu0 0
      %2431 = vperm.xlu0 %2430, %v2401
      %v2432 = vpop.permute.xlu0 %2431
      %2435 = vset.pattern.permute.xlu0 0
      %2436 = vperm.xlu0 %2435, %v2402
      %v2437 = vpop.permute.xlu0 %2436
      %2440 = vset.pattern.permute.xlu0 0
      %2441 = vperm.xlu0 %2440, %v2403
      %v2442 = vpop.permute.xlu0 %2441
      %v2452 = vunpack.c.l.b16 %v2387
      %v2453 = vunpack.c.l.b16 %v2388
      %v2454 = vunpack.c.l.b16 %v2389
      %v2455 = vunpack.c.l.b16 %v2390
      %v2456 = vunpack.c.l.b16 %v2391
      %v2457 = vunpack.c.l.b16 %v2392
      %v2458 = vunpack.c.l.b16 %v2393
      %v2459 = vunpack.c.l.b16 %v2394
      %v2460 = vpack.c.b16 %v2453, %v2452
      %v2461 = vpack.c.b16 %v2455, %v2454
      %v2462 = vpack.c.b16 %v2457, %v2456
      %v2463 = vpack.c.b16 %v2459, %v2458
      %v2465 = vsel %vm672, %v2460, 0
      %v2468 = vsel %vm672, %v2461, 0
      %v2471 = vsel %vm672, %v2462, 0
      %v2474 = vsel %vm672, %v2463, 0
      %2476 = vmatprep.subr.bf16.mxu0 0
      %2477 = vmatpush1.bf16.msra.mxu0 0
      %2478 = vmatprep.subr.bf16.mxu0 0
      %2479 = vmatpush1.bf16.msra.mxu0 0
      %2480 = vmatprep.subr.bf16.mxu0 0
      %2481 = vmatpush1.bf16.msra.mxu0 0
      %2482 = vmatprep.subr.bf16.mxu0 0
      %2483 = vmatpush1.bf16.msra.mxu0 0
      %2484 = vmatprep.subr.bf16.mxu0 0
      %2485 = vmatpush1.bf16.msra.mxu0 0
      %2486 = vmatprep.subr.bf16.mxu0 0
      %2487 = vmatpush1.bf16.msra.mxu0 0
      %2488 = vmatprep.subr.bf16.mxu0 %v668
      %2489 = vmatpush1.bf16.msra.mxu0 %v667
      %2490 = vmatprep.subr.bf16.mxu0 %v666
      %2491 = vmatpush1.bf16.msra.mxu0 %v665
      %2492 = vmatprep.subr.bf16.mxu0 0
      %2493 = vmatpush2.bf16.msra.mxu0 0
      %2494 = vmatprep.subr.bf16.mxu0 0
      %2495 = vmatpush2.bf16.msra.mxu0 0
      %2496 = vmatprep.subr.bf16.mxu0 0
      %2497 = vmatpush2.bf16.msra.mxu0 0
      %2498 = vmatprep.subr.bf16.mxu0 0
      %2499 = vmatpush2.bf16.msra.mxu0 0
      %2500 = vmatprep.subr.bf16.mxu0 0
      %2501 = vmatpush2.bf16.msra.mxu0 0
      %2502 = vmatprep.subr.bf16.mxu0 0
      %2503 = vmatpush2.bf16.msra.mxu0 0
      %2504 = vmatprep.subr.bf16.mxu0 0
      %2505 = vmatpush2.bf16.msra.mxu0 0
      %2506 = vmatprep.subr.bf16.mxu0 0
      %2507 = vmatpush2.bf16.msra.mxu0 0
      %2508 = vmatprep.mubr.bf16.mxu0 0
      %2509 = vmatmul.mubr.bf16.gmra.mxu0 %v2465
      %v2510 = vpop.f32.mrf.mxu0
      %v2511 = vadd.f32 %v2407, %v2510
      %v2512 = vpop.f32.mrf.mxu0
      %v2513 = vadd.f32 %v2407, %v2512
      %v2514 = vpop.f32.mrf.mxu0
      %v2515 = vadd.f32 %v2412, %v2514
      %v2516 = vpop.f32.mrf.mxu0
      %v2517 = vadd.f32 %v2412, %v2516
      %2518 = vmatprep.mubr.bf16.mxu0 0
      %2519 = vmatmul.mubr.bf16.gmra.mxu0 %v2468
      %v2520 = vpop.f32.mrf.mxu0
      %v2521 = vadd.f32 %v2417, %v2520
      %v2522 = vpop.f32.mrf.mxu0
      %v2523 = vadd.f32 %v2417, %v2522
      %v2524 = vpop.f32.mrf.mxu0
      %v2525 = vadd.f32 %v2422, %v2524
      %v2526 = vpop.f32.mrf.mxu0
      %v2527 = vadd.f32 %v2422, %v2526
      %2528 = vmatprep.mubr.bf16.mxu0 0
      %2529 = vmatmul.mubr.bf16.gmra.mxu0 %v2471
      %v2530 = vpop.f32.mrf.mxu0
      %v2531 = vadd.f32 %v2427, %v2530
      %v2532 = vpop.f32.mrf.mxu0
      %v2533 = vadd.f32 %v2427, %v2532
      %v2534 = vpop.f32.mrf.mxu0
      %v2535 = vadd.f32 %v2432, %v2534
      %v2536 = vpop.f32.mrf.mxu0
      %v2537 = vadd.f32 %v2432, %v2536
      %2538 = vmatprep.mubr.bf16.mxu0 0
      %2539 = vmatmul.mubr.bf16.gmra.mxu0 %v2474
      %v2540 = vpop.f32.mrf.mxu0
      %v2541 = vadd.f32 %v2437, %v2540
      %v2542 = vpop.f32.mrf.mxu0
      %v2543 = vadd.f32 %v2437, %v2542
      %v2544 = vpop.f32.mrf.mxu0
      %v2545 = vadd.f32 %v2442, %v2544
      %v2546 = vpop.f32.mrf.mxu0
      %v2547 = vadd.f32 %v2442, %v2546
      %2548 = vdwg.mxu0
      %s2549 = scalar_lea.vmem %s7, 16
      %v2550 = vld [vmem:[%s2549] sm:$0xf]
      %v2551 = vld [vmem:[%s2549 + $0x4] sm:$0xf]
      %v2552 = vld [vmem:[%s2549 + $0x8] sm:$0xf]
      %v2553 = vld [vmem:[%s2549 + $0xc] sm:$0xf]
      %v2554 = vpack.c.bf16 %v2381, %v2381
      %v2555 = vpack.c.bf16 %v2511, %v2511
      %v2556 = vpack.c.bf16 %v2513, %v2513
      %v2557 = vpack.c.bf16 %v2531, %v2531
      %v2558 = vpack.c.bf16 %v2533, %v2533
      %v2560 = vsel %vm930, %v2554, 0
      %v2563 = vsel %vm934, %v2555, 0
      %v2566 = vsel %vm934, %v2556, 0
      %2568 = vmatprep.subr.bf16.mxu0 0
      %2569 = vmatpush1.bf16.msra.mxu0 0
      %2570 = vmatprep.subr.bf16.mxu0 0
      %2571 = vmatpush1.bf16.msra.mxu0 0
      %2572 = vmatprep.subr.bf16.mxu0 0
      %2573 = vmatpush1.bf16.msra.mxu0 0
      %2574 = vmatprep.subr.bf16.mxu0 0
      %2575 = vmatpush1.bf16.msra.mxu0 0
      %2576 = vmatprep.subr.bf16.mxu0 0
      %2577 = vmatpush1.bf16.msra.mxu0 0
      %2578 = vmatprep.subr.bf16.mxu0 0
      %2579 = vmatpush1.bf16.msra.mxu0 0
      %2580 = vmatprep.subr.bf16.mxu0 0
      %2581 = vmatpush1.bf16.msra.mxu0 0
      %2582 = vmatprep.subr.bf16.mxu0 %v2566
      %2583 = vmatpush1.bf16.msra.mxu0 %v2563
      %2584 = vmatprep.subr.bf16.mxu0 0
      %2585 = vmatpush2.bf16.msra.mxu0 0
      %2586 = vmatprep.subr.bf16.mxu0 0
      %2587 = vmatpush2.bf16.msra.mxu0 0
      %2588 = vmatprep.subr.bf16.mxu0 0
      %2589 = vmatpush2.bf16.msra.mxu0 0
      %2590 = vmatprep.subr.bf16.mxu0 0
      %2591 = vmatpush2.bf16.msra.mxu0 0
      %2592 = vmatprep.subr.bf16.mxu0 0
      %2593 = vmatpush2.bf16.msra.mxu0 0
      %2594 = vmatprep.subr.bf16.mxu0 0
      %2595 = vmatpush2.bf16.msra.mxu0 0
      %2596 = vmatprep.subr.bf16.mxu0 0
      %2597 = vmatpush2.bf16.msra.mxu0 0
      %2598 = vmatprep.subr.bf16.mxu0 0
      %2599 = vmatpush2.bf16.msra.mxu0 0
      %2600 = vmatprep.mubr.bf16.mxu0 0
      %2601 = vmatmul.mubr.bf16.gmra.mxu0 %v2560
      %v2602 = vpop.f32.mrf.mxu0
      %v2603 = vadd.f32 0.0, %v2602
      %v2604 = vpop.f32.mrf.mxu0
      %v2605 = vadd.f32 0.0, %v2604
      %v2606 = vpop.f32.mrf.mxu0
      %v2607 = vpop.f32.mrf.mxu0
      %2608 = vdwg.mxu0
      %v2609 = vmax.f32 %v2603, %v2605
      %2610 = vmax.xlane.f32.xlu0 %v2609
      %v2611 = vpop.xlane.xlu0 %2610
      %v2612 = vsub.f32 %v2603, %v2611
      %v2613 = vsub.f32 %v2605, %v2611
      %v2614 = vmul.f32 %v2612, 1.442695
      %v2615 = vpow.pop %v2614
      %v2616 = vmul.f32 %v2613, 1.442695
      %v2617 = vpow.pop %v2616
      %v2618 = vadd.f32 %v2615, %v2617
      %2619 = vadd.xlane.f32.xlu0 %v2618
      %v2620 = vpop.xlane.xlu0 %2619
      %v2621 = vrcp.pop %v2620
      %v2622 = vmul.f32 %v2615, %v2621
      %v2623 = vmul.f32 %v2617, %v2621
      %v2624 = vpack.c.bf16 %v2622, %v2622
      %v2625 = vpack.c.bf16 %v2623, %v2623
      %2626 = vmatprep.subr.bf16.mxu0 0
      %2627 = vmatpush1.bf16.xpose.msra.mxu0 0
      %2628 = vmatprep.subr.bf16.mxu0 0
      %2629 = vmatpush1.bf16.xpose.msra.mxu0 0
      %2630 = vmatprep.subr.bf16.mxu0 0
      %2631 = vmatpush1.bf16.xpose.msra.mxu0 0
      %2632 = vmatprep.subr.bf16.mxu0 0
      %2633 = vmatpush1.bf16.xpose.msra.mxu0 0
      %2634 = vmatprep.subr.bf16.mxu0 0
      %2635 = vmatpush1.bf16.xpose.msra.mxu0 0
      %2636 = vmatprep.subr.bf16.mxu0 0
      %2637 = vmatpush1.bf16.xpose.msra.mxu0 0
      %2638 = vmatprep.subr.bf16.mxu0 0
      %2639 = vmatpush1.bf16.xpose.msra.mxu0 0
      %2640 = vmatprep.subr.bf16.mxu0 %v2558
      %2641 = vmatpush1.bf16.xpose.msra.mxu0 %v2557
      %2642 = vmatprep.subr.bf16.mxu0 0
      %2643 = vmatpush2.bf16.xpose.msra.mxu0 0
      %2644 = vmatprep.subr.bf16.mxu0 0
      %2645 = vmatpush2.bf16.xpose.msra.mxu0 0
      %2646 = vmatprep.subr.bf16.mxu0 0
      %2647 = vmatpush2.bf16.xpose.msra.mxu0 0
      %2648 = vmatprep.subr.bf16.mxu0 0
      %2649 = vmatpush2.bf16.xpose.msra.mxu0 0
      %2650 = vmatprep.subr.bf16.mxu0 0
      %2651 = vmatpush2.bf16.xpose.msra.mxu0 0
      %2652 = vmatprep.subr.bf16.mxu0 0
      %2653 = vmatpush2.bf16.xpose.msra.mxu0 0
      %2654 = vmatprep.subr.bf16.mxu0 0
      %2655 = vmatpush2.bf16.xpose.msra.mxu0 0
      %2656 = vmatprep.subr.bf16.mxu0 0
      %2657 = vmatpush2.bf16.xpose.msra.mxu0 0
      %2658 = vmatprep.mubr.bf16.mxu0 %v2625
      %2659 = vmatmul.mubr.bf16.gmra.mxu0 %v2624
      %v2660 = vpop.f32.mrf.mxu0
      %v2661 = vadd.f32 0.0, %v2660
      %v2662 = vpop.f32.mrf.mxu0
      %v2663 = vpop.f32.mrf.mxu0
      %v2664 = vpop.f32.mrf.mxu0
      %2665 = vdwg.mxu0
      %v2666 = vpack.c.bf16 %v2515, %v2515
      %v2667 = vpack.c.bf16 %v2517, %v2517
      %v2668 = vpack.c.bf16 %v2535, %v2535
      %v2669 = vpack.c.bf16 %v2537, %v2537
      %2671 = vrot.lane.b32.xlu0 %v2554, 120
      %v2672 = vpop.permute.xlu0 %2671
      %v2674 = vsel %vm930, %v2672, 0
      %v2677 = vsel %vm934, %v2666, 0
      %v2680 = vsel %vm934, %v2667, 0
      %2682 = vmatprep.subr.bf16.mxu0 0
      %2683 = vmatpush1.bf16.msra.mxu0 0
      %2684 = vmatprep.subr.bf16.mxu0 0
      %2685 = vmatpush1.bf16.msra.mxu0 0
      %2686 = vmatprep.subr.bf16.mxu0 0
      %2687 = vmatpush1.bf16.msra.mxu0 0
      %2688 = vmatprep.subr.bf16.mxu0 0
      %2689 = vmatpush1.bf16.msra.mxu0 0
      %2690 = vmatprep.subr.bf16.mxu0 0
      %2691 = vmatpush1.bf16.msra.mxu0 0
      %2692 = vmatprep.subr.bf16.mxu0 0
      %2693 = vmatpush1.bf16.msra.mxu0 0
      %2694 = vmatprep.subr.bf16.mxu0 0
      %2695 = vmatpush1.bf16.msra.mxu0 0
      %2696 = vmatprep.subr.bf16.mxu0 %v2680
      %2697 = vmatpush1.bf16.msra.mxu0 %v2677
      %2698 = vmatprep.subr.bf16.mxu0 0
      %2699 = vmatpush2.bf16.msra.mxu0 0
      %2700 = vmatprep.subr.bf16.mxu0 0
      %2701 = vmatpush2.bf16.msra.mxu0 0
      %2702 = vmatprep.subr.bf16.mxu0 0
      %2703 = vmatpush2.bf16.msra.mxu0 0
      %2704 = vmatprep.subr.bf16.mxu0 0
      %2705 = vmatpush2.bf16.msra.mxu0 0
      %2706 = vmatprep.subr.bf16.mxu0 0
      %2707 = vmatpush2.bf16.msra.mxu0 0
      %2708 = vmatprep.subr.bf16.mxu0 0
      %2709 = vmatpush2.bf16.msra.mxu0 0
      %2710 = vmatprep.subr.bf16.mxu0 0
      %2711 = vmatpush2.bf16.msra.mxu0 0
      %2712 = vmatprep.subr.bf16.mxu0 0
      %2713 = vmatpush2.bf16.msra.mxu0 0
      %2714 = vmatprep.mubr.bf16.mxu0 0
      %2715 = vmatmul.mubr.bf16.gmra.mxu0 %v2674
      %v2716 = vpop.f32.mrf.mxu0
      %v2717 = vadd.f32 0.0, %v2716
      %v2718 = vpop.f32.mrf.mxu0
      %v2719 = vadd.f32 0.0, %v2718
      %v2720 = vpop.f32.mrf.mxu0
      %v2721 = vpop.f32.mrf.mxu0
      %2722 = vdwg.mxu0
      %v2723 = vmax.f32 %v2717, %v2719
      %2724 = vmax.xlane.f32.xlu0 %v2723
      %v2725 = vpop.xlane.xlu0 %2724
      %v2726 = vsub.f32 %v2717, %v2725
      %v2727 = vsub.f32 %v2719, %v2725
      %v2728 = vmul.f32 %v2726, 1.442695
      %v2729 = vpow.pop %v2728
      %v2730 = vmul.f32 %v2727, 1.442695
      %v2731 = vpow.pop %v2730
      %v2732 = vadd.f32 %v2729, %v2731
      %2733 = vadd.xlane.f32.xlu0 %v2732
      %v2734 = vpop.xlane.xlu0 %2733
      %v2735 = vrcp.pop %v2734
      %v2736 = vmul.f32 %v2729, %v2735
      %v2737 = vmul.f32 %v2731, %v2735
      %v2738 = vpack.c.bf16 %v2736, %v2736
      %v2739 = vpack.c.bf16 %v2737, %v2737
      %2740 = vmatprep.subr.bf16.mxu0 0
      %2741 = vmatpush1.bf16.xpose.msra.mxu0 0
      %2742 = vmatprep.subr.bf16.mxu0 0
      %2743 = vmatpush1.bf16.xpose.msra.mxu0 0
      %2744 = vmatprep.subr.bf16.mxu0 0
      %2745 = vmatpush1.bf16.xpose.msra.mxu0 0
      %2746 = vmatprep.subr.bf16.mxu0 0
      %2747 = vmatpush1.bf16.xpose.msra.mxu0 0
      %2748 = vmatprep.subr.bf16.mxu0 0
      %2749 = vmatpush1.bf16.xpose.msra.mxu0 0
      %2750 = vmatprep.subr.bf16.mxu0 0
      %2751 = vmatpush1.bf16.xpose.msra.mxu0 0
      %2752 = vmatprep.subr.bf16.mxu0 0
      %2753 = vmatpush1.bf16.xpose.msra.mxu0 0
      %2754 = vmatprep.subr.bf16.mxu0 %v2669
      %2755 = vmatpush1.bf16.xpose.msra.mxu0 %v2668
      %2756 = vmatprep.subr.bf16.mxu0 0
      %2757 = vmatpush2.bf16.xpose.msra.mxu0 0
      %2758 = vmatprep.subr.bf16.mxu0 0
      %2759 = vmatpush2.bf16.xpose.msra.mxu0 0
      %2760 = vmatprep.subr.bf16.mxu0 0
      %2761 = vmatpush2.bf16.xpose.msra.mxu0 0
      %2762 = vmatprep.subr.bf16.mxu0 0
      %2763 = vmatpush2.bf16.xpose.msra.mxu0 0
      %2764 = vmatprep.subr.bf16.mxu0 0
      %2765 = vmatpush2.bf16.xpose.msra.mxu0 0
      %2766 = vmatprep.subr.bf16.mxu0 0
      %2767 = vmatpush2.bf16.xpose.msra.mxu0 0
      %2768 = vmatprep.subr.bf16.mxu0 0
      %2769 = vmatpush2.bf16.xpose.msra.mxu0 0
      %2770 = vmatprep.subr.bf16.mxu0 0
      %2771 = vmatpush2.bf16.xpose.msra.mxu0 0
      %2772 = vmatprep.mubr.bf16.mxu0 %v2739
      %2773 = vmatmul.mubr.bf16.gmra.mxu0 %v2738
      %v2774 = vpop.f32.mrf.mxu0
      %v2775 = vadd.f32 0.0, %v2774
      %v2776 = vpop.f32.mrf.mxu0
      %v2777 = vpop.f32.mrf.mxu0
      %v2778 = vpop.f32.mrf.mxu0
      %2779 = vdwg.mxu0
      %v2780 = vpack.c.bf16 %v2521, %v2521
      %v2781 = vpack.c.bf16 %v2523, %v2523
      %v2782 = vpack.c.bf16 %v2541, %v2541
      %v2783 = vpack.c.bf16 %v2543, %v2543
      %2784 = vrot.lane.b32.xlu0 %v2554, 112
      %v2785 = vpop.permute.xlu0 %2784
      %v2787 = vsel %vm930, %v2785, 0
      %v2790 = vsel %vm934, %v2780, 0
      %v2793 = vsel %vm934, %v2781, 0
      %2795 = vmatprep.subr.bf16.mxu0 0
      %2796 = vmatpush1.bf16.msra.mxu0 0
      %2797 = vmatprep.subr.bf16.mxu0 0
      %2798 = vmatpush1.bf16.msra.mxu0 0
      %2799 = vmatprep.subr.bf16.mxu0 0
      %2800 = vmatpush1.bf16.msra.mxu0 0
      %2801 = vmatprep.subr.bf16.mxu0 0
      %2802 = vmatpush1.bf16.msra.mxu0 0
      %2803 = vmatprep.subr.bf16.mxu0 0
      %2804 = vmatpush1.bf16.msra.mxu0 0
      %2805 = vmatprep.subr.bf16.mxu0 0
      %2806 = vmatpush1.bf16.msra.mxu0 0
      %2807 = vmatprep.subr.bf16.mxu0 0
      %2808 = vmatpush1.bf16.msra.mxu0 0
      %2809 = vmatprep.subr.bf16.mxu0 %v2793
      %2810 = vmatpush1.bf16.msra.mxu0 %v2790
      %2811 = vmatprep.subr.bf16.mxu0 0
      %2812 = vmatpush2.bf16.msra.mxu0 0
      %2813 = vmatprep.subr.bf16.mxu0 0
      %2814 = vmatpush2.bf16.msra.mxu0 0
      %2815 = vmatprep.subr.bf16.mxu0 0
      %2816 = vmatpush2.bf16.msra.mxu0 0
      %2817 = vmatprep.subr.bf16.mxu0 0
      %2818 = vmatpush2.bf16.msra.mxu0 0
      %2819 = vmatprep.subr.bf16.mxu0 0
      %2820 = vmatpush2.bf16.msra.mxu0 0
      %2821 = vmatprep.subr.bf16.mxu0 0
      %2822 = vmatpush2.bf16.msra.mxu0 0
      %2823 = vmatprep.subr.bf16.mxu0 0
      %2824 = vmatpush2.bf16.msra.mxu0 0
      %2825 = vmatprep.subr.bf16.mxu0 0
      %2826 = vmatpush2.bf16.msra.mxu0 0
      %2827 = vmatprep.mubr.bf16.mxu0 0
      %2828 = vmatmul.mubr.bf16.gmra.mxu0 %v2787
      %v2829 = vpop.f32.mrf.mxu0
      %v2830 = vadd.f32 0.0, %v2829
      %v2831 = vpop.f32.mrf.mxu0
      %v2832 = vadd.f32 0.0, %v2831
      %v2833 = vpop.f32.mrf.mxu0
      %v2834 = vpop.f32.mrf.mxu0
      %2835 = vdwg.mxu0
      %v2836 = vmax.f32 %v2830, %v2832
      %2837 = vmax.xlane.f32.xlu0 %v2836
      %v2838 = vpop.xlane.xlu0 %2837
      %v2839 = vsub.f32 %v2830, %v2838
      %v2840 = vsub.f32 %v2832, %v2838
      %v2841 = vmul.f32 %v2839, 1.442695
      %v2842 = vpow.pop %v2841
      %v2843 = vmul.f32 %v2840, 1.442695
      %v2844 = vpow.pop %v2843
      %v2845 = vadd.f32 %v2842, %v2844
      %2846 = vadd.xlane.f32.xlu0 %v2845
      %v2847 = vpop.xlane.xlu0 %2846
      %v2848 = vrcp.pop %v2847
      %v2849 = vmul.f32 %v2842, %v2848
      %v2850 = vmul.f32 %v2844, %v2848
      %v2851 = vpack.c.bf16 %v2849, %v2849
      %v2852 = vpack.c.bf16 %v2850, %v2850
      %2853 = vmatprep.subr.bf16.mxu0 0
      %2854 = vmatpush1.bf16.xpose.msra.mxu0 0
      %2855 = vmatprep.subr.bf16.mxu0 0
      %2856 = vmatpush1.bf16.xpose.msra.mxu0 0
      %2857 = vmatprep.subr.bf16.mxu0 0
      %2858 = vmatpush1.bf16.xpose.msra.mxu0 0
      %2859 = vmatprep.subr.bf16.mxu0 0
      %2860 = vmatpush1.bf16.xpose.msra.mxu0 0
      %2861 = vmatprep.subr.bf16.mxu0 0
      %2862 = vmatpush1.bf16.xpose.msra.mxu0 0
      %2863 = vmatprep.subr.bf16.mxu0 0
      %2864 = vmatpush1.bf16.xpose.msra.mxu0 0
      %2865 = vmatprep.subr.bf16.mxu0 0
      %2866 = vmatpush1.bf16.xpose.msra.mxu0 0
      %2867 = vmatprep.subr.bf16.mxu0 %v2783
      %2868 = vmatpush1.bf16.xpose.msra.mxu0 %v2782
      %2869 = vmatprep.subr.bf16.mxu0 0
      %2870 = vmatpush2.bf16.xpose.msra.mxu0 0
      %2871 = vmatprep.subr.bf16.mxu0 0
      %2872 = vmatpush2.bf16.xpose.msra.mxu0 0
      %2873 = vmatprep.subr.bf16.mxu0 0
      %2874 = vmatpush2.bf16.xpose.msra.mxu0 0
      %2875 = vmatprep.subr.bf16.mxu0 0
      %2876 = vmatpush2.bf16.xpose.msra.mxu0 0
      %2877 = vmatprep.subr.bf16.mxu0 0
      %2878 = vmatpush2.bf16.xpose.msra.mxu0 0
      %2879 = vmatprep.subr.bf16.mxu0 0
      %2880 = vmatpush2.bf16.xpose.msra.mxu0 0
      %2881 = vmatprep.subr.bf16.mxu0 0
      %2882 = vmatpush2.bf16.xpose.msra.mxu0 0
      %2883 = vmatprep.subr.bf16.mxu0 0
      %2884 = vmatpush2.bf16.xpose.msra.mxu0 0
      %2885 = vmatprep.mubr.bf16.mxu0 %v2852
      %2886 = vmatmul.mubr.bf16.gmra.mxu0 %v2851
      %v2887 = vpop.f32.mrf.mxu0
      %v2888 = vadd.f32 0.0, %v2887
      %v2889 = vpop.f32.mrf.mxu0
      %v2890 = vpop.f32.mrf.mxu0
      %v2891 = vpop.f32.mrf.mxu0
      %2892 = vdwg.mxu0
      %v2893 = vpack.c.bf16 %v2525, %v2525
      %v2894 = vpack.c.bf16 %v2527, %v2527
      %v2895 = vpack.c.bf16 %v2545, %v2545
      %v2896 = vpack.c.bf16 %v2547, %v2547
      %2897 = vrot.lane.b32.xlu0 %v2554, 104
      %v2898 = vpop.permute.xlu0 %2897
      %v2900 = vsel %vm930, %v2898, 0
      %v2903 = vsel %vm934, %v2893, 0
      %v2906 = vsel %vm934, %v2894, 0
      %2908 = vmatprep.subr.bf16.mxu0 0
      %2909 = vmatpush1.bf16.msra.mxu0 0
      %2910 = vmatprep.subr.bf16.mxu0 0
      %2911 = vmatpush1.bf16.msra.mxu0 0
      %2912 = vmatprep.subr.bf16.mxu0 0
      %2913 = vmatpush1.bf16.msra.mxu0 0
      %2914 = vmatprep.subr.bf16.mxu0 0
      %2915 = vmatpush1.bf16.msra.mxu0 0
      %2916 = vmatprep.subr.bf16.mxu0 0
      %2917 = vmatpush1.bf16.msra.mxu0 0
      %2918 = vmatprep.subr.bf16.mxu0 0
      %2919 = vmatpush1.bf16.msra.mxu0 0
      %2920 = vmatprep.subr.bf16.mxu0 0
      %2921 = vmatpush1.bf16.msra.mxu0 0
      %2922 = vmatprep.subr.bf16.mxu0 %v2906
      %2923 = vmatpush1.bf16.msra.mxu0 %v2903
      %2924 = vmatprep.subr.bf16.mxu0 0
      %2925 = vmatpush2.bf16.msra.mxu0 0
      %2926 = vmatprep.subr.bf16.mxu0 0
      %2927 = vmatpush2.bf16.msra.mxu0 0
      %2928 = vmatprep.subr.bf16.mxu0 0
      %2929 = vmatpush2.bf16.msra.mxu0 0
      %2930 = vmatprep.subr.bf16.mxu0 0
      %2931 = vmatpush2.bf16.msra.mxu0 0
      %2932 = vmatprep.subr.bf16.mxu0 0
      %2933 = vmatpush2.bf16.msra.mxu0 0
      %2934 = vmatprep.subr.bf16.mxu0 0
      %2935 = vmatpush2.bf16.msra.mxu0 0
      %2936 = vmatprep.subr.bf16.mxu0 0
      %2937 = vmatpush2.bf16.msra.mxu0 0
      %2938 = vmatprep.subr.bf16.mxu0 0
      %2939 = vmatpush2.bf16.msra.mxu0 0
      %2940 = vmatprep.mubr.bf16.mxu0 0
      %2941 = vmatmul.mubr.bf16.gmra.mxu0 %v2900
      %v2942 = vpop.f32.mrf.mxu0
      %v2943 = vadd.f32 0.0, %v2942
      %v2944 = vpop.f32.mrf.mxu0
      %v2945 = vadd.f32 0.0, %v2944
      %v2946 = vpop.f32.mrf.mxu0
      %v2947 = vpop.f32.mrf.mxu0
      %2948 = vdwg.mxu0
      %v2949 = vmax.f32 %v2943, %v2945
      %2950 = vmax.xlane.f32.xlu0 %v2949
      %v2951 = vpop.xlane.xlu0 %2950
      %v2952 = vsub.f32 %v2943, %v2951
      %v2953 = vsub.f32 %v2945, %v2951
      %v2954 = vmul.f32 %v2952, 1.442695
      %v2955 = vpow.pop %v2954
      %v2956 = vmul.f32 %v2953, 1.442695
      %v2957 = vpow.pop %v2956
      %v2958 = vadd.f32 %v2955, %v2957
      %2959 = vadd.xlane.f32.xlu0 %v2958
      %v2960 = vpop.xlane.xlu0 %2959
      %v2961 = vrcp.pop %v2960
      %v2962 = vmul.f32 %v2955, %v2961
      %v2963 = vmul.f32 %v2957, %v2961
      %v2964 = vpack.c.bf16 %v2962, %v2962
      %v2965 = vpack.c.bf16 %v2963, %v2963
      %2966 = vmatprep.subr.bf16.mxu0 0
      %2967 = vmatpush1.bf16.xpose.msra.mxu0 0
      %2968 = vmatprep.subr.bf16.mxu0 0
      %2969 = vmatpush1.bf16.xpose.msra.mxu0 0
      %2970 = vmatprep.subr.bf16.mxu0 0
      %2971 = vmatpush1.bf16.xpose.msra.mxu0 0
      %2972 = vmatprep.subr.bf16.mxu0 0
      %2973 = vmatpush1.bf16.xpose.msra.mxu0 0
      %2974 = vmatprep.subr.bf16.mxu0 0
      %2975 = vmatpush1.bf16.xpose.msra.mxu0 0
      %2976 = vmatprep.subr.bf16.mxu0 0
      %2977 = vmatpush1.bf16.xpose.msra.mxu0 0
      %2978 = vmatprep.subr.bf16.mxu0 0
      %2979 = vmatpush1.bf16.xpose.msra.mxu0 0
      %2980 = vmatprep.subr.bf16.mxu0 %v2896
      %2981 = vmatpush1.bf16.xpose.msra.mxu0 %v2895
      %2982 = vmatprep.subr.bf16.mxu0 0
      %2983 = vmatpush2.bf16.xpose.msra.mxu0 0
      %2984 = vmatprep.subr.bf16.mxu0 0
      %2985 = vmatpush2.bf16.xpose.msra.mxu0 0
      %2986 = vmatprep.subr.bf16.mxu0 0
      %2987 = vmatpush2.bf16.xpose.msra.mxu0 0
      %2988 = vmatprep.subr.bf16.mxu0 0
      %2989 = vmatpush2.bf16.xpose.msra.mxu0 0
      %2990 = vmatprep.subr.bf16.mxu0 0
      %2991 = vmatpush2.bf16.xpose.msra.mxu0 0
      %2992 = vmatprep.subr.bf16.mxu0 0
      %2993 = vmatpush2.bf16.xpose.msra.mxu0 0
      %2994 = vmatprep.subr.bf16.mxu0 0
      %2995 = vmatpush2.bf16.xpose.msra.mxu0 0
      %2996 = vmatprep.subr.bf16.mxu0 0
      %2997 = vmatpush2.bf16.xpose.msra.mxu0 0
      %2998 = vmatprep.mubr.bf16.mxu0 %v2965
      %2999 = vmatmul.mubr.bf16.gmra.mxu0 %v2964
      %v3000 = vpop.f32.mrf.mxu0
      %v3001 = vadd.f32 0.0, %v3000
      %v3002 = vpop.f32.mrf.mxu0
      %v3003 = vpop.f32.mrf.mxu0
      %v3004 = vpop.f32.mrf.mxu0
      %3005 = vdwg.mxu0
      %3007 = vrot.lane.b32.xlu0 %v2775, 8
      %v3008 = vpop.permute.xlu0 %3007
      %3011 = vrot.lane.b32.xlu0 %v2888, 16
      %v3012 = vpop.permute.xlu0 %3011
      %3015 = vrot.lane.b32.xlu0 %v3001, 24
      %v3016 = vpop.permute.xlu0 %3015
      %v3018 = vsel %vm930, %v2661, %v3008
      %v3019 = vsel %vm1392, %v3018, %v3012
      %v3020 = vsel %vm1394, %v3019, %v3016
      %v3021 = vpack.c.bf16 %v3020, %v3020
      %v3022 = vlaneseq
      %v3023 = vshrl.u32 %v3022, 7
      %v3024 = vsub.s32 1, %v3023
      %v3025 = vrot.slane %v2297, %v3024
      %v3030 = vunpack.c.l.b16 %v2550
      %v3031 = vunpack.c.l.b16 %v2551
      %v3032 = vunpack.c.l.b16 %v2552
      %v3033 = vunpack.c.l.b16 %v2553
      %v3034 = vpack.c.b16 %v3031, %v3030
      %v3035 = vpack.c.b16 %v3033, %v3032
      %v3039 = vsel %vm672, %v3021, 0
      %3041 = vmatprep.subr.bf16.mxu0 0
      %3042 = vmatpush1.bf16.msra.mxu0 0
      %3043 = vmatprep.subr.bf16.mxu0 0
      %3044 = vmatpush1.bf16.msra.mxu0 0
      %3045 = vmatprep.subr.bf16.mxu0 0
      %3046 = vmatpush1.bf16.msra.mxu0 0
      %3047 = vmatprep.subr.bf16.mxu0 0
      %3048 = vmatpush1.bf16.msra.mxu0 0
      %3049 = vmatprep.subr.bf16.mxu0 0
      %3050 = vmatpush1.bf16.msra.mxu0 0
      %3051 = vmatprep.subr.bf16.mxu0 0
      %3052 = vmatpush1.bf16.msra.mxu0 0
      %3053 = vmatprep.subr.bf16.mxu0 0
      %3054 = vmatpush1.bf16.msra.mxu0 %v3035
      %3055 = vmatprep.subr.bf16.mxu0 0
      %3056 = vmatpush1.bf16.msra.mxu0 %v3034
      %3057 = vmatprep.subr.bf16.mxu0 0
      %3058 = vmatpush2.bf16.msra.mxu0 0
      %3059 = vmatprep.subr.bf16.mxu0 0
      %3060 = vmatpush2.bf16.msra.mxu0 0
      %3061 = vmatprep.subr.bf16.mxu0 0
      %3062 = vmatpush2.bf16.msra.mxu0 0
      %3063 = vmatprep.subr.bf16.mxu0 0
      %3064 = vmatpush2.bf16.msra.mxu0 0
      %3065 = vmatprep.subr.bf16.mxu0 0
      %3066 = vmatpush2.bf16.msra.mxu0 0
      %3067 = vmatprep.subr.bf16.mxu0 0
      %3068 = vmatpush2.bf16.msra.mxu0 0
      %3069 = vmatprep.subr.bf16.mxu0 0
      %3070 = vmatpush2.bf16.msra.mxu0 0
      %3071 = vmatprep.subr.bf16.mxu0 0
      %3072 = vmatpush2.bf16.msra.mxu0 0
      %3073 = vmatprep.mubr.bf16.mxu0 0
      %3074 = vmatmul.mubr.bf16.gmra.mxu0 %v3039
      %v3075 = vpop.f32.mrf.mxu0
      %v3076 = vadd.f32 %v3025, %v3075
      %v3077 = vpop.f32.mrf.mxu0
      %v3078 = vpop.f32.mrf.mxu0
      %v3079 = vpop.f32.mrf.mxu0
      %3080 = vdwg.mxu0
      %v3081 = vadd.f32 %v2293, %v3076
      %v3082 = vsel %vm672, %v3081, 0.0
      %3083 = vadd.xlane.f32.xlu0 %v3082
      %v3084 = vpop.xlane.xlu0 %3083
      %v3085 = vmul.f32 %v3084, %v549
      %v3086 = vsub.f32 %v3081, %v3085
      %v3087 = vmul.f32 %v3086, %v3086
      %v3088 = vsel %vm672, %v3087, 0.0
      %3089 = vadd.xlane.f32.xlu0 %v3088
      %v3090 = vpop.xlane.xlu0 %3089
      %v3091 = vmul.f32 %v3090, %v549
      %v3092 = vadd.f32 %v3091, 1e-05
      %v3093 = vrsqrt.pop %v3092
      %v3094 = vmul.f32 %v3086, %v3093
      %v3095 = vlaneseq
      %v3096 = vshrl.u32 %v3095, 7
      %v3097 = vsub.s32 2, %v3096
      %v3098 = vrot.slane %v2295, %v3097
      %v3099 = vmul.f32 %v3094, %v3098
      %v3100 = vlaneseq
      %v3101 = vshrl.u32 %v3100, 7
      %v3102 = vsub.s32 3, %v3101
      %v3103 = vrot.slane %v2295, %v3102
      %v3104 = vadd.f32 %v3099, %v3103
      %v3105 = vpack.c.bf16 %v3104, %v3104
      %s3106 = scalar_lea.vmem %s8, 16
      %v3107 = vld [vmem:[%s3106] sm:$0xf]
      %v3108 = vld [vmem:[%s3106 + $0x4] sm:$0xf]
      %v3109 = vld [vmem:[%s3106 + $0x8] sm:$0xf]
      %v3110 = vld [vmem:[%s3106 + $0xc] sm:$0xf]
      %s3111 = scalar_lea.vmem %s14, 1
      %v3112 = vld [vmem:[%s3111] sm:$0x1]
      %v3114 = vlaneseq
      %v3115 = vshrl.u32 %v3114, 7
      %v3116 = vsub.s32 0, %v3115
      %v3117 = vrot.slane %v3112, %v3116
      %v3123 = vunpack.c.l.b16 %v3107
      %v3124 = vunpack.c.l.b16 %v3108
      %v3125 = vunpack.c.l.b16 %v3109
      %v3126 = vunpack.c.l.b16 %v3110
      %v3127 = vpack.c.b16 %v3124, %v3123
      %v3128 = vpack.c.b16 %v3126, %v3125
      %v3132 = vsel %vm672, %v3105, 0
      %3134 = vmatprep.subr.bf16.mxu0 0
      %3135 = vmatpush1.bf16.msra.mxu0 0
      %3136 = vmatprep.subr.bf16.mxu0 0
      %3137 = vmatpush1.bf16.msra.mxu0 0
      %3138 = vmatprep.subr.bf16.mxu0 0
      %3139 = vmatpush1.bf16.msra.mxu0 0
      %3140 = vmatprep.subr.bf16.mxu0 0
      %3141 = vmatpush1.bf16.msra.mxu0 0
      %3142 = vmatprep.subr.bf16.mxu0 0
      %3143 = vmatpush1.bf16.msra.mxu0 0
      %3144 = vmatprep.subr.bf16.mxu0 0
      %3145 = vmatpush1.bf16.msra.mxu0 0
      %3146 = vmatprep.subr.bf16.mxu0 0
      %3147 = vmatpush1.bf16.msra.mxu0 %v3128
      %3148 = vmatprep.subr.bf16.mxu0 0
      %3149 = vmatpush1.bf16.msra.mxu0 %v3127
      %3150 = vmatprep.subr.bf16.mxu0 0
      %3151 = vmatpush2.bf16.msra.mxu0 0
      %3152 = vmatprep.subr.bf16.mxu0 0
      %3153 = vmatpush2.bf16.msra.mxu0 0
      %3154 = vmatprep.subr.bf16.mxu0 0
      %3155 = vmatpush2.bf16.msra.mxu0 0
      %3156 = vmatprep.subr.bf16.mxu0 0
      %3157 = vmatpush2.bf16.msra.mxu0 0
      %3158 = vmatprep.subr.bf16.mxu0 0
      %3159 = vmatpush2.bf16.msra.mxu0 0
      %3160 = vmatprep.subr.bf16.mxu0 0
      %3161 = vmatpush2.bf16.msra.mxu0 0
      %3162 = vmatprep.subr.bf16.mxu0 0
      %3163 = vmatpush2.bf16.msra.mxu0 0
      %3164 = vmatprep.subr.bf16.mxu0 0
      %3165 = vmatpush2.bf16.msra.mxu0 0
      %3166 = vmatprep.mubr.bf16.mxu0 0
      %3167 = vmatmul.mubr.bf16.gmra.mxu0 %v3132
      %v3168 = vpop.f32.mrf.mxu0
      %v3169 = vadd.f32 %v3117, %v3168
      %v3170 = vpop.f32.mrf.mxu0
      %v3171 = vpop.f32.mrf.mxu0
      %v3172 = vpop.f32.mrf.mxu0
      %3173 = vdwg.mxu0
      %s3174 = scalar_lea.vmem %s9, 16
      %v3175 = vld [vmem:[%s3174] sm:$0xf]
      %v3176 = vld [vmem:[%s3174 + $0x4] sm:$0xf]
      %v3177 = vld [vmem:[%s3174 + $0x8] sm:$0xf]
      %v3178 = vld [vmem:[%s3174 + $0xc] sm:$0xf]
      %v3179 = vpack.c.bf16 %v3169, %v3169
      %3181 = vrot.lane.b32.xlu0 %v3179, 96
      %v3182 = vpop.permute.xlu0 %3181
      %v3184 = vsel %vm930, %v3179, 0
      %v3187 = vsel %vm930, %v3182, 0
      %3189 = vmatprep.subr.bf16.mxu0 0
      %3190 = vmatpush1.bf16.xpose.msra.mxu0 0
      %3191 = vmatprep.subr.bf16.mxu0 0
      %3192 = vmatpush1.bf16.xpose.msra.mxu0 0
      %3193 = vmatprep.subr.bf16.mxu0 0
      %3194 = vmatpush1.bf16.xpose.msra.mxu0 0
      %3195 = vmatprep.subr.bf16.mxu0 0
      %3196 = vmatpush1.bf16.xpose.msra.mxu0 0
      %3197 = vmatprep.subr.bf16.mxu0 0
      %3198 = vmatpush1.bf16.xpose.msra.mxu0 0
      %3199 = vmatprep.subr.bf16.mxu0 0
      %3200 = vmatpush1.bf16.xpose.msra.mxu0 0
      %3201 = vmatprep.subr.bf16.mxu0 0
      %3202 = vmatpush1.bf16.xpose.msra.mxu0 0
      %3203 = vmatprep.subr.bf16.mxu0 0
      %3204 = vmatpush1.bf16.xpose.msra.mxu0 %v3187
      %3205 = vmatprep.subr.bf16.mxu0 0
      %3206 = vmatpush2.bf16.xpose.msra.mxu0 0
      %3207 = vmatprep.subr.bf16.mxu0 0
      %3208 = vmatpush2.bf16.xpose.msra.mxu0 0
      %3209 = vmatprep.subr.bf16.mxu0 0
      %3210 = vmatpush2.bf16.xpose.msra.mxu0 0
      %3211 = vmatprep.subr.bf16.mxu0 0
      %3212 = vmatpush2.bf16.xpose.msra.mxu0 0
      %3213 = vmatprep.subr.bf16.mxu0 0
      %3214 = vmatpush2.bf16.xpose.msra.mxu0 0
      %3215 = vmatprep.subr.bf16.mxu0 0
      %3216 = vmatpush2.bf16.xpose.msra.mxu0 0
      %3217 = vmatprep.subr.bf16.mxu0 0
      %3218 = vmatpush2.bf16.xpose.msra.mxu0 0
      %3219 = vmatprep.subr.bf16.mxu0 0
      %3220 = vmatpush2.bf16.xpose.msra.mxu0 0
      %3221 = vmatprep.mubr.bf16.mxu0 0
      %3222 = vmatmul.mubr.bf16.gmra.mxu0 %v3184
      %v3223 = vpop.f32.mrf.mxu0
      %v3224 = vadd.f32 0.0, %v3223
      %v3225 = vpop.f32.mrf.mxu0
      %v3226 = vpop.f32.mrf.mxu0
      %v3227 = vpop.f32.mrf.mxu0
      %3228 = vdwg.mxu0
      %v3229 = vsel %vm930, %v3224, -inf
      %3230 = vmax.xlane.f32.xlu0 %v3229
      %v3231 = vpop.xlane.xlu0 %3230
      %v3232 = vsub.f32 %v3224, %v3231
      %v3233 = vmul.f32 %v3232, 1.442695
      %v3234 = vpow.pop %v3233
      %v3235 = vsel %vm930, %v3234, 0.0
      %3236 = vadd.xlane.f32.xlu0 %v3235
      %v3237 = vpop.xlane.xlu0 %3236
      %v3238 = vrcp.pop %v3237
      %v3239 = vmul.f32 %v3234, %v3238
      %v3240 = vpack.c.bf16 %v3239, %v3239
      %3241 = vrot.lane.b32.xlu0 %v3179, 64
      %v3242 = vpop.permute.xlu0 %3241
      %v3244 = vsel %vm930, %v3240, 0
      %v3247 = vsel %vm934, %v3242, 0
      %3249 = vmatprep.subr.bf16.mxu0 0
      %3250 = vmatpush1.bf16.msra.mxu0 0
      %3251 = vmatprep.subr.bf16.mxu0 0
      %3252 = vmatpush1.bf16.msra.mxu0 0
      %3253 = vmatprep.subr.bf16.mxu0 0
      %3254 = vmatpush1.bf16.msra.mxu0 0
      %3255 = vmatprep.subr.bf16.mxu0 0
      %3256 = vmatpush1.bf16.msra.mxu0 0
      %3257 = vmatprep.subr.bf16.mxu0 0
      %3258 = vmatpush1.bf16.msra.mxu0 0
      %3259 = vmatprep.subr.bf16.mxu0 0
      %3260 = vmatpush1.bf16.msra.mxu0 0
      %3261 = vmatprep.subr.bf16.mxu0 0
      %3262 = vmatpush1.bf16.msra.mxu0 0
      %3263 = vmatprep.subr.bf16.mxu0 0
      %3264 = vmatpush1.bf16.msra.mxu0 %v3247
      %3265 = vmatprep.subr.bf16.mxu0 0
      %3266 = vmatpush2.bf16.msra.mxu0 0
      %3267 = vmatprep.subr.bf16.mxu0 0
      %3268 = vmatpush2.bf16.msra.mxu0 0
      %3269 = vmatprep.subr.bf16.mxu0 0
      %3270 = vmatpush2.bf16.msra.mxu0 0
      %3271 = vmatprep.subr.bf16.mxu0 0
      %3272 = vmatpush2.bf16.msra.mxu0 0
      %3273 = vmatprep.subr.bf16.mxu0 0
      %3274 = vmatpush2.bf16.msra.mxu0 0
      %3275 = vmatprep.subr.bf16.mxu0 0
      %3276 = vmatpush2.bf16.msra.mxu0 0
      %3277 = vmatprep.subr.bf16.mxu0 0
      %3278 = vmatpush2.bf16.msra.mxu0 0
      %3279 = vmatprep.subr.bf16.mxu0 0
      %3280 = vmatpush2.bf16.msra.mxu0 0
      %3281 = vmatprep.mubr.bf16.mxu0 0
      %3282 = vmatmul.mubr.bf16.gmra.mxu0 %v3244
      %v3283 = vpop.f32.mrf.mxu0
      %v3284 = vadd.f32 0.0, %v3283
      %v3285 = vpop.f32.mrf.mxu0
      %v3286 = vpop.f32.mrf.mxu0
      %v3287 = vpop.f32.mrf.mxu0
      %3288 = vdwg.mxu0
      %3289 = vrot.lane.b32.xlu0 %v3179, 120
      %v3290 = vpop.permute.xlu0 %3289
      %3291 = vrot.lane.b32.xlu0 %v3179, 88
      %v3292 = vpop.permute.xlu0 %3291
      %v3294 = vsel %vm930, %v3290, 0
      %v3297 = vsel %vm930, %v3292, 0
      %3299 = vmatprep.subr.bf16.mxu0 0
      %3300 = vmatpush1.bf16.xpose.msra.mxu0 0
      %3301 = vmatprep.subr.bf16.mxu0 0
      %3302 = vmatpush1.bf16.xpose.msra.mxu0 0
      %3303 = vmatprep.subr.bf16.mxu0 0
      %3304 = vmatpush1.bf16.xpose.msra.mxu0 0
      %3305 = vmatprep.subr.bf16.mxu0 0
      %3306 = vmatpush1.bf16.xpose.msra.mxu0 0
      %3307 = vmatprep.subr.bf16.mxu0 0
      %3308 = vmatpush1.bf16.xpose.msra.mxu0 0
      %3309 = vmatprep.subr.bf16.mxu0 0
      %3310 = vmatpush1.bf16.xpose.msra.mxu0 0
      %3311 = vmatprep.subr.bf16.mxu0 0
      %3312 = vmatpush1.bf16.xpose.msra.mxu0 0
      %3313 = vmatprep.subr.bf16.mxu0 0
      %3314 = vmatpush1.bf16.xpose.msra.mxu0 %v3297
      %3315 = vmatprep.subr.bf16.mxu0 0
      %3316 = vmatpush2.bf16.xpose.msra.mxu0 0
      %3317 = vmatprep.subr.bf16.mxu0 0
      %3318 = vmatpush2.bf16.xpose.msra.mxu0 0
      %3319 = vmatprep.subr.bf16.mxu0 0
      %3320 = vmatpush2.bf16.xpose.msra.mxu0 0
      %3321 = vmatprep.subr.bf16.mxu0 0
      %3322 = vmatpush2.bf16.xpose.msra.mxu0 0
      %3323 = vmatprep.subr.bf16.mxu0 0
      %3324 = vmatpush2.bf16.xpose.msra.mxu0 0
      %3325 = vmatprep.subr.bf16.mxu0 0
      %3326 = vmatpush2.bf16.xpose.msra.mxu0 0
      %3327 = vmatprep.subr.bf16.mxu0 0
      %3328 = vmatpush2.bf16.xpose.msra.mxu0 0
      %3329 = vmatprep.subr.bf16.mxu0 0
      %3330 = vmatpush2.bf16.xpose.msra.mxu0 0
      %3331 = vmatprep.mubr.bf16.mxu0 0
      %3332 = vmatmul.mubr.bf16.gmra.mxu0 %v3294
      %v3333 = vpop.f32.mrf.mxu0
      %v3334 = vadd.f32 0.0, %v3333
      %v3335 = vpop.f32.mrf.mxu0
      %v3336 = vpop.f32.mrf.mxu0
      %v3337 = vpop.f32.mrf.mxu0
      %3338 = vdwg.mxu0
      %v3339 = vsel %vm930, %v3334, -inf
      %3340 = vmax.xlane.f32.xlu0 %v3339
      %v3341 = vpop.xlane.xlu0 %3340
      %v3342 = vsub.f32 %v3334, %v3341
      %v3343 = vmul.f32 %v3342, 1.442695
      %v3344 = vpow.pop %v3343
      %v3345 = vsel %vm930, %v3344, 0.0
      %3346 = vadd.xlane.f32.xlu0 %v3345
      %v3347 = vpop.xlane.xlu0 %3346
      %v3348 = vrcp.pop %v3347
      %v3349 = vmul.f32 %v3344, %v3348
      %v3350 = vpack.c.bf16 %v3349, %v3349
      %3351 = vrot.lane.b32.xlu0 %v3179, 56
      %v3352 = vpop.permute.xlu0 %3351
      %v3354 = vsel %vm930, %v3350, 0
      %v3357 = vsel %vm934, %v3352, 0
      %3359 = vmatprep.subr.bf16.mxu0 0
      %3360 = vmatpush1.bf16.msra.mxu0 0
      %3361 = vmatprep.subr.bf16.mxu0 0
      %3362 = vmatpush1.bf16.msra.mxu0 0
      %3363 = vmatprep.subr.bf16.mxu0 0
      %3364 = vmatpush1.bf16.msra.mxu0 0
      %3365 = vmatprep.subr.bf16.mxu0 0
      %3366 = vmatpush1.bf16.msra.mxu0 0
      %3367 = vmatprep.subr.bf16.mxu0 0
      %3368 = vmatpush1.bf16.msra.mxu0 0
      %3369 = vmatprep.subr.bf16.mxu0 0
      %3370 = vmatpush1.bf16.msra.mxu0 0
      %3371 = vmatprep.subr.bf16.mxu0 0
      %3372 = vmatpush1.bf16.msra.mxu0 0
      %3373 = vmatprep.subr.bf16.mxu0 0
      %3374 = vmatpush1.bf16.msra.mxu0 %v3357
      %3375 = vmatprep.subr.bf16.mxu0 0
      %3376 = vmatpush2.bf16.msra.mxu0 0
      %3377 = vmatprep.subr.bf16.mxu0 0
      %3378 = vmatpush2.bf16.msra.mxu0 0
      %3379 = vmatprep.subr.bf16.mxu0 0
      %3380 = vmatpush2.bf16.msra.mxu0 0
      %3381 = vmatprep.subr.bf16.mxu0 0
      %3382 = vmatpush2.bf16.msra.mxu0 0
      %3383 = vmatprep.subr.bf16.mxu0 0
      %3384 = vmatpush2.bf16.msra.mxu0 0
      %3385 = vmatprep.subr.bf16.mxu0 0
      %3386 = vmatpush2.bf16.msra.mxu0 0
      %3387 = vmatprep.subr.bf16.mxu0 0
      %3388 = vmatpush2.bf16.msra.mxu0 0
      %3389 = vmatprep.subr.bf16.mxu0 0
      %3390 = vmatpush2.bf16.msra.mxu0 0
      %3391 = vmatprep.mubr.bf16.mxu0 0
      %3392 = vmatmul.mubr.bf16.gmra.mxu0 %v3354
      %v3393 = vpop.f32.mrf.mxu0
      %v3394 = vadd.f32 0.0, %v3393
      %v3395 = vpop.f32.mrf.mxu0
      %v3396 = vpop.f32.mrf.mxu0
      %v3397 = vpop.f32.mrf.mxu0
      %3398 = vdwg.mxu0
      %3399 = vrot.lane.b32.xlu0 %v3179, 112
      %v3400 = vpop.permute.xlu0 %3399
      %3401 = vrot.lane.b32.xlu0 %v3179, 80
      %v3402 = vpop.permute.xlu0 %3401
      %v3404 = vsel %vm930, %v3400, 0
      %v3407 = vsel %vm930, %v3402, 0
      %3409 = vmatprep.subr.bf16.mxu0 0
      %3410 = vmatpush1.bf16.xpose.msra.mxu0 0
      %3411 = vmatprep.subr.bf16.mxu0 0
      %3412 = vmatpush1.bf16.xpose.msra.mxu0 0
      %3413 = vmatprep.subr.bf16.mxu0 0
      %3414 = vmatpush1.bf16.xpose.msra.mxu0 0
      %3415 = vmatprep.subr.bf16.mxu0 0
      %3416 = vmatpush1.bf16.xpose.msra.mxu0 0
      %3417 = vmatprep.subr.bf16.mxu0 0
      %3418 = vmatpush1.bf16.xpose.msra.mxu0 0
      %3419 = vmatprep.subr.bf16.mxu0 0
      %3420 = vmatpush1.bf16.xpose.msra.mxu0 0
      %3421 = vmatprep.subr.bf16.mxu0 0
      %3422 = vmatpush1.bf16.xpose.msra.mxu0 0
      %3423 = vmatprep.subr.bf16.mxu0 0
      %3424 = vmatpush1.bf16.xpose.msra.mxu0 %v3407
      %3425 = vmatprep.subr.bf16.mxu0 0
      %3426 = vmatpush2.bf16.xpose.msra.mxu0 0
      %3427 = vmatprep.subr.bf16.mxu0 0
      %3428 = vmatpush2.bf16.xpose.msra.mxu0 0
      %3429 = vmatprep.subr.bf16.mxu0 0
      %3430 = vmatpush2.bf16.xpose.msra.mxu0 0
      %3431 = vmatprep.subr.bf16.mxu0 0
      %3432 = vmatpush2.bf16.xpose.msra.mxu0 0
      %3433 = vmatprep.subr.bf16.mxu0 0
      %3434 = vmatpush2.bf16.xpose.msra.mxu0 0
      %3435 = vmatprep.subr.bf16.mxu0 0
      %3436 = vmatpush2.bf16.xpose.msra.mxu0 0
      %3437 = vmatprep.subr.bf16.mxu0 0
      %3438 = vmatpush2.bf16.xpose.msra.mxu0 0
      %3439 = vmatprep.subr.bf16.mxu0 0
      %3440 = vmatpush2.bf16.xpose.msra.mxu0 0
      %3441 = vmatprep.mubr.bf16.mxu0 0
      %3442 = vmatmul.mubr.bf16.gmra.mxu0 %v3404
      %v3443 = vpop.f32.mrf.mxu0
      %v3444 = vadd.f32 0.0, %v3443
      %v3445 = vpop.f32.mrf.mxu0
      %v3446 = vpop.f32.mrf.mxu0
      %v3447 = vpop.f32.mrf.mxu0
      %3448 = vdwg.mxu0
      %v3449 = vsel %vm930, %v3444, -inf
      %3450 = vmax.xlane.f32.xlu0 %v3449
      %v3451 = vpop.xlane.xlu0 %3450
      %v3452 = vsub.f32 %v3444, %v3451
      %v3453 = vmul.f32 %v3452, 1.442695
      %v3454 = vpow.pop %v3453
      %v3455 = vsel %vm930, %v3454, 0.0
      %3456 = vadd.xlane.f32.xlu0 %v3455
      %v3457 = vpop.xlane.xlu0 %3456
      %v3458 = vrcp.pop %v3457
      %v3459 = vmul.f32 %v3454, %v3458
      %v3460 = vpack.c.bf16 %v3459, %v3459
      %3461 = vrot.lane.b32.xlu0 %v3179, 48
      %v3462 = vpop.permute.xlu0 %3461
      %v3464 = vsel %vm930, %v3460, 0
      %v3467 = vsel %vm934, %v3462, 0
      %3469 = vmatprep.subr.bf16.mxu0 0
      %3470 = vmatpush1.bf16.msra.mxu0 0
      %3471 = vmatprep.subr.bf16.mxu0 0
      %3472 = vmatpush1.bf16.msra.mxu0 0
      %3473 = vmatprep.subr.bf16.mxu0 0
      %3474 = vmatpush1.bf16.msra.mxu0 0
      %3475 = vmatprep.subr.bf16.mxu0 0
      %3476 = vmatpush1.bf16.msra.mxu0 0
      %3477 = vmatprep.subr.bf16.mxu0 0
      %3478 = vmatpush1.bf16.msra.mxu0 0
      %3479 = vmatprep.subr.bf16.mxu0 0
      %3480 = vmatpush1.bf16.msra.mxu0 0
      %3481 = vmatprep.subr.bf16.mxu0 0
      %3482 = vmatpush1.bf16.msra.mxu0 0
      %3483 = vmatprep.subr.bf16.mxu0 0
      %3484 = vmatpush1.bf16.msra.mxu0 %v3467
      %3485 = vmatprep.subr.bf16.mxu0 0
      %3486 = vmatpush2.bf16.msra.mxu0 0
      %3487 = vmatprep.subr.bf16.mxu0 0
      %3488 = vmatpush2.bf16.msra.mxu0 0
      %3489 = vmatprep.subr.bf16.mxu0 0
      %3490 = vmatpush2.bf16.msra.mxu0 0
      %3491 = vmatprep.subr.bf16.mxu0 0
      %3492 = vmatpush2.bf16.msra.mxu0 0
      %3493 = vmatprep.subr.bf16.mxu0 0
      %3494 = vmatpush2.bf16.msra.mxu0 0
      %3495 = vmatprep.subr.bf16.mxu0 0
      %3496 = vmatpush2.bf16.msra.mxu0 0
      %3497 = vmatprep.subr.bf16.mxu0 0
      %3498 = vmatpush2.bf16.msra.mxu0 0
      %3499 = vmatprep.subr.bf16.mxu0 0
      %3500 = vmatpush2.bf16.msra.mxu0 0
      %3501 = vmatprep.mubr.bf16.mxu0 0
      %3502 = vmatmul.mubr.bf16.gmra.mxu0 %v3464
      %v3503 = vpop.f32.mrf.mxu0
      %v3504 = vadd.f32 0.0, %v3503
      %v3505 = vpop.f32.mrf.mxu0
      %v3506 = vpop.f32.mrf.mxu0
      %v3507 = vpop.f32.mrf.mxu0
      %3508 = vdwg.mxu0
      %3509 = vrot.lane.b32.xlu0 %v3179, 104
      %v3510 = vpop.permute.xlu0 %3509
      %3511 = vrot.lane.b32.xlu0 %v3179, 72
      %v3512 = vpop.permute.xlu0 %3511
      %v3514 = vsel %vm930, %v3510, 0
      %v3517 = vsel %vm930, %v3512, 0
      %3519 = vmatprep.subr.bf16.mxu0 0
      %3520 = vmatpush1.bf16.xpose.msra.mxu0 0
      %3521 = vmatprep.subr.bf16.mxu0 0
      %3522 = vmatpush1.bf16.xpose.msra.mxu0 0
      %3523 = vmatprep.subr.bf16.mxu0 0
      %3524 = vmatpush1.bf16.xpose.msra.mxu0 0
      %3525 = vmatprep.subr.bf16.mxu0 0
      %3526 = vmatpush1.bf16.xpose.msra.mxu0 0
      %3527 = vmatprep.subr.bf16.mxu0 0
      %3528 = vmatpush1.bf16.xpose.msra.mxu0 0
      %3529 = vmatprep.subr.bf16.mxu0 0
      %3530 = vmatpush1.bf16.xpose.msra.mxu0 0
      %3531 = vmatprep.subr.bf16.mxu0 0
      %3532 = vmatpush1.bf16.xpose.msra.mxu0 0
      %3533 = vmatprep.subr.bf16.mxu0 0
      %3534 = vmatpush1.bf16.xpose.msra.mxu0 %v3517
      %3535 = vmatprep.subr.bf16.mxu0 0
      %3536 = vmatpush2.bf16.xpose.msra.mxu0 0
      %3537 = vmatprep.subr.bf16.mxu0 0
      %3538 = vmatpush2.bf16.xpose.msra.mxu0 0
      %3539 = vmatprep.subr.bf16.mxu0 0
      %3540 = vmatpush2.bf16.xpose.msra.mxu0 0
      %3541 = vmatprep.subr.bf16.mxu0 0
      %3542 = vmatpush2.bf16.xpose.msra.mxu0 0
      %3543 = vmatprep.subr.bf16.mxu0 0
      %3544 = vmatpush2.bf16.xpose.msra.mxu0 0
      %3545 = vmatprep.subr.bf16.mxu0 0
      %3546 = vmatpush2.bf16.xpose.msra.mxu0 0
      %3547 = vmatprep.subr.bf16.mxu0 0
      %3548 = vmatpush2.bf16.xpose.msra.mxu0 0
      %3549 = vmatprep.subr.bf16.mxu0 0
      %3550 = vmatpush2.bf16.xpose.msra.mxu0 0
      %3551 = vmatprep.mubr.bf16.mxu0 0
      %3552 = vmatmul.mubr.bf16.gmra.mxu0 %v3514
      %v3553 = vpop.f32.mrf.mxu0
      %v3554 = vadd.f32 0.0, %v3553
      %v3555 = vpop.f32.mrf.mxu0
      %v3556 = vpop.f32.mrf.mxu0
      %v3557 = vpop.f32.mrf.mxu0
      %3558 = vdwg.mxu0
      %v3559 = vsel %vm930, %v3554, -inf
      %3560 = vmax.xlane.f32.xlu0 %v3559
      %v3561 = vpop.xlane.xlu0 %3560
      %v3562 = vsub.f32 %v3554, %v3561
      %v3563 = vmul.f32 %v3562, 1.442695
      %v3564 = vpow.pop %v3563
      %v3565 = vsel %vm930, %v3564, 0.0
      %3566 = vadd.xlane.f32.xlu0 %v3565
      %v3567 = vpop.xlane.xlu0 %3566
      %v3568 = vrcp.pop %v3567
      %v3569 = vmul.f32 %v3564, %v3568
      %v3570 = vpack.c.bf16 %v3569, %v3569
      %3571 = vrot.lane.b32.xlu0 %v3179, 40
      %v3572 = vpop.permute.xlu0 %3571
      %v3574 = vsel %vm930, %v3570, 0
      %v3577 = vsel %vm934, %v3572, 0
      %3579 = vmatprep.subr.bf16.mxu0 0
      %3580 = vmatpush1.bf16.msra.mxu0 0
      %3581 = vmatprep.subr.bf16.mxu0 0
      %3582 = vmatpush1.bf16.msra.mxu0 0
      %3583 = vmatprep.subr.bf16.mxu0 0
      %3584 = vmatpush1.bf16.msra.mxu0 0
      %3585 = vmatprep.subr.bf16.mxu0 0
      %3586 = vmatpush1.bf16.msra.mxu0 0
      %3587 = vmatprep.subr.bf16.mxu0 0
      %3588 = vmatpush1.bf16.msra.mxu0 0
      %3589 = vmatprep.subr.bf16.mxu0 0
      %3590 = vmatpush1.bf16.msra.mxu0 0
      %3591 = vmatprep.subr.bf16.mxu0 0
      %3592 = vmatpush1.bf16.msra.mxu0 0
      %3593 = vmatprep.subr.bf16.mxu0 0
      %3594 = vmatpush1.bf16.msra.mxu0 %v3577
      %3595 = vmatprep.subr.bf16.mxu0 0
      %3596 = vmatpush2.bf16.msra.mxu0 0
      %3597 = vmatprep.subr.bf16.mxu0 0
      %3598 = vmatpush2.bf16.msra.mxu0 0
      %3599 = vmatprep.subr.bf16.mxu0 0
      %3600 = vmatpush2.bf16.msra.mxu0 0
      %3601 = vmatprep.subr.bf16.mxu0 0
      %3602 = vmatpush2.bf16.msra.mxu0 0
      %3603 = vmatprep.subr.bf16.mxu0 0
      %3604 = vmatpush2.bf16.msra.mxu0 0
      %3605 = vmatprep.subr.bf16.mxu0 0
      %3606 = vmatpush2.bf16.msra.mxu0 0
      %3607 = vmatprep.subr.bf16.mxu0 0
      %3608 = vmatpush2.bf16.msra.mxu0 0
      %3609 = vmatprep.subr.bf16.mxu0 0
      %3610 = vmatpush2.bf16.msra.mxu0 0
      %3611 = vmatprep.mubr.bf16.mxu0 0
      %3612 = vmatmul.mubr.bf16.gmra.mxu0 %v3574
      %v3613 = vpop.f32.mrf.mxu0
      %v3614 = vadd.f32 0.0, %v3613
      %v3615 = vpop.f32.mrf.mxu0
      %v3616 = vpop.f32.mrf.mxu0
      %v3617 = vpop.f32.mrf.mxu0
      %3618 = vdwg.mxu0
      %3620 = vrot.lane.b32.xlu0 %v3394, 8
      %v3621 = vpop.permute.xlu0 %3620
      %3624 = vrot.lane.b32.xlu0 %v3504, 16
      %v3625 = vpop.permute.xlu0 %3624
      %3628 = vrot.lane.b32.xlu0 %v3614, 24
      %v3629 = vpop.permute.xlu0 %3628
      %v3631 = vsel %vm930, %v3284, %v3621
      %v3632 = vsel %vm1392, %v3631, %v3625
      %v3633 = vsel %vm1394, %v3632, %v3629
      %v3634 = vpack.c.bf16 %v3633, %v3633
      %v3635 = vlaneseq
      %v3636 = vshrl.u32 %v3635, 7
      %v3637 = vsub.s32 2, %v3636
      %v3638 = vrot.slane %v2297, %v3637
      %v3643 = vunpack.c.l.b16 %v3175
      %v3644 = vunpack.c.l.b16 %v3176
      %v3645 = vunpack.c.l.b16 %v3177
      %v3646 = vunpack.c.l.b16 %v3178
      %v3647 = vpack.c.b16 %v3644, %v3643
      %v3648 = vpack.c.b16 %v3646, %v3645
      %v3652 = vsel %vm672, %v3634, 0
      %3654 = vmatprep.subr.bf16.mxu0 0
      %3655 = vmatpush1.bf16.msra.mxu0 0
      %3656 = vmatprep.subr.bf16.mxu0 0
      %3657 = vmatpush1.bf16.msra.mxu0 0
      %3658 = vmatprep.subr.bf16.mxu0 0
      %3659 = vmatpush1.bf16.msra.mxu0 0
      %3660 = vmatprep.subr.bf16.mxu0 0
      %3661 = vmatpush1.bf16.msra.mxu0 0
      %3662 = vmatprep.subr.bf16.mxu0 0
      %3663 = vmatpush1.bf16.msra.mxu0 0
      %3664 = vmatprep.subr.bf16.mxu0 0
      %3665 = vmatpush1.bf16.msra.mxu0 0
      %3666 = vmatprep.subr.bf16.mxu0 0
      %3667 = vmatpush1.bf16.msra.mxu0 %v3648
      %3668 = vmatprep.subr.bf16.mxu0 0
      %3669 = vmatpush1.bf16.msra.mxu0 %v3647
      %3670 = vmatprep.subr.bf16.mxu0 0
      %3671 = vmatpush2.bf16.msra.mxu0 0
      %3672 = vmatprep.subr.bf16.mxu0 0
      %3673 = vmatpush2.bf16.msra.mxu0 0
      %3674 = vmatprep.subr.bf16.mxu0 0
      %3675 = vmatpush2.bf16.msra.mxu0 0
      %3676 = vmatprep.subr.bf16.mxu0 0
      %3677 = vmatpush2.bf16.msra.mxu0 0
      %3678 = vmatprep.subr.bf16.mxu0 0
      %3679 = vmatpush2.bf16.msra.mxu0 0
      %3680 = vmatprep.subr.bf16.mxu0 0
      %3681 = vmatpush2.bf16.msra.mxu0 0
      %3682 = vmatprep.subr.bf16.mxu0 0
      %3683 = vmatpush2.bf16.msra.mxu0 0
      %3684 = vmatprep.subr.bf16.mxu0 0
      %3685 = vmatpush2.bf16.msra.mxu0 0
      %3686 = vmatprep.mubr.bf16.mxu0 0
      %3687 = vmatmul.mubr.bf16.gmra.mxu0 %v3652
      %v3688 = vpop.f32.mrf.mxu0
      %v3689 = vadd.f32 %v3638, %v3688
      %v3690 = vpop.f32.mrf.mxu0
      %v3691 = vpop.f32.mrf.mxu0
      %v3692 = vpop.f32.mrf.mxu0
      %3693 = vdwg.mxu0
      %v3694 = vadd.f32 %v3081, %v3689
      %v3695 = vsel %vm672, %v3694, 0.0
      %3696 = vadd.xlane.f32.xlu0 %v3695
      %v3697 = vpop.xlane.xlu0 %3696
      %v3698 = vmul.f32 %v3697, %v549
      %v3699 = vsub.f32 %v3694, %v3698
      %v3700 = vmul.f32 %v3699, %v3699
      %v3701 = vsel %vm672, %v3700, 0.0
      %3702 = vadd.xlane.f32.xlu0 %v3701
      %v3703 = vpop.xlane.xlu0 %3702
      %v3704 = vmul.f32 %v3703, %v549
      %v3705 = vadd.f32 %v3704, 1e-05
      %v3706 = vrsqrt.pop %v3705
      %v3707 = vmul.f32 %v3699, %v3706
      %v3708 = vlaneseq
      %v3709 = vshrl.u32 %v3708, 7
      %v3710 = vsub.s32 4, %v3709
      %v3711 = vrot.slane %v2295, %v3710
      %v3712 = vmul.f32 %v3707, %v3711
      %v3713 = vlaneseq
      %v3714 = vshrl.u32 %v3713, 7
      %v3715 = vsub.s32 5, %v3714
      %v3716 = vrot.slane %v2295, %v3715
      %v3717 = vadd.f32 %v3712, %v3716
      %v3718 = vpack.c.bf16 %v3717, %v3717
      %s3719 = scalar_lea.vmem %s10, 16
      %v3720 = vld [vmem:[%s3719] sm:$0xf]
      %v3721 = vld [vmem:[%s3719 + $0x4] sm:$0xf]
      %v3722 = vld [vmem:[%s3719 + $0x8] sm:$0xf]
      %v3723 = vld [vmem:[%s3719 + $0xc] sm:$0xf]
      %s3724 = scalar_lea.vmem %s15, 1
      %v3725 = vld [vmem:[%s3724] sm:$0x1]
      %v3727 = vlaneseq
      %v3728 = vshrl.u32 %v3727, 7
      %v3729 = vsub.s32 0, %v3728
      %v3730 = vrot.slane %v3725, %v3729
      %v3736 = vunpack.c.l.b16 %v3720
      %v3737 = vunpack.c.l.b16 %v3721
      %v3738 = vunpack.c.l.b16 %v3722
      %v3739 = vunpack.c.l.b16 %v3723
      %v3740 = vpack.c.b16 %v3737, %v3736
      %v3741 = vpack.c.b16 %v3739, %v3738
      %v3745 = vsel %vm672, %v3718, 0
      %3747 = vmatprep.subr.bf16.mxu0 0
      %3748 = vmatpush1.bf16.msra.mxu0 0
      %3749 = vmatprep.subr.bf16.mxu0 0
      %3750 = vmatpush1.bf16.msra.mxu0 0
      %3751 = vmatprep.subr.bf16.mxu0 0
      %3752 = vmatpush1.bf16.msra.mxu0 0
      %3753 = vmatprep.subr.bf16.mxu0 0
      %3754 = vmatpush1.bf16.msra.mxu0 0
      %3755 = vmatprep.subr.bf16.mxu0 0
      %3756 = vmatpush1.bf16.msra.mxu0 0
      %3757 = vmatprep.subr.bf16.mxu0 0
      %3758 = vmatpush1.bf16.msra.mxu0 0
      %3759 = vmatprep.subr.bf16.mxu0 0
      %3760 = vmatpush1.bf16.msra.mxu0 %v3741
      %3761 = vmatprep.subr.bf16.mxu0 0
      %3762 = vmatpush1.bf16.msra.mxu0 %v3740
      %3763 = vmatprep.subr.bf16.mxu0 0
      %3764 = vmatpush2.bf16.msra.mxu0 0
      %3765 = vmatprep.subr.bf16.mxu0 0
      %3766 = vmatpush2.bf16.msra.mxu0 0
      %3767 = vmatprep.subr.bf16.mxu0 0
      %3768 = vmatpush2.bf16.msra.mxu0 0
      %3769 = vmatprep.subr.bf16.mxu0 0
      %3770 = vmatpush2.bf16.msra.mxu0 0
      %3771 = vmatprep.subr.bf16.mxu0 0
      %3772 = vmatpush2.bf16.msra.mxu0 0
      %3773 = vmatprep.subr.bf16.mxu0 0
      %3774 = vmatpush2.bf16.msra.mxu0 0
      %3775 = vmatprep.subr.bf16.mxu0 0
      %3776 = vmatpush2.bf16.msra.mxu0 0
      %3777 = vmatprep.subr.bf16.mxu0 0
      %3778 = vmatpush2.bf16.msra.mxu0 0
      %3779 = vmatprep.mubr.bf16.mxu0 0
      %3780 = vmatmul.mubr.bf16.gmra.mxu0 %v3745
      %v3781 = vpop.f32.mrf.mxu0
      %v3782 = vadd.f32 %v3730, %v3781
      %v3783 = vpop.f32.mrf.mxu0
      %v3784 = vpop.f32.mrf.mxu0
      %v3785 = vpop.f32.mrf.mxu0
      %3786 = vdwg.mxu0
      %v3787 = vmul.f32 %v3782, 0.5
      %v3788 = vmul.f32 %v3782, 0.70710677
      %v3789 = vand.u32 2147483647, %v3788
      %v3790 = vmul.f32 %v3789, 0.3275911
      %v3791 = vadd.f32 %v3790, 1.0
      %v3792 = vrcp.pop %v3791
      %v3793 = vmul.f32 %v3792, 1.0614054
      %v3794 = vadd.f32 %v3793, -1.4531521
      %v3795 = vmul.f32 %v3794, %v3792
      %v3796 = vadd.f32 %v3795, 1.4214138
      %v3797 = vmul.f32 %v3796, %v3792
      %v3798 = vadd.f32 %v3797, -0.28449672
      %v3799 = vmul.f32 %v3798, %v3792
      %v3800 = vadd.f32 %v3799, 0.2548296
      %v3801 = vmul.f32 %v3800, %v3792
      %v3802 = vsub.f32 0.0, %v3789
      %v3803 = vmul.f32 %v3802, %v3789
      %v3804 = vmul.f32 %v3803, 1.442695
      %v3805 = vpow.pop %v3804
      %v3806 = vmul.f32 %v3801, %v3805
      %v3807 = vsub.f32 1.0, %v3806
      %vm3808 = vcmp.ge.f32.partialorder %v3788, 0.0
      %v3809 = vsub.f32 0.0, %v3807
      %v3810 = vsel %vm3808, %v3807, %v3809
      %v3811 = vadd.f32 %v3810, 1.0
      %v3812 = vmul.f32 %v3787, %v3811
      %v3813 = vpack.c.bf16 %v3812, %v3812
      %s3814 = scalar_lea.vmem %s11, 64
      %v3815 = vld [vmem:[%s3814] sm:$0xf]
      %v3816 = vld [vmem:[%s3814 + $0x4] sm:$0xf]
      %v3817 = vld [vmem:[%s3814 + $0x8] sm:$0xf]
      %v3818 = vld [vmem:[%s3814 + $0xc] sm:$0xf]
      %v3819 = vld [vmem:[%s3814 + $0x10] sm:$0xf]
      %v3820 = vld [vmem:[%s3814 + $0x14] sm:$0xf]
      %v3821 = vld [vmem:[%s3814 + $0x18] sm:$0xf]
      %v3822 = vld [vmem:[%s3814 + $0x1c] sm:$0xf]
      %v3823 = vld [vmem:[%s3814 + $0x20] sm:$0xf]
      %v3824 = vld [vmem:[%s3814 + $0x24] sm:$0xf]
      %v3825 = vld [vmem:[%s3814 + $0x28] sm:$0xf]
      %v3826 = vld [vmem:[%s3814 + $0x2c] sm:$0xf]
      %v3827 = vld [vmem:[%s3814 + $0x30] sm:$0xf]
      %v3828 = vld [vmem:[%s3814 + $0x34] sm:$0xf]
      %v3829 = vld [vmem:[%s3814 + $0x38] sm:$0xf]
      %v3830 = vld [vmem:[%s3814 + $0x3c] sm:$0xf]
      %v3847 = vunpack.c.l.b16 %v3815
      %v3848 = vunpack.c.l.b16 %v3816
      %v3849 = vunpack.c.l.b16 %v3817
      %v3850 = vunpack.c.l.b16 %v3818
      %v3851 = vunpack.c.l.b16 %v3819
      %v3852 = vunpack.c.l.b16 %v3820
      %v3853 = vunpack.c.l.b16 %v3821
      %v3854 = vunpack.c.l.b16 %v3822
      %v3855 = vunpack.c.l.b16 %v3823
      %v3856 = vunpack.c.l.b16 %v3824
      %v3857 = vunpack.c.l.b16 %v3825
      %v3858 = vunpack.c.l.b16 %v3826
      %v3859 = vunpack.c.l.b16 %v3827
      %v3860 = vunpack.c.l.b16 %v3828
      %v3861 = vunpack.c.l.b16 %v3829
      %v3862 = vunpack.c.l.b16 %v3830
      %v3863 = vpack.c.b16 %v3848, %v3847
      %v3864 = vpack.c.b16 %v3850, %v3849
      %v3865 = vpack.c.b16 %v3852, %v3851
      %v3866 = vpack.c.b16 %v3854, %v3853
      %v3867 = vpack.c.b16 %v3856, %v3855
      %v3868 = vpack.c.b16 %v3858, %v3857
      %v3869 = vpack.c.b16 %v3860, %v3859
      %v3870 = vpack.c.b16 %v3862, %v3861
      %3879 = vmatprep.subr.bf16.mxu0 0
      %3880 = vmatpush1.bf16.msra.mxu0 %v3870
      %3881 = vmatprep.subr.bf16.mxu0 0
      %3882 = vmatpush1.bf16.msra.mxu0 %v3869
      %3883 = vmatprep.subr.bf16.mxu0 0
      %3884 = vmatpush1.bf16.msra.mxu0 %v3868
      %3885 = vmatprep.subr.bf16.mxu0 0
      %3886 = vmatpush1.bf16.msra.mxu0 %v3867
      %3887 = vmatprep.subr.bf16.mxu0 0
      %3888 = vmatpush1.bf16.msra.mxu0 %v3866
      %3889 = vmatprep.subr.bf16.mxu0 0
      %3890 = vmatpush1.bf16.msra.mxu0 %v3865
      %3891 = vmatprep.subr.bf16.mxu0 0
      %3892 = vmatpush1.bf16.msra.mxu0 %v3864
      %3893 = vmatprep.subr.bf16.mxu0 0
      %3894 = vmatpush1.bf16.msra.mxu0 %v3863
      %3895 = vmatprep.subr.bf16.mxu0 0
      %3896 = vmatpush2.bf16.msra.mxu0 0
      %3897 = vmatprep.subr.bf16.mxu0 0
      %3898 = vmatpush2.bf16.msra.mxu0 0
      %3899 = vmatprep.subr.bf16.mxu0 0
      %3900 = vmatpush2.bf16.msra.mxu0 0
      %3901 = vmatprep.subr.bf16.mxu0 0
      %3902 = vmatpush2.bf16.msra.mxu0 0
      %3903 = vmatprep.subr.bf16.mxu0 0
      %3904 = vmatpush2.bf16.msra.mxu0 0
      %3905 = vmatprep.subr.bf16.mxu0 0
      %3906 = vmatpush2.bf16.msra.mxu0 0
      %3907 = vmatprep.subr.bf16.mxu0 0
      %3908 = vmatpush2.bf16.msra.mxu0 0
      %3909 = vmatprep.subr.bf16.mxu0 0
      %3910 = vmatpush2.bf16.msra.mxu0 0
      %3911 = vmatprep.mubr.bf16.mxu0 0
      %3912 = vmatmul.mubr.bf16.gmra.mxu0 %v3813
      %v3913 = vpop.f32.mrf.mxu0
      %v3914 = vadd.f32 0.0, %v3913
      %v3915 = vpop.f32.mrf.mxu0
      %v3916 = vpop.f32.mrf.mxu0
      %v3917 = vpop.f32.mrf.mxu0
      %3918 = vdwg.mxu0
      %v3919 = vadd.f32 %v3694, %v3914
      %v3920 = vlaneseq
      %v3921 = vshrl.u32 %v3920, 7
      %v3922 = vsub.s32 3, %v3921
      %v3923 = vrot.slane %v2297, %v3922
      %v3924 = vadd.f32 %v3919, %v3923
      %v3925 = vld [vmem:[%s3] sm:$0x1]
      %v3926 = vld [vmem:[%s3 + $0x1] sm:$0x1]
      %v3927 = vsel %vm672, %v3924, 0.0
      %3928 = vadd.xlane.f32.xlu0 %v3927
      %v3929 = vpop.xlane.xlu0 %3928
      %v3930 = vmul.f32 %v3929, %v549
      %v3931 = vsub.f32 %v3924, %v3930
      %v3932 = vmul.f32 %v3931, %v3931
      %v3933 = vsel %vm672, %v3932, 0.0
      %3934 = vadd.xlane.f32.xlu0 %v3933
      %v3935 = vpop.xlane.xlu0 %3934
      %v3936 = vmul.f32 %v3935, %v549
      %v3937 = vadd.f32 %v3936, 1e-05
      %v3938 = vrsqrt.pop %v3937
      %v3939 = vmul.f32 %v3931, %v3938
      %v3940 = vlaneseq
      %v3941 = vshrl.u32 %v3940, 7
      %v3942 = vsub.s32 0, %v3941
      %v3943 = vrot.slane %v3925, %v3942
      %v3944 = vmul.f32 %v3939, %v3943
      %v3945 = vlaneseq
      %v3946 = vshrl.u32 %v3945, 7
      %v3947 = vsub.s32 0, %v3946
      %v3948 = vrot.slane %v3926, %v3947
      %v3949 = vadd.f32 %v3944, %v3948
      %v3950 = vpack.c.bf16 %v3949, %v3949
      %v3952 = vsel %vm672, %v3950, 0
      %3954 = vmatprep.subr.bf16.mxu0 0
      %3955 = vmatpush1.bf16.msra.mxu0 0
      %3956 = vmatprep.subr.bf16.mxu0 0
      %3957 = vmatpush1.bf16.msra.mxu0 0
      %3958 = vmatprep.subr.bf16.mxu0 0
      %3959 = vmatpush1.bf16.msra.mxu0 0
      %3960 = vmatprep.subr.bf16.mxu0 0
      %3961 = vmatpush1.bf16.msra.mxu0 0
      %3962 = vmatprep.subr.bf16.mxu0 0
      %3963 = vmatpush1.bf16.msra.mxu0 0
      %3964 = vmatprep.subr.bf16.mxu0 0
      %3965 = vmatpush1.bf16.msra.mxu0 0
      %3966 = vmatprep.subr.bf16.mxu0 %v668
      %3967 = vmatpush1.bf16.msra.mxu0 %v667
      %3968 = vmatprep.subr.bf16.mxu0 %v666
      %3969 = vmatpush1.bf16.msra.mxu0 %v665
      %3970 = vmatprep.subr.bf16.mxu0 0
      %3971 = vmatpush2.bf16.msra.mxu0 0
      %3972 = vmatprep.subr.bf16.mxu0 0
      %3973 = vmatpush2.bf16.msra.mxu0 0
      %3974 = vmatprep.subr.bf16.mxu0 0
      %3975 = vmatpush2.bf16.msra.mxu0 0
      %3976 = vmatprep.subr.bf16.mxu0 0
      %3977 = vmatpush2.bf16.msra.mxu0 0
      %3978 = vmatprep.subr.bf16.mxu0 0
      %3979 = vmatpush2.bf16.msra.mxu0 0
      %3980 = vmatprep.subr.bf16.mxu0 0
      %3981 = vmatpush2.bf16.msra.mxu0 0
      %3982 = vmatprep.subr.bf16.mxu0 0
      %3983 = vmatpush2.bf16.msra.mxu0 0
      %3984 = vmatprep.subr.bf16.mxu0 0
      %3985 = vmatpush2.bf16.msra.mxu0 0
      %3986 = vmatprep.mubr.bf16.mxu0 0
      %3987 = vmatmul.mubr.bf16.gmra.mxu0 %v3952
      %v3988 = vpop.f32.mrf.mxu0
      %v3989 = vadd.f32 0.0, %v3988
      %v3990 = vpop.f32.mrf.mxu0
      %v3991 = vadd.f32 0.0, %v3990
      %v3992 = vpop.f32.mrf.mxu0
      %v3993 = vpop.f32.mrf.mxu0
      %3994 = vdwg.mxu0
      %3995 = vst [vmem:[%s521] sm:$0xff] %v3989
      %3996 = vst [vmem:[%s521 + $0x8] sm:$0xff] %v3991
      %p3997 = scmp.lt.s32.totalorder %s27, 1
      %s3998 = scalar_select %p3997, %s27, 1
      %s3999 = smul.addr %s3998, 2
      %s4000 = smul.addr %s3999, 8
      %s4001 = scalar_lea.vmem %s16, %s4000
      // Predicated region
      $region85: #{transformer_learner_forward.1} parent=83 // pred_check
        %p4002 = pneg %p386
      $region86: #{transformer_learner_forward.1} parent=83 // pred_check_branch
        %4004 = sbr.rel (%p4002) target = $region88
      $region87: #{transformer_learner_forward.1} parent=83 // pred_region
        _
      $region88: #{transformer_learner_forward.1} parent=83 // pred_fallthru
        _
    $region84: #{transformer_learner_forward.1} parent=5 // pred_fallthru
      _
    %p4005 = scmp.le.s32.totalorder 2, %s22
    // Predicated region
    $region89: #{transformer_learner_forward.1} parent=5 // pred_check
      %p4006 = pneg %p4005
    $region90: #{transformer_learner_forward.1} parent=5 // pred_check_branch
      %4008 = sbr.rel (%p4006) target = $region92
    $region91: #{transformer_learner_forward.1} parent=5 // pred_region
      %s4009 = ssub.s32 %s22, 2
      // Predicated region
      $region93: #{transformer_learner_forward.1} parent=91 // pred_check
        %p4010 = pneg %p392
      $region94: #{transformer_learner_forward.1} parent=91 // pred_check_branch
        %4012 = sbr.rel (%p4010) target = $region96
      $region95: #{transformer_learner_forward.1} parent=91 // pred_region
        %p4013 = scmp.lt.s32.totalorder %s28, 1
        %s4014 = scalar_select %p4013, %s28, 1
        %s4015 = smul.addr %s4014, 2
        %s4016 = smul.addr %s4015, 8
        %s4017 = scalar_lea.vmem %s16, %s4016
      $region96: #{transformer_learner_forward.1} parent=91 // pred_fallthru
        _
    $region92: #{transformer_learner_forward.1} parent=5 // pred_fallthru
      _
  $region6: #{transformer_learner_forward.1} parent=0 // loop_footer
    %s26 = sadd.s32 1, %s22
  $region7: #{transformer_learner_forward.1} parent=0 // loop_footer_branch
    %21 = sbr.rel target = $region3
  $region8: #{transformer_learner_forward.1} parent=0 // loop_exit
    _

</llo_original>
